<compile_context>
chip_gen: v7x
topology: tpu7x:2x2x1
jax: 0.10.0
libtpu: 0.0.40
codegen_flags: <defaults>
</compile_context>

<pallas_src>
import numpy as np

import jax
import jax.numpy as jnp
from jax.experimental import pallas as pl
from jax.experimental.pallas import tpu as pltpu


# (cin, cout, kernel_size, stride, padding) for involution1..3
CONFIGS = (
    (1, 4, (2, 2, 2), (2, 2, 2), (0, 0, 0)),
    (4, 8, (2, 2, 2), (2, 2, 2), (0, 0, 0)),
    (8, 16, (3, 3, 3), (1, 1, 1), (1, 1, 1)),
)


def _out_shape(shape, ks, st, pd):
    return tuple((s + 2 * p - k) // t + 1 for s, k, t, p in zip(shape, ks, st, pd))


def _tree_sum(terms):
    terms = list(terms)
    while len(terms) > 1:
        nxt = [terms[i] + terms[i + 1] for i in range(0, len(terms) - 1, 2)]
        if len(terms) % 2:
            nxt.append(terms[-1])
        terms = nxt
    return terms[0]


# ---------------------------------------------------------------------------
# Layer-3 unfold as a 0/1 gather matrix (trace-time constant, bf16-exact).
# ---------------------------------------------------------------------------
def _build_unfold_gather(batch, in_shape, ks, st, pd):
    """G (K, M, N): unfold(act)[c, k, n] = (act @ G[k])[c, n]; padded taps are zero."""
    din, hin, win = in_shape
    kd, kh, kw = ks
    sd, sh, sw = st
    pdd, pdh, pdw = pd
    do_, ho_, wo_ = _out_shape(in_shape, ks, st, pd)
    k_total = kd * kh * kw
    m_total = batch * din * hin * win
    n_total = batch * do_ * ho_ * wo_
    g = np.zeros((k_total, m_total, n_total), np.float32)
    for b in range(batch):
        for do in range(do_):
            for ho in range(ho_):
                for wo in range(wo_):
                    n = ((b * do_ + do) * ho_ + ho) * wo_ + wo
                    for i in range(kd):
                        di = do * sd + i - pdd
                        if not (0 <= di < din):
                            continue
                        for j in range(kh):
                            hi = ho * sh + j - pdh
                            if not (0 <= hi < hin):
                                continue
                            for k in range(kw):
                                wi = wo * sw + k - pdw
                                if not (0 <= wi < win):
                                    continue
                                kk = (i * kh + j) * kw + k
                                m = ((b * din + di) * hin + hi) * win + wi
                                g[kk, m, n] = 1.0
    return g


# ---------------------------------------------------------------------------
# Packed small-weight slab (one DMA instead of ~12 descriptors)
# ---------------------------------------------------------------------------
def _slab_entries(n_classes):
    entries = []
    for li, (cin, cout, ks, _, _) in enumerate(CONFIGS, start=1):
        K = ks[0] * ks[1] * ks[2]
        entries += [(f"ws{li}", (K, cout)),
                    (f"wi{li}", (cout, cin)),
                    (f"wr{li}", (cout, cin))]
    entries.append(("bfc", (n_classes, 1)))
    return entries


def _slab_layout(n_classes):
    layout, col, rows = {}, 0, 0
    for name, (r, c) in _slab_entries(n_classes):
        layout[name] = (0, r, col, col + c)
        col += c
        rows = max(rows, r)
    rows = -(-rows // 8) * 8
    cols = -(-col // 128) * 128
    return layout, (rows, cols)


def _pack_slab(wdict, layout, shape):
    slab = np.zeros(shape, np.float32)
    for name, (r0, r1, c0, c1) in layout.items():
        slab[r0:r1, c0:c1] = np.asarray(wdict[name], np.float32)
    return jnp.asarray(slab)


# ---------------------------------------------------------------------------
# The single fused Pallas kernel (whole network forward pass)
# ---------------------------------------------------------------------------
def _make_kernel(layout, *, B, K2, N2, K3, N3, S3):
    f32 = jnp.float32

    def kernel(x1u_ref, wslab_ref, wfc_ref, g3_ref, out_ref):
        w = wslab_ref[...]

        def ld(name):
            r0, r1, c0, c1 = layout[name]
            return w[r0:r1, c0:c1]

        # ---------------- involution1: Cin=1, kernel=stride=(2,2,2), pad=0 ----
        x1u = x1u_ref[...]                                        # (K1, N1)
        x1p = jnp.mean(x1u, axis=0, keepdims=True)                # AvgPool(k=stride) == tap mean
        red1 = jnp.maximum(ld("wr1") * x1p, 0.0)                  # (C1, N1) folded BN + ReLU
        ker1 = jnp.dot(ld("ws1"), red1, preferred_element_type=f32)   # (K1, N1)
        t1 = jnp.sum(ker1 * x1u, axis=0, keepdims=True)           # (1, N1)
        a1 = ld("wi1") * t1                                       # (C1, N1)  (Cin=1 outer product)

        # ---------------- involution2: kernel=stride=(2,2,2), pad=0 -----------
        # Column ordering of a1 (chosen at trace time) makes the unfold a set of
        # static 32-lane slices; AvgPool(k=stride) is their mean.
        taps2 = [a1[:, k * N2:(k + 1) * N2] for k in range(K2)]   # K2 x (C1, N2)
        x2p = _tree_sum(taps2) * (1.0 / K2)                       # (C1, N2)
        red2 = jnp.maximum(jnp.dot(ld("wr2"), x2p, preferred_element_type=f32), 0.0)
        ker2 = jnp.dot(ld("ws2"), red2, preferred_element_type=f32)   # (K2, N2)
        t2 = _tree_sum([ker2[k:k + 1, :] * taps2[k] for k in range(K2)])  # (C1, N2)
        a2 = jnp.dot(ld("wi2"), t2, preferred_element_type=f32)   # (C2, N2)

        # ---------------- involution3: kernel=(3,3,3), stride=1, pad=1 --------
        # AvgPool3d(kernel=stride=1) is the identity.
        red3 = jnp.maximum(jnp.dot(ld("wr3"), a2, preferred_element_type=f32), 0.0)
        ker3 = jnp.dot(ld("ws3"), red3, preferred_element_type=f32)   # (K3, N3)
        # Unfold = ONE wide bf16 matmul against the lane-concatenated 0/1 gather.
        u3 = jnp.dot(a2.astype(jnp.bfloat16), g3_ref[...],
                     preferred_element_type=f32)                  # (C2, K3*N3)
        t3 = _tree_sum([ker3[k:k + 1, :] * u3[:, k * N3:(k + 1) * N3]
                        for k in range(K3)])                      # (C2, N3)
        a3 = jnp.dot(ld("wi3"), t3, preferred_element_type=f32)   # (C3, N3)

        # ---------------- Flatten + Linear head (fused) -----------------------
        wfc = wfc_ref[...]                                        # (C3, n_cls, S3)
        cols = []
        for b in range(B):                                        # B static, tiny
            a3_b = a3[:, b * S3:(b + 1) * S3]                     # (C3, S3)
            m = jnp.sum(wfc * a3_b[:, None, :], axis=0)           # (n_cls, S3)
            cols.append(jnp.sum(m, axis=1, keepdims=True))        # (n_cls, 1)
        out_ref[...] = jnp.concatenate(cols, axis=1) + ld("bfc")  # (n_cls, B)

    return kernel


# ---------------------------------------------------------------------------
# Parameters
# ---------------------------------------------------------------------------
def _kaiming_normal(key, shape, fan_in):
    return jax.random.normal(key, shape, jnp.float32) * float(np.sqrt(2.0 / fan_in))


def _init_involution(key, cin, cout, K):
    cr = cout  # reduce_ratio = 1
    k1, k2, k3 = jax.random.split(key, 3)
    w_init = _kaiming_normal(k1, (cout, cin), cin)   # initial_mapping 1x1x1 conv
    w_red = _kaiming_normal(k2, (cr, cin), cin)      # reduce_mapping  1x1x1 conv
    w_span = _kaiming_normal(k3, (K, cr), cr)        # span_mapping    1x1x1 conv
    eps = 1e-5
    bn_scale = float(1.0 / np.sqrt(1.0 + eps))       # gamma / sqrt(running_var + eps)
    return {
        "w_init": w_init,
        "w_red": w_red * bn_scale,                   # eval-mode BN scale folded in
        "b_red": jnp.zeros((cr, 1), jnp.float32),    # beta - mean*scale == 0
        "w_span": w_span,
    }


def init_params(key, input_channels, patch_size, n_classes):
    keys = jax.random.split(key, len(CONFIGS) + 1)
    inv = []
    for (cin, cout, ks, st, pd), k in zip(CONFIGS, keys[:-1]):
        inv.append(_init_involution(k, cin, cout, ks[0] * ks[1] * ks[2]))
    # mirrors _get_final_flattened_size
    d = (input_channels, patch_size, patch_size)
    for (_, _, ks, st, pd) in CONFIGS:
        d = _out_shape(d, ks, st, pd)
    C3 = CONFIGS[-1][1]
    S3 = d[0] * d[1] * d[2]
    features_size = C3 * S3
    w_fc = _kaiming_normal(keys[-1], (features_size, n_classes), features_size)
    b_fc = jnp.zeros((n_classes, 1), jnp.float32)

    # -------- kernel-ready forms, computed ONCE here (not per forward call) ----
    layout, slab_shape = _slab_layout(n_classes)
    wdict = {"bfc": np.asarray(b_fc)}
    for li, p in enumerate(inv, start=1):
        wdict[f"wi{li}"] = np.asarray(p["w_init"])
        wdict[f"wr{li}"] = np.asarray(p["w_red"])
        wdict[f"ws{li}"] = np.asarray(p["w_span"])
    wslab = _pack_slab(wdict, layout, slab_shape)
    # wfc3[c, cls, s] = w_fc[c*S3 + s, cls]
    wfc3 = jnp.transpose(w_fc.reshape(C3, S3, n_classes), (0, 2, 1))

    return {"inv": inv, "w_fc": w_fc, "b_fc": b_fc, "wslab": wslab, "wfc3": wfc3}


# ---------------------------------------------------------------------------
# Forward pass: one fused, grid-less pallas_call
# ---------------------------------------------------------------------------
@jax.jit
def i3d_forward(params, x):
    """x: (B, 1, input_channels, patch_size, patch_size) NCDHW -> (B, n_classes)."""
    B = x.shape[0]
    D0, H0, W0 = x.shape[2:]
    ((c1_in, C1, ks1, st1, pd1),
     (c2_in, C2, ks2, st2, pd2),
     (c3_in, C3, ks3, st3, pd3)) = CONFIGS
    # Structural facts exploited by the fused kernel.
    assert c1_in == 1 and ks1 == st1 == (2, 2, 2) and pd1 == (0, 0, 0)
    assert ks2 == st2 == (2, 2, 2) and pd2 == (0, 0, 0)
    assert st3 == (1, 1, 1)
    assert D0 % 4 == 0 and H0 % 4 == 0 and W0 % 4 == 0

    d1 = _out_shape((D0, H0, W0), ks1, st1, pd1)
    d2 = _out_shape(d1, ks2, st2, pd2)
    d3 = _out_shape(d2, ks3, st3, pd3)
    K1 = ks1[0] * ks1[1] * ks1[2]
    K2 = ks2[0] * ks2[1] * ks2[2]
    K3 = ks3[0] * ks3[1] * ks3[2]
    S3 = d3[0] * d3[1] * d3[2]
    N2 = B * d2[0] * d2[1] * d2[2]
    N3 = B * S3
    N1 = K2 * N2
    n_classes = params["wfc3"].shape[1]
    layout, _ = _slab_layout(n_classes)

    # ---- layer-1 unfold + layer-2-friendly column ordering (pure reindexing) ----
    # Column n1 = kk2*N2 + n2 so the layer-2 unfold is static 32-lane slices.
    xr = x[:, 0].reshape(B, d2[0], 2, 2, d2[1], 2, 2, d2[2], 2, 2)
    # axes: (b, do2, i2, i1, ho2, j2, j1, wo2, k2, k1)
    x1u = xr.transpose(3, 6, 9, 2, 5, 8, 0, 1, 4, 7).reshape(K1, N1)

    # ---- layer-3 unfold gather, lane-concatenated (trace-time constant, bf16-exact) ----
    g3 = _build_unfold_gather(B, d2, ks3, st3, pd3)                 # (K3, N2, N3)
    g3c = jnp.asarray(np.transpose(g3, (1, 0, 2)).reshape(N2, K3 * N3), jnp.bfloat16)

    kernel = _make_kernel(layout, B=B, K2=K2, N2=N2, K3=K3, N3=N3, S3=S3)

    cost = pl.CostEstimate(
        flops=int(2 * (K1 * C1 * N1 + C2 * N2 * K3 * N3 + K3 * C3 * N3
                       + C3 * C2 * N3 + C3 * n_classes * S3 * B) + 12 * N1),
        transcendentals=0,
        bytes_accessed=int(4 * (x1u.size + params["wslab"].size + params["wfc3"].size
                                + n_classes * B) + 2 * g3c.size),
    )

    vmem = pl.BlockSpec(memory_space=pltpu.MemorySpace.VMEM)
    logits_t = pl.pallas_call(
        kernel,
        out_shape=jax.ShapeDtypeStruct((n_classes, B), jnp.float32),
        in_specs=[vmem, vmem, vmem, vmem],
        out_specs=vmem,
        cost_estimate=cost,
    )(x1u, params["wslab"], params["wfc3"], g3c)
    return logits_t.T                                               # (B, n_classes)


# ---------------------------------------------------------------------------
# Pure-JAX reference (same eval-mode-BN parameterization) for a numeric check
# ---------------------------------------------------------------------------
def _involution3d_ref(x, p, ks, st, pd):
    B, Cin, D, H, W = x.shape
    kd, kh, kw = ks
    sd, sh, sw = st
    pdd, pdh, pdw = pd
    Do = (D + 2 * pdd - kd) // sd + 1
    Ho = (H + 2 * pdh - kh) // sh + 1
    Wo = (W + 2 * pdw - kw) // sw + 1
    xp = jnp.pad(x, ((0, 0), (0, 0), (pdd, pdd), (pdh, pdh), (pdw, pdw)))
    patches = []
    for i in range(kd):
        for j in range(kh):
            for k in range(kw):
                patches.append(xp[:, :,
                                  i:i + Do * sd:sd,
                                  j:j + Ho * sh:sh,
                                  k:k + Wo * sw:sw])
    x_unf = jnp.stack(patches, axis=2)                        # (B, Cin, K, Do, Ho, Wo)
    xs = x[:, :, :Do * sd, :Ho * sh, :Wo * sw]
    pool = xs.reshape(B, Cin, Do, sd, Ho, sh, Wo, sw).mean(axis=(3, 5, 7))
    red = jnp.einsum("rc,bcdhw->brdhw", p["w_red"], pool) + p["b_red"].reshape(1, -1, 1, 1, 1)
    red = jnp.maximum(red, 0.0)
    ker = jnp.einsum("kr,brdhw->bkdhw", p["w_span"], red)     # (B, K, Do, Ho, Wo)
    t = jnp.einsum("bkdhw,bckdhw->bcdhw", ker, x_unf)
    return jnp.einsum("oc,bcdhw->bodhw", p["w_init"], t)


def i3d_forward_ref(params, x):
    for (cin, cout, ks, st, pd), p in zip(CONFIGS, params["inv"]):
        x = _involution3d_ref(x, p, ks, st, pd)
    x = x.reshape(x.shape[0], -1)
    return x @ params["w_fc"] + params["b_fc"].reshape(1, -1)


# ---------------------------------------------------------------------------
if __name__ == "__main__":
    key = jax.random.PRNGKey(0)
    kparams, kx = jax.random.split(key)

    batch = 2
    input_channels = 16   # spectral bands (depth D)
    patch_size = 8
    n_classes = 10

    params = init_params(kparams, input_channels, patch_size, n_classes)
    x = jax.random.normal(kx, (batch, 1, input_channels, patch_size, patch_size),
                          jnp.float32)

    logits = i3d_forward(params, x)
    jax.block_until_ready(logits)
    assert logits.shape == (batch, n_classes), logits.shape
    assert bool(jnp.all(jnp.isfinite(logits)))

    # Numeric check vs. a pure-JAX reference; tolerance absorbs TPU matmul precision,
    # fp reassociation and the single bf16 cast on the layer-3 gather matmul input.
    ref = jax.jit(i3d_forward_ref)(params, x)
    jax.block_until_ready(ref)
    nerr = float(jnp.max(jnp.abs(logits - ref)) / (jnp.max(jnp.abs(ref)) + 1e-6))
    assert nerr < 5e-2, f"mismatch vs reference: normalized max err {nerr}"

    print("KERNEL_OK")
</pallas_src>

<mosaic_0001>
module attributes {stable_mosaic.version = 11 : i64} {
  func.func @kernel(%arg0: memref<8x256xf32, #tpu.memory_space<vmem>>, %arg1: memref<32x128xf32, #tpu.memory_space<vmem>>, %arg2: memref<16x10x16xf32, #tpu.memory_space<vmem>>, %arg3: memref<32x864xbf16, #tpu.memory_space<vmem>>, %arg4: memref<10x2xf32, #tpu.memory_space<vmem>>) attributes {dimension_semantics = [], scalar_prefetch = 0 : i64, scratch_operands = 0 : i64, tpu.core_type = #tpu.core_type<tc>} {
    %c0 = arith.constant 0 : index
    %c0_0 = arith.constant 0 : index
    %0 = vector.load %arg1[%c0, %c0_0] : memref<32x128xf32, #tpu.memory_space<vmem>>, vector<32x128xf32>
    %c0_1 = arith.constant 0 : index
    %c0_2 = arith.constant 0 : index
    %1 = vector.load %arg0[%c0_1, %c0_2] : memref<8x256xf32, #tpu.memory_space<vmem>>, vector<8x256xf32>
    %cst = arith.constant dense<0.000000e+00> : vector<256xf32>
    %2 = vector.multi_reduction <add>, %1, %cst [0] : vector<8x256xf32> to vector<256xf32>
    %3 = vector.shape_cast %2 : vector<256xf32> to vector<1x256xf32>
    %cst_3 = arith.constant 8.000000e+00 : f32
    %4 = vector.broadcast %cst_3 : f32 to vector<1x256xf32>
    %5 = arith.divf %3, %4 : vector<1x256xf32>
    %6 = vector.extract_strided_slice %0 {offsets = [0, 5], sizes = [4, 1], strides = [1, 1]} : vector<32x128xf32> to vector<4x1xf32>
    %7 = vector.broadcast %6 : vector<4x1xf32> to vector<4x256xf32>
    %8 = vector.broadcast %5 : vector<1x256xf32> to vector<4x256xf32>
    %9 = arith.mulf %7, %8 : vector<4x256xf32>
    %cst_4 = arith.constant 0.000000e+00 : f32
    %10 = vector.broadcast %cst_4 : f32 to vector<4x256xf32>
    %11 = arith.maximumf %9, %10 : vector<4x256xf32>
    %12 = vector.extract_strided_slice %0 {offsets = [0, 0], sizes = [8, 4], strides = [1, 1]} : vector<32x128xf32> to vector<8x4xf32>
    %cst_5 = arith.constant dense<0.000000e+00> : vector<8x256xf32>
    %13 = tpu.matmul %12, %11, %cst_5 {dimension_numbers = #tpu.dot_dimension_numbers<[1], [0], [0], [1], [0, 0, 1, 1], [], []>} : vector<8x4xf32>, vector<4x256xf32>, vector<8x256xf32> -> vector<8x256xf32>
    %14 = arith.mulf %13, %1 : vector<8x256xf32>
    %cst_6 = arith.constant dense<0.000000e+00> : vector<256xf32>
    %15 = vector.multi_reduction <add>, %14, %cst_6 [0] : vector<8x256xf32> to vector<256xf32>
    %16 = vector.shape_cast %15 : vector<256xf32> to vector<1x256xf32>
    %17 = vector.extract_strided_slice %0 {offsets = [0, 4], sizes = [4, 1], strides = [1, 1]} : vector<32x128xf32> to vector<4x1xf32>
    %18 = vector.broadcast %17 : vector<4x1xf32> to vector<4x256xf32>
    %19 = vector.broadcast %16 : vector<1x256xf32> to vector<4x256xf32>
    %20 = arith.mulf %18, %19 : vector<4x256xf32>
    %21 = vector.extract_strided_slice %20 {offsets = [0, 0], sizes = [4, 32], strides = [1, 1]} : vector<4x256xf32> to vector<4x32xf32>
    %22 = vector.extract_strided_slice %20 {offsets = [0, 32], sizes = [4, 32], strides = [1, 1]} : vector<4x256xf32> to vector<4x32xf32>
    %23 = vector.extract_strided_slice %20 {offsets = [0, 64], sizes = [4, 32], strides = [1, 1]} : vector<4x256xf32> to vector<4x32xf32>
    %24 = vector.extract_strided_slice %20 {offsets = [0, 96], sizes = [4, 32], strides = [1, 1]} : vector<4x256xf32> to vector<4x32xf32>
    %25 = vector.extract_strided_slice %20 {offsets = [0, 128], sizes = [4, 32], strides = [1, 1]} : vector<4x256xf32> to vector<4x32xf32>
    %26 = vector.extract_strided_slice %20 {offsets = [0, 160], sizes = [4, 32], strides = [1, 1]} : vector<4x256xf32> to vector<4x32xf32>
    %27 = vector.extract_strided_slice %20 {offsets = [0, 192], sizes = [4, 32], strides = [1, 1]} : vector<4x256xf32> to vector<4x32xf32>
    %28 = vector.extract_strided_slice %20 {offsets = [0, 224], sizes = [4, 32], strides = [1, 1]} : vector<4x256xf32> to vector<4x32xf32>
    %29 = arith.addf %21, %22 : vector<4x32xf32>
    %30 = arith.addf %23, %24 : vector<4x32xf32>
    %31 = arith.addf %25, %26 : vector<4x32xf32>
    %32 = arith.addf %27, %28 : vector<4x32xf32>
    %33 = arith.addf %29, %30 : vector<4x32xf32>
    %34 = arith.addf %31, %32 : vector<4x32xf32>
    %35 = arith.addf %33, %34 : vector<4x32xf32>
    %cst_7 = arith.constant 1.250000e-01 : f32
    %36 = vector.broadcast %cst_7 : f32 to vector<4x32xf32>
    %37 = arith.mulf %35, %36 : vector<4x32xf32>
    %38 = vector.extract_strided_slice %0 {offsets = [0, 18], sizes = [8, 4], strides = [1, 1]} : vector<32x128xf32> to vector<8x4xf32>
    %cst_8 = arith.constant dense<0.000000e+00> : vector<8x32xf32>
    %39 = tpu.matmul %38, %37, %cst_8 {dimension_numbers = #tpu.dot_dimension_numbers<[1], [0], [0], [1], [0, 0, 1, 1], [], []>} : vector<8x4xf32>, vector<4x32xf32>, vector<8x32xf32> -> vector<8x32xf32>
    %cst_9 = arith.constant 0.000000e+00 : f32
    %40 = vector.broadcast %cst_9 : f32 to vector<8x32xf32>
    %41 = arith.maximumf %39, %40 : vector<8x32xf32>
    %42 = vector.extract_strided_slice %0 {offsets = [0, 6], sizes = [8, 8], strides = [1, 1]} : vector<32x128xf32> to vector<8x8xf32>
    %cst_10 = arith.constant dense<0.000000e+00> : vector<8x32xf32>
    %43 = tpu.matmul %42, %41, %cst_10 {dimension_numbers = #tpu.dot_dimension_numbers<[1], [0], [0], [1], [0, 0, 1, 1], [], []>} : vector<8x8xf32>, vector<8x32xf32>, vector<8x32xf32> -> vector<8x32xf32>
    %44 = vector.extract_strided_slice %43 {offsets = [0, 0], sizes = [1, 32], strides = [1, 1]} : vector<8x32xf32> to vector<1x32xf32>
    %45 = vector.broadcast %44 : vector<1x32xf32> to vector<4x32xf32>
    %46 = arith.mulf %45, %21 : vector<4x32xf32>
    %47 = vector.extract_strided_slice %43 {offsets = [1, 0], sizes = [1, 32], strides = [1, 1]} : vector<8x32xf32> to vector<1x32xf32>
    %48 = vector.broadcast %47 : vector<1x32xf32> to vector<4x32xf32>
    %49 = arith.mulf %48, %22 : vector<4x32xf32>
    %50 = vector.extract_strided_slice %43 {offsets = [2, 0], sizes = [1, 32], strides = [1, 1]} : vector<8x32xf32> to vector<1x32xf32>
    %51 = vector.broadcast %50 : vector<1x32xf32> to vector<4x32xf32>
    %52 = arith.mulf %51, %23 : vector<4x32xf32>
    %53 = vector.extract_strided_slice %43 {offsets = [3, 0], sizes = [1, 32], strides = [1, 1]} : vector<8x32xf32> to vector<1x32xf32>
    %54 = vector.broadcast %53 : vector<1x32xf32> to vector<4x32xf32>
    %55 = arith.mulf %54, %24 : vector<4x32xf32>
    %56 = vector.extract_strided_slice %43 {offsets = [4, 0], sizes = [1, 32], strides = [1, 1]} : vector<8x32xf32> to vector<1x32xf32>
    %57 = vector.broadcast %56 : vector<1x32xf32> to vector<4x32xf32>
    %58 = arith.mulf %57, %25 : vector<4x32xf32>
    %59 = vector.extract_strided_slice %43 {offsets = [5, 0], sizes = [1, 32], strides = [1, 1]} : vector<8x32xf32> to vector<1x32xf32>
    %60 = vector.broadcast %59 : vector<1x32xf32> to vector<4x32xf32>
    %61 = arith.mulf %60, %26 : vector<4x32xf32>
    %62 = vector.extract_strided_slice %43 {offsets = [6, 0], sizes = [1, 32], strides = [1, 1]} : vector<8x32xf32> to vector<1x32xf32>
    %63 = vector.broadcast %62 : vector<1x32xf32> to vector<4x32xf32>
    %64 = arith.mulf %63, %27 : vector<4x32xf32>
    %65 = vector.extract_strided_slice %43 {offsets = [7, 0], sizes = [1, 32], strides = [1, 1]} : vector<8x32xf32> to vector<1x32xf32>
    %66 = vector.broadcast %65 : vector<1x32xf32> to vector<4x32xf32>
    %67 = arith.mulf %66, %28 : vector<4x32xf32>
    %68 = arith.addf %46, %49 : vector<4x32xf32>
    %69 = arith.addf %52, %55 : vector<4x32xf32>
    %70 = arith.addf %58, %61 : vector<4x32xf32>
    %71 = arith.addf %64, %67 : vector<4x32xf32>
    %72 = arith.addf %68, %69 : vector<4x32xf32>
    %73 = arith.addf %70, %71 : vector<4x32xf32>
    %74 = arith.addf %72, %73 : vector<4x32xf32>
    %75 = vector.extract_strided_slice %0 {offsets = [0, 14], sizes = [8, 4], strides = [1, 1]} : vector<32x128xf32> to vector<8x4xf32>
    %cst_11 = arith.constant dense<0.000000e+00> : vector<8x32xf32>
    %76 = tpu.matmul %75, %74, %cst_11 {dimension_numbers = #tpu.dot_dimension_numbers<[1], [0], [0], [1], [0, 0, 1, 1], [], []>} : vector<8x4xf32>, vector<4x32xf32>, vector<8x32xf32> -> vector<8x32xf32>
    %77 = vector.extract_strided_slice %0 {offsets = [0, 46], sizes = [16, 8], strides = [1, 1]} : vector<32x128xf32> to vector<16x8xf32>
    %cst_12 = arith.constant dense<0.000000e+00> : vector<16x32xf32>
    %78 = tpu.matmul %77, %76, %cst_12 {dimension_numbers = #tpu.dot_dimension_numbers<[1], [0], [0], [1], [0, 0, 1, 1], [], []>} : vector<16x8xf32>, vector<8x32xf32>, vector<16x32xf32> -> vector<16x32xf32>
    %cst_13 = arith.constant 0.000000e+00 : f32
    %79 = vector.broadcast %cst_13 : f32 to vector<16x32xf32>
    %80 = arith.maximumf %78, %79 : vector<16x32xf32>
    %81 = vector.extract_strided_slice %0 {offsets = [0, 22], sizes = [27, 16], strides = [1, 1]} : vector<32x128xf32> to vector<27x16xf32>
    %cst_14 = arith.constant dense<0.000000e+00> : vector<27x32xf32>
    %82 = tpu.matmul %81, %80, %cst_14 {dimension_numbers = #tpu.dot_dimension_numbers<[1], [0], [0], [1], [0, 0, 1, 1], [], []>} : vector<27x16xf32>, vector<16x32xf32>, vector<27x32xf32> -> vector<27x32xf32>
    %83 = arith.truncf %76 : vector<8x32xf32> to vector<8x32xbf16>
    %c0_15 = arith.constant 0 : index
    %c0_16 = arith.constant 0 : index
    %84 = vector.load %arg3[%c0_15, %c0_16] : memref<32x864xbf16, #tpu.memory_space<vmem>>, vector<32x864xbf16>
    %cst_17 = arith.constant dense<0.000000e+00> : vector<8x864xf32>
    %85 = tpu.matmul %83, %84, %cst_17 {dimension_numbers = #tpu.dot_dimension_numbers<[1], [0], [0], [1], [0, 0, 1, 1], [], []>} : vector<8x32xbf16>, vector<32x864xbf16>, vector<8x864xf32> -> vector<8x864xf32>
    %86 = vector.extract_strided_slice %82 {offsets = [0, 0], sizes = [1, 32], strides = [1, 1]} : vector<27x32xf32> to vector<1x32xf32>
    %87 = vector.extract_strided_slice %85 {offsets = [0, 0], sizes = [8, 32], strides = [1, 1]} : vector<8x864xf32> to vector<8x32xf32>
    %88 = vector.broadcast %86 : vector<1x32xf32> to vector<8x32xf32>
    %89 = arith.mulf %88, %87 : vector<8x32xf32>
    %90 = vector.extract_strided_slice %82 {offsets = [1, 0], sizes = [1, 32], strides = [1, 1]} : vector<27x32xf32> to vector<1x32xf32>
    %91 = vector.extract_strided_slice %85 {offsets = [0, 32], sizes = [8, 32], strides = [1, 1]} : vector<8x864xf32> to vector<8x32xf32>
    %92 = vector.broadcast %90 : vector<1x32xf32> to vector<8x32xf32>
    %93 = arith.mulf %92, %91 : vector<8x32xf32>
    %94 = vector.extract_strided_slice %82 {offsets = [2, 0], sizes = [1, 32], strides = [1, 1]} : vector<27x32xf32> to vector<1x32xf32>
    %95 = vector.extract_strided_slice %85 {offsets = [0, 64], sizes = [8, 32], strides = [1, 1]} : vector<8x864xf32> to vector<8x32xf32>
    %96 = vector.broadcast %94 : vector<1x32xf32> to vector<8x32xf32>
    %97 = arith.mulf %96, %95 : vector<8x32xf32>
    %98 = vector.extract_strided_slice %82 {offsets = [3, 0], sizes = [1, 32], strides = [1, 1]} : vector<27x32xf32> to vector<1x32xf32>
    %99 = vector.extract_strided_slice %85 {offsets = [0, 96], sizes = [8, 32], strides = [1, 1]} : vector<8x864xf32> to vector<8x32xf32>
    %100 = vector.broadcast %98 : vector<1x32xf32> to vector<8x32xf32>
    %101 = arith.mulf %100, %99 : vector<8x32xf32>
    %102 = vector.extract_strided_slice %82 {offsets = [4, 0], sizes = [1, 32], strides = [1, 1]} : vector<27x32xf32> to vector<1x32xf32>
    %103 = vector.extract_strided_slice %85 {offsets = [0, 128], sizes = [8, 32], strides = [1, 1]} : vector<8x864xf32> to vector<8x32xf32>
    %104 = vector.broadcast %102 : vector<1x32xf32> to vector<8x32xf32>
    %105 = arith.mulf %104, %103 : vector<8x32xf32>
    %106 = vector.extract_strided_slice %82 {offsets = [5, 0], sizes = [1, 32], strides = [1, 1]} : vector<27x32xf32> to vector<1x32xf32>
    %107 = vector.extract_strided_slice %85 {offsets = [0, 160], sizes = [8, 32], strides = [1, 1]} : vector<8x864xf32> to vector<8x32xf32>
    %108 = vector.broadcast %106 : vector<1x32xf32> to vector<8x32xf32>
    %109 = arith.mulf %108, %107 : vector<8x32xf32>
    %110 = vector.extract_strided_slice %82 {offsets = [6, 0], sizes = [1, 32], strides = [1, 1]} : vector<27x32xf32> to vector<1x32xf32>
    %111 = vector.extract_strided_slice %85 {offsets = [0, 192], sizes = [8, 32], strides = [1, 1]} : vector<8x864xf32> to vector<8x32xf32>
    %112 = vector.broadcast %110 : vector<1x32xf32> to vector<8x32xf32>
    %113 = arith.mulf %112, %111 : vector<8x32xf32>
    %114 = vector.extract_strided_slice %82 {offsets = [7, 0], sizes = [1, 32], strides = [1, 1]} : vector<27x32xf32> to vector<1x32xf32>
    %115 = vector.extract_strided_slice %85 {offsets = [0, 224], sizes = [8, 32], strides = [1, 1]} : vector<8x864xf32> to vector<8x32xf32>
    %116 = vector.broadcast %114 : vector<1x32xf32> to vector<8x32xf32>
    %117 = arith.mulf %116, %115 : vector<8x32xf32>
    %118 = vector.extract_strided_slice %82 {offsets = [8, 0], sizes = [1, 32], strides = [1, 1]} : vector<27x32xf32> to vector<1x32xf32>
    %119 = vector.extract_strided_slice %85 {offsets = [0, 256], sizes = [8, 32], strides = [1, 1]} : vector<8x864xf32> to vector<8x32xf32>
    %120 = vector.broadcast %118 : vector<1x32xf32> to vector<8x32xf32>
    %121 = arith.mulf %120, %119 : vector<8x32xf32>
    %122 = vector.extract_strided_slice %82 {offsets = [9, 0], sizes = [1, 32], strides = [1, 1]} : vector<27x32xf32> to vector<1x32xf32>
    %123 = vector.extract_strided_slice %85 {offsets = [0, 288], sizes = [8, 32], strides = [1, 1]} : vector<8x864xf32> to vector<8x32xf32>
    %124 = vector.broadcast %122 : vector<1x32xf32> to vector<8x32xf32>
    %125 = arith.mulf %124, %123 : vector<8x32xf32>
    %126 = vector.extract_strided_slice %82 {offsets = [10, 0], sizes = [1, 32], strides = [1, 1]} : vector<27x32xf32> to vector<1x32xf32>
    %127 = vector.extract_strided_slice %85 {offsets = [0, 320], sizes = [8, 32], strides = [1, 1]} : vector<8x864xf32> to vector<8x32xf32>
    %128 = vector.broadcast %126 : vector<1x32xf32> to vector<8x32xf32>
    %129 = arith.mulf %128, %127 : vector<8x32xf32>
    %130 = vector.extract_strided_slice %82 {offsets = [11, 0], sizes = [1, 32], strides = [1, 1]} : vector<27x32xf32> to vector<1x32xf32>
    %131 = vector.extract_strided_slice %85 {offsets = [0, 352], sizes = [8, 32], strides = [1, 1]} : vector<8x864xf32> to vector<8x32xf32>
    %132 = vector.broadcast %130 : vector<1x32xf32> to vector<8x32xf32>
    %133 = arith.mulf %132, %131 : vector<8x32xf32>
    %134 = vector.extract_strided_slice %82 {offsets = [12, 0], sizes = [1, 32], strides = [1, 1]} : vector<27x32xf32> to vector<1x32xf32>
    %135 = vector.extract_strided_slice %85 {offsets = [0, 384], sizes = [8, 32], strides = [1, 1]} : vector<8x864xf32> to vector<8x32xf32>
    %136 = vector.broadcast %134 : vector<1x32xf32> to vector<8x32xf32>
    %137 = arith.mulf %136, %135 : vector<8x32xf32>
    %138 = vector.extract_strided_slice %82 {offsets = [13, 0], sizes = [1, 32], strides = [1, 1]} : vector<27x32xf32> to vector<1x32xf32>
    %139 = vector.extract_strided_slice %85 {offsets = [0, 416], sizes = [8, 32], strides = [1, 1]} : vector<8x864xf32> to vector<8x32xf32>
    %140 = vector.broadcast %138 : vector<1x32xf32> to vector<8x32xf32>
    %141 = arith.mulf %140, %139 : vector<8x32xf32>
    %142 = vector.extract_strided_slice %82 {offsets = [14, 0], sizes = [1, 32], strides = [1, 1]} : vector<27x32xf32> to vector<1x32xf32>
    %143 = vector.extract_strided_slice %85 {offsets = [0, 448], sizes = [8, 32], strides = [1, 1]} : vector<8x864xf32> to vector<8x32xf32>
    %144 = vector.broadcast %142 : vector<1x32xf32> to vector<8x32xf32>
    %145 = arith.mulf %144, %143 : vector<8x32xf32>
    %146 = vector.extract_strided_slice %82 {offsets = [15, 0], sizes = [1, 32], strides = [1, 1]} : vector<27x32xf32> to vector<1x32xf32>
    %147 = vector.extract_strided_slice %85 {offsets = [0, 480], sizes = [8, 32], strides = [1, 1]} : vector<8x864xf32> to vector<8x32xf32>
    %148 = vector.broadcast %146 : vector<1x32xf32> to vector<8x32xf32>
    %149 = arith.mulf %148, %147 : vector<8x32xf32>
    %150 = vector.extract_strided_slice %82 {offsets = [16, 0], sizes = [1, 32], strides = [1, 1]} : vector<27x32xf32> to vector<1x32xf32>
    %151 = vector.extract_strided_slice %85 {offsets = [0, 512], sizes = [8, 32], strides = [1, 1]} : vector<8x864xf32> to vector<8x32xf32>
    %152 = vector.broadcast %150 : vector<1x32xf32> to vector<8x32xf32>
    %153 = arith.mulf %152, %151 : vector<8x32xf32>
    %154 = vector.extract_strided_slice %82 {offsets = [17, 0], sizes = [1, 32], strides = [1, 1]} : vector<27x32xf32> to vector<1x32xf32>
    %155 = vector.extract_strided_slice %85 {offsets = [0, 544], sizes = [8, 32], strides = [1, 1]} : vector<8x864xf32> to vector<8x32xf32>
    %156 = vector.broadcast %154 : vector<1x32xf32> to vector<8x32xf32>
    %157 = arith.mulf %156, %155 : vector<8x32xf32>
    %158 = vector.extract_strided_slice %82 {offsets = [18, 0], sizes = [1, 32], strides = [1, 1]} : vector<27x32xf32> to vector<1x32xf32>
    %159 = vector.extract_strided_slice %85 {offsets = [0, 576], sizes = [8, 32], strides = [1, 1]} : vector<8x864xf32> to vector<8x32xf32>
    %160 = vector.broadcast %158 : vector<1x32xf32> to vector<8x32xf32>
    %161 = arith.mulf %160, %159 : vector<8x32xf32>
    %162 = vector.extract_strided_slice %82 {offsets = [19, 0], sizes = [1, 32], strides = [1, 1]} : vector<27x32xf32> to vector<1x32xf32>
    %163 = vector.extract_strided_slice %85 {offsets = [0, 608], sizes = [8, 32], strides = [1, 1]} : vector<8x864xf32> to vector<8x32xf32>
    %164 = vector.broadcast %162 : vector<1x32xf32> to vector<8x32xf32>
    %165 = arith.mulf %164, %163 : vector<8x32xf32>
    %166 = vector.extract_strided_slice %82 {offsets = [20, 0], sizes = [1, 32], strides = [1, 1]} : vector<27x32xf32> to vector<1x32xf32>
    %167 = vector.extract_strided_slice %85 {offsets = [0, 640], sizes = [8, 32], strides = [1, 1]} : vector<8x864xf32> to vector<8x32xf32>
    %168 = vector.broadcast %166 : vector<1x32xf32> to vector<8x32xf32>
    %169 = arith.mulf %168, %167 : vector<8x32xf32>
    %170 = vector.extract_strided_slice %82 {offsets = [21, 0], sizes = [1, 32], strides = [1, 1]} : vector<27x32xf32> to vector<1x32xf32>
    %171 = vector.extract_strided_slice %85 {offsets = [0, 672], sizes = [8, 32], strides = [1, 1]} : vector<8x864xf32> to vector<8x32xf32>
    %172 = vector.broadcast %170 : vector<1x32xf32> to vector<8x32xf32>
    %173 = arith.mulf %172, %171 : vector<8x32xf32>
    %174 = vector.extract_strided_slice %82 {offsets = [22, 0], sizes = [1, 32], strides = [1, 1]} : vector<27x32xf32> to vector<1x32xf32>
    %175 = vector.extract_strided_slice %85 {offsets = [0, 704], sizes = [8, 32], strides = [1, 1]} : vector<8x864xf32> to vector<8x32xf32>
    %176 = vector.broadcast %174 : vector<1x32xf32> to vector<8x32xf32>
    %177 = arith.mulf %176, %175 : vector<8x32xf32>
    %178 = vector.extract_strided_slice %82 {offsets = [23, 0], sizes = [1, 32], strides = [1, 1]} : vector<27x32xf32> to vector<1x32xf32>
    %179 = vector.extract_strided_slice %85 {offsets = [0, 736], sizes = [8, 32], strides = [1, 1]} : vector<8x864xf32> to vector<8x32xf32>
    %180 = vector.broadcast %178 : vector<1x32xf32> to vector<8x32xf32>
    %181 = arith.mulf %180, %179 : vector<8x32xf32>
    %182 = vector.extract_strided_slice %82 {offsets = [24, 0], sizes = [1, 32], strides = [1, 1]} : vector<27x32xf32> to vector<1x32xf32>
    %183 = vector.extract_strided_slice %85 {offsets = [0, 768], sizes = [8, 32], strides = [1, 1]} : vector<8x864xf32> to vector<8x32xf32>
    %184 = vector.broadcast %182 : vector<1x32xf32> to vector<8x32xf32>
    %185 = arith.mulf %184, %183 : vector<8x32xf32>
    %186 = vector.extract_strided_slice %82 {offsets = [25, 0], sizes = [1, 32], strides = [1, 1]} : vector<27x32xf32> to vector<1x32xf32>
    %187 = vector.extract_strided_slice %85 {offsets = [0, 800], sizes = [8, 32], strides = [1, 1]} : vector<8x864xf32> to vector<8x32xf32>
    %188 = vector.broadcast %186 : vector<1x32xf32> to vector<8x32xf32>
    %189 = arith.mulf %188, %187 : vector<8x32xf32>
    %190 = vector.extract_strided_slice %82 {offsets = [26, 0], sizes = [1, 32], strides = [1, 1]} : vector<27x32xf32> to vector<1x32xf32>
    %191 = vector.extract_strided_slice %85 {offsets = [0, 832], sizes = [8, 32], strides = [1, 1]} : vector<8x864xf32> to vector<8x32xf32>
    %192 = vector.broadcast %190 : vector<1x32xf32> to vector<8x32xf32>
    %193 = arith.mulf %192, %191 : vector<8x32xf32>
    %194 = arith.addf %89, %93 : vector<8x32xf32>
    %195 = arith.addf %97, %101 : vector<8x32xf32>
    %196 = arith.addf %105, %109 : vector<8x32xf32>
    %197 = arith.addf %113, %117 : vector<8x32xf32>
    %198 = arith.addf %121, %125 : vector<8x32xf32>
    %199 = arith.addf %129, %133 : vector<8x32xf32>
    %200 = arith.addf %137, %141 : vector<8x32xf32>
    %201 = arith.addf %145, %149 : vector<8x32xf32>
    %202 = arith.addf %153, %157 : vector<8x32xf32>
    %203 = arith.addf %161, %165 : vector<8x32xf32>
    %204 = arith.addf %169, %173 : vector<8x32xf32>
    %205 = arith.addf %177, %181 : vector<8x32xf32>
    %206 = arith.addf %185, %189 : vector<8x32xf32>
    %207 = arith.addf %194, %195 : vector<8x32xf32>
    %208 = arith.addf %196, %197 : vector<8x32xf32>
    %209 = arith.addf %198, %199 : vector<8x32xf32>
    %210 = arith.addf %200, %201 : vector<8x32xf32>
    %211 = arith.addf %202, %203 : vector<8x32xf32>
    %212 = arith.addf %204, %205 : vector<8x32xf32>
    %213 = arith.addf %206, %193 : vector<8x32xf32>
    %214 = arith.addf %207, %208 : vector<8x32xf32>
    %215 = arith.addf %209, %210 : vector<8x32xf32>
    %216 = arith.addf %211, %212 : vector<8x32xf32>
    %217 = arith.addf %214, %215 : vector<8x32xf32>
    %218 = arith.addf %216, %213 : vector<8x32xf32>
    %219 = arith.addf %217, %218 : vector<8x32xf32>
    %220 = vector.extract_strided_slice %0 {offsets = [0, 38], sizes = [16, 8], strides = [1, 1]} : vector<32x128xf32> to vector<16x8xf32>
    %cst_18 = arith.constant dense<0.000000e+00> : vector<16x32xf32>
    %221 = tpu.matmul %220, %219, %cst_18 {dimension_numbers = #tpu.dot_dimension_numbers<[1], [0], [0], [1], [0, 0, 1, 1], [], []>} : vector<16x8xf32>, vector<8x32xf32>, vector<16x32xf32> -> vector<16x32xf32>
    %c0_19 = arith.constant 0 : index
    %c0_20 = arith.constant 0 : index
    %c0_21 = arith.constant 0 : index
    %222 = vector.load %arg2[%c0_19, %c0_20, %c0_21] : memref<16x10x16xf32, #tpu.memory_space<vmem>>, vector<16x10x16xf32>
    %223 = vector.extract_strided_slice %221 {offsets = [0, 0], sizes = [16, 16], strides = [1, 1]} : vector<16x32xf32> to vector<16x16xf32>
    %224 = vector.shape_cast %223 : vector<16x16xf32> to vector<16x1x16xf32>
    %225 = vector.broadcast %224 : vector<16x1x16xf32> to vector<16x10x16xf32>
    %226 = arith.mulf %222, %225 : vector<16x10x16xf32>
    %cst_22 = arith.constant dense<0.000000e+00> : vector<10x16xf32>
    %227 = vector.multi_reduction <add>, %226, %cst_22 [0] : vector<16x10x16xf32> to vector<10x16xf32>
    %cst_23 = arith.constant dense<0.000000e+00> : vector<10xf32>
    %228 = vector.multi_reduction <add>, %227, %cst_23 [1] : vector<10x16xf32> to vector<10xf32>
    %229 = vector.shape_cast %228 : vector<10xf32> to vector<10x1xf32>
    %230 = vector.extract_strided_slice %221 {offsets = [0, 16], sizes = [16, 16], strides = [1, 1]} : vector<16x32xf32> to vector<16x16xf32>
    %231 = vector.shape_cast %230 : vector<16x16xf32> to vector<16x1x16xf32>
    %232 = vector.broadcast %231 : vector<16x1x16xf32> to vector<16x10x16xf32>
    %233 = arith.mulf %222, %232 : vector<16x10x16xf32>
    %cst_24 = arith.constant dense<0.000000e+00> : vector<10x16xf32>
    %234 = vector.multi_reduction <add>, %233, %cst_24 [0] : vector<16x10x16xf32> to vector<10x16xf32>
    %cst_25 = arith.constant dense<0.000000e+00> : vector<10xf32>
    %235 = vector.multi_reduction <add>, %234, %cst_25 [1] : vector<10x16xf32> to vector<10xf32>
    %236 = vector.shape_cast %235 : vector<10xf32> to vector<10x1xf32>
    %237 = tpu.concatenate %229, %236 in 1 : vector<10x1xf32>, vector<10x1xf32> -> vector<10x2xf32>
    %238 = vector.extract_strided_slice %0 {offsets = [0, 54], sizes = [10, 1], strides = [1, 1]} : vector<32x128xf32> to vector<10x1xf32>
    %239 = vector.broadcast %238 : vector<10x1xf32> to vector<10x2xf32>
    %240 = arith.addf %237, %239 : vector<10x2xf32>
    %c0_26 = arith.constant 0 : index
    %c0_27 = arith.constant 0 : index
    %241 = vector.load %arg4[%c0_26, %c0_27] : memref<10x2xf32, #tpu.memory_space<vmem>>, vector<10x2xf32>
    tpu.vector_store %arg4[%c0_26, %c0_27], %240 {strides = array<i32>} : memref<10x2xf32, #tpu.memory_space<vmem>>, vector<10x2xf32>,
    return
  }
}

</mosaic_0001>

<llo_original>
// kernel: squeeze.1
$region0: #{squeeze.1}
  %s0 = inlined_call_operand.hbm [shape: f32[2,1,16,8,8], index: 0, kind: input, shape index: {}]
  %s1 = inlined_call_operand.vmem [shape: f32[2,4,2,2,2,2,2,2,2,2], index: 1, kind: output, shape index: {}]
  $region1: #{squeeze.1} parent=0
    #allocation0 [shape = 'u8[65536]{0}', space=vmem, size = 0x10000, scoped, tag = 'operand span for operand 0']
    #allocation1 [shape = 's32[1]{0}', space=sflag, size = 0x4, scoped, tag = 'scoped memory for squeeze.1']
    #allocation2 [shape = 'u8[2097152]{0}', space=vmem, size = 0x200000, scoped, tag = 'scoped mem for output reshape']
    %2 = vsyncpa [#allocation1], 0
    %s4 = ssub.s32 2048, 2048
    %5 = vsyncadd [#allocation1], %s4
    %s7 = sshll.u32 [#allocation0], 4
    %s8 = int_to_ptr.vmem [resolvable:$true] %s7
    %10 = dma.hbm_to_vmem [thread:$0]  %s0, 2048, %s8, [#allocation1]
    %11 = dma.done [#allocation1], 2048
    %v12 = vld [vmem:[#allocation0] sm:$0xff]
    %vm13 = vcmask 15360
    %14 = vst.msk [vmem:[#allocation2] sm:$0x1] %vm13, %v12
    %s15 = scalar_lea.vmem [#allocation2], 31
    %16 = vst.msk [vmem:[%s15] sm:$0x2] %vm13, %v12
    %s17 = scalar_lea.vmem [#allocation2], 62
    %18 = vst.msk [vmem:[%s17] sm:$0x4] %vm13, %v12
    %s19 = scalar_lea.vmem [#allocation2], 93
    %20 = vst.msk [vmem:[%s19] sm:$0x8] %vm13, %v12
    %s21 = scalar_lea.vmem [#allocation2], 124
    %22 = vst.msk [vmem:[%s21] sm:$0x10] %vm13, %v12
    %s23 = scalar_lea.vmem [#allocation2], 155
    %24 = vst.msk [vmem:[%s23] sm:$0x20] %vm13, %v12
    %s25 = scalar_lea.vmem [#allocation2], 186
    %26 = vst.msk [vmem:[%s25] sm:$0x40] %vm13, %v12
    %s27 = scalar_lea.vmem [#allocation2], 217
    %28 = vst.msk [vmem:[%s27] sm:$0x80] %vm13, %v12
    %s29 = scalar_lea.vmem [#allocation0], 8
    %v30 = vld [vmem:[%s29] sm:$0xff]
    %vm31 = vcmask 15360
    %s32 = scalar_lea.vmem [#allocation2], 256
    %33 = vst.msk [vmem:[%s32] sm:$0x1] %vm31, %v30
    %s34 = scalar_lea.vmem [#allocation2], 287
    %35 = vst.msk [vmem:[%s34] sm:$0x2] %vm31, %v30
    %s36 = scalar_lea.vmem [#allocation2], 318
    %37 = vst.msk [vmem:[%s36] sm:$0x4] %vm31, %v30
    %s38 = scalar_lea.vmem [#allocation2], 349
    %39 = vst.msk [vmem:[%s38] sm:$0x8] %vm31, %v30
    %s40 = scalar_lea.vmem [#allocation2], 380
    %41 = vst.msk [vmem:[%s40] sm:$0x10] %vm31, %v30
    %s42 = scalar_lea.vmem [#allocation2], 411
    %43 = vst.msk [vmem:[%s42] sm:$0x20] %vm31, %v30
    %s44 = scalar_lea.vmem [#allocation2], 442
    %45 = vst.msk [vmem:[%s44] sm:$0x40] %vm31, %v30
    %s46 = scalar_lea.vmem [#allocation2], 473
    %47 = vst.msk [vmem:[%s46] sm:$0x80] %vm31, %v30
    %s48 = scalar_lea.vmem [#allocation0], 16
    %v49 = vld [vmem:[%s48] sm:$0xff]
    %vm50 = vcmask 15360
    %s51 = scalar_lea.vmem [#allocation2], 512
    %52 = vst.msk [vmem:[%s51] sm:$0x1] %vm50, %v49
    %s53 = scalar_lea.vmem [#allocation2], 543
    %54 = vst.msk [vmem:[%s53] sm:$0x2] %vm50, %v49
    %s55 = scalar_lea.vmem [#allocation2], 574
    %56 = vst.msk [vmem:[%s55] sm:$0x4] %vm50, %v49
    %s57 = scalar_lea.vmem [#allocation2], 605
    %58 = vst.msk [vmem:[%s57] sm:$0x8] %vm50, %v49
    %s59 = scalar_lea.vmem [#allocation2], 636
    %60 = vst.msk [vmem:[%s59] sm:$0x10] %vm50, %v49
    %s61 = scalar_lea.vmem [#allocation2], 667
    %62 = vst.msk [vmem:[%s61] sm:$0x20] %vm50, %v49
    %s63 = scalar_lea.vmem [#allocation2], 698
    %64 = vst.msk [vmem:[%s63] sm:$0x40] %vm50, %v49
    %s65 = scalar_lea.vmem [#allocation2], 729
    %66 = vst.msk [vmem:[%s65] sm:$0x80] %vm50, %v49
    %s67 = scalar_lea.vmem [#allocation0], 24
    %v68 = vld [vmem:[%s67] sm:$0xff]
    %vm69 = vcmask 15360
    %s70 = scalar_lea.vmem [#allocation2], 768
    %71 = vst.msk [vmem:[%s70] sm:$0x1] %vm69, %v68
    %s72 = scalar_lea.vmem [#allocation2], 799
    %73 = vst.msk [vmem:[%s72] sm:$0x2] %vm69, %v68
    %s74 = scalar_lea.vmem [#allocation2], 830
    %75 = vst.msk [vmem:[%s74] sm:$0x4] %vm69, %v68
    %s76 = scalar_lea.vmem [#allocation2], 861
    %77 = vst.msk [vmem:[%s76] sm:$0x8] %vm69, %v68
    %s78 = scalar_lea.vmem [#allocation2], 892
    %79 = vst.msk [vmem:[%s78] sm:$0x10] %vm69, %v68
    %s80 = scalar_lea.vmem [#allocation2], 923
    %81 = vst.msk [vmem:[%s80] sm:$0x20] %vm69, %v68
    %s82 = scalar_lea.vmem [#allocation2], 954
    %83 = vst.msk [vmem:[%s82] sm:$0x40] %vm69, %v68
    %s84 = scalar_lea.vmem [#allocation2], 985
    %85 = vst.msk [vmem:[%s84] sm:$0x80] %vm69, %v68
    %s86 = scalar_lea.vmem [#allocation0], 32
    %v87 = vld [vmem:[%s86] sm:$0xff]
    %vm88 = vcmask 15360
    %s89 = scalar_lea.vmem [#allocation2], 1024
    %90 = vst.msk [vmem:[%s89] sm:$0x1] %vm88, %v87
    %s91 = scalar_lea.vmem [#allocation2], 1055
    %92 = vst.msk [vmem:[%s91] sm:$0x2] %vm88, %v87
    %s93 = scalar_lea.vmem [#allocation2], 1086
    %94 = vst.msk [vmem:[%s93] sm:$0x4] %vm88, %v87
    %s95 = scalar_lea.vmem [#allocation2], 1117
    %96 = vst.msk [vmem:[%s95] sm:$0x8] %vm88, %v87
    %s97 = scalar_lea.vmem [#allocation2], 1148
    %98 = vst.msk [vmem:[%s97] sm:$0x10] %vm88, %v87
    %s99 = scalar_lea.vmem [#allocation2], 1179
    %100 = vst.msk [vmem:[%s99] sm:$0x20] %vm88, %v87
    %s101 = scalar_lea.vmem [#allocation2], 1210
    %102 = vst.msk [vmem:[%s101] sm:$0x40] %vm88, %v87
    %s103 = scalar_lea.vmem [#allocation2], 1241
    %104 = vst.msk [vmem:[%s103] sm:$0x80] %vm88, %v87
    %s105 = scalar_lea.vmem [#allocation0], 40
    %v106 = vld [vmem:[%s105] sm:$0xff]
    %vm107 = vcmask 15360
    %s108 = scalar_lea.vmem [#allocation2], 1280
    %109 = vst.msk [vmem:[%s108] sm:$0x1] %vm107, %v106
    %s110 = scalar_lea.vmem [#allocation2], 1311
    %111 = vst.msk [vmem:[%s110] sm:$0x2] %vm107, %v106
    %s112 = scalar_lea.vmem [#allocation2], 1342
    %113 = vst.msk [vmem:[%s112] sm:$0x4] %vm107, %v106
    %s114 = scalar_lea.vmem [#allocation2], 1373
    %115 = vst.msk [vmem:[%s114] sm:$0x8] %vm107, %v106
    %s116 = scalar_lea.vmem [#allocation2], 1404
    %117 = vst.msk [vmem:[%s116] sm:$0x10] %vm107, %v106
    %s118 = scalar_lea.vmem [#allocation2], 1435
    %119 = vst.msk [vmem:[%s118] sm:$0x20] %vm107, %v106
    %s120 = scalar_lea.vmem [#allocation2], 1466
    %121 = vst.msk [vmem:[%s120] sm:$0x40] %vm107, %v106
    %s122 = scalar_lea.vmem [#allocation2], 1497
    %123 = vst.msk [vmem:[%s122] sm:$0x80] %vm107, %v106
    %s124 = scalar_lea.vmem [#allocation0], 48
    %v125 = vld [vmem:[%s124] sm:$0xff]
    %vm126 = vcmask 15360
    %s127 = scalar_lea.vmem [#allocation2], 1536
    %128 = vst.msk [vmem:[%s127] sm:$0x1] %vm126, %v125
    %s129 = scalar_lea.vmem [#allocation2], 1567
    %130 = vst.msk [vmem:[%s129] sm:$0x2] %vm126, %v125
    %s131 = scalar_lea.vmem [#allocation2], 1598
    %132 = vst.msk [vmem:[%s131] sm:$0x4] %vm126, %v125
    %s133 = scalar_lea.vmem [#allocation2], 1629
    %134 = vst.msk [vmem:[%s133] sm:$0x8] %vm126, %v125
    %s135 = scalar_lea.vmem [#allocation2], 1660
    %136 = vst.msk [vmem:[%s135] sm:$0x10] %vm126, %v125
    %s137 = scalar_lea.vmem [#allocation2], 1691
    %138 = vst.msk [vmem:[%s137] sm:$0x20] %vm126, %v125
    %s139 = scalar_lea.vmem [#allocation2], 1722
    %140 = vst.msk [vmem:[%s139] sm:$0x40] %vm126, %v125
    %s141 = scalar_lea.vmem [#allocation2], 1753
    %142 = vst.msk [vmem:[%s141] sm:$0x80] %vm126, %v125
    %s143 = scalar_lea.vmem [#allocation0], 56
    %v144 = vld [vmem:[%s143] sm:$0xff]
    %vm145 = vcmask 15360
    %s146 = scalar_lea.vmem [#allocation2], 1792
    %147 = vst.msk [vmem:[%s146] sm:$0x1] %vm145, %v144
    %s148 = scalar_lea.vmem [#allocation2], 1823
    %149 = vst.msk [vmem:[%s148] sm:$0x2] %vm145, %v144
    %s150 = scalar_lea.vmem [#allocation2], 1854
    %151 = vst.msk [vmem:[%s150] sm:$0x4] %vm145, %v144
    %s152 = scalar_lea.vmem [#allocation2], 1885
    %153 = vst.msk [vmem:[%s152] sm:$0x8] %vm145, %v144
    %s154 = scalar_lea.vmem [#allocation2], 1916
    %155 = vst.msk [vmem:[%s154] sm:$0x10] %vm145, %v144
    %s156 = scalar_lea.vmem [#allocation2], 1947
    %157 = vst.msk [vmem:[%s156] sm:$0x20] %vm145, %v144
    %s158 = scalar_lea.vmem [#allocation2], 1978
    %159 = vst.msk [vmem:[%s158] sm:$0x40] %vm145, %v144
    %s160 = scalar_lea.vmem [#allocation2], 2009
    %161 = vst.msk [vmem:[%s160] sm:$0x80] %vm145, %v144
    %s162 = scalar_lea.vmem [#allocation0], 64
    %v163 = vld [vmem:[%s162] sm:$0xff]
    %vm164 = vcmask 15360
    %s165 = scalar_lea.vmem [#allocation2], 2048
    %166 = vst.msk [vmem:[%s165] sm:$0x1] %vm164, %v163
    %s167 = scalar_lea.vmem [#allocation2], 2079
    %168 = vst.msk [vmem:[%s167] sm:$0x2] %vm164, %v163
    %s169 = scalar_lea.vmem [#allocation2], 2110
    %170 = vst.msk [vmem:[%s169] sm:$0x4] %vm164, %v163
    %s171 = scalar_lea.vmem [#allocation2], 2141
    %172 = vst.msk [vmem:[%s171] sm:$0x8] %vm164, %v163
    %s173 = scalar_lea.vmem [#allocation2], 2172
    %174 = vst.msk [vmem:[%s173] sm:$0x10] %vm164, %v163
    %s175 = scalar_lea.vmem [#allocation2], 2203
    %176 = vst.msk [vmem:[%s175] sm:$0x20] %vm164, %v163
    %s177 = scalar_lea.vmem [#allocation2], 2234
    %178 = vst.msk [vmem:[%s177] sm:$0x40] %vm164, %v163
    %s179 = scalar_lea.vmem [#allocation2], 2265
    %180 = vst.msk [vmem:[%s179] sm:$0x80] %vm164, %v163
    %s181 = scalar_lea.vmem [#allocation0], 72
    %v182 = vld [vmem:[%s181] sm:$0xff]
    %vm183 = vcmask 15360
    %s184 = scalar_lea.vmem [#allocation2], 2304
    %185 = vst.msk [vmem:[%s184] sm:$0x1] %vm183, %v182
    %s186 = scalar_lea.vmem [#allocation2], 2335
    %187 = vst.msk [vmem:[%s186] sm:$0x2] %vm183, %v182
    %s188 = scalar_lea.vmem [#allocation2], 2366
    %189 = vst.msk [vmem:[%s188] sm:$0x4] %vm183, %v182
    %s190 = scalar_lea.vmem [#allocation2], 2397
    %191 = vst.msk [vmem:[%s190] sm:$0x8] %vm183, %v182
    %s192 = scalar_lea.vmem [#allocation2], 2428
    %193 = vst.msk [vmem:[%s192] sm:$0x10] %vm183, %v182
    %s194 = scalar_lea.vmem [#allocation2], 2459
    %195 = vst.msk [vmem:[%s194] sm:$0x20] %vm183, %v182
    %s196 = scalar_lea.vmem [#allocation2], 2490
    %197 = vst.msk [vmem:[%s196] sm:$0x40] %vm183, %v182
    %s198 = scalar_lea.vmem [#allocation2], 2521
    %199 = vst.msk [vmem:[%s198] sm:$0x80] %vm183, %v182
    %s200 = scalar_lea.vmem [#allocation0], 80
    %v201 = vld [vmem:[%s200] sm:$0xff]
    %vm202 = vcmask 15360
    %s203 = scalar_lea.vmem [#allocation2], 2560
    %204 = vst.msk [vmem:[%s203] sm:$0x1] %vm202, %v201
    %s205 = scalar_lea.vmem [#allocation2], 2591
    %206 = vst.msk [vmem:[%s205] sm:$0x2] %vm202, %v201
    %s207 = scalar_lea.vmem [#allocation2], 2622
    %208 = vst.msk [vmem:[%s207] sm:$0x4] %vm202, %v201
    %s209 = scalar_lea.vmem [#allocation2], 2653
    %210 = vst.msk [vmem:[%s209] sm:$0x8] %vm202, %v201
    %s211 = scalar_lea.vmem [#allocation2], 2684
    %212 = vst.msk [vmem:[%s211] sm:$0x10] %vm202, %v201
    %s213 = scalar_lea.vmem [#allocation2], 2715
    %214 = vst.msk [vmem:[%s213] sm:$0x20] %vm202, %v201
    %s215 = scalar_lea.vmem [#allocation2], 2746
    %216 = vst.msk [vmem:[%s215] sm:$0x40] %vm202, %v201
    %s217 = scalar_lea.vmem [#allocation2], 2777
    %218 = vst.msk [vmem:[%s217] sm:$0x80] %vm202, %v201
    %s219 = scalar_lea.vmem [#allocation0], 88
    %v220 = vld [vmem:[%s219] sm:$0xff]
    %vm221 = vcmask 15360
    %s222 = scalar_lea.vmem [#allocation2], 2816
    %223 = vst.msk [vmem:[%s222] sm:$0x1] %vm221, %v220
    %s224 = scalar_lea.vmem [#allocation2], 2847
    %225 = vst.msk [vmem:[%s224] sm:$0x2] %vm221, %v220
    %s226 = scalar_lea.vmem [#allocation2], 2878
    %227 = vst.msk [vmem:[%s226] sm:$0x4] %vm221, %v220
    %s228 = scalar_lea.vmem [#allocation2], 2909
    %229 = vst.msk [vmem:[%s228] sm:$0x8] %vm221, %v220
    %s230 = scalar_lea.vmem [#allocation2], 2940
    %231 = vst.msk [vmem:[%s230] sm:$0x10] %vm221, %v220
    %s232 = scalar_lea.vmem [#allocation2], 2971
    %233 = vst.msk [vmem:[%s232] sm:$0x20] %vm221, %v220
    %s234 = scalar_lea.vmem [#allocation2], 3002
    %235 = vst.msk [vmem:[%s234] sm:$0x40] %vm221, %v220
    %s236 = scalar_lea.vmem [#allocation2], 3033
    %237 = vst.msk [vmem:[%s236] sm:$0x80] %vm221, %v220
    %s238 = scalar_lea.vmem [#allocation0], 96
    %v239 = vld [vmem:[%s238] sm:$0xff]
    %vm240 = vcmask 15360
    %s241 = scalar_lea.vmem [#allocation2], 3072
    %242 = vst.msk [vmem:[%s241] sm:$0x1] %vm240, %v239
    %s243 = scalar_lea.vmem [#allocation2], 3103
    %244 = vst.msk [vmem:[%s243] sm:$0x2] %vm240, %v239
    %s245 = scalar_lea.vmem [#allocation2], 3134
    %246 = vst.msk [vmem:[%s245] sm:$0x4] %vm240, %v239
    %s247 = scalar_lea.vmem [#allocation2], 3165
    %248 = vst.msk [vmem:[%s247] sm:$0x8] %vm240, %v239
    %s249 = scalar_lea.vmem [#allocation2], 3196
    %250 = vst.msk [vmem:[%s249] sm:$0x10] %vm240, %v239
    %s251 = scalar_lea.vmem [#allocation2], 3227
    %252 = vst.msk [vmem:[%s251] sm:$0x20] %vm240, %v239
    %s253 = scalar_lea.vmem [#allocation2], 3258
    %254 = vst.msk [vmem:[%s253] sm:$0x40] %vm240, %v239
    %s255 = scalar_lea.vmem [#allocation2], 3289
    %256 = vst.msk [vmem:[%s255] sm:$0x80] %vm240, %v239
    %s257 = scalar_lea.vmem [#allocation0], 104
    %v258 = vld [vmem:[%s257] sm:$0xff]
    %vm259 = vcmask 15360
    %s260 = scalar_lea.vmem [#allocation2], 3328
    %261 = vst.msk [vmem:[%s260] sm:$0x1] %vm259, %v258
    %s262 = scalar_lea.vmem [#allocation2], 3359
    %263 = vst.msk [vmem:[%s262] sm:$0x2] %vm259, %v258
    %s264 = scalar_lea.vmem [#allocation2], 3390
    %265 = vst.msk [vmem:[%s264] sm:$0x4] %vm259, %v258
    %s266 = scalar_lea.vmem [#allocation2], 3421
    %267 = vst.msk [vmem:[%s266] sm:$0x8] %vm259, %v258
    %s268 = scalar_lea.vmem [#allocation2], 3452
    %269 = vst.msk [vmem:[%s268] sm:$0x10] %vm259, %v258
    %s270 = scalar_lea.vmem [#allocation2], 3483
    %271 = vst.msk [vmem:[%s270] sm:$0x20] %vm259, %v258
    %s272 = scalar_lea.vmem [#allocation2], 3514
    %273 = vst.msk [vmem:[%s272] sm:$0x40] %vm259, %v258
    %s274 = scalar_lea.vmem [#allocation2], 3545
    %275 = vst.msk [vmem:[%s274] sm:$0x80] %vm259, %v258
    %s276 = scalar_lea.vmem [#allocation0], 112
    %v277 = vld [vmem:[%s276] sm:$0xff]
    %vm278 = vcmask 15360
    %s279 = scalar_lea.vmem [#allocation2], 3584
    %280 = vst.msk [vmem:[%s279] sm:$0x1] %vm278, %v277
    %s281 = scalar_lea.vmem [#allocation2], 3615
    %282 = vst.msk [vmem:[%s281] sm:$0x2] %vm278, %v277
    %s283 = scalar_lea.vmem [#allocation2], 3646
    %284 = vst.msk [vmem:[%s283] sm:$0x4] %vm278, %v277
    %s285 = scalar_lea.vmem [#allocation2], 3677
    %286 = vst.msk [vmem:[%s285] sm:$0x8] %vm278, %v277
    %s287 = scalar_lea.vmem [#allocation2], 3708
    %288 = vst.msk [vmem:[%s287] sm:$0x10] %vm278, %v277
    %s289 = scalar_lea.vmem [#allocation2], 3739
    %290 = vst.msk [vmem:[%s289] sm:$0x20] %vm278, %v277
    %s291 = scalar_lea.vmem [#allocation2], 3770
    %292 = vst.msk [vmem:[%s291] sm:$0x40] %vm278, %v277
    %s293 = scalar_lea.vmem [#allocation2], 3801
    %294 = vst.msk [vmem:[%s293] sm:$0x80] %vm278, %v277
    %s295 = scalar_lea.vmem [#allocation0], 120
    %v296 = vld [vmem:[%s295] sm:$0xff]
    %vm297 = vcmask 15360
    %s298 = scalar_lea.vmem [#allocation2], 3840
    %299 = vst.msk [vmem:[%s298] sm:$0x1] %vm297, %v296
    %s300 = scalar_lea.vmem [#allocation2], 3871
    %301 = vst.msk [vmem:[%s300] sm:$0x2] %vm297, %v296
    %s302 = scalar_lea.vmem [#allocation2], 3902
    %303 = vst.msk [vmem:[%s302] sm:$0x4] %vm297, %v296
    %s304 = scalar_lea.vmem [#allocation2], 3933
    %305 = vst.msk [vmem:[%s304] sm:$0x8] %vm297, %v296
    %s306 = scalar_lea.vmem [#allocation2], 3964
    %307 = vst.msk [vmem:[%s306] sm:$0x10] %vm297, %v296
    %s308 = scalar_lea.vmem [#allocation2], 3995
    %309 = vst.msk [vmem:[%s308] sm:$0x20] %vm297, %v296
    %s310 = scalar_lea.vmem [#allocation2], 4026
    %311 = vst.msk [vmem:[%s310] sm:$0x40] %vm297, %v296
    %s312 = scalar_lea.vmem [#allocation2], 4057
    %313 = vst.msk [vmem:[%s312] sm:$0x80] %vm297, %v296
    %v314 = vld [vmem:[#allocation0] sm:$0xff]
    %315 = vrot.lane.b32.xlu0 %v314, 126
    %v316 = vpop.permute.xlu0 %315
    %vm317 = vcmask 15360
    %s318 = scalar_lea.vmem [#allocation2], 1
    %319 = vst.msk [vmem:[%s318] sm:$0x1] %vm317, %v316
    %s320 = scalar_lea.vmem [#allocation2], 32
    %321 = vst.msk [vmem:[%s320] sm:$0x2] %vm317, %v316
    %s322 = scalar_lea.vmem [#allocation2], 63
    %323 = vst.msk [vmem:[%s322] sm:$0x4] %vm317, %v316
    %s324 = scalar_lea.vmem [#allocation2], 94
    %325 = vst.msk [vmem:[%s324] sm:$0x8] %vm317, %v316
    %s326 = scalar_lea.vmem [#allocation2], 125
    %327 = vst.msk [vmem:[%s326] sm:$0x10] %vm317, %v316
    %s328 = scalar_lea.vmem [#allocation2], 156
    %329 = vst.msk [vmem:[%s328] sm:$0x20] %vm317, %v316
    %s330 = scalar_lea.vmem [#allocation2], 187
    %331 = vst.msk [vmem:[%s330] sm:$0x40] %vm317, %v316
    %s332 = scalar_lea.vmem [#allocation2], 218
    %333 = vst.msk [vmem:[%s332] sm:$0x80] %vm317, %v316
    %s334 = scalar_lea.vmem [#allocation0], 8
    %v335 = vld [vmem:[%s334] sm:$0xff]
    %336 = vrot.lane.b32.xlu0 %v335, 126
    %v337 = vpop.permute.xlu0 %336
    %vm338 = vcmask 15360
    %s339 = scalar_lea.vmem [#allocation2], 257
    %340 = vst.msk [vmem:[%s339] sm:$0x1] %vm338, %v337
    %s341 = scalar_lea.vmem [#allocation2], 288
    %342 = vst.msk [vmem:[%s341] sm:$0x2] %vm338, %v337
    %s343 = scalar_lea.vmem [#allocation2], 319
    %344 = vst.msk [vmem:[%s343] sm:$0x4] %vm338, %v337
    %s345 = scalar_lea.vmem [#allocation2], 350
    %346 = vst.msk [vmem:[%s345] sm:$0x8] %vm338, %v337
    %s347 = scalar_lea.vmem [#allocation2], 381
    %348 = vst.msk [vmem:[%s347] sm:$0x10] %vm338, %v337
    %s349 = scalar_lea.vmem [#allocation2], 412
    %350 = vst.msk [vmem:[%s349] sm:$0x20] %vm338, %v337
    %s351 = scalar_lea.vmem [#allocation2], 443
    %352 = vst.msk [vmem:[%s351] sm:$0x40] %vm338, %v337
    %s353 = scalar_lea.vmem [#allocation2], 474
    %354 = vst.msk [vmem:[%s353] sm:$0x80] %vm338, %v337
    %s355 = scalar_lea.vmem [#allocation0], 16
    %v356 = vld [vmem:[%s355] sm:$0xff]
    %357 = vrot.lane.b32.xlu0 %v356, 126
    %v358 = vpop.permute.xlu0 %357
    %vm359 = vcmask 15360
    %s360 = scalar_lea.vmem [#allocation2], 513
    %361 = vst.msk [vmem:[%s360] sm:$0x1] %vm359, %v358
    %s362 = scalar_lea.vmem [#allocation2], 544
    %363 = vst.msk [vmem:[%s362] sm:$0x2] %vm359, %v358
    %s364 = scalar_lea.vmem [#allocation2], 575
    %365 = vst.msk [vmem:[%s364] sm:$0x4] %vm359, %v358
    %s366 = scalar_lea.vmem [#allocation2], 606
    %367 = vst.msk [vmem:[%s366] sm:$0x8] %vm359, %v358
    %s368 = scalar_lea.vmem [#allocation2], 637
    %369 = vst.msk [vmem:[%s368] sm:$0x10] %vm359, %v358
    %s370 = scalar_lea.vmem [#allocation2], 668
    %371 = vst.msk [vmem:[%s370] sm:$0x20] %vm359, %v358
    %s372 = scalar_lea.vmem [#allocation2], 699
    %373 = vst.msk [vmem:[%s372] sm:$0x40] %vm359, %v358
    %s374 = scalar_lea.vmem [#allocation2], 730
    %375 = vst.msk [vmem:[%s374] sm:$0x80] %vm359, %v358
    %s376 = scalar_lea.vmem [#allocation0], 24
    %v377 = vld [vmem:[%s376] sm:$0xff]
    %378 = vrot.lane.b32.xlu0 %v377, 126
    %v379 = vpop.permute.xlu0 %378
    %vm380 = vcmask 15360
    %s381 = scalar_lea.vmem [#allocation2], 769
    %382 = vst.msk [vmem:[%s381] sm:$0x1] %vm380, %v379
    %s383 = scalar_lea.vmem [#allocation2], 800
    %384 = vst.msk [vmem:[%s383] sm:$0x2] %vm380, %v379
    %s385 = scalar_lea.vmem [#allocation2], 831
    %386 = vst.msk [vmem:[%s385] sm:$0x4] %vm380, %v379
    %s387 = scalar_lea.vmem [#allocation2], 862
    %388 = vst.msk [vmem:[%s387] sm:$0x8] %vm380, %v379
    %s389 = scalar_lea.vmem [#allocation2], 893
    %390 = vst.msk [vmem:[%s389] sm:$0x10] %vm380, %v379
    %s391 = scalar_lea.vmem [#allocation2], 924
    %392 = vst.msk [vmem:[%s391] sm:$0x20] %vm380, %v379
    %s393 = scalar_lea.vmem [#allocation2], 955
    %394 = vst.msk [vmem:[%s393] sm:$0x40] %vm380, %v379
    %s395 = scalar_lea.vmem [#allocation2], 986
    %396 = vst.msk [vmem:[%s395] sm:$0x80] %vm380, %v379
    %s397 = scalar_lea.vmem [#allocation0], 32
    %v398 = vld [vmem:[%s397] sm:$0xff]
    %399 = vrot.lane.b32.xlu0 %v398, 126
    %v400 = vpop.permute.xlu0 %399
    %vm401 = vcmask 15360
    %s402 = scalar_lea.vmem [#allocation2], 1025
    %403 = vst.msk [vmem:[%s402] sm:$0x1] %vm401, %v400
    %s404 = scalar_lea.vmem [#allocation2], 1056
    %405 = vst.msk [vmem:[%s404] sm:$0x2] %vm401, %v400
    %s406 = scalar_lea.vmem [#allocation2], 1087
    %407 = vst.msk [vmem:[%s406] sm:$0x4] %vm401, %v400
    %s408 = scalar_lea.vmem [#allocation2], 1118
    %409 = vst.msk [vmem:[%s408] sm:$0x8] %vm401, %v400
    %s410 = scalar_lea.vmem [#allocation2], 1149
    %411 = vst.msk [vmem:[%s410] sm:$0x10] %vm401, %v400
    %s412 = scalar_lea.vmem [#allocation2], 1180
    %413 = vst.msk [vmem:[%s412] sm:$0x20] %vm401, %v400
    %s414 = scalar_lea.vmem [#allocation2], 1211
    %415 = vst.msk [vmem:[%s414] sm:$0x40] %vm401, %v400
    %s416 = scalar_lea.vmem [#allocation2], 1242
    %417 = vst.msk [vmem:[%s416] sm:$0x80] %vm401, %v400
    %s418 = scalar_lea.vmem [#allocation0], 40
    %v419 = vld [vmem:[%s418] sm:$0xff]
    %420 = vrot.lane.b32.xlu0 %v419, 126
    %v421 = vpop.permute.xlu0 %420
    %vm422 = vcmask 15360
    %s423 = scalar_lea.vmem [#allocation2], 1281
    %424 = vst.msk [vmem:[%s423] sm:$0x1] %vm422, %v421
    %s425 = scalar_lea.vmem [#allocation2], 1312
    %426 = vst.msk [vmem:[%s425] sm:$0x2] %vm422, %v421
    %s427 = scalar_lea.vmem [#allocation2], 1343
    %428 = vst.msk [vmem:[%s427] sm:$0x4] %vm422, %v421
    %s429 = scalar_lea.vmem [#allocation2], 1374
    %430 = vst.msk [vmem:[%s429] sm:$0x8] %vm422, %v421
    %s431 = scalar_lea.vmem [#allocation2], 1405
    %432 = vst.msk [vmem:[%s431] sm:$0x10] %vm422, %v421
    %s433 = scalar_lea.vmem [#allocation2], 1436
    %434 = vst.msk [vmem:[%s433] sm:$0x20] %vm422, %v421
    %s435 = scalar_lea.vmem [#allocation2], 1467
    %436 = vst.msk [vmem:[%s435] sm:$0x40] %vm422, %v421
    %s437 = scalar_lea.vmem [#allocation2], 1498
    %438 = vst.msk [vmem:[%s437] sm:$0x80] %vm422, %v421
    %s439 = scalar_lea.vmem [#allocation0], 48
    %v440 = vld [vmem:[%s439] sm:$0xff]
    %441 = vrot.lane.b32.xlu0 %v440, 126
    %v442 = vpop.permute.xlu0 %441
    %vm443 = vcmask 15360
    %s444 = scalar_lea.vmem [#allocation2], 1537
    %445 = vst.msk [vmem:[%s444] sm:$0x1] %vm443, %v442
    %s446 = scalar_lea.vmem [#allocation2], 1568
    %447 = vst.msk [vmem:[%s446] sm:$0x2] %vm443, %v442
    %s448 = scalar_lea.vmem [#allocation2], 1599
    %449 = vst.msk [vmem:[%s448] sm:$0x4] %vm443, %v442
    %s450 = scalar_lea.vmem [#allocation2], 1630
    %451 = vst.msk [vmem:[%s450] sm:$0x8] %vm443, %v442
    %s452 = scalar_lea.vmem [#allocation2], 1661
    %453 = vst.msk [vmem:[%s452] sm:$0x10] %vm443, %v442
    %s454 = scalar_lea.vmem [#allocation2], 1692
    %455 = vst.msk [vmem:[%s454] sm:$0x20] %vm443, %v442
    %s456 = scalar_lea.vmem [#allocation2], 1723
    %457 = vst.msk [vmem:[%s456] sm:$0x40] %vm443, %v442
    %s458 = scalar_lea.vmem [#allocation2], 1754
    %459 = vst.msk [vmem:[%s458] sm:$0x80] %vm443, %v442
    %s460 = scalar_lea.vmem [#allocation0], 56
    %v461 = vld [vmem:[%s460] sm:$0xff]
    %462 = vrot.lane.b32.xlu0 %v461, 126
    %v463 = vpop.permute.xlu0 %462
    %vm464 = vcmask 15360
    %s465 = scalar_lea.vmem [#allocation2], 1793
    %466 = vst.msk [vmem:[%s465] sm:$0x1] %vm464, %v463
    %s467 = scalar_lea.vmem [#allocation2], 1824
    %468 = vst.msk [vmem:[%s467] sm:$0x2] %vm464, %v463
    %s469 = scalar_lea.vmem [#allocation2], 1855
    %470 = vst.msk [vmem:[%s469] sm:$0x4] %vm464, %v463
    %s471 = scalar_lea.vmem [#allocation2], 1886
    %472 = vst.msk [vmem:[%s471] sm:$0x8] %vm464, %v463
    %s473 = scalar_lea.vmem [#allocation2], 1917
    %474 = vst.msk [vmem:[%s473] sm:$0x10] %vm464, %v463
    %s475 = scalar_lea.vmem [#allocation2], 1948
    %476 = vst.msk [vmem:[%s475] sm:$0x20] %vm464, %v463
    %s477 = scalar_lea.vmem [#allocation2], 1979
    %478 = vst.msk [vmem:[%s477] sm:$0x40] %vm464, %v463
    %s479 = scalar_lea.vmem [#allocation2], 2010
    %480 = vst.msk [vmem:[%s479] sm:$0x80] %vm464, %v463
    %s481 = scalar_lea.vmem [#allocation0], 64
    %v482 = vld [vmem:[%s481] sm:$0xff]
    %483 = vrot.lane.b32.xlu0 %v482, 126
    %v484 = vpop.permute.xlu0 %483
    %vm485 = vcmask 15360
    %s486 = scalar_lea.vmem [#allocation2], 2049
    %487 = vst.msk [vmem:[%s486] sm:$0x1] %vm485, %v484
    %s488 = scalar_lea.vmem [#allocation2], 2080
    %489 = vst.msk [vmem:[%s488] sm:$0x2] %vm485, %v484
    %s490 = scalar_lea.vmem [#allocation2], 2111
    %491 = vst.msk [vmem:[%s490] sm:$0x4] %vm485, %v484
    %s492 = scalar_lea.vmem [#allocation2], 2142
    %493 = vst.msk [vmem:[%s492] sm:$0x8] %vm485, %v484
    %s494 = scalar_lea.vmem [#allocation2], 2173
    %495 = vst.msk [vmem:[%s494] sm:$0x10] %vm485, %v484
    %s496 = scalar_lea.vmem [#allocation2], 2204
    %497 = vst.msk [vmem:[%s496] sm:$0x20] %vm485, %v484
    %s498 = scalar_lea.vmem [#allocation2], 2235
    %499 = vst.msk [vmem:[%s498] sm:$0x40] %vm485, %v484
    %s500 = scalar_lea.vmem [#allocation2], 2266
    %501 = vst.msk [vmem:[%s500] sm:$0x80] %vm485, %v484
    %s502 = scalar_lea.vmem [#allocation0], 72
    %v503 = vld [vmem:[%s502] sm:$0xff]
    %504 = vrot.lane.b32.xlu0 %v503, 126
    %v505 = vpop.permute.xlu0 %504
    %vm506 = vcmask 15360
    %s507 = scalar_lea.vmem [#allocation2], 2305
    %508 = vst.msk [vmem:[%s507] sm:$0x1] %vm506, %v505
    %s509 = scalar_lea.vmem [#allocation2], 2336
    %510 = vst.msk [vmem:[%s509] sm:$0x2] %vm506, %v505
    %s511 = scalar_lea.vmem [#allocation2], 2367
    %512 = vst.msk [vmem:[%s511] sm:$0x4] %vm506, %v505
    %s513 = scalar_lea.vmem [#allocation2], 2398
    %514 = vst.msk [vmem:[%s513] sm:$0x8] %vm506, %v505
    %s515 = scalar_lea.vmem [#allocation2], 2429
    %516 = vst.msk [vmem:[%s515] sm:$0x10] %vm506, %v505
    %s517 = scalar_lea.vmem [#allocation2], 2460
    %518 = vst.msk [vmem:[%s517] sm:$0x20] %vm506, %v505
    %s519 = scalar_lea.vmem [#allocation2], 2491
    %520 = vst.msk [vmem:[%s519] sm:$0x40] %vm506, %v505
    %s521 = scalar_lea.vmem [#allocation2], 2522
    %522 = vst.msk [vmem:[%s521] sm:$0x80] %vm506, %v505
    %s523 = scalar_lea.vmem [#allocation0], 80
    %v524 = vld [vmem:[%s523] sm:$0xff]
    %525 = vrot.lane.b32.xlu0 %v524, 126
    %v526 = vpop.permute.xlu0 %525
    %vm527 = vcmask 15360
    %s528 = scalar_lea.vmem [#allocation2], 2561
    %529 = vst.msk [vmem:[%s528] sm:$0x1] %vm527, %v526
    %s530 = scalar_lea.vmem [#allocation2], 2592
    %531 = vst.msk [vmem:[%s530] sm:$0x2] %vm527, %v526
    %s532 = scalar_lea.vmem [#allocation2], 2623
    %533 = vst.msk [vmem:[%s532] sm:$0x4] %vm527, %v526
    %s534 = scalar_lea.vmem [#allocation2], 2654
    %535 = vst.msk [vmem:[%s534] sm:$0x8] %vm527, %v526
    %s536 = scalar_lea.vmem [#allocation2], 2685
    %537 = vst.msk [vmem:[%s536] sm:$0x10] %vm527, %v526
    %s538 = scalar_lea.vmem [#allocation2], 2716
    %539 = vst.msk [vmem:[%s538] sm:$0x20] %vm527, %v526
    %s540 = scalar_lea.vmem [#allocation2], 2747
    %541 = vst.msk [vmem:[%s540] sm:$0x40] %vm527, %v526
    %s542 = scalar_lea.vmem [#allocation2], 2778
    %543 = vst.msk [vmem:[%s542] sm:$0x80] %vm527, %v526
    %s544 = scalar_lea.vmem [#allocation0], 88
    %v545 = vld [vmem:[%s544] sm:$0xff]
    %546 = vrot.lane.b32.xlu0 %v545, 126
    %v547 = vpop.permute.xlu0 %546
    %vm548 = vcmask 15360
    %s549 = scalar_lea.vmem [#allocation2], 2817
    %550 = vst.msk [vmem:[%s549] sm:$0x1] %vm548, %v547
    %s551 = scalar_lea.vmem [#allocation2], 2848
    %552 = vst.msk [vmem:[%s551] sm:$0x2] %vm548, %v547
    %s553 = scalar_lea.vmem [#allocation2], 2879
    %554 = vst.msk [vmem:[%s553] sm:$0x4] %vm548, %v547
    %s555 = scalar_lea.vmem [#allocation2], 2910
    %556 = vst.msk [vmem:[%s555] sm:$0x8] %vm548, %v547
    %s557 = scalar_lea.vmem [#allocation2], 2941
    %558 = vst.msk [vmem:[%s557] sm:$0x10] %vm548, %v547
    %s559 = scalar_lea.vmem [#allocation2], 2972
    %560 = vst.msk [vmem:[%s559] sm:$0x20] %vm548, %v547
    %s561 = scalar_lea.vmem [#allocation2], 3003
    %562 = vst.msk [vmem:[%s561] sm:$0x40] %vm548, %v547
    %s563 = scalar_lea.vmem [#allocation2], 3034
    %564 = vst.msk [vmem:[%s563] sm:$0x80] %vm548, %v547
    %s565 = scalar_lea.vmem [#allocation0], 96
    %v566 = vld [vmem:[%s565] sm:$0xff]
    %567 = vrot.lane.b32.xlu0 %v566, 126
    %v568 = vpop.permute.xlu0 %567
    %vm569 = vcmask 15360
    %s570 = scalar_lea.vmem [#allocation2], 3073
    %571 = vst.msk [vmem:[%s570] sm:$0x1] %vm569, %v568
    %s572 = scalar_lea.vmem [#allocation2], 3104
    %573 = vst.msk [vmem:[%s572] sm:$0x2] %vm569, %v568
    %s574 = scalar_lea.vmem [#allocation2], 3135
    %575 = vst.msk [vmem:[%s574] sm:$0x4] %vm569, %v568
    %s576 = scalar_lea.vmem [#allocation2], 3166
    %577 = vst.msk [vmem:[%s576] sm:$0x8] %vm569, %v568
    %s578 = scalar_lea.vmem [#allocation2], 3197
    %579 = vst.msk [vmem:[%s578] sm:$0x10] %vm569, %v568
    %s580 = scalar_lea.vmem [#allocation2], 3228
    %581 = vst.msk [vmem:[%s580] sm:$0x20] %vm569, %v568
    %s582 = scalar_lea.vmem [#allocation2], 3259
    %583 = vst.msk [vmem:[%s582] sm:$0x40] %vm569, %v568
    %s584 = scalar_lea.vmem [#allocation2], 3290
    %585 = vst.msk [vmem:[%s584] sm:$0x80] %vm569, %v568
    %s586 = scalar_lea.vmem [#allocation0], 104
    %v587 = vld [vmem:[%s586] sm:$0xff]
    %588 = vrot.lane.b32.xlu0 %v587, 126
    %v589 = vpop.permute.xlu0 %588
    %vm590 = vcmask 15360
    %s591 = scalar_lea.vmem [#allocation2], 3329
    %592 = vst.msk [vmem:[%s591] sm:$0x1] %vm590, %v589
    %s593 = scalar_lea.vmem [#allocation2], 3360
    %594 = vst.msk [vmem:[%s593] sm:$0x2] %vm590, %v589
    %s595 = scalar_lea.vmem [#allocation2], 3391
    %596 = vst.msk [vmem:[%s595] sm:$0x4] %vm590, %v589
    %s597 = scalar_lea.vmem [#allocation2], 3422
    %598 = vst.msk [vmem:[%s597] sm:$0x8] %vm590, %v589
    %s599 = scalar_lea.vmem [#allocation2], 3453
    %600 = vst.msk [vmem:[%s599] sm:$0x10] %vm590, %v589
    %s601 = scalar_lea.vmem [#allocation2], 3484
    %602 = vst.msk [vmem:[%s601] sm:$0x20] %vm590, %v589
    %s603 = scalar_lea.vmem [#allocation2], 3515
    %604 = vst.msk [vmem:[%s603] sm:$0x40] %vm590, %v589
    %s605 = scalar_lea.vmem [#allocation2], 3546
    %606 = vst.msk [vmem:[%s605] sm:$0x80] %vm590, %v589
    %s607 = scalar_lea.vmem [#allocation0], 112
    %v608 = vld [vmem:[%s607] sm:$0xff]
    %609 = vrot.lane.b32.xlu0 %v608, 126
    %v610 = vpop.permute.xlu0 %609
    %vm611 = vcmask 15360
    %s612 = scalar_lea.vmem [#allocation2], 3585
    %613 = vst.msk [vmem:[%s612] sm:$0x1] %vm611, %v610
    %s614 = scalar_lea.vmem [#allocation2], 3616
    %615 = vst.msk [vmem:[%s614] sm:$0x2] %vm611, %v610
    %s616 = scalar_lea.vmem [#allocation2], 3647
    %617 = vst.msk [vmem:[%s616] sm:$0x4] %vm611, %v610
    %s618 = scalar_lea.vmem [#allocation2], 3678
    %619 = vst.msk [vmem:[%s618] sm:$0x8] %vm611, %v610
    %s620 = scalar_lea.vmem [#allocation2], 3709
    %621 = vst.msk [vmem:[%s620] sm:$0x10] %vm611, %v610
    %s622 = scalar_lea.vmem [#allocation2], 3740
    %623 = vst.msk [vmem:[%s622] sm:$0x20] %vm611, %v610
    %s624 = scalar_lea.vmem [#allocation2], 3771
    %625 = vst.msk [vmem:[%s624] sm:$0x40] %vm611, %v610
    %s626 = scalar_lea.vmem [#allocation2], 3802
    %627 = vst.msk [vmem:[%s626] sm:$0x80] %vm611, %v610
    %s628 = scalar_lea.vmem [#allocation0], 120
    %v629 = vld [vmem:[%s628] sm:$0xff]
    %630 = vrot.lane.b32.xlu0 %v629, 126
    %v631 = vpop.permute.xlu0 %630
    %vm632 = vcmask 15360
    %s633 = scalar_lea.vmem [#allocation2], 3841
    %634 = vst.msk [vmem:[%s633] sm:$0x1] %vm632, %v631
    %s635 = scalar_lea.vmem [#allocation2], 3872
    %636 = vst.msk [vmem:[%s635] sm:$0x2] %vm632, %v631
    %s637 = scalar_lea.vmem [#allocation2], 3903
    %638 = vst.msk [vmem:[%s637] sm:$0x4] %vm632, %v631
    %s639 = scalar_lea.vmem [#allocation2], 3934
    %640 = vst.msk [vmem:[%s639] sm:$0x8] %vm632, %v631
    %s641 = scalar_lea.vmem [#allocation2], 3965
    %642 = vst.msk [vmem:[%s641] sm:$0x10] %vm632, %v631
    %s643 = scalar_lea.vmem [#allocation2], 3996
    %644 = vst.msk [vmem:[%s643] sm:$0x20] %vm632, %v631
    %s645 = scalar_lea.vmem [#allocation2], 4027
    %646 = vst.msk [vmem:[%s645] sm:$0x40] %vm632, %v631
    %s647 = scalar_lea.vmem [#allocation2], 4058
    %648 = vst.msk [vmem:[%s647] sm:$0x80] %vm632, %v631
    %v649 = vld [vmem:[#allocation0] sm:$0xff]
    %650 = vrot.lane.b32.xlu0 %v649, 124
    %v651 = vpop.permute.xlu0 %650
    %vm652 = vcmask 15360
    %s653 = scalar_lea.vmem [#allocation2], 8
    %654 = vst.msk [vmem:[%s653] sm:$0x1] %vm652, %v651
    %s655 = scalar_lea.vmem [#allocation2], 39
    %656 = vst.msk [vmem:[%s655] sm:$0x2] %vm652, %v651
    %s657 = scalar_lea.vmem [#allocation2], 70
    %658 = vst.msk [vmem:[%s657] sm:$0x4] %vm652, %v651
    %s659 = scalar_lea.vmem [#allocation2], 101
    %660 = vst.msk [vmem:[%s659] sm:$0x8] %vm652, %v651
    %s661 = scalar_lea.vmem [#allocation2], 132
    %662 = vst.msk [vmem:[%s661] sm:$0x10] %vm652, %v651
    %s663 = scalar_lea.vmem [#allocation2], 163
    %664 = vst.msk [vmem:[%s663] sm:$0x20] %vm652, %v651
    %s665 = scalar_lea.vmem [#allocation2], 194
    %666 = vst.msk [vmem:[%s665] sm:$0x40] %vm652, %v651
    %s667 = scalar_lea.vmem [#allocation2], 225
    %668 = vst.msk [vmem:[%s667] sm:$0x80] %vm652, %v651
    %s669 = scalar_lea.vmem [#allocation0], 8
    %v670 = vld [vmem:[%s669] sm:$0xff]
    %671 = vrot.lane.b32.xlu0 %v670, 124
    %v672 = vpop.permute.xlu0 %671
    %vm673 = vcmask 15360
    %s674 = scalar_lea.vmem [#allocation2], 264
    %675 = vst.msk [vmem:[%s674] sm:$0x1] %vm673, %v672
    %s676 = scalar_lea.vmem [#allocation2], 295
    %677 = vst.msk [vmem:[%s676] sm:$0x2] %vm673, %v672
    %s678 = scalar_lea.vmem [#allocation2], 326
    %679 = vst.msk [vmem:[%s678] sm:$0x4] %vm673, %v672
    %s680 = scalar_lea.vmem [#allocation2], 357
    %681 = vst.msk [vmem:[%s680] sm:$0x8] %vm673, %v672
    %s682 = scalar_lea.vmem [#allocation2], 388
    %683 = vst.msk [vmem:[%s682] sm:$0x10] %vm673, %v672
    %s684 = scalar_lea.vmem [#allocation2], 419
    %685 = vst.msk [vmem:[%s684] sm:$0x20] %vm673, %v672
    %s686 = scalar_lea.vmem [#allocation2], 450
    %687 = vst.msk [vmem:[%s686] sm:$0x40] %vm673, %v672
    %s688 = scalar_lea.vmem [#allocation2], 481
    %689 = vst.msk [vmem:[%s688] sm:$0x80] %vm673, %v672
    %s690 = scalar_lea.vmem [#allocation0], 16
    %v691 = vld [vmem:[%s690] sm:$0xff]
    %692 = vrot.lane.b32.xlu0 %v691, 124
    %v693 = vpop.permute.xlu0 %692
    %vm694 = vcmask 15360
    %s695 = scalar_lea.vmem [#allocation2], 520
    %696 = vst.msk [vmem:[%s695] sm:$0x1] %vm694, %v693
    %s697 = scalar_lea.vmem [#allocation2], 551
    %698 = vst.msk [vmem:[%s697] sm:$0x2] %vm694, %v693
    %s699 = scalar_lea.vmem [#allocation2], 582
    %700 = vst.msk [vmem:[%s699] sm:$0x4] %vm694, %v693
    %s701 = scalar_lea.vmem [#allocation2], 613
    %702 = vst.msk [vmem:[%s701] sm:$0x8] %vm694, %v693
    %s703 = scalar_lea.vmem [#allocation2], 644
    %704 = vst.msk [vmem:[%s703] sm:$0x10] %vm694, %v693
    %s705 = scalar_lea.vmem [#allocation2], 675
    %706 = vst.msk [vmem:[%s705] sm:$0x20] %vm694, %v693
    %s707 = scalar_lea.vmem [#allocation2], 706
    %708 = vst.msk [vmem:[%s707] sm:$0x40] %vm694, %v693
    %s709 = scalar_lea.vmem [#allocation2], 737
    %710 = vst.msk [vmem:[%s709] sm:$0x80] %vm694, %v693
    %s711 = scalar_lea.vmem [#allocation0], 24
    %v712 = vld [vmem:[%s711] sm:$0xff]
    %713 = vrot.lane.b32.xlu0 %v712, 124
    %v714 = vpop.permute.xlu0 %713
    %vm715 = vcmask 15360
    %s716 = scalar_lea.vmem [#allocation2], 776
    %717 = vst.msk [vmem:[%s716] sm:$0x1] %vm715, %v714
    %s718 = scalar_lea.vmem [#allocation2], 807
    %719 = vst.msk [vmem:[%s718] sm:$0x2] %vm715, %v714
    %s720 = scalar_lea.vmem [#allocation2], 838
    %721 = vst.msk [vmem:[%s720] sm:$0x4] %vm715, %v714
    %s722 = scalar_lea.vmem [#allocation2], 869
    %723 = vst.msk [vmem:[%s722] sm:$0x8] %vm715, %v714
    %s724 = scalar_lea.vmem [#allocation2], 900
    %725 = vst.msk [vmem:[%s724] sm:$0x10] %vm715, %v714
    %s726 = scalar_lea.vmem [#allocation2], 931
    %727 = vst.msk [vmem:[%s726] sm:$0x20] %vm715, %v714
    %s728 = scalar_lea.vmem [#allocation2], 962
    %729 = vst.msk [vmem:[%s728] sm:$0x40] %vm715, %v714
    %s730 = scalar_lea.vmem [#allocation2], 993
    %731 = vst.msk [vmem:[%s730] sm:$0x80] %vm715, %v714
    %s732 = scalar_lea.vmem [#allocation0], 32
    %v733 = vld [vmem:[%s732] sm:$0xff]
    %734 = vrot.lane.b32.xlu0 %v733, 124
    %v735 = vpop.permute.xlu0 %734
    %vm736 = vcmask 15360
    %s737 = scalar_lea.vmem [#allocation2], 1032
    %738 = vst.msk [vmem:[%s737] sm:$0x1] %vm736, %v735
    %s739 = scalar_lea.vmem [#allocation2], 1063
    %740 = vst.msk [vmem:[%s739] sm:$0x2] %vm736, %v735
    %s741 = scalar_lea.vmem [#allocation2], 1094
    %742 = vst.msk [vmem:[%s741] sm:$0x4] %vm736, %v735
    %s743 = scalar_lea.vmem [#allocation2], 1125
    %744 = vst.msk [vmem:[%s743] sm:$0x8] %vm736, %v735
    %s745 = scalar_lea.vmem [#allocation2], 1156
    %746 = vst.msk [vmem:[%s745] sm:$0x10] %vm736, %v735
    %s747 = scalar_lea.vmem [#allocation2], 1187
    %748 = vst.msk [vmem:[%s747] sm:$0x20] %vm736, %v735
    %s749 = scalar_lea.vmem [#allocation2], 1218
    %750 = vst.msk [vmem:[%s749] sm:$0x40] %vm736, %v735
    %s751 = scalar_lea.vmem [#allocation2], 1249
    %752 = vst.msk [vmem:[%s751] sm:$0x80] %vm736, %v735
    %s753 = scalar_lea.vmem [#allocation0], 40
    %v754 = vld [vmem:[%s753] sm:$0xff]
    %755 = vrot.lane.b32.xlu0 %v754, 124
    %v756 = vpop.permute.xlu0 %755
    %vm757 = vcmask 15360
    %s758 = scalar_lea.vmem [#allocation2], 1288
    %759 = vst.msk [vmem:[%s758] sm:$0x1] %vm757, %v756
    %s760 = scalar_lea.vmem [#allocation2], 1319
    %761 = vst.msk [vmem:[%s760] sm:$0x2] %vm757, %v756
    %s762 = scalar_lea.vmem [#allocation2], 1350
    %763 = vst.msk [vmem:[%s762] sm:$0x4] %vm757, %v756
    %s764 = scalar_lea.vmem [#allocation2], 1381
    %765 = vst.msk [vmem:[%s764] sm:$0x8] %vm757, %v756
    %s766 = scalar_lea.vmem [#allocation2], 1412
    %767 = vst.msk [vmem:[%s766] sm:$0x10] %vm757, %v756
    %s768 = scalar_lea.vmem [#allocation2], 1443
    %769 = vst.msk [vmem:[%s768] sm:$0x20] %vm757, %v756
    %s770 = scalar_lea.vmem [#allocation2], 1474
    %771 = vst.msk [vmem:[%s770] sm:$0x40] %vm757, %v756
    %s772 = scalar_lea.vmem [#allocation2], 1505
    %773 = vst.msk [vmem:[%s772] sm:$0x80] %vm757, %v756
    %s774 = scalar_lea.vmem [#allocation0], 48
    %v775 = vld [vmem:[%s774] sm:$0xff]
    %776 = vrot.lane.b32.xlu0 %v775, 124
    %v777 = vpop.permute.xlu0 %776
    %vm778 = vcmask 15360
    %s779 = scalar_lea.vmem [#allocation2], 1544
    %780 = vst.msk [vmem:[%s779] sm:$0x1] %vm778, %v777
    %s781 = scalar_lea.vmem [#allocation2], 1575
    %782 = vst.msk [vmem:[%s781] sm:$0x2] %vm778, %v777
    %s783 = scalar_lea.vmem [#allocation2], 1606
    %784 = vst.msk [vmem:[%s783] sm:$0x4] %vm778, %v777
    %s785 = scalar_lea.vmem [#allocation2], 1637
    %786 = vst.msk [vmem:[%s785] sm:$0x8] %vm778, %v777
    %s787 = scalar_lea.vmem [#allocation2], 1668
    %788 = vst.msk [vmem:[%s787] sm:$0x10] %vm778, %v777
    %s789 = scalar_lea.vmem [#allocation2], 1699
    %790 = vst.msk [vmem:[%s789] sm:$0x20] %vm778, %v777
    %s791 = scalar_lea.vmem [#allocation2], 1730
    %792 = vst.msk [vmem:[%s791] sm:$0x40] %vm778, %v777
    %s793 = scalar_lea.vmem [#allocation2], 1761
    %794 = vst.msk [vmem:[%s793] sm:$0x80] %vm778, %v777
    %s795 = scalar_lea.vmem [#allocation0], 56
    %v796 = vld [vmem:[%s795] sm:$0xff]
    %797 = vrot.lane.b32.xlu0 %v796, 124
    %v798 = vpop.permute.xlu0 %797
    %vm799 = vcmask 15360
    %s800 = scalar_lea.vmem [#allocation2], 1800
    %801 = vst.msk [vmem:[%s800] sm:$0x1] %vm799, %v798
    %s802 = scalar_lea.vmem [#allocation2], 1831
    %803 = vst.msk [vmem:[%s802] sm:$0x2] %vm799, %v798
    %s804 = scalar_lea.vmem [#allocation2], 1862
    %805 = vst.msk [vmem:[%s804] sm:$0x4] %vm799, %v798
    %s806 = scalar_lea.vmem [#allocation2], 1893
    %807 = vst.msk [vmem:[%s806] sm:$0x8] %vm799, %v798
    %s808 = scalar_lea.vmem [#allocation2], 1924
    %809 = vst.msk [vmem:[%s808] sm:$0x10] %vm799, %v798
    %s810 = scalar_lea.vmem [#allocation2], 1955
    %811 = vst.msk [vmem:[%s810] sm:$0x20] %vm799, %v798
    %s812 = scalar_lea.vmem [#allocation2], 1986
    %813 = vst.msk [vmem:[%s812] sm:$0x40] %vm799, %v798
    %s814 = scalar_lea.vmem [#allocation2], 2017
    %815 = vst.msk [vmem:[%s814] sm:$0x80] %vm799, %v798
    %s816 = scalar_lea.vmem [#allocation0], 64
    %v817 = vld [vmem:[%s816] sm:$0xff]
    %818 = vrot.lane.b32.xlu0 %v817, 124
    %v819 = vpop.permute.xlu0 %818
    %vm820 = vcmask 15360
    %s821 = scalar_lea.vmem [#allocation2], 2056
    %822 = vst.msk [vmem:[%s821] sm:$0x1] %vm820, %v819
    %s823 = scalar_lea.vmem [#allocation2], 2087
    %824 = vst.msk [vmem:[%s823] sm:$0x2] %vm820, %v819
    %s825 = scalar_lea.vmem [#allocation2], 2118
    %826 = vst.msk [vmem:[%s825] sm:$0x4] %vm820, %v819
    %s827 = scalar_lea.vmem [#allocation2], 2149
    %828 = vst.msk [vmem:[%s827] sm:$0x8] %vm820, %v819
    %s829 = scalar_lea.vmem [#allocation2], 2180
    %830 = vst.msk [vmem:[%s829] sm:$0x10] %vm820, %v819
    %s831 = scalar_lea.vmem [#allocation2], 2211
    %832 = vst.msk [vmem:[%s831] sm:$0x20] %vm820, %v819
    %s833 = scalar_lea.vmem [#allocation2], 2242
    %834 = vst.msk [vmem:[%s833] sm:$0x40] %vm820, %v819
    %s835 = scalar_lea.vmem [#allocation2], 2273
    %836 = vst.msk [vmem:[%s835] sm:$0x80] %vm820, %v819
    %s837 = scalar_lea.vmem [#allocation0], 72
    %v838 = vld [vmem:[%s837] sm:$0xff]
    %839 = vrot.lane.b32.xlu0 %v838, 124
    %v840 = vpop.permute.xlu0 %839
    %vm841 = vcmask 15360
    %s842 = scalar_lea.vmem [#allocation2], 2312
    %843 = vst.msk [vmem:[%s842] sm:$0x1] %vm841, %v840
    %s844 = scalar_lea.vmem [#allocation2], 2343
    %845 = vst.msk [vmem:[%s844] sm:$0x2] %vm841, %v840
    %s846 = scalar_lea.vmem [#allocation2], 2374
    %847 = vst.msk [vmem:[%s846] sm:$0x4] %vm841, %v840
    %s848 = scalar_lea.vmem [#allocation2], 2405
    %849 = vst.msk [vmem:[%s848] sm:$0x8] %vm841, %v840
    %s850 = scalar_lea.vmem [#allocation2], 2436
    %851 = vst.msk [vmem:[%s850] sm:$0x10] %vm841, %v840
    %s852 = scalar_lea.vmem [#allocation2], 2467
    %853 = vst.msk [vmem:[%s852] sm:$0x20] %vm841, %v840
    %s854 = scalar_lea.vmem [#allocation2], 2498
    %855 = vst.msk [vmem:[%s854] sm:$0x40] %vm841, %v840
    %s856 = scalar_lea.vmem [#allocation2], 2529
    %857 = vst.msk [vmem:[%s856] sm:$0x80] %vm841, %v840
    %s858 = scalar_lea.vmem [#allocation0], 80
    %v859 = vld [vmem:[%s858] sm:$0xff]
    %860 = vrot.lane.b32.xlu0 %v859, 124
    %v861 = vpop.permute.xlu0 %860
    %vm862 = vcmask 15360
    %s863 = scalar_lea.vmem [#allocation2], 2568
    %864 = vst.msk [vmem:[%s863] sm:$0x1] %vm862, %v861
    %s865 = scalar_lea.vmem [#allocation2], 2599
    %866 = vst.msk [vmem:[%s865] sm:$0x2] %vm862, %v861
    %s867 = scalar_lea.vmem [#allocation2], 2630
    %868 = vst.msk [vmem:[%s867] sm:$0x4] %vm862, %v861
    %s869 = scalar_lea.vmem [#allocation2], 2661
    %870 = vst.msk [vmem:[%s869] sm:$0x8] %vm862, %v861
    %s871 = scalar_lea.vmem [#allocation2], 2692
    %872 = vst.msk [vmem:[%s871] sm:$0x10] %vm862, %v861
    %s873 = scalar_lea.vmem [#allocation2], 2723
    %874 = vst.msk [vmem:[%s873] sm:$0x20] %vm862, %v861
    %s875 = scalar_lea.vmem [#allocation2], 2754
    %876 = vst.msk [vmem:[%s875] sm:$0x40] %vm862, %v861
    %s877 = scalar_lea.vmem [#allocation2], 2785
    %878 = vst.msk [vmem:[%s877] sm:$0x80] %vm862, %v861
    %s879 = scalar_lea.vmem [#allocation0], 88
    %v880 = vld [vmem:[%s879] sm:$0xff]
    %881 = vrot.lane.b32.xlu0 %v880, 124
    %v882 = vpop.permute.xlu0 %881
    %vm883 = vcmask 15360
    %s884 = scalar_lea.vmem [#allocation2], 2824
    %885 = vst.msk [vmem:[%s884] sm:$0x1] %vm883, %v882
    %s886 = scalar_lea.vmem [#allocation2], 2855
    %887 = vst.msk [vmem:[%s886] sm:$0x2] %vm883, %v882
    %s888 = scalar_lea.vmem [#allocation2], 2886
    %889 = vst.msk [vmem:[%s888] sm:$0x4] %vm883, %v882
    %s890 = scalar_lea.vmem [#allocation2], 2917
    %891 = vst.msk [vmem:[%s890] sm:$0x8] %vm883, %v882
    %s892 = scalar_lea.vmem [#allocation2], 2948
    %893 = vst.msk [vmem:[%s892] sm:$0x10] %vm883, %v882
    %s894 = scalar_lea.vmem [#allocation2], 2979
    %895 = vst.msk [vmem:[%s894] sm:$0x20] %vm883, %v882
    %s896 = scalar_lea.vmem [#allocation2], 3010
    %897 = vst.msk [vmem:[%s896] sm:$0x40] %vm883, %v882
    %s898 = scalar_lea.vmem [#allocation2], 3041
    %899 = vst.msk [vmem:[%s898] sm:$0x80] %vm883, %v882
    %s900 = scalar_lea.vmem [#allocation0], 96
    %v901 = vld [vmem:[%s900] sm:$0xff]
    %902 = vrot.lane.b32.xlu0 %v901, 124
    %v903 = vpop.permute.xlu0 %902
    %vm904 = vcmask 15360
    %s905 = scalar_lea.vmem [#allocation2], 3080
    %906 = vst.msk [vmem:[%s905] sm:$0x1] %vm904, %v903
    %s907 = scalar_lea.vmem [#allocation2], 3111
    %908 = vst.msk [vmem:[%s907] sm:$0x2] %vm904, %v903
    %s909 = scalar_lea.vmem [#allocation2], 3142
    %910 = vst.msk [vmem:[%s909] sm:$0x4] %vm904, %v903
    %s911 = scalar_lea.vmem [#allocation2], 3173
    %912 = vst.msk [vmem:[%s911] sm:$0x8] %vm904, %v903
    %s913 = scalar_lea.vmem [#allocation2], 3204
    %914 = vst.msk [vmem:[%s913] sm:$0x10] %vm904, %v903
    %s915 = scalar_lea.vmem [#allocation2], 3235
    %916 = vst.msk [vmem:[%s915] sm:$0x20] %vm904, %v903
    %s917 = scalar_lea.vmem [#allocation2], 3266
    %918 = vst.msk [vmem:[%s917] sm:$0x40] %vm904, %v903
    %s919 = scalar_lea.vmem [#allocation2], 3297
    %920 = vst.msk [vmem:[%s919] sm:$0x80] %vm904, %v903
    %s921 = scalar_lea.vmem [#allocation0], 104
    %v922 = vld [vmem:[%s921] sm:$0xff]
    %923 = vrot.lane.b32.xlu0 %v922, 124
    %v924 = vpop.permute.xlu0 %923
    %vm925 = vcmask 15360
    %s926 = scalar_lea.vmem [#allocation2], 3336
    %927 = vst.msk [vmem:[%s926] sm:$0x1] %vm925, %v924
    %s928 = scalar_lea.vmem [#allocation2], 3367
    %929 = vst.msk [vmem:[%s928] sm:$0x2] %vm925, %v924
    %s930 = scalar_lea.vmem [#allocation2], 3398
    %931 = vst.msk [vmem:[%s930] sm:$0x4] %vm925, %v924
    %s932 = scalar_lea.vmem [#allocation2], 3429
    %933 = vst.msk [vmem:[%s932] sm:$0x8] %vm925, %v924
    %s934 = scalar_lea.vmem [#allocation2], 3460
    %935 = vst.msk [vmem:[%s934] sm:$0x10] %vm925, %v924
    %s936 = scalar_lea.vmem [#allocation2], 3491
    %937 = vst.msk [vmem:[%s936] sm:$0x20] %vm925, %v924
    %s938 = scalar_lea.vmem [#allocation2], 3522
    %939 = vst.msk [vmem:[%s938] sm:$0x40] %vm925, %v924
    %s940 = scalar_lea.vmem [#allocation2], 3553
    %941 = vst.msk [vmem:[%s940] sm:$0x80] %vm925, %v924
    %s942 = scalar_lea.vmem [#allocation0], 112
    %v943 = vld [vmem:[%s942] sm:$0xff]
    %944 = vrot.lane.b32.xlu0 %v943, 124
    %v945 = vpop.permute.xlu0 %944
    %vm946 = vcmask 15360
    %s947 = scalar_lea.vmem [#allocation2], 3592
    %948 = vst.msk [vmem:[%s947] sm:$0x1] %vm946, %v945
    %s949 = scalar_lea.vmem [#allocation2], 3623
    %950 = vst.msk [vmem:[%s949] sm:$0x2] %vm946, %v945
    %s951 = scalar_lea.vmem [#allocation2], 3654
    %952 = vst.msk [vmem:[%s951] sm:$0x4] %vm946, %v945
    %s953 = scalar_lea.vmem [#allocation2], 3685
    %954 = vst.msk [vmem:[%s953] sm:$0x8] %vm946, %v945
    %s955 = scalar_lea.vmem [#allocation2], 3716
    %956 = vst.msk [vmem:[%s955] sm:$0x10] %vm946, %v945
    %s957 = scalar_lea.vmem [#allocation2], 3747
    %958 = vst.msk [vmem:[%s957] sm:$0x20] %vm946, %v945
    %s959 = scalar_lea.vmem [#allocation2], 3778
    %960 = vst.msk [vmem:[%s959] sm:$0x40] %vm946, %v945
    %s961 = scalar_lea.vmem [#allocation2], 3809
    %962 = vst.msk [vmem:[%s961] sm:$0x80] %vm946, %v945
    %s963 = scalar_lea.vmem [#allocation0], 120
    %v964 = vld [vmem:[%s963] sm:$0xff]
    %965 = vrot.lane.b32.xlu0 %v964, 124
    %v966 = vpop.permute.xlu0 %965
    %vm967 = vcmask 15360
    %s968 = scalar_lea.vmem [#allocation2], 3848
    %969 = vst.msk [vmem:[%s968] sm:$0x1] %vm967, %v966
    %s970 = scalar_lea.vmem [#allocation2], 3879
    %971 = vst.msk [vmem:[%s970] sm:$0x2] %vm967, %v966
    %s972 = scalar_lea.vmem [#allocation2], 3910
    %973 = vst.msk [vmem:[%s972] sm:$0x4] %vm967, %v966
    %s974 = scalar_lea.vmem [#allocation2], 3941
    %975 = vst.msk [vmem:[%s974] sm:$0x8] %vm967, %v966
    %s976 = scalar_lea.vmem [#allocation2], 3972
    %977 = vst.msk [vmem:[%s976] sm:$0x10] %vm967, %v966
    %s978 = scalar_lea.vmem [#allocation2], 4003
    %979 = vst.msk [vmem:[%s978] sm:$0x20] %vm967, %v966
    %s980 = scalar_lea.vmem [#allocation2], 4034
    %981 = vst.msk [vmem:[%s980] sm:$0x40] %vm967, %v966
    %s982 = scalar_lea.vmem [#allocation2], 4065
    %983 = vst.msk [vmem:[%s982] sm:$0x80] %vm967, %v966
    %v984 = vld [vmem:[#allocation0] sm:$0xff]
    %985 = vrot.lane.b32.xlu0 %v984, 122
    %v986 = vpop.permute.xlu0 %985
    %vm987 = vcmask 15360
    %s988 = scalar_lea.vmem [#allocation2], 9
    %989 = vst.msk [vmem:[%s988] sm:$0x1] %vm987, %v986
    %s990 = scalar_lea.vmem [#allocation2], 40
    %991 = vst.msk [vmem:[%s990] sm:$0x2] %vm987, %v986
    %s992 = scalar_lea.vmem [#allocation2], 71
    %993 = vst.msk [vmem:[%s992] sm:$0x4] %vm987, %v986
    %s994 = scalar_lea.vmem [#allocation2], 102
    %995 = vst.msk [vmem:[%s994] sm:$0x8] %vm987, %v986
    %s996 = scalar_lea.vmem [#allocation2], 133
    %997 = vst.msk [vmem:[%s996] sm:$0x10] %vm987, %v986
    %s998 = scalar_lea.vmem [#allocation2], 164
    %999 = vst.msk [vmem:[%s998] sm:$0x20] %vm987, %v986
    %s1000 = scalar_lea.vmem [#allocation2], 195
    %1001 = vst.msk [vmem:[%s1000] sm:$0x40] %vm987, %v986
    %s1002 = scalar_lea.vmem [#allocation2], 226
    %1003 = vst.msk [vmem:[%s1002] sm:$0x80] %vm987, %v986
    %s1004 = scalar_lea.vmem [#allocation0], 8
    %v1005 = vld [vmem:[%s1004] sm:$0xff]
    %1006 = vrot.lane.b32.xlu0 %v1005, 122
    %v1007 = vpop.permute.xlu0 %1006
    %vm1008 = vcmask 15360
    %s1009 = scalar_lea.vmem [#allocation2], 265
    %1010 = vst.msk [vmem:[%s1009] sm:$0x1] %vm1008, %v1007
    %s1011 = scalar_lea.vmem [#allocation2], 296
    %1012 = vst.msk [vmem:[%s1011] sm:$0x2] %vm1008, %v1007
    %s1013 = scalar_lea.vmem [#allocation2], 327
    %1014 = vst.msk [vmem:[%s1013] sm:$0x4] %vm1008, %v1007
    %s1015 = scalar_lea.vmem [#allocation2], 358
    %1016 = vst.msk [vmem:[%s1015] sm:$0x8] %vm1008, %v1007
    %s1017 = scalar_lea.vmem [#allocation2], 389
    %1018 = vst.msk [vmem:[%s1017] sm:$0x10] %vm1008, %v1007
    %s1019 = scalar_lea.vmem [#allocation2], 420
    %1020 = vst.msk [vmem:[%s1019] sm:$0x20] %vm1008, %v1007
    %s1021 = scalar_lea.vmem [#allocation2], 451
    %1022 = vst.msk [vmem:[%s1021] sm:$0x40] %vm1008, %v1007
    %s1023 = scalar_lea.vmem [#allocation2], 482
    %1024 = vst.msk [vmem:[%s1023] sm:$0x80] %vm1008, %v1007
    %s1025 = scalar_lea.vmem [#allocation0], 16
    %v1026 = vld [vmem:[%s1025] sm:$0xff]
    %1027 = vrot.lane.b32.xlu0 %v1026, 122
    %v1028 = vpop.permute.xlu0 %1027
    %vm1029 = vcmask 15360
    %s1030 = scalar_lea.vmem [#allocation2], 521
    %1031 = vst.msk [vmem:[%s1030] sm:$0x1] %vm1029, %v1028
    %s1032 = scalar_lea.vmem [#allocation2], 552
    %1033 = vst.msk [vmem:[%s1032] sm:$0x2] %vm1029, %v1028
    %s1034 = scalar_lea.vmem [#allocation2], 583
    %1035 = vst.msk [vmem:[%s1034] sm:$0x4] %vm1029, %v1028
    %s1036 = scalar_lea.vmem [#allocation2], 614
    %1037 = vst.msk [vmem:[%s1036] sm:$0x8] %vm1029, %v1028
    %s1038 = scalar_lea.vmem [#allocation2], 645
    %1039 = vst.msk [vmem:[%s1038] sm:$0x10] %vm1029, %v1028
    %s1040 = scalar_lea.vmem [#allocation2], 676
    %1041 = vst.msk [vmem:[%s1040] sm:$0x20] %vm1029, %v1028
    %s1042 = scalar_lea.vmem [#allocation2], 707
    %1043 = vst.msk [vmem:[%s1042] sm:$0x40] %vm1029, %v1028
    %s1044 = scalar_lea.vmem [#allocation2], 738
    %1045 = vst.msk [vmem:[%s1044] sm:$0x80] %vm1029, %v1028
    %s1046 = scalar_lea.vmem [#allocation0], 24
    %v1047 = vld [vmem:[%s1046] sm:$0xff]
    %1048 = vrot.lane.b32.xlu0 %v1047, 122
    %v1049 = vpop.permute.xlu0 %1048
    %vm1050 = vcmask 15360
    %s1051 = scalar_lea.vmem [#allocation2], 777
    %1052 = vst.msk [vmem:[%s1051] sm:$0x1] %vm1050, %v1049
    %s1053 = scalar_lea.vmem [#allocation2], 808
    %1054 = vst.msk [vmem:[%s1053] sm:$0x2] %vm1050, %v1049
    %s1055 = scalar_lea.vmem [#allocation2], 839
    %1056 = vst.msk [vmem:[%s1055] sm:$0x4] %vm1050, %v1049
    %s1057 = scalar_lea.vmem [#allocation2], 870
    %1058 = vst.msk [vmem:[%s1057] sm:$0x8] %vm1050, %v1049
    %s1059 = scalar_lea.vmem [#allocation2], 901
    %1060 = vst.msk [vmem:[%s1059] sm:$0x10] %vm1050, %v1049
    %s1061 = scalar_lea.vmem [#allocation2], 932
    %1062 = vst.msk [vmem:[%s1061] sm:$0x20] %vm1050, %v1049
    %s1063 = scalar_lea.vmem [#allocation2], 963
    %1064 = vst.msk [vmem:[%s1063] sm:$0x40] %vm1050, %v1049
    %s1065 = scalar_lea.vmem [#allocation2], 994
    %1066 = vst.msk [vmem:[%s1065] sm:$0x80] %vm1050, %v1049
    %s1067 = scalar_lea.vmem [#allocation0], 32
    %v1068 = vld [vmem:[%s1067] sm:$0xff]
    %1069 = vrot.lane.b32.xlu0 %v1068, 122
    %v1070 = vpop.permute.xlu0 %1069
    %vm1071 = vcmask 15360
    %s1072 = scalar_lea.vmem [#allocation2], 1033
    %1073 = vst.msk [vmem:[%s1072] sm:$0x1] %vm1071, %v1070
    %s1074 = scalar_lea.vmem [#allocation2], 1064
    %1075 = vst.msk [vmem:[%s1074] sm:$0x2] %vm1071, %v1070
    %s1076 = scalar_lea.vmem [#allocation2], 1095
    %1077 = vst.msk [vmem:[%s1076] sm:$0x4] %vm1071, %v1070
    %s1078 = scalar_lea.vmem [#allocation2], 1126
    %1079 = vst.msk [vmem:[%s1078] sm:$0x8] %vm1071, %v1070
    %s1080 = scalar_lea.vmem [#allocation2], 1157
    %1081 = vst.msk [vmem:[%s1080] sm:$0x10] %vm1071, %v1070
    %s1082 = scalar_lea.vmem [#allocation2], 1188
    %1083 = vst.msk [vmem:[%s1082] sm:$0x20] %vm1071, %v1070
    %s1084 = scalar_lea.vmem [#allocation2], 1219
    %1085 = vst.msk [vmem:[%s1084] sm:$0x40] %vm1071, %v1070
    %s1086 = scalar_lea.vmem [#allocation2], 1250
    %1087 = vst.msk [vmem:[%s1086] sm:$0x80] %vm1071, %v1070
    %s1088 = scalar_lea.vmem [#allocation0], 40
    %v1089 = vld [vmem:[%s1088] sm:$0xff]
    %1090 = vrot.lane.b32.xlu0 %v1089, 122
    %v1091 = vpop.permute.xlu0 %1090
    %vm1092 = vcmask 15360
    %s1093 = scalar_lea.vmem [#allocation2], 1289
    %1094 = vst.msk [vmem:[%s1093] sm:$0x1] %vm1092, %v1091
    %s1095 = scalar_lea.vmem [#allocation2], 1320
    %1096 = vst.msk [vmem:[%s1095] sm:$0x2] %vm1092, %v1091
    %s1097 = scalar_lea.vmem [#allocation2], 1351
    %1098 = vst.msk [vmem:[%s1097] sm:$0x4] %vm1092, %v1091
    %s1099 = scalar_lea.vmem [#allocation2], 1382
    %1100 = vst.msk [vmem:[%s1099] sm:$0x8] %vm1092, %v1091
    %s1101 = scalar_lea.vmem [#allocation2], 1413
    %1102 = vst.msk [vmem:[%s1101] sm:$0x10] %vm1092, %v1091
    %s1103 = scalar_lea.vmem [#allocation2], 1444
    %1104 = vst.msk [vmem:[%s1103] sm:$0x20] %vm1092, %v1091
    %s1105 = scalar_lea.vmem [#allocation2], 1475
    %1106 = vst.msk [vmem:[%s1105] sm:$0x40] %vm1092, %v1091
    %s1107 = scalar_lea.vmem [#allocation2], 1506
    %1108 = vst.msk [vmem:[%s1107] sm:$0x80] %vm1092, %v1091
    %s1109 = scalar_lea.vmem [#allocation0], 48
    %v1110 = vld [vmem:[%s1109] sm:$0xff]
    %1111 = vrot.lane.b32.xlu0 %v1110, 122
    %v1112 = vpop.permute.xlu0 %1111
    %vm1113 = vcmask 15360
    %s1114 = scalar_lea.vmem [#allocation2], 1545
    %1115 = vst.msk [vmem:[%s1114] sm:$0x1] %vm1113, %v1112
    %s1116 = scalar_lea.vmem [#allocation2], 1576
    %1117 = vst.msk [vmem:[%s1116] sm:$0x2] %vm1113, %v1112
    %s1118 = scalar_lea.vmem [#allocation2], 1607
    %1119 = vst.msk [vmem:[%s1118] sm:$0x4] %vm1113, %v1112
    %s1120 = scalar_lea.vmem [#allocation2], 1638
    %1121 = vst.msk [vmem:[%s1120] sm:$0x8] %vm1113, %v1112
    %s1122 = scalar_lea.vmem [#allocation2], 1669
    %1123 = vst.msk [vmem:[%s1122] sm:$0x10] %vm1113, %v1112
    %s1124 = scalar_lea.vmem [#allocation2], 1700
    %1125 = vst.msk [vmem:[%s1124] sm:$0x20] %vm1113, %v1112
    %s1126 = scalar_lea.vmem [#allocation2], 1731
    %1127 = vst.msk [vmem:[%s1126] sm:$0x40] %vm1113, %v1112
    %s1128 = scalar_lea.vmem [#allocation2], 1762
    %1129 = vst.msk [vmem:[%s1128] sm:$0x80] %vm1113, %v1112
    %s1130 = scalar_lea.vmem [#allocation0], 56
    %v1131 = vld [vmem:[%s1130] sm:$0xff]
    %1132 = vrot.lane.b32.xlu0 %v1131, 122
    %v1133 = vpop.permute.xlu0 %1132
    %vm1134 = vcmask 15360
    %s1135 = scalar_lea.vmem [#allocation2], 1801
    %1136 = vst.msk [vmem:[%s1135] sm:$0x1] %vm1134, %v1133
    %s1137 = scalar_lea.vmem [#allocation2], 1832
    %1138 = vst.msk [vmem:[%s1137] sm:$0x2] %vm1134, %v1133
    %s1139 = scalar_lea.vmem [#allocation2], 1863
    %1140 = vst.msk [vmem:[%s1139] sm:$0x4] %vm1134, %v1133
    %s1141 = scalar_lea.vmem [#allocation2], 1894
    %1142 = vst.msk [vmem:[%s1141] sm:$0x8] %vm1134, %v1133
    %s1143 = scalar_lea.vmem [#allocation2], 1925
    %1144 = vst.msk [vmem:[%s1143] sm:$0x10] %vm1134, %v1133
    %s1145 = scalar_lea.vmem [#allocation2], 1956
    %1146 = vst.msk [vmem:[%s1145] sm:$0x20] %vm1134, %v1133
    %s1147 = scalar_lea.vmem [#allocation2], 1987
    %1148 = vst.msk [vmem:[%s1147] sm:$0x40] %vm1134, %v1133
    %s1149 = scalar_lea.vmem [#allocation2], 2018
    %1150 = vst.msk [vmem:[%s1149] sm:$0x80] %vm1134, %v1133
    %s1151 = scalar_lea.vmem [#allocation0], 64
    %v1152 = vld [vmem:[%s1151] sm:$0xff]
    %1153 = vrot.lane.b32.xlu0 %v1152, 122
    %v1154 = vpop.permute.xlu0 %1153
    %vm1155 = vcmask 15360
    %s1156 = scalar_lea.vmem [#allocation2], 2057
    %1157 = vst.msk [vmem:[%s1156] sm:$0x1] %vm1155, %v1154
    %s1158 = scalar_lea.vmem [#allocation2], 2088
    %1159 = vst.msk [vmem:[%s1158] sm:$0x2] %vm1155, %v1154
    %s1160 = scalar_lea.vmem [#allocation2], 2119
    %1161 = vst.msk [vmem:[%s1160] sm:$0x4] %vm1155, %v1154
    %s1162 = scalar_lea.vmem [#allocation2], 2150
    %1163 = vst.msk [vmem:[%s1162] sm:$0x8] %vm1155, %v1154
    %s1164 = scalar_lea.vmem [#allocation2], 2181
    %1165 = vst.msk [vmem:[%s1164] sm:$0x10] %vm1155, %v1154
    %s1166 = scalar_lea.vmem [#allocation2], 2212
    %1167 = vst.msk [vmem:[%s1166] sm:$0x20] %vm1155, %v1154
    %s1168 = scalar_lea.vmem [#allocation2], 2243
    %1169 = vst.msk [vmem:[%s1168] sm:$0x40] %vm1155, %v1154
    %s1170 = scalar_lea.vmem [#allocation2], 2274
    %1171 = vst.msk [vmem:[%s1170] sm:$0x80] %vm1155, %v1154
    %s1172 = scalar_lea.vmem [#allocation0], 72
    %v1173 = vld [vmem:[%s1172] sm:$0xff]
    %1174 = vrot.lane.b32.xlu0 %v1173, 122
    %v1175 = vpop.permute.xlu0 %1174
    %vm1176 = vcmask 15360
    %s1177 = scalar_lea.vmem [#allocation2], 2313
    %1178 = vst.msk [vmem:[%s1177] sm:$0x1] %vm1176, %v1175
    %s1179 = scalar_lea.vmem [#allocation2], 2344
    %1180 = vst.msk [vmem:[%s1179] sm:$0x2] %vm1176, %v1175
    %s1181 = scalar_lea.vmem [#allocation2], 2375
    %1182 = vst.msk [vmem:[%s1181] sm:$0x4] %vm1176, %v1175
    %s1183 = scalar_lea.vmem [#allocation2], 2406
    %1184 = vst.msk [vmem:[%s1183] sm:$0x8] %vm1176, %v1175
    %s1185 = scalar_lea.vmem [#allocation2], 2437
    %1186 = vst.msk [vmem:[%s1185] sm:$0x10] %vm1176, %v1175
    %s1187 = scalar_lea.vmem [#allocation2], 2468
    %1188 = vst.msk [vmem:[%s1187] sm:$0x20] %vm1176, %v1175
    %s1189 = scalar_lea.vmem [#allocation2], 2499
    %1190 = vst.msk [vmem:[%s1189] sm:$0x40] %vm1176, %v1175
    %s1191 = scalar_lea.vmem [#allocation2], 2530
    %1192 = vst.msk [vmem:[%s1191] sm:$0x80] %vm1176, %v1175
    %s1193 = scalar_lea.vmem [#allocation0], 80
    %v1194 = vld [vmem:[%s1193] sm:$0xff]
    %1195 = vrot.lane.b32.xlu0 %v1194, 122
    %v1196 = vpop.permute.xlu0 %1195
    %vm1197 = vcmask 15360
    %s1198 = scalar_lea.vmem [#allocation2], 2569
    %1199 = vst.msk [vmem:[%s1198] sm:$0x1] %vm1197, %v1196
    %s1200 = scalar_lea.vmem [#allocation2], 2600
    %1201 = vst.msk [vmem:[%s1200] sm:$0x2] %vm1197, %v1196
    %s1202 = scalar_lea.vmem [#allocation2], 2631
    %1203 = vst.msk [vmem:[%s1202] sm:$0x4] %vm1197, %v1196
    %s1204 = scalar_lea.vmem [#allocation2], 2662
    %1205 = vst.msk [vmem:[%s1204] sm:$0x8] %vm1197, %v1196
    %s1206 = scalar_lea.vmem [#allocation2], 2693
    %1207 = vst.msk [vmem:[%s1206] sm:$0x10] %vm1197, %v1196
    %s1208 = scalar_lea.vmem [#allocation2], 2724
    %1209 = vst.msk [vmem:[%s1208] sm:$0x20] %vm1197, %v1196
    %s1210 = scalar_lea.vmem [#allocation2], 2755
    %1211 = vst.msk [vmem:[%s1210] sm:$0x40] %vm1197, %v1196
    %s1212 = scalar_lea.vmem [#allocation2], 2786
    %1213 = vst.msk [vmem:[%s1212] sm:$0x80] %vm1197, %v1196
    %s1214 = scalar_lea.vmem [#allocation0], 88
    %v1215 = vld [vmem:[%s1214] sm:$0xff]
    %1216 = vrot.lane.b32.xlu0 %v1215, 122
    %v1217 = vpop.permute.xlu0 %1216
    %vm1218 = vcmask 15360
    %s1219 = scalar_lea.vmem [#allocation2], 2825
    %1220 = vst.msk [vmem:[%s1219] sm:$0x1] %vm1218, %v1217
    %s1221 = scalar_lea.vmem [#allocation2], 2856
    %1222 = vst.msk [vmem:[%s1221] sm:$0x2] %vm1218, %v1217
    %s1223 = scalar_lea.vmem [#allocation2], 2887
    %1224 = vst.msk [vmem:[%s1223] sm:$0x4] %vm1218, %v1217
    %s1225 = scalar_lea.vmem [#allocation2], 2918
    %1226 = vst.msk [vmem:[%s1225] sm:$0x8] %vm1218, %v1217
    %s1227 = scalar_lea.vmem [#allocation2], 2949
    %1228 = vst.msk [vmem:[%s1227] sm:$0x10] %vm1218, %v1217
    %s1229 = scalar_lea.vmem [#allocation2], 2980
    %1230 = vst.msk [vmem:[%s1229] sm:$0x20] %vm1218, %v1217
    %s1231 = scalar_lea.vmem [#allocation2], 3011
    %1232 = vst.msk [vmem:[%s1231] sm:$0x40] %vm1218, %v1217
    %s1233 = scalar_lea.vmem [#allocation2], 3042
    %1234 = vst.msk [vmem:[%s1233] sm:$0x80] %vm1218, %v1217
    %s1235 = scalar_lea.vmem [#allocation0], 96
    %v1236 = vld [vmem:[%s1235] sm:$0xff]
    %1237 = vrot.lane.b32.xlu0 %v1236, 122
    %v1238 = vpop.permute.xlu0 %1237
    %vm1239 = vcmask 15360
    %s1240 = scalar_lea.vmem [#allocation2], 3081
    %1241 = vst.msk [vmem:[%s1240] sm:$0x1] %vm1239, %v1238
    %s1242 = scalar_lea.vmem [#allocation2], 3112
    %1243 = vst.msk [vmem:[%s1242] sm:$0x2] %vm1239, %v1238
    %s1244 = scalar_lea.vmem [#allocation2], 3143
    %1245 = vst.msk [vmem:[%s1244] sm:$0x4] %vm1239, %v1238
    %s1246 = scalar_lea.vmem [#allocation2], 3174
    %1247 = vst.msk [vmem:[%s1246] sm:$0x8] %vm1239, %v1238
    %s1248 = scalar_lea.vmem [#allocation2], 3205
    %1249 = vst.msk [vmem:[%s1248] sm:$0x10] %vm1239, %v1238
    %s1250 = scalar_lea.vmem [#allocation2], 3236
    %1251 = vst.msk [vmem:[%s1250] sm:$0x20] %vm1239, %v1238
    %s1252 = scalar_lea.vmem [#allocation2], 3267
    %1253 = vst.msk [vmem:[%s1252] sm:$0x40] %vm1239, %v1238
    %s1254 = scalar_lea.vmem [#allocation2], 3298
    %1255 = vst.msk [vmem:[%s1254] sm:$0x80] %vm1239, %v1238
    %s1256 = scalar_lea.vmem [#allocation0], 104
    %v1257 = vld [vmem:[%s1256] sm:$0xff]
    %1258 = vrot.lane.b32.xlu0 %v1257, 122
    %v1259 = vpop.permute.xlu0 %1258
    %vm1260 = vcmask 15360
    %s1261 = scalar_lea.vmem [#allocation2], 3337
    %1262 = vst.msk [vmem:[%s1261] sm:$0x1] %vm1260, %v1259
    %s1263 = scalar_lea.vmem [#allocation2], 3368
    %1264 = vst.msk [vmem:[%s1263] sm:$0x2] %vm1260, %v1259
    %s1265 = scalar_lea.vmem [#allocation2], 3399
    %1266 = vst.msk [vmem:[%s1265] sm:$0x4] %vm1260, %v1259
    %s1267 = scalar_lea.vmem [#allocation2], 3430
    %1268 = vst.msk [vmem:[%s1267] sm:$0x8] %vm1260, %v1259
    %s1269 = scalar_lea.vmem [#allocation2], 3461
    %1270 = vst.msk [vmem:[%s1269] sm:$0x10] %vm1260, %v1259
    %s1271 = scalar_lea.vmem [#allocation2], 3492
    %1272 = vst.msk [vmem:[%s1271] sm:$0x20] %vm1260, %v1259
    %s1273 = scalar_lea.vmem [#allocation2], 3523
    %1274 = vst.msk [vmem:[%s1273] sm:$0x40] %vm1260, %v1259
    %s1275 = scalar_lea.vmem [#allocation2], 3554
    %1276 = vst.msk [vmem:[%s1275] sm:$0x80] %vm1260, %v1259
    %s1277 = scalar_lea.vmem [#allocation0], 112
    %v1278 = vld [vmem:[%s1277] sm:$0xff]
    %1279 = vrot.lane.b32.xlu0 %v1278, 122
    %v1280 = vpop.permute.xlu0 %1279
    %vm1281 = vcmask 15360
    %s1282 = scalar_lea.vmem [#allocation2], 3593
    %1283 = vst.msk [vmem:[%s1282] sm:$0x1] %vm1281, %v1280
    %s1284 = scalar_lea.vmem [#allocation2], 3624
    %1285 = vst.msk [vmem:[%s1284] sm:$0x2] %vm1281, %v1280
    %s1286 = scalar_lea.vmem [#allocation2], 3655
    %1287 = vst.msk [vmem:[%s1286] sm:$0x4] %vm1281, %v1280
    %s1288 = scalar_lea.vmem [#allocation2], 3686
    %1289 = vst.msk [vmem:[%s1288] sm:$0x8] %vm1281, %v1280
    %s1290 = scalar_lea.vmem [#allocation2], 3717
    %1291 = vst.msk [vmem:[%s1290] sm:$0x10] %vm1281, %v1280
    %s1292 = scalar_lea.vmem [#allocation2], 3748
    %1293 = vst.msk [vmem:[%s1292] sm:$0x20] %vm1281, %v1280
    %s1294 = scalar_lea.vmem [#allocation2], 3779
    %1295 = vst.msk [vmem:[%s1294] sm:$0x40] %vm1281, %v1280
    %s1296 = scalar_lea.vmem [#allocation2], 3810
    %1297 = vst.msk [vmem:[%s1296] sm:$0x80] %vm1281, %v1280
    %s1298 = scalar_lea.vmem [#allocation0], 120
    %v1299 = vld [vmem:[%s1298] sm:$0xff]
    %1300 = vrot.lane.b32.xlu0 %v1299, 122
    %v1301 = vpop.permute.xlu0 %1300
    %vm1302 = vcmask 15360
    %s1303 = scalar_lea.vmem [#allocation2], 3849
    %1304 = vst.msk [vmem:[%s1303] sm:$0x1] %vm1302, %v1301
    %s1305 = scalar_lea.vmem [#allocation2], 3880
    %1306 = vst.msk [vmem:[%s1305] sm:$0x2] %vm1302, %v1301
    %s1307 = scalar_lea.vmem [#allocation2], 3911
    %1308 = vst.msk [vmem:[%s1307] sm:$0x4] %vm1302, %v1301
    %s1309 = scalar_lea.vmem [#allocation2], 3942
    %1310 = vst.msk [vmem:[%s1309] sm:$0x8] %vm1302, %v1301
    %s1311 = scalar_lea.vmem [#allocation2], 3973
    %1312 = vst.msk [vmem:[%s1311] sm:$0x10] %vm1302, %v1301
    %s1313 = scalar_lea.vmem [#allocation2], 4004
    %1314 = vst.msk [vmem:[%s1313] sm:$0x20] %vm1302, %v1301
    %s1315 = scalar_lea.vmem [#allocation2], 4035
    %1316 = vst.msk [vmem:[%s1315] sm:$0x40] %vm1302, %v1301
    %s1317 = scalar_lea.vmem [#allocation2], 4066
    %1318 = vst.msk [vmem:[%s1317] sm:$0x80] %vm1302, %v1301
    %v1319 = vld [vmem:[#allocation0] sm:$0xff]
    %1320 = vrot.lane.b32.xlu0 %v1319, 120
    %v1321 = vpop.permute.xlu0 %1320
    %vm1322 = vcmask 15360
    %s1323 = scalar_lea.vmem [#allocation2], 16
    %1324 = vst.msk [vmem:[%s1323] sm:$0x1] %vm1322, %v1321
    %s1325 = scalar_lea.vmem [#allocation2], 47
    %1326 = vst.msk [vmem:[%s1325] sm:$0x2] %vm1322, %v1321
    %s1327 = scalar_lea.vmem [#allocation2], 78
    %1328 = vst.msk [vmem:[%s1327] sm:$0x4] %vm1322, %v1321
    %s1329 = scalar_lea.vmem [#allocation2], 109
    %1330 = vst.msk [vmem:[%s1329] sm:$0x8] %vm1322, %v1321
    %s1331 = scalar_lea.vmem [#allocation2], 140
    %1332 = vst.msk [vmem:[%s1331] sm:$0x10] %vm1322, %v1321
    %s1333 = scalar_lea.vmem [#allocation2], 171
    %1334 = vst.msk [vmem:[%s1333] sm:$0x20] %vm1322, %v1321
    %s1335 = scalar_lea.vmem [#allocation2], 202
    %1336 = vst.msk [vmem:[%s1335] sm:$0x40] %vm1322, %v1321
    %s1337 = scalar_lea.vmem [#allocation2], 233
    %1338 = vst.msk [vmem:[%s1337] sm:$0x80] %vm1322, %v1321
    %s1339 = scalar_lea.vmem [#allocation0], 8
    %v1340 = vld [vmem:[%s1339] sm:$0xff]
    %1341 = vrot.lane.b32.xlu0 %v1340, 120
    %v1342 = vpop.permute.xlu0 %1341
    %vm1343 = vcmask 15360
    %s1344 = scalar_lea.vmem [#allocation2], 272
    %1345 = vst.msk [vmem:[%s1344] sm:$0x1] %vm1343, %v1342
    %s1346 = scalar_lea.vmem [#allocation2], 303
    %1347 = vst.msk [vmem:[%s1346] sm:$0x2] %vm1343, %v1342
    %s1348 = scalar_lea.vmem [#allocation2], 334
    %1349 = vst.msk [vmem:[%s1348] sm:$0x4] %vm1343, %v1342
    %s1350 = scalar_lea.vmem [#allocation2], 365
    %1351 = vst.msk [vmem:[%s1350] sm:$0x8] %vm1343, %v1342
    %s1352 = scalar_lea.vmem [#allocation2], 396
    %1353 = vst.msk [vmem:[%s1352] sm:$0x10] %vm1343, %v1342
    %s1354 = scalar_lea.vmem [#allocation2], 427
    %1355 = vst.msk [vmem:[%s1354] sm:$0x20] %vm1343, %v1342
    %s1356 = scalar_lea.vmem [#allocation2], 458
    %1357 = vst.msk [vmem:[%s1356] sm:$0x40] %vm1343, %v1342
    %s1358 = scalar_lea.vmem [#allocation2], 489
    %1359 = vst.msk [vmem:[%s1358] sm:$0x80] %vm1343, %v1342
    %s1360 = scalar_lea.vmem [#allocation0], 16
    %v1361 = vld [vmem:[%s1360] sm:$0xff]
    %1362 = vrot.lane.b32.xlu0 %v1361, 120
    %v1363 = vpop.permute.xlu0 %1362
    %vm1364 = vcmask 15360
    %s1365 = scalar_lea.vmem [#allocation2], 528
    %1366 = vst.msk [vmem:[%s1365] sm:$0x1] %vm1364, %v1363
    %s1367 = scalar_lea.vmem [#allocation2], 559
    %1368 = vst.msk [vmem:[%s1367] sm:$0x2] %vm1364, %v1363
    %s1369 = scalar_lea.vmem [#allocation2], 590
    %1370 = vst.msk [vmem:[%s1369] sm:$0x4] %vm1364, %v1363
    %s1371 = scalar_lea.vmem [#allocation2], 621
    %1372 = vst.msk [vmem:[%s1371] sm:$0x8] %vm1364, %v1363
    %s1373 = scalar_lea.vmem [#allocation2], 652
    %1374 = vst.msk [vmem:[%s1373] sm:$0x10] %vm1364, %v1363
    %s1375 = scalar_lea.vmem [#allocation2], 683
    %1376 = vst.msk [vmem:[%s1375] sm:$0x20] %vm1364, %v1363
    %s1377 = scalar_lea.vmem [#allocation2], 714
    %1378 = vst.msk [vmem:[%s1377] sm:$0x40] %vm1364, %v1363
    %s1379 = scalar_lea.vmem [#allocation2], 745
    %1380 = vst.msk [vmem:[%s1379] sm:$0x80] %vm1364, %v1363
    %s1381 = scalar_lea.vmem [#allocation0], 24
    %v1382 = vld [vmem:[%s1381] sm:$0xff]
    %1383 = vrot.lane.b32.xlu0 %v1382, 120
    %v1384 = vpop.permute.xlu0 %1383
    %vm1385 = vcmask 15360
    %s1386 = scalar_lea.vmem [#allocation2], 784
    %1387 = vst.msk [vmem:[%s1386] sm:$0x1] %vm1385, %v1384
    %s1388 = scalar_lea.vmem [#allocation2], 815
    %1389 = vst.msk [vmem:[%s1388] sm:$0x2] %vm1385, %v1384
    %s1390 = scalar_lea.vmem [#allocation2], 846
    %1391 = vst.msk [vmem:[%s1390] sm:$0x4] %vm1385, %v1384
    %s1392 = scalar_lea.vmem [#allocation2], 877
    %1393 = vst.msk [vmem:[%s1392] sm:$0x8] %vm1385, %v1384
    %s1394 = scalar_lea.vmem [#allocation2], 908
    %1395 = vst.msk [vmem:[%s1394] sm:$0x10] %vm1385, %v1384
    %s1396 = scalar_lea.vmem [#allocation2], 939
    %1397 = vst.msk [vmem:[%s1396] sm:$0x20] %vm1385, %v1384
    %s1398 = scalar_lea.vmem [#allocation2], 970
    %1399 = vst.msk [vmem:[%s1398] sm:$0x40] %vm1385, %v1384
    %s1400 = scalar_lea.vmem [#allocation2], 1001
    %1401 = vst.msk [vmem:[%s1400] sm:$0x80] %vm1385, %v1384
    %s1402 = scalar_lea.vmem [#allocation0], 32
    %v1403 = vld [vmem:[%s1402] sm:$0xff]
    %1404 = vrot.lane.b32.xlu0 %v1403, 120
    %v1405 = vpop.permute.xlu0 %1404
    %vm1406 = vcmask 15360
    %s1407 = scalar_lea.vmem [#allocation2], 1040
    %1408 = vst.msk [vmem:[%s1407] sm:$0x1] %vm1406, %v1405
    %s1409 = scalar_lea.vmem [#allocation2], 1071
    %1410 = vst.msk [vmem:[%s1409] sm:$0x2] %vm1406, %v1405
    %s1411 = scalar_lea.vmem [#allocation2], 1102
    %1412 = vst.msk [vmem:[%s1411] sm:$0x4] %vm1406, %v1405
    %s1413 = scalar_lea.vmem [#allocation2], 1133
    %1414 = vst.msk [vmem:[%s1413] sm:$0x8] %vm1406, %v1405
    %s1415 = scalar_lea.vmem [#allocation2], 1164
    %1416 = vst.msk [vmem:[%s1415] sm:$0x10] %vm1406, %v1405
    %s1417 = scalar_lea.vmem [#allocation2], 1195
    %1418 = vst.msk [vmem:[%s1417] sm:$0x20] %vm1406, %v1405
    %s1419 = scalar_lea.vmem [#allocation2], 1226
    %1420 = vst.msk [vmem:[%s1419] sm:$0x40] %vm1406, %v1405
    %s1421 = scalar_lea.vmem [#allocation2], 1257
    %1422 = vst.msk [vmem:[%s1421] sm:$0x80] %vm1406, %v1405
    %s1423 = scalar_lea.vmem [#allocation0], 40
    %v1424 = vld [vmem:[%s1423] sm:$0xff]
    %1425 = vrot.lane.b32.xlu0 %v1424, 120
    %v1426 = vpop.permute.xlu0 %1425
    %vm1427 = vcmask 15360
    %s1428 = scalar_lea.vmem [#allocation2], 1296
    %1429 = vst.msk [vmem:[%s1428] sm:$0x1] %vm1427, %v1426
    %s1430 = scalar_lea.vmem [#allocation2], 1327
    %1431 = vst.msk [vmem:[%s1430] sm:$0x2] %vm1427, %v1426
    %s1432 = scalar_lea.vmem [#allocation2], 1358
    %1433 = vst.msk [vmem:[%s1432] sm:$0x4] %vm1427, %v1426
    %s1434 = scalar_lea.vmem [#allocation2], 1389
    %1435 = vst.msk [vmem:[%s1434] sm:$0x8] %vm1427, %v1426
    %s1436 = scalar_lea.vmem [#allocation2], 1420
    %1437 = vst.msk [vmem:[%s1436] sm:$0x10] %vm1427, %v1426
    %s1438 = scalar_lea.vmem [#allocation2], 1451
    %1439 = vst.msk [vmem:[%s1438] sm:$0x20] %vm1427, %v1426
    %s1440 = scalar_lea.vmem [#allocation2], 1482
    %1441 = vst.msk [vmem:[%s1440] sm:$0x40] %vm1427, %v1426
    %s1442 = scalar_lea.vmem [#allocation2], 1513
    %1443 = vst.msk [vmem:[%s1442] sm:$0x80] %vm1427, %v1426
    %s1444 = scalar_lea.vmem [#allocation0], 48
    %v1445 = vld [vmem:[%s1444] sm:$0xff]
    %1446 = vrot.lane.b32.xlu0 %v1445, 120
    %v1447 = vpop.permute.xlu0 %1446
    %vm1448 = vcmask 15360
    %s1449 = scalar_lea.vmem [#allocation2], 1552
    %1450 = vst.msk [vmem:[%s1449] sm:$0x1] %vm1448, %v1447
    %s1451 = scalar_lea.vmem [#allocation2], 1583
    %1452 = vst.msk [vmem:[%s1451] sm:$0x2] %vm1448, %v1447
    %s1453 = scalar_lea.vmem [#allocation2], 1614
    %1454 = vst.msk [vmem:[%s1453] sm:$0x4] %vm1448, %v1447
    %s1455 = scalar_lea.vmem [#allocation2], 1645
    %1456 = vst.msk [vmem:[%s1455] sm:$0x8] %vm1448, %v1447
    %s1457 = scalar_lea.vmem [#allocation2], 1676
    %1458 = vst.msk [vmem:[%s1457] sm:$0x10] %vm1448, %v1447
    %s1459 = scalar_lea.vmem [#allocation2], 1707
    %1460 = vst.msk [vmem:[%s1459] sm:$0x20] %vm1448, %v1447
    %s1461 = scalar_lea.vmem [#allocation2], 1738
    %1462 = vst.msk [vmem:[%s1461] sm:$0x40] %vm1448, %v1447
    %s1463 = scalar_lea.vmem [#allocation2], 1769
    %1464 = vst.msk [vmem:[%s1463] sm:$0x80] %vm1448, %v1447
    %s1465 = scalar_lea.vmem [#allocation0], 56
    %v1466 = vld [vmem:[%s1465] sm:$0xff]
    %1467 = vrot.lane.b32.xlu0 %v1466, 120
    %v1468 = vpop.permute.xlu0 %1467
    %vm1469 = vcmask 15360
    %s1470 = scalar_lea.vmem [#allocation2], 1808
    %1471 = vst.msk [vmem:[%s1470] sm:$0x1] %vm1469, %v1468
    %s1472 = scalar_lea.vmem [#allocation2], 1839
    %1473 = vst.msk [vmem:[%s1472] sm:$0x2] %vm1469, %v1468
    %s1474 = scalar_lea.vmem [#allocation2], 1870
    %1475 = vst.msk [vmem:[%s1474] sm:$0x4] %vm1469, %v1468
    %s1476 = scalar_lea.vmem [#allocation2], 1901
    %1477 = vst.msk [vmem:[%s1476] sm:$0x8] %vm1469, %v1468
    %s1478 = scalar_lea.vmem [#allocation2], 1932
    %1479 = vst.msk [vmem:[%s1478] sm:$0x10] %vm1469, %v1468
    %s1480 = scalar_lea.vmem [#allocation2], 1963
    %1481 = vst.msk [vmem:[%s1480] sm:$0x20] %vm1469, %v1468
    %s1482 = scalar_lea.vmem [#allocation2], 1994
    %1483 = vst.msk [vmem:[%s1482] sm:$0x40] %vm1469, %v1468
    %s1484 = scalar_lea.vmem [#allocation2], 2025
    %1485 = vst.msk [vmem:[%s1484] sm:$0x80] %vm1469, %v1468
    %s1486 = scalar_lea.vmem [#allocation0], 64
    %v1487 = vld [vmem:[%s1486] sm:$0xff]
    %1488 = vrot.lane.b32.xlu0 %v1487, 120
    %v1489 = vpop.permute.xlu0 %1488
    %vm1490 = vcmask 15360
    %s1491 = scalar_lea.vmem [#allocation2], 2064
    %1492 = vst.msk [vmem:[%s1491] sm:$0x1] %vm1490, %v1489
    %s1493 = scalar_lea.vmem [#allocation2], 2095
    %1494 = vst.msk [vmem:[%s1493] sm:$0x2] %vm1490, %v1489
    %s1495 = scalar_lea.vmem [#allocation2], 2126
    %1496 = vst.msk [vmem:[%s1495] sm:$0x4] %vm1490, %v1489
    %s1497 = scalar_lea.vmem [#allocation2], 2157
    %1498 = vst.msk [vmem:[%s1497] sm:$0x8] %vm1490, %v1489
    %s1499 = scalar_lea.vmem [#allocation2], 2188
    %1500 = vst.msk [vmem:[%s1499] sm:$0x10] %vm1490, %v1489
    %s1501 = scalar_lea.vmem [#allocation2], 2219
    %1502 = vst.msk [vmem:[%s1501] sm:$0x20] %vm1490, %v1489
    %s1503 = scalar_lea.vmem [#allocation2], 2250
    %1504 = vst.msk [vmem:[%s1503] sm:$0x40] %vm1490, %v1489
    %s1505 = scalar_lea.vmem [#allocation2], 2281
    %1506 = vst.msk [vmem:[%s1505] sm:$0x80] %vm1490, %v1489
    %s1507 = scalar_lea.vmem [#allocation0], 72
    %v1508 = vld [vmem:[%s1507] sm:$0xff]
    %1509 = vrot.lane.b32.xlu0 %v1508, 120
    %v1510 = vpop.permute.xlu0 %1509
    %vm1511 = vcmask 15360
    %s1512 = scalar_lea.vmem [#allocation2], 2320
    %1513 = vst.msk [vmem:[%s1512] sm:$0x1] %vm1511, %v1510
    %s1514 = scalar_lea.vmem [#allocation2], 2351
    %1515 = vst.msk [vmem:[%s1514] sm:$0x2] %vm1511, %v1510
    %s1516 = scalar_lea.vmem [#allocation2], 2382
    %1517 = vst.msk [vmem:[%s1516] sm:$0x4] %vm1511, %v1510
    %s1518 = scalar_lea.vmem [#allocation2], 2413
    %1519 = vst.msk [vmem:[%s1518] sm:$0x8] %vm1511, %v1510
    %s1520 = scalar_lea.vmem [#allocation2], 2444
    %1521 = vst.msk [vmem:[%s1520] sm:$0x10] %vm1511, %v1510
    %s1522 = scalar_lea.vmem [#allocation2], 2475
    %1523 = vst.msk [vmem:[%s1522] sm:$0x20] %vm1511, %v1510
    %s1524 = scalar_lea.vmem [#allocation2], 2506
    %1525 = vst.msk [vmem:[%s1524] sm:$0x40] %vm1511, %v1510
    %s1526 = scalar_lea.vmem [#allocation2], 2537
    %1527 = vst.msk [vmem:[%s1526] sm:$0x80] %vm1511, %v1510
    %s1528 = scalar_lea.vmem [#allocation0], 80
    %v1529 = vld [vmem:[%s1528] sm:$0xff]
    %1530 = vrot.lane.b32.xlu0 %v1529, 120
    %v1531 = vpop.permute.xlu0 %1530
    %vm1532 = vcmask 15360
    %s1533 = scalar_lea.vmem [#allocation2], 2576
    %1534 = vst.msk [vmem:[%s1533] sm:$0x1] %vm1532, %v1531
    %s1535 = scalar_lea.vmem [#allocation2], 2607
    %1536 = vst.msk [vmem:[%s1535] sm:$0x2] %vm1532, %v1531
    %s1537 = scalar_lea.vmem [#allocation2], 2638
    %1538 = vst.msk [vmem:[%s1537] sm:$0x4] %vm1532, %v1531
    %s1539 = scalar_lea.vmem [#allocation2], 2669
    %1540 = vst.msk [vmem:[%s1539] sm:$0x8] %vm1532, %v1531
    %s1541 = scalar_lea.vmem [#allocation2], 2700
    %1542 = vst.msk [vmem:[%s1541] sm:$0x10] %vm1532, %v1531
    %s1543 = scalar_lea.vmem [#allocation2], 2731
    %1544 = vst.msk [vmem:[%s1543] sm:$0x20] %vm1532, %v1531
    %s1545 = scalar_lea.vmem [#allocation2], 2762
    %1546 = vst.msk [vmem:[%s1545] sm:$0x40] %vm1532, %v1531
    %s1547 = scalar_lea.vmem [#allocation2], 2793
    %1548 = vst.msk [vmem:[%s1547] sm:$0x80] %vm1532, %v1531
    %s1549 = scalar_lea.vmem [#allocation0], 88
    %v1550 = vld [vmem:[%s1549] sm:$0xff]
    %1551 = vrot.lane.b32.xlu0 %v1550, 120
    %v1552 = vpop.permute.xlu0 %1551
    %vm1553 = vcmask 15360
    %s1554 = scalar_lea.vmem [#allocation2], 2832
    %1555 = vst.msk [vmem:[%s1554] sm:$0x1] %vm1553, %v1552
    %s1556 = scalar_lea.vmem [#allocation2], 2863
    %1557 = vst.msk [vmem:[%s1556] sm:$0x2] %vm1553, %v1552
    %s1558 = scalar_lea.vmem [#allocation2], 2894
    %1559 = vst.msk [vmem:[%s1558] sm:$0x4] %vm1553, %v1552
    %s1560 = scalar_lea.vmem [#allocation2], 2925
    %1561 = vst.msk [vmem:[%s1560] sm:$0x8] %vm1553, %v1552
    %s1562 = scalar_lea.vmem [#allocation2], 2956
    %1563 = vst.msk [vmem:[%s1562] sm:$0x10] %vm1553, %v1552
    %s1564 = scalar_lea.vmem [#allocation2], 2987
    %1565 = vst.msk [vmem:[%s1564] sm:$0x20] %vm1553, %v1552
    %s1566 = scalar_lea.vmem [#allocation2], 3018
    %1567 = vst.msk [vmem:[%s1566] sm:$0x40] %vm1553, %v1552
    %s1568 = scalar_lea.vmem [#allocation2], 3049
    %1569 = vst.msk [vmem:[%s1568] sm:$0x80] %vm1553, %v1552
    %s1570 = scalar_lea.vmem [#allocation0], 96
    %v1571 = vld [vmem:[%s1570] sm:$0xff]
    %1572 = vrot.lane.b32.xlu0 %v1571, 120
    %v1573 = vpop.permute.xlu0 %1572
    %vm1574 = vcmask 15360
    %s1575 = scalar_lea.vmem [#allocation2], 3088
    %1576 = vst.msk [vmem:[%s1575] sm:$0x1] %vm1574, %v1573
    %s1577 = scalar_lea.vmem [#allocation2], 3119
    %1578 = vst.msk [vmem:[%s1577] sm:$0x2] %vm1574, %v1573
    %s1579 = scalar_lea.vmem [#allocation2], 3150
    %1580 = vst.msk [vmem:[%s1579] sm:$0x4] %vm1574, %v1573
    %s1581 = scalar_lea.vmem [#allocation2], 3181
    %1582 = vst.msk [vmem:[%s1581] sm:$0x8] %vm1574, %v1573
    %s1583 = scalar_lea.vmem [#allocation2], 3212
    %1584 = vst.msk [vmem:[%s1583] sm:$0x10] %vm1574, %v1573
    %s1585 = scalar_lea.vmem [#allocation2], 3243
    %1586 = vst.msk [vmem:[%s1585] sm:$0x20] %vm1574, %v1573
    %s1587 = scalar_lea.vmem [#allocation2], 3274
    %1588 = vst.msk [vmem:[%s1587] sm:$0x40] %vm1574, %v1573
    %s1589 = scalar_lea.vmem [#allocation2], 3305
    %1590 = vst.msk [vmem:[%s1589] sm:$0x80] %vm1574, %v1573
    %s1591 = scalar_lea.vmem [#allocation0], 104
    %v1592 = vld [vmem:[%s1591] sm:$0xff]
    %1593 = vrot.lane.b32.xlu0 %v1592, 120
    %v1594 = vpop.permute.xlu0 %1593
    %vm1595 = vcmask 15360
    %s1596 = scalar_lea.vmem [#allocation2], 3344
    %1597 = vst.msk [vmem:[%s1596] sm:$0x1] %vm1595, %v1594
    %s1598 = scalar_lea.vmem [#allocation2], 3375
    %1599 = vst.msk [vmem:[%s1598] sm:$0x2] %vm1595, %v1594
    %s1600 = scalar_lea.vmem [#allocation2], 3406
    %1601 = vst.msk [vmem:[%s1600] sm:$0x4] %vm1595, %v1594
    %s1602 = scalar_lea.vmem [#allocation2], 3437
    %1603 = vst.msk [vmem:[%s1602] sm:$0x8] %vm1595, %v1594
    %s1604 = scalar_lea.vmem [#allocation2], 3468
    %1605 = vst.msk [vmem:[%s1604] sm:$0x10] %vm1595, %v1594
    %s1606 = scalar_lea.vmem [#allocation2], 3499
    %1607 = vst.msk [vmem:[%s1606] sm:$0x20] %vm1595, %v1594
    %s1608 = scalar_lea.vmem [#allocation2], 3530
    %1609 = vst.msk [vmem:[%s1608] sm:$0x40] %vm1595, %v1594
    %s1610 = scalar_lea.vmem [#allocation2], 3561
    %1611 = vst.msk [vmem:[%s1610] sm:$0x80] %vm1595, %v1594
    %s1612 = scalar_lea.vmem [#allocation0], 112
    %v1613 = vld [vmem:[%s1612] sm:$0xff]
    %1614 = vrot.lane.b32.xlu0 %v1613, 120
    %v1615 = vpop.permute.xlu0 %1614
    %vm1616 = vcmask 15360
    %s1617 = scalar_lea.vmem [#allocation2], 3600
    %1618 = vst.msk [vmem:[%s1617] sm:$0x1] %vm1616, %v1615
    %s1619 = scalar_lea.vmem [#allocation2], 3631
    %1620 = vst.msk [vmem:[%s1619] sm:$0x2] %vm1616, %v1615
    %s1621 = scalar_lea.vmem [#allocation2], 3662
    %1622 = vst.msk [vmem:[%s1621] sm:$0x4] %vm1616, %v1615
    %s1623 = scalar_lea.vmem [#allocation2], 3693
    %1624 = vst.msk [vmem:[%s1623] sm:$0x8] %vm1616, %v1615
    %s1625 = scalar_lea.vmem [#allocation2], 3724
    %1626 = vst.msk [vmem:[%s1625] sm:$0x10] %vm1616, %v1615
    %s1627 = scalar_lea.vmem [#allocation2], 3755
    %1628 = vst.msk [vmem:[%s1627] sm:$0x20] %vm1616, %v1615
    %s1629 = scalar_lea.vmem [#allocation2], 3786
    %1630 = vst.msk [vmem:[%s1629] sm:$0x40] %vm1616, %v1615
    %s1631 = scalar_lea.vmem [#allocation2], 3817
    %1632 = vst.msk [vmem:[%s1631] sm:$0x80] %vm1616, %v1615
    %s1633 = scalar_lea.vmem [#allocation0], 120
    %v1634 = vld [vmem:[%s1633] sm:$0xff]
    %1635 = vrot.lane.b32.xlu0 %v1634, 120
    %v1636 = vpop.permute.xlu0 %1635
    %vm1637 = vcmask 15360
    %s1638 = scalar_lea.vmem [#allocation2], 3856
    %1639 = vst.msk [vmem:[%s1638] sm:$0x1] %vm1637, %v1636
    %s1640 = scalar_lea.vmem [#allocation2], 3887
    %1641 = vst.msk [vmem:[%s1640] sm:$0x2] %vm1637, %v1636
    %s1642 = scalar_lea.vmem [#allocation2], 3918
    %1643 = vst.msk [vmem:[%s1642] sm:$0x4] %vm1637, %v1636
    %s1644 = scalar_lea.vmem [#allocation2], 3949
    %1645 = vst.msk [vmem:[%s1644] sm:$0x8] %vm1637, %v1636
    %s1646 = scalar_lea.vmem [#allocation2], 3980
    %1647 = vst.msk [vmem:[%s1646] sm:$0x10] %vm1637, %v1636
    %s1648 = scalar_lea.vmem [#allocation2], 4011
    %1649 = vst.msk [vmem:[%s1648] sm:$0x20] %vm1637, %v1636
    %s1650 = scalar_lea.vmem [#allocation2], 4042
    %1651 = vst.msk [vmem:[%s1650] sm:$0x40] %vm1637, %v1636
    %s1652 = scalar_lea.vmem [#allocation2], 4073
    %1653 = vst.msk [vmem:[%s1652] sm:$0x80] %vm1637, %v1636
    %v1654 = vld [vmem:[#allocation0] sm:$0xff]
    %1655 = vrot.lane.b32.xlu0 %v1654, 118
    %v1656 = vpop.permute.xlu0 %1655
    %vm1657 = vcmask 15360
    %s1658 = scalar_lea.vmem [#allocation2], 17
    %1659 = vst.msk [vmem:[%s1658] sm:$0x1] %vm1657, %v1656
    %s1660 = scalar_lea.vmem [#allocation2], 48
    %1661 = vst.msk [vmem:[%s1660] sm:$0x2] %vm1657, %v1656
    %s1662 = scalar_lea.vmem [#allocation2], 79
    %1663 = vst.msk [vmem:[%s1662] sm:$0x4] %vm1657, %v1656
    %s1664 = scalar_lea.vmem [#allocation2], 110
    %1665 = vst.msk [vmem:[%s1664] sm:$0x8] %vm1657, %v1656
    %s1666 = scalar_lea.vmem [#allocation2], 141
    %1667 = vst.msk [vmem:[%s1666] sm:$0x10] %vm1657, %v1656
    %s1668 = scalar_lea.vmem [#allocation2], 172
    %1669 = vst.msk [vmem:[%s1668] sm:$0x20] %vm1657, %v1656
    %s1670 = scalar_lea.vmem [#allocation2], 203
    %1671 = vst.msk [vmem:[%s1670] sm:$0x40] %vm1657, %v1656
    %s1672 = scalar_lea.vmem [#allocation2], 234
    %1673 = vst.msk [vmem:[%s1672] sm:$0x80] %vm1657, %v1656
    %s1674 = scalar_lea.vmem [#allocation0], 8
    %v1675 = vld [vmem:[%s1674] sm:$0xff]
    %1676 = vrot.lane.b32.xlu0 %v1675, 118
    %v1677 = vpop.permute.xlu0 %1676
    %vm1678 = vcmask 15360
    %s1679 = scalar_lea.vmem [#allocation2], 273
    %1680 = vst.msk [vmem:[%s1679] sm:$0x1] %vm1678, %v1677
    %s1681 = scalar_lea.vmem [#allocation2], 304
    %1682 = vst.msk [vmem:[%s1681] sm:$0x2] %vm1678, %v1677
    %s1683 = scalar_lea.vmem [#allocation2], 335
    %1684 = vst.msk [vmem:[%s1683] sm:$0x4] %vm1678, %v1677
    %s1685 = scalar_lea.vmem [#allocation2], 366
    %1686 = vst.msk [vmem:[%s1685] sm:$0x8] %vm1678, %v1677
    %s1687 = scalar_lea.vmem [#allocation2], 397
    %1688 = vst.msk [vmem:[%s1687] sm:$0x10] %vm1678, %v1677
    %s1689 = scalar_lea.vmem [#allocation2], 428
    %1690 = vst.msk [vmem:[%s1689] sm:$0x20] %vm1678, %v1677
    %s1691 = scalar_lea.vmem [#allocation2], 459
    %1692 = vst.msk [vmem:[%s1691] sm:$0x40] %vm1678, %v1677
    %s1693 = scalar_lea.vmem [#allocation2], 490
    %1694 = vst.msk [vmem:[%s1693] sm:$0x80] %vm1678, %v1677
    %s1695 = scalar_lea.vmem [#allocation0], 16
    %v1696 = vld [vmem:[%s1695] sm:$0xff]
    %1697 = vrot.lane.b32.xlu0 %v1696, 118
    %v1698 = vpop.permute.xlu0 %1697
    %vm1699 = vcmask 15360
    %s1700 = scalar_lea.vmem [#allocation2], 529
    %1701 = vst.msk [vmem:[%s1700] sm:$0x1] %vm1699, %v1698
    %s1702 = scalar_lea.vmem [#allocation2], 560
    %1703 = vst.msk [vmem:[%s1702] sm:$0x2] %vm1699, %v1698
    %s1704 = scalar_lea.vmem [#allocation2], 591
    %1705 = vst.msk [vmem:[%s1704] sm:$0x4] %vm1699, %v1698
    %s1706 = scalar_lea.vmem [#allocation2], 622
    %1707 = vst.msk [vmem:[%s1706] sm:$0x8] %vm1699, %v1698
    %s1708 = scalar_lea.vmem [#allocation2], 653
    %1709 = vst.msk [vmem:[%s1708] sm:$0x10] %vm1699, %v1698
    %s1710 = scalar_lea.vmem [#allocation2], 684
    %1711 = vst.msk [vmem:[%s1710] sm:$0x20] %vm1699, %v1698
    %s1712 = scalar_lea.vmem [#allocation2], 715
    %1713 = vst.msk [vmem:[%s1712] sm:$0x40] %vm1699, %v1698
    %s1714 = scalar_lea.vmem [#allocation2], 746
    %1715 = vst.msk [vmem:[%s1714] sm:$0x80] %vm1699, %v1698
    %s1716 = scalar_lea.vmem [#allocation0], 24
    %v1717 = vld [vmem:[%s1716] sm:$0xff]
    %1718 = vrot.lane.b32.xlu0 %v1717, 118
    %v1719 = vpop.permute.xlu0 %1718
    %vm1720 = vcmask 15360
    %s1721 = scalar_lea.vmem [#allocation2], 785
    %1722 = vst.msk [vmem:[%s1721] sm:$0x1] %vm1720, %v1719
    %s1723 = scalar_lea.vmem [#allocation2], 816
    %1724 = vst.msk [vmem:[%s1723] sm:$0x2] %vm1720, %v1719
    %s1725 = scalar_lea.vmem [#allocation2], 847
    %1726 = vst.msk [vmem:[%s1725] sm:$0x4] %vm1720, %v1719
    %s1727 = scalar_lea.vmem [#allocation2], 878
    %1728 = vst.msk [vmem:[%s1727] sm:$0x8] %vm1720, %v1719
    %s1729 = scalar_lea.vmem [#allocation2], 909
    %1730 = vst.msk [vmem:[%s1729] sm:$0x10] %vm1720, %v1719
    %s1731 = scalar_lea.vmem [#allocation2], 940
    %1732 = vst.msk [vmem:[%s1731] sm:$0x20] %vm1720, %v1719
    %s1733 = scalar_lea.vmem [#allocation2], 971
    %1734 = vst.msk [vmem:[%s1733] sm:$0x40] %vm1720, %v1719
    %s1735 = scalar_lea.vmem [#allocation2], 1002
    %1736 = vst.msk [vmem:[%s1735] sm:$0x80] %vm1720, %v1719
    %s1737 = scalar_lea.vmem [#allocation0], 32
    %v1738 = vld [vmem:[%s1737] sm:$0xff]
    %1739 = vrot.lane.b32.xlu0 %v1738, 118
    %v1740 = vpop.permute.xlu0 %1739
    %vm1741 = vcmask 15360
    %s1742 = scalar_lea.vmem [#allocation2], 1041
    %1743 = vst.msk [vmem:[%s1742] sm:$0x1] %vm1741, %v1740
    %s1744 = scalar_lea.vmem [#allocation2], 1072
    %1745 = vst.msk [vmem:[%s1744] sm:$0x2] %vm1741, %v1740
    %s1746 = scalar_lea.vmem [#allocation2], 1103
    %1747 = vst.msk [vmem:[%s1746] sm:$0x4] %vm1741, %v1740
    %s1748 = scalar_lea.vmem [#allocation2], 1134
    %1749 = vst.msk [vmem:[%s1748] sm:$0x8] %vm1741, %v1740
    %s1750 = scalar_lea.vmem [#allocation2], 1165
    %1751 = vst.msk [vmem:[%s1750] sm:$0x10] %vm1741, %v1740
    %s1752 = scalar_lea.vmem [#allocation2], 1196
    %1753 = vst.msk [vmem:[%s1752] sm:$0x20] %vm1741, %v1740
    %s1754 = scalar_lea.vmem [#allocation2], 1227
    %1755 = vst.msk [vmem:[%s1754] sm:$0x40] %vm1741, %v1740
    %s1756 = scalar_lea.vmem [#allocation2], 1258
    %1757 = vst.msk [vmem:[%s1756] sm:$0x80] %vm1741, %v1740
    %s1758 = scalar_lea.vmem [#allocation0], 40
    %v1759 = vld [vmem:[%s1758] sm:$0xff]
    %1760 = vrot.lane.b32.xlu0 %v1759, 118
    %v1761 = vpop.permute.xlu0 %1760
    %vm1762 = vcmask 15360
    %s1763 = scalar_lea.vmem [#allocation2], 1297
    %1764 = vst.msk [vmem:[%s1763] sm:$0x1] %vm1762, %v1761
    %s1765 = scalar_lea.vmem [#allocation2], 1328
    %1766 = vst.msk [vmem:[%s1765] sm:$0x2] %vm1762, %v1761
    %s1767 = scalar_lea.vmem [#allocation2], 1359
    %1768 = vst.msk [vmem:[%s1767] sm:$0x4] %vm1762, %v1761
    %s1769 = scalar_lea.vmem [#allocation2], 1390
    %1770 = vst.msk [vmem:[%s1769] sm:$0x8] %vm1762, %v1761
    %s1771 = scalar_lea.vmem [#allocation2], 1421
    %1772 = vst.msk [vmem:[%s1771] sm:$0x10] %vm1762, %v1761
    %s1773 = scalar_lea.vmem [#allocation2], 1452
    %1774 = vst.msk [vmem:[%s1773] sm:$0x20] %vm1762, %v1761
    %s1775 = scalar_lea.vmem [#allocation2], 1483
    %1776 = vst.msk [vmem:[%s1775] sm:$0x40] %vm1762, %v1761
    %s1777 = scalar_lea.vmem [#allocation2], 1514
    %1778 = vst.msk [vmem:[%s1777] sm:$0x80] %vm1762, %v1761
    %s1779 = scalar_lea.vmem [#allocation0], 48
    %v1780 = vld [vmem:[%s1779] sm:$0xff]
    %1781 = vrot.lane.b32.xlu0 %v1780, 118
    %v1782 = vpop.permute.xlu0 %1781
    %vm1783 = vcmask 15360
    %s1784 = scalar_lea.vmem [#allocation2], 1553
    %1785 = vst.msk [vmem:[%s1784] sm:$0x1] %vm1783, %v1782
    %s1786 = scalar_lea.vmem [#allocation2], 1584
    %1787 = vst.msk [vmem:[%s1786] sm:$0x2] %vm1783, %v1782
    %s1788 = scalar_lea.vmem [#allocation2], 1615
    %1789 = vst.msk [vmem:[%s1788] sm:$0x4] %vm1783, %v1782
    %s1790 = scalar_lea.vmem [#allocation2], 1646
    %1791 = vst.msk [vmem:[%s1790] sm:$0x8] %vm1783, %v1782
    %s1792 = scalar_lea.vmem [#allocation2], 1677
    %1793 = vst.msk [vmem:[%s1792] sm:$0x10] %vm1783, %v1782
    %s1794 = scalar_lea.vmem [#allocation2], 1708
    %1795 = vst.msk [vmem:[%s1794] sm:$0x20] %vm1783, %v1782
    %s1796 = scalar_lea.vmem [#allocation2], 1739
    %1797 = vst.msk [vmem:[%s1796] sm:$0x40] %vm1783, %v1782
    %s1798 = scalar_lea.vmem [#allocation2], 1770
    %1799 = vst.msk [vmem:[%s1798] sm:$0x80] %vm1783, %v1782
    %s1800 = scalar_lea.vmem [#allocation0], 56
    %v1801 = vld [vmem:[%s1800] sm:$0xff]
    %1802 = vrot.lane.b32.xlu0 %v1801, 118
    %v1803 = vpop.permute.xlu0 %1802
    %vm1804 = vcmask 15360
    %s1805 = scalar_lea.vmem [#allocation2], 1809
    %1806 = vst.msk [vmem:[%s1805] sm:$0x1] %vm1804, %v1803
    %s1807 = scalar_lea.vmem [#allocation2], 1840
    %1808 = vst.msk [vmem:[%s1807] sm:$0x2] %vm1804, %v1803
    %s1809 = scalar_lea.vmem [#allocation2], 1871
    %1810 = vst.msk [vmem:[%s1809] sm:$0x4] %vm1804, %v1803
    %s1811 = scalar_lea.vmem [#allocation2], 1902
    %1812 = vst.msk [vmem:[%s1811] sm:$0x8] %vm1804, %v1803
    %s1813 = scalar_lea.vmem [#allocation2], 1933
    %1814 = vst.msk [vmem:[%s1813] sm:$0x10] %vm1804, %v1803
    %s1815 = scalar_lea.vmem [#allocation2], 1964
    %1816 = vst.msk [vmem:[%s1815] sm:$0x20] %vm1804, %v1803
    %s1817 = scalar_lea.vmem [#allocation2], 1995
    %1818 = vst.msk [vmem:[%s1817] sm:$0x40] %vm1804, %v1803
    %s1819 = scalar_lea.vmem [#allocation2], 2026
    %1820 = vst.msk [vmem:[%s1819] sm:$0x80] %vm1804, %v1803
    %s1821 = scalar_lea.vmem [#allocation0], 64
    %v1822 = vld [vmem:[%s1821] sm:$0xff]
    %1823 = vrot.lane.b32.xlu0 %v1822, 118
    %v1824 = vpop.permute.xlu0 %1823
    %vm1825 = vcmask 15360
    %s1826 = scalar_lea.vmem [#allocation2], 2065
    %1827 = vst.msk [vmem:[%s1826] sm:$0x1] %vm1825, %v1824
    %s1828 = scalar_lea.vmem [#allocation2], 2096
    %1829 = vst.msk [vmem:[%s1828] sm:$0x2] %vm1825, %v1824
    %s1830 = scalar_lea.vmem [#allocation2], 2127
    %1831 = vst.msk [vmem:[%s1830] sm:$0x4] %vm1825, %v1824
    %s1832 = scalar_lea.vmem [#allocation2], 2158
    %1833 = vst.msk [vmem:[%s1832] sm:$0x8] %vm1825, %v1824
    %s1834 = scalar_lea.vmem [#allocation2], 2189
    %1835 = vst.msk [vmem:[%s1834] sm:$0x10] %vm1825, %v1824
    %s1836 = scalar_lea.vmem [#allocation2], 2220
    %1837 = vst.msk [vmem:[%s1836] sm:$0x20] %vm1825, %v1824
    %s1838 = scalar_lea.vmem [#allocation2], 2251
    %1839 = vst.msk [vmem:[%s1838] sm:$0x40] %vm1825, %v1824
    %s1840 = scalar_lea.vmem [#allocation2], 2282
    %1841 = vst.msk [vmem:[%s1840] sm:$0x80] %vm1825, %v1824
    %s1842 = scalar_lea.vmem [#allocation0], 72
    %v1843 = vld [vmem:[%s1842] sm:$0xff]
    %1844 = vrot.lane.b32.xlu0 %v1843, 118
    %v1845 = vpop.permute.xlu0 %1844
    %vm1846 = vcmask 15360
    %s1847 = scalar_lea.vmem [#allocation2], 2321
    %1848 = vst.msk [vmem:[%s1847] sm:$0x1] %vm1846, %v1845
    %s1849 = scalar_lea.vmem [#allocation2], 2352
    %1850 = vst.msk [vmem:[%s1849] sm:$0x2] %vm1846, %v1845
    %s1851 = scalar_lea.vmem [#allocation2], 2383
    %1852 = vst.msk [vmem:[%s1851] sm:$0x4] %vm1846, %v1845
    %s1853 = scalar_lea.vmem [#allocation2], 2414
    %1854 = vst.msk [vmem:[%s1853] sm:$0x8] %vm1846, %v1845
    %s1855 = scalar_lea.vmem [#allocation2], 2445
    %1856 = vst.msk [vmem:[%s1855] sm:$0x10] %vm1846, %v1845
    %s1857 = scalar_lea.vmem [#allocation2], 2476
    %1858 = vst.msk [vmem:[%s1857] sm:$0x20] %vm1846, %v1845
    %s1859 = scalar_lea.vmem [#allocation2], 2507
    %1860 = vst.msk [vmem:[%s1859] sm:$0x40] %vm1846, %v1845
    %s1861 = scalar_lea.vmem [#allocation2], 2538
    %1862 = vst.msk [vmem:[%s1861] sm:$0x80] %vm1846, %v1845
    %s1863 = scalar_lea.vmem [#allocation0], 80
    %v1864 = vld [vmem:[%s1863] sm:$0xff]
    %1865 = vrot.lane.b32.xlu0 %v1864, 118
    %v1866 = vpop.permute.xlu0 %1865
    %vm1867 = vcmask 15360
    %s1868 = scalar_lea.vmem [#allocation2], 2577
    %1869 = vst.msk [vmem:[%s1868] sm:$0x1] %vm1867, %v1866
    %s1870 = scalar_lea.vmem [#allocation2], 2608
    %1871 = vst.msk [vmem:[%s1870] sm:$0x2] %vm1867, %v1866
    %s1872 = scalar_lea.vmem [#allocation2], 2639
    %1873 = vst.msk [vmem:[%s1872] sm:$0x4] %vm1867, %v1866
    %s1874 = scalar_lea.vmem [#allocation2], 2670
    %1875 = vst.msk [vmem:[%s1874] sm:$0x8] %vm1867, %v1866
    %s1876 = scalar_lea.vmem [#allocation2], 2701
    %1877 = vst.msk [vmem:[%s1876] sm:$0x10] %vm1867, %v1866
    %s1878 = scalar_lea.vmem [#allocation2], 2732
    %1879 = vst.msk [vmem:[%s1878] sm:$0x20] %vm1867, %v1866
    %s1880 = scalar_lea.vmem [#allocation2], 2763
    %1881 = vst.msk [vmem:[%s1880] sm:$0x40] %vm1867, %v1866
    %s1882 = scalar_lea.vmem [#allocation2], 2794
    %1883 = vst.msk [vmem:[%s1882] sm:$0x80] %vm1867, %v1866
    %s1884 = scalar_lea.vmem [#allocation0], 88
    %v1885 = vld [vmem:[%s1884] sm:$0xff]
    %1886 = vrot.lane.b32.xlu0 %v1885, 118
    %v1887 = vpop.permute.xlu0 %1886
    %vm1888 = vcmask 15360
    %s1889 = scalar_lea.vmem [#allocation2], 2833
    %1890 = vst.msk [vmem:[%s1889] sm:$0x1] %vm1888, %v1887
    %s1891 = scalar_lea.vmem [#allocation2], 2864
    %1892 = vst.msk [vmem:[%s1891] sm:$0x2] %vm1888, %v1887
    %s1893 = scalar_lea.vmem [#allocation2], 2895
    %1894 = vst.msk [vmem:[%s1893] sm:$0x4] %vm1888, %v1887
    %s1895 = scalar_lea.vmem [#allocation2], 2926
    %1896 = vst.msk [vmem:[%s1895] sm:$0x8] %vm1888, %v1887
    %s1897 = scalar_lea.vmem [#allocation2], 2957
    %1898 = vst.msk [vmem:[%s1897] sm:$0x10] %vm1888, %v1887
    %s1899 = scalar_lea.vmem [#allocation2], 2988
    %1900 = vst.msk [vmem:[%s1899] sm:$0x20] %vm1888, %v1887
    %s1901 = scalar_lea.vmem [#allocation2], 3019
    %1902 = vst.msk [vmem:[%s1901] sm:$0x40] %vm1888, %v1887
    %s1903 = scalar_lea.vmem [#allocation2], 3050
    %1904 = vst.msk [vmem:[%s1903] sm:$0x80] %vm1888, %v1887
    %s1905 = scalar_lea.vmem [#allocation0], 96
    %v1906 = vld [vmem:[%s1905] sm:$0xff]
    %1907 = vrot.lane.b32.xlu0 %v1906, 118
    %v1908 = vpop.permute.xlu0 %1907
    %vm1909 = vcmask 15360
    %s1910 = scalar_lea.vmem [#allocation2], 3089
    %1911 = vst.msk [vmem:[%s1910] sm:$0x1] %vm1909, %v1908
    %s1912 = scalar_lea.vmem [#allocation2], 3120
    %1913 = vst.msk [vmem:[%s1912] sm:$0x2] %vm1909, %v1908
    %s1914 = scalar_lea.vmem [#allocation2], 3151
    %1915 = vst.msk [vmem:[%s1914] sm:$0x4] %vm1909, %v1908
    %s1916 = scalar_lea.vmem [#allocation2], 3182
    %1917 = vst.msk [vmem:[%s1916] sm:$0x8] %vm1909, %v1908
    %s1918 = scalar_lea.vmem [#allocation2], 3213
    %1919 = vst.msk [vmem:[%s1918] sm:$0x10] %vm1909, %v1908
    %s1920 = scalar_lea.vmem [#allocation2], 3244
    %1921 = vst.msk [vmem:[%s1920] sm:$0x20] %vm1909, %v1908
    %s1922 = scalar_lea.vmem [#allocation2], 3275
    %1923 = vst.msk [vmem:[%s1922] sm:$0x40] %vm1909, %v1908
    %s1924 = scalar_lea.vmem [#allocation2], 3306
    %1925 = vst.msk [vmem:[%s1924] sm:$0x80] %vm1909, %v1908
    %s1926 = scalar_lea.vmem [#allocation0], 104
    %v1927 = vld [vmem:[%s1926] sm:$0xff]
    %1928 = vrot.lane.b32.xlu0 %v1927, 118
    %v1929 = vpop.permute.xlu0 %1928
    %vm1930 = vcmask 15360
    %s1931 = scalar_lea.vmem [#allocation2], 3345
    %1932 = vst.msk [vmem:[%s1931] sm:$0x1] %vm1930, %v1929
    %s1933 = scalar_lea.vmem [#allocation2], 3376
    %1934 = vst.msk [vmem:[%s1933] sm:$0x2] %vm1930, %v1929
    %s1935 = scalar_lea.vmem [#allocation2], 3407
    %1936 = vst.msk [vmem:[%s1935] sm:$0x4] %vm1930, %v1929
    %s1937 = scalar_lea.vmem [#allocation2], 3438
    %1938 = vst.msk [vmem:[%s1937] sm:$0x8] %vm1930, %v1929
    %s1939 = scalar_lea.vmem [#allocation2], 3469
    %1940 = vst.msk [vmem:[%s1939] sm:$0x10] %vm1930, %v1929
    %s1941 = scalar_lea.vmem [#allocation2], 3500
    %1942 = vst.msk [vmem:[%s1941] sm:$0x20] %vm1930, %v1929
    %s1943 = scalar_lea.vmem [#allocation2], 3531
    %1944 = vst.msk [vmem:[%s1943] sm:$0x40] %vm1930, %v1929
    %s1945 = scalar_lea.vmem [#allocation2], 3562
    %1946 = vst.msk [vmem:[%s1945] sm:$0x80] %vm1930, %v1929
    %s1947 = scalar_lea.vmem [#allocation0], 112
    %v1948 = vld [vmem:[%s1947] sm:$0xff]
    %1949 = vrot.lane.b32.xlu0 %v1948, 118
    %v1950 = vpop.permute.xlu0 %1949
    %vm1951 = vcmask 15360
    %s1952 = scalar_lea.vmem [#allocation2], 3601
    %1953 = vst.msk [vmem:[%s1952] sm:$0x1] %vm1951, %v1950
    %s1954 = scalar_lea.vmem [#allocation2], 3632
    %1955 = vst.msk [vmem:[%s1954] sm:$0x2] %vm1951, %v1950
    %s1956 = scalar_lea.vmem [#allocation2], 3663
    %1957 = vst.msk [vmem:[%s1956] sm:$0x4] %vm1951, %v1950
    %s1958 = scalar_lea.vmem [#allocation2], 3694
    %1959 = vst.msk [vmem:[%s1958] sm:$0x8] %vm1951, %v1950
    %s1960 = scalar_lea.vmem [#allocation2], 3725
    %1961 = vst.msk [vmem:[%s1960] sm:$0x10] %vm1951, %v1950
    %s1962 = scalar_lea.vmem [#allocation2], 3756
    %1963 = vst.msk [vmem:[%s1962] sm:$0x20] %vm1951, %v1950
    %s1964 = scalar_lea.vmem [#allocation2], 3787
    %1965 = vst.msk [vmem:[%s1964] sm:$0x40] %vm1951, %v1950
    %s1966 = scalar_lea.vmem [#allocation2], 3818
    %1967 = vst.msk [vmem:[%s1966] sm:$0x80] %vm1951, %v1950
    %s1968 = scalar_lea.vmem [#allocation0], 120
    %v1969 = vld [vmem:[%s1968] sm:$0xff]
    %1970 = vrot.lane.b32.xlu0 %v1969, 118
    %v1971 = vpop.permute.xlu0 %1970
    %vm1972 = vcmask 15360
    %s1973 = scalar_lea.vmem [#allocation2], 3857
    %1974 = vst.msk [vmem:[%s1973] sm:$0x1] %vm1972, %v1971
    %s1975 = scalar_lea.vmem [#allocation2], 3888
    %1976 = vst.msk [vmem:[%s1975] sm:$0x2] %vm1972, %v1971
    %s1977 = scalar_lea.vmem [#allocation2], 3919
    %1978 = vst.msk [vmem:[%s1977] sm:$0x4] %vm1972, %v1971
    %s1979 = scalar_lea.vmem [#allocation2], 3950
    %1980 = vst.msk [vmem:[%s1979] sm:$0x8] %vm1972, %v1971
    %s1981 = scalar_lea.vmem [#allocation2], 3981
    %1982 = vst.msk [vmem:[%s1981] sm:$0x10] %vm1972, %v1971
    %s1983 = scalar_lea.vmem [#allocation2], 4012
    %1984 = vst.msk [vmem:[%s1983] sm:$0x20] %vm1972, %v1971
    %s1985 = scalar_lea.vmem [#allocation2], 4043
    %1986 = vst.msk [vmem:[%s1985] sm:$0x40] %vm1972, %v1971
    %s1987 = scalar_lea.vmem [#allocation2], 4074
    %1988 = vst.msk [vmem:[%s1987] sm:$0x80] %vm1972, %v1971
    %v1989 = vld [vmem:[#allocation0] sm:$0xff]
    %1990 = vrot.lane.b32.xlu0 %v1989, 116
    %v1991 = vpop.permute.xlu0 %1990
    %vm1992 = vcmask 15360
    %s1993 = scalar_lea.vmem [#allocation2], 24
    %1994 = vst.msk [vmem:[%s1993] sm:$0x1] %vm1992, %v1991
    %s1995 = scalar_lea.vmem [#allocation2], 55
    %1996 = vst.msk [vmem:[%s1995] sm:$0x2] %vm1992, %v1991
    %s1997 = scalar_lea.vmem [#allocation2], 86
    %1998 = vst.msk [vmem:[%s1997] sm:$0x4] %vm1992, %v1991
    %s1999 = scalar_lea.vmem [#allocation2], 117
    %2000 = vst.msk [vmem:[%s1999] sm:$0x8] %vm1992, %v1991
    %s2001 = scalar_lea.vmem [#allocation2], 148
    %2002 = vst.msk [vmem:[%s2001] sm:$0x10] %vm1992, %v1991
    %s2003 = scalar_lea.vmem [#allocation2], 179
    %2004 = vst.msk [vmem:[%s2003] sm:$0x20] %vm1992, %v1991
    %s2005 = scalar_lea.vmem [#allocation2], 210
    %2006 = vst.msk [vmem:[%s2005] sm:$0x40] %vm1992, %v1991
    %s2007 = scalar_lea.vmem [#allocation2], 241
    %2008 = vst.msk [vmem:[%s2007] sm:$0x80] %vm1992, %v1991
    %s2009 = scalar_lea.vmem [#allocation0], 8
    %v2010 = vld [vmem:[%s2009] sm:$0xff]
    %2011 = vrot.lane.b32.xlu0 %v2010, 116
    %v2012 = vpop.permute.xlu0 %2011
    %vm2013 = vcmask 15360
    %s2014 = scalar_lea.vmem [#allocation2], 280
    %2015 = vst.msk [vmem:[%s2014] sm:$0x1] %vm2013, %v2012
    %s2016 = scalar_lea.vmem [#allocation2], 311
    %2017 = vst.msk [vmem:[%s2016] sm:$0x2] %vm2013, %v2012
    %s2018 = scalar_lea.vmem [#allocation2], 342
    %2019 = vst.msk [vmem:[%s2018] sm:$0x4] %vm2013, %v2012
    %s2020 = scalar_lea.vmem [#allocation2], 373
    %2021 = vst.msk [vmem:[%s2020] sm:$0x8] %vm2013, %v2012
    %s2022 = scalar_lea.vmem [#allocation2], 404
    %2023 = vst.msk [vmem:[%s2022] sm:$0x10] %vm2013, %v2012
    %s2024 = scalar_lea.vmem [#allocation2], 435
    %2025 = vst.msk [vmem:[%s2024] sm:$0x20] %vm2013, %v2012
    %s2026 = scalar_lea.vmem [#allocation2], 466
    %2027 = vst.msk [vmem:[%s2026] sm:$0x40] %vm2013, %v2012
    %s2028 = scalar_lea.vmem [#allocation2], 497
    %2029 = vst.msk [vmem:[%s2028] sm:$0x80] %vm2013, %v2012
    %s2030 = scalar_lea.vmem [#allocation0], 16
    %v2031 = vld [vmem:[%s2030] sm:$0xff]
    %2032 = vrot.lane.b32.xlu0 %v2031, 116
    %v2033 = vpop.permute.xlu0 %2032
    %vm2034 = vcmask 15360
    %s2035 = scalar_lea.vmem [#allocation2], 536
    %2036 = vst.msk [vmem:[%s2035] sm:$0x1] %vm2034, %v2033
    %s2037 = scalar_lea.vmem [#allocation2], 567
    %2038 = vst.msk [vmem:[%s2037] sm:$0x2] %vm2034, %v2033
    %s2039 = scalar_lea.vmem [#allocation2], 598
    %2040 = vst.msk [vmem:[%s2039] sm:$0x4] %vm2034, %v2033
    %s2041 = scalar_lea.vmem [#allocation2], 629
    %2042 = vst.msk [vmem:[%s2041] sm:$0x8] %vm2034, %v2033
    %s2043 = scalar_lea.vmem [#allocation2], 660
    %2044 = vst.msk [vmem:[%s2043] sm:$0x10] %vm2034, %v2033
    %s2045 = scalar_lea.vmem [#allocation2], 691
    %2046 = vst.msk [vmem:[%s2045] sm:$0x20] %vm2034, %v2033
    %s2047 = scalar_lea.vmem [#allocation2], 722
    %2048 = vst.msk [vmem:[%s2047] sm:$0x40] %vm2034, %v2033
    %s2049 = scalar_lea.vmem [#allocation2], 753
    %2050 = vst.msk [vmem:[%s2049] sm:$0x80] %vm2034, %v2033
    %s2051 = scalar_lea.vmem [#allocation0], 24
    %v2052 = vld [vmem:[%s2051] sm:$0xff]
    %2053 = vrot.lane.b32.xlu0 %v2052, 116
    %v2054 = vpop.permute.xlu0 %2053
    %vm2055 = vcmask 15360
    %s2056 = scalar_lea.vmem [#allocation2], 792
    %2057 = vst.msk [vmem:[%s2056] sm:$0x1] %vm2055, %v2054
    %s2058 = scalar_lea.vmem [#allocation2], 823
    %2059 = vst.msk [vmem:[%s2058] sm:$0x2] %vm2055, %v2054
    %s2060 = scalar_lea.vmem [#allocation2], 854
    %2061 = vst.msk [vmem:[%s2060] sm:$0x4] %vm2055, %v2054
    %s2062 = scalar_lea.vmem [#allocation2], 885
    %2063 = vst.msk [vmem:[%s2062] sm:$0x8] %vm2055, %v2054
    %s2064 = scalar_lea.vmem [#allocation2], 916
    %2065 = vst.msk [vmem:[%s2064] sm:$0x10] %vm2055, %v2054
    %s2066 = scalar_lea.vmem [#allocation2], 947
    %2067 = vst.msk [vmem:[%s2066] sm:$0x20] %vm2055, %v2054
    %s2068 = scalar_lea.vmem [#allocation2], 978
    %2069 = vst.msk [vmem:[%s2068] sm:$0x40] %vm2055, %v2054
    %s2070 = scalar_lea.vmem [#allocation2], 1009
    %2071 = vst.msk [vmem:[%s2070] sm:$0x80] %vm2055, %v2054
    %s2072 = scalar_lea.vmem [#allocation0], 32
    %v2073 = vld [vmem:[%s2072] sm:$0xff]
    %2074 = vrot.lane.b32.xlu0 %v2073, 116
    %v2075 = vpop.permute.xlu0 %2074
    %vm2076 = vcmask 15360
    %s2077 = scalar_lea.vmem [#allocation2], 1048
    %2078 = vst.msk [vmem:[%s2077] sm:$0x1] %vm2076, %v2075
    %s2079 = scalar_lea.vmem [#allocation2], 1079
    %2080 = vst.msk [vmem:[%s2079] sm:$0x2] %vm2076, %v2075
    %s2081 = scalar_lea.vmem [#allocation2], 1110
    %2082 = vst.msk [vmem:[%s2081] sm:$0x4] %vm2076, %v2075
    %s2083 = scalar_lea.vmem [#allocation2], 1141
    %2084 = vst.msk [vmem:[%s2083] sm:$0x8] %vm2076, %v2075
    %s2085 = scalar_lea.vmem [#allocation2], 1172
    %2086 = vst.msk [vmem:[%s2085] sm:$0x10] %vm2076, %v2075
    %s2087 = scalar_lea.vmem [#allocation2], 1203
    %2088 = vst.msk [vmem:[%s2087] sm:$0x20] %vm2076, %v2075
    %s2089 = scalar_lea.vmem [#allocation2], 1234
    %2090 = vst.msk [vmem:[%s2089] sm:$0x40] %vm2076, %v2075
    %s2091 = scalar_lea.vmem [#allocation2], 1265
    %2092 = vst.msk [vmem:[%s2091] sm:$0x80] %vm2076, %v2075
    %s2093 = scalar_lea.vmem [#allocation0], 40
    %v2094 = vld [vmem:[%s2093] sm:$0xff]
    %2095 = vrot.lane.b32.xlu0 %v2094, 116
    %v2096 = vpop.permute.xlu0 %2095
    %vm2097 = vcmask 15360
    %s2098 = scalar_lea.vmem [#allocation2], 1304
    %2099 = vst.msk [vmem:[%s2098] sm:$0x1] %vm2097, %v2096
    %s2100 = scalar_lea.vmem [#allocation2], 1335
    %2101 = vst.msk [vmem:[%s2100] sm:$0x2] %vm2097, %v2096
    %s2102 = scalar_lea.vmem [#allocation2], 1366
    %2103 = vst.msk [vmem:[%s2102] sm:$0x4] %vm2097, %v2096
    %s2104 = scalar_lea.vmem [#allocation2], 1397
    %2105 = vst.msk [vmem:[%s2104] sm:$0x8] %vm2097, %v2096
    %s2106 = scalar_lea.vmem [#allocation2], 1428
    %2107 = vst.msk [vmem:[%s2106] sm:$0x10] %vm2097, %v2096
    %s2108 = scalar_lea.vmem [#allocation2], 1459
    %2109 = vst.msk [vmem:[%s2108] sm:$0x20] %vm2097, %v2096
    %s2110 = scalar_lea.vmem [#allocation2], 1490
    %2111 = vst.msk [vmem:[%s2110] sm:$0x40] %vm2097, %v2096
    %s2112 = scalar_lea.vmem [#allocation2], 1521
    %2113 = vst.msk [vmem:[%s2112] sm:$0x80] %vm2097, %v2096
    %s2114 = scalar_lea.vmem [#allocation0], 48
    %v2115 = vld [vmem:[%s2114] sm:$0xff]
    %2116 = vrot.lane.b32.xlu0 %v2115, 116
    %v2117 = vpop.permute.xlu0 %2116
    %vm2118 = vcmask 15360
    %s2119 = scalar_lea.vmem [#allocation2], 1560
    %2120 = vst.msk [vmem:[%s2119] sm:$0x1] %vm2118, %v2117
    %s2121 = scalar_lea.vmem [#allocation2], 1591
    %2122 = vst.msk [vmem:[%s2121] sm:$0x2] %vm2118, %v2117
    %s2123 = scalar_lea.vmem [#allocation2], 1622
    %2124 = vst.msk [vmem:[%s2123] sm:$0x4] %vm2118, %v2117
    %s2125 = scalar_lea.vmem [#allocation2], 1653
    %2126 = vst.msk [vmem:[%s2125] sm:$0x8] %vm2118, %v2117
    %s2127 = scalar_lea.vmem [#allocation2], 1684
    %2128 = vst.msk [vmem:[%s2127] sm:$0x10] %vm2118, %v2117
    %s2129 = scalar_lea.vmem [#allocation2], 1715
    %2130 = vst.msk [vmem:[%s2129] sm:$0x20] %vm2118, %v2117
    %s2131 = scalar_lea.vmem [#allocation2], 1746
    %2132 = vst.msk [vmem:[%s2131] sm:$0x40] %vm2118, %v2117
    %s2133 = scalar_lea.vmem [#allocation2], 1777
    %2134 = vst.msk [vmem:[%s2133] sm:$0x80] %vm2118, %v2117
    %s2135 = scalar_lea.vmem [#allocation0], 56
    %v2136 = vld [vmem:[%s2135] sm:$0xff]
    %2137 = vrot.lane.b32.xlu0 %v2136, 116
    %v2138 = vpop.permute.xlu0 %2137
    %vm2139 = vcmask 15360
    %s2140 = scalar_lea.vmem [#allocation2], 1816
    %2141 = vst.msk [vmem:[%s2140] sm:$0x1] %vm2139, %v2138
    %s2142 = scalar_lea.vmem [#allocation2], 1847
    %2143 = vst.msk [vmem:[%s2142] sm:$0x2] %vm2139, %v2138
    %s2144 = scalar_lea.vmem [#allocation2], 1878
    %2145 = vst.msk [vmem:[%s2144] sm:$0x4] %vm2139, %v2138
    %s2146 = scalar_lea.vmem [#allocation2], 1909
    %2147 = vst.msk [vmem:[%s2146] sm:$0x8] %vm2139, %v2138
    %s2148 = scalar_lea.vmem [#allocation2], 1940
    %2149 = vst.msk [vmem:[%s2148] sm:$0x10] %vm2139, %v2138
    %s2150 = scalar_lea.vmem [#allocation2], 1971
    %2151 = vst.msk [vmem:[%s2150] sm:$0x20] %vm2139, %v2138
    %s2152 = scalar_lea.vmem [#allocation2], 2002
    %2153 = vst.msk [vmem:[%s2152] sm:$0x40] %vm2139, %v2138
    %s2154 = scalar_lea.vmem [#allocation2], 2033
    %2155 = vst.msk [vmem:[%s2154] sm:$0x80] %vm2139, %v2138
    %s2156 = scalar_lea.vmem [#allocation0], 64
    %v2157 = vld [vmem:[%s2156] sm:$0xff]
    %2158 = vrot.lane.b32.xlu0 %v2157, 116
    %v2159 = vpop.permute.xlu0 %2158
    %vm2160 = vcmask 15360
    %s2161 = scalar_lea.vmem [#allocation2], 2072
    %2162 = vst.msk [vmem:[%s2161] sm:$0x1] %vm2160, %v2159
    %s2163 = scalar_lea.vmem [#allocation2], 2103
    %2164 = vst.msk [vmem:[%s2163] sm:$0x2] %vm2160, %v2159
    %s2165 = scalar_lea.vmem [#allocation2], 2134
    %2166 = vst.msk [vmem:[%s2165] sm:$0x4] %vm2160, %v2159
    %s2167 = scalar_lea.vmem [#allocation2], 2165
    %2168 = vst.msk [vmem:[%s2167] sm:$0x8] %vm2160, %v2159
    %s2169 = scalar_lea.vmem [#allocation2], 2196
    %2170 = vst.msk [vmem:[%s2169] sm:$0x10] %vm2160, %v2159
    %s2171 = scalar_lea.vmem [#allocation2], 2227
    %2172 = vst.msk [vmem:[%s2171] sm:$0x20] %vm2160, %v2159
    %s2173 = scalar_lea.vmem [#allocation2], 2258
    %2174 = vst.msk [vmem:[%s2173] sm:$0x40] %vm2160, %v2159
    %s2175 = scalar_lea.vmem [#allocation2], 2289
    %2176 = vst.msk [vmem:[%s2175] sm:$0x80] %vm2160, %v2159
    %s2177 = scalar_lea.vmem [#allocation0], 72
    %v2178 = vld [vmem:[%s2177] sm:$0xff]
    %2179 = vrot.lane.b32.xlu0 %v2178, 116
    %v2180 = vpop.permute.xlu0 %2179
    %vm2181 = vcmask 15360
    %s2182 = scalar_lea.vmem [#allocation2], 2328
    %2183 = vst.msk [vmem:[%s2182] sm:$0x1] %vm2181, %v2180
    %s2184 = scalar_lea.vmem [#allocation2], 2359
    %2185 = vst.msk [vmem:[%s2184] sm:$0x2] %vm2181, %v2180
    %s2186 = scalar_lea.vmem [#allocation2], 2390
    %2187 = vst.msk [vmem:[%s2186] sm:$0x4] %vm2181, %v2180
    %s2188 = scalar_lea.vmem [#allocation2], 2421
    %2189 = vst.msk [vmem:[%s2188] sm:$0x8] %vm2181, %v2180
    %s2190 = scalar_lea.vmem [#allocation2], 2452
    %2191 = vst.msk [vmem:[%s2190] sm:$0x10] %vm2181, %v2180
    %s2192 = scalar_lea.vmem [#allocation2], 2483
    %2193 = vst.msk [vmem:[%s2192] sm:$0x20] %vm2181, %v2180
    %s2194 = scalar_lea.vmem [#allocation2], 2514
    %2195 = vst.msk [vmem:[%s2194] sm:$0x40] %vm2181, %v2180
    %s2196 = scalar_lea.vmem [#allocation2], 2545
    %2197 = vst.msk [vmem:[%s2196] sm:$0x80] %vm2181, %v2180
    %s2198 = scalar_lea.vmem [#allocation0], 80
    %v2199 = vld [vmem:[%s2198] sm:$0xff]
    %2200 = vrot.lane.b32.xlu0 %v2199, 116
    %v2201 = vpop.permute.xlu0 %2200
    %vm2202 = vcmask 15360
    %s2203 = scalar_lea.vmem [#allocation2], 2584
    %2204 = vst.msk [vmem:[%s2203] sm:$0x1] %vm2202, %v2201
    %s2205 = scalar_lea.vmem [#allocation2], 2615
    %2206 = vst.msk [vmem:[%s2205] sm:$0x2] %vm2202, %v2201
    %s2207 = scalar_lea.vmem [#allocation2], 2646
    %2208 = vst.msk [vmem:[%s2207] sm:$0x4] %vm2202, %v2201
    %s2209 = scalar_lea.vmem [#allocation2], 2677
    %2210 = vst.msk [vmem:[%s2209] sm:$0x8] %vm2202, %v2201
    %s2211 = scalar_lea.vmem [#allocation2], 2708
    %2212 = vst.msk [vmem:[%s2211] sm:$0x10] %vm2202, %v2201
    %s2213 = scalar_lea.vmem [#allocation2], 2739
    %2214 = vst.msk [vmem:[%s2213] sm:$0x20] %vm2202, %v2201
    %s2215 = scalar_lea.vmem [#allocation2], 2770
    %2216 = vst.msk [vmem:[%s2215] sm:$0x40] %vm2202, %v2201
    %s2217 = scalar_lea.vmem [#allocation2], 2801
    %2218 = vst.msk [vmem:[%s2217] sm:$0x80] %vm2202, %v2201
    %s2219 = scalar_lea.vmem [#allocation0], 88
    %v2220 = vld [vmem:[%s2219] sm:$0xff]
    %2221 = vrot.lane.b32.xlu0 %v2220, 116
    %v2222 = vpop.permute.xlu0 %2221
    %vm2223 = vcmask 15360
    %s2224 = scalar_lea.vmem [#allocation2], 2840
    %2225 = vst.msk [vmem:[%s2224] sm:$0x1] %vm2223, %v2222
    %s2226 = scalar_lea.vmem [#allocation2], 2871
    %2227 = vst.msk [vmem:[%s2226] sm:$0x2] %vm2223, %v2222
    %s2228 = scalar_lea.vmem [#allocation2], 2902
    %2229 = vst.msk [vmem:[%s2228] sm:$0x4] %vm2223, %v2222
    %s2230 = scalar_lea.vmem [#allocation2], 2933
    %2231 = vst.msk [vmem:[%s2230] sm:$0x8] %vm2223, %v2222
    %s2232 = scalar_lea.vmem [#allocation2], 2964
    %2233 = vst.msk [vmem:[%s2232] sm:$0x10] %vm2223, %v2222
    %s2234 = scalar_lea.vmem [#allocation2], 2995
    %2235 = vst.msk [vmem:[%s2234] sm:$0x20] %vm2223, %v2222
    %s2236 = scalar_lea.vmem [#allocation2], 3026
    %2237 = vst.msk [vmem:[%s2236] sm:$0x40] %vm2223, %v2222
    %s2238 = scalar_lea.vmem [#allocation2], 3057
    %2239 = vst.msk [vmem:[%s2238] sm:$0x80] %vm2223, %v2222
    %s2240 = scalar_lea.vmem [#allocation0], 96
    %v2241 = vld [vmem:[%s2240] sm:$0xff]
    %2242 = vrot.lane.b32.xlu0 %v2241, 116
    %v2243 = vpop.permute.xlu0 %2242
    %vm2244 = vcmask 15360
    %s2245 = scalar_lea.vmem [#allocation2], 3096
    %2246 = vst.msk [vmem:[%s2245] sm:$0x1] %vm2244, %v2243
    %s2247 = scalar_lea.vmem [#allocation2], 3127
    %2248 = vst.msk [vmem:[%s2247] sm:$0x2] %vm2244, %v2243
    %s2249 = scalar_lea.vmem [#allocation2], 3158
    %2250 = vst.msk [vmem:[%s2249] sm:$0x4] %vm2244, %v2243
    %s2251 = scalar_lea.vmem [#allocation2], 3189
    %2252 = vst.msk [vmem:[%s2251] sm:$0x8] %vm2244, %v2243
    %s2253 = scalar_lea.vmem [#allocation2], 3220
    %2254 = vst.msk [vmem:[%s2253] sm:$0x10] %vm2244, %v2243
    %s2255 = scalar_lea.vmem [#allocation2], 3251
    %2256 = vst.msk [vmem:[%s2255] sm:$0x20] %vm2244, %v2243
    %s2257 = scalar_lea.vmem [#allocation2], 3282
    %2258 = vst.msk [vmem:[%s2257] sm:$0x40] %vm2244, %v2243
    %s2259 = scalar_lea.vmem [#allocation2], 3313
    %2260 = vst.msk [vmem:[%s2259] sm:$0x80] %vm2244, %v2243
    %s2261 = scalar_lea.vmem [#allocation0], 104
    %v2262 = vld [vmem:[%s2261] sm:$0xff]
    %2263 = vrot.lane.b32.xlu0 %v2262, 116
    %v2264 = vpop.permute.xlu0 %2263
    %vm2265 = vcmask 15360
    %s2266 = scalar_lea.vmem [#allocation2], 3352
    %2267 = vst.msk [vmem:[%s2266] sm:$0x1] %vm2265, %v2264
    %s2268 = scalar_lea.vmem [#allocation2], 3383
    %2269 = vst.msk [vmem:[%s2268] sm:$0x2] %vm2265, %v2264
    %s2270 = scalar_lea.vmem [#allocation2], 3414
    %2271 = vst.msk [vmem:[%s2270] sm:$0x4] %vm2265, %v2264
    %s2272 = scalar_lea.vmem [#allocation2], 3445
    %2273 = vst.msk [vmem:[%s2272] sm:$0x8] %vm2265, %v2264
    %s2274 = scalar_lea.vmem [#allocation2], 3476
    %2275 = vst.msk [vmem:[%s2274] sm:$0x10] %vm2265, %v2264
    %s2276 = scalar_lea.vmem [#allocation2], 3507
    %2277 = vst.msk [vmem:[%s2276] sm:$0x20] %vm2265, %v2264
    %s2278 = scalar_lea.vmem [#allocation2], 3538
    %2279 = vst.msk [vmem:[%s2278] sm:$0x40] %vm2265, %v2264
    %s2280 = scalar_lea.vmem [#allocation2], 3569
    %2281 = vst.msk [vmem:[%s2280] sm:$0x80] %vm2265, %v2264
    %s2282 = scalar_lea.vmem [#allocation0], 112
    %v2283 = vld [vmem:[%s2282] sm:$0xff]
    %2284 = vrot.lane.b32.xlu0 %v2283, 116
    %v2285 = vpop.permute.xlu0 %2284
    %vm2286 = vcmask 15360
    %s2287 = scalar_lea.vmem [#allocation2], 3608
    %2288 = vst.msk [vmem:[%s2287] sm:$0x1] %vm2286, %v2285
    %s2289 = scalar_lea.vmem [#allocation2], 3639
    %2290 = vst.msk [vmem:[%s2289] sm:$0x2] %vm2286, %v2285
    %s2291 = scalar_lea.vmem [#allocation2], 3670
    %2292 = vst.msk [vmem:[%s2291] sm:$0x4] %vm2286, %v2285
    %s2293 = scalar_lea.vmem [#allocation2], 3701
    %2294 = vst.msk [vmem:[%s2293] sm:$0x8] %vm2286, %v2285
    %s2295 = scalar_lea.vmem [#allocation2], 3732
    %2296 = vst.msk [vmem:[%s2295] sm:$0x10] %vm2286, %v2285
    %s2297 = scalar_lea.vmem [#allocation2], 3763
    %2298 = vst.msk [vmem:[%s2297] sm:$0x20] %vm2286, %v2285
    %s2299 = scalar_lea.vmem [#allocation2], 3794
    %2300 = vst.msk [vmem:[%s2299] sm:$0x40] %vm2286, %v2285
    %s2301 = scalar_lea.vmem [#allocation2], 3825
    %2302 = vst.msk [vmem:[%s2301] sm:$0x80] %vm2286, %v2285
    %s2303 = scalar_lea.vmem [#allocation0], 120
    %v2304 = vld [vmem:[%s2303] sm:$0xff]
    %2305 = vrot.lane.b32.xlu0 %v2304, 116
    %v2306 = vpop.permute.xlu0 %2305
    %vm2307 = vcmask 15360
    %s2308 = scalar_lea.vmem [#allocation2], 3864
    %2309 = vst.msk [vmem:[%s2308] sm:$0x1] %vm2307, %v2306
    %s2310 = scalar_lea.vmem [#allocation2], 3895
    %2311 = vst.msk [vmem:[%s2310] sm:$0x2] %vm2307, %v2306
    %s2312 = scalar_lea.vmem [#allocation2], 3926
    %2313 = vst.msk [vmem:[%s2312] sm:$0x4] %vm2307, %v2306
    %s2314 = scalar_lea.vmem [#allocation2], 3957
    %2315 = vst.msk [vmem:[%s2314] sm:$0x8] %vm2307, %v2306
    %s2316 = scalar_lea.vmem [#allocation2], 3988
    %2317 = vst.msk [vmem:[%s2316] sm:$0x10] %vm2307, %v2306
    %s2318 = scalar_lea.vmem [#allocation2], 4019
    %2319 = vst.msk [vmem:[%s2318] sm:$0x20] %vm2307, %v2306
    %s2320 = scalar_lea.vmem [#allocation2], 4050
    %2321 = vst.msk [vmem:[%s2320] sm:$0x40] %vm2307, %v2306
    %s2322 = scalar_lea.vmem [#allocation2], 4081
    %2323 = vst.msk [vmem:[%s2322] sm:$0x80] %vm2307, %v2306
    %v2324 = vld [vmem:[#allocation0] sm:$0xff]
    %2325 = vrot.lane.b32.xlu0 %v2324, 114
    %v2326 = vpop.permute.xlu0 %2325
    %vm2327 = vcmask 15360
    %s2328 = scalar_lea.vmem [#allocation2], 25
    %2329 = vst.msk [vmem:[%s2328] sm:$0x1] %vm2327, %v2326
    %s2330 = scalar_lea.vmem [#allocation2], 56
    %2331 = vst.msk [vmem:[%s2330] sm:$0x2] %vm2327, %v2326
    %s2332 = scalar_lea.vmem [#allocation2], 87
    %2333 = vst.msk [vmem:[%s2332] sm:$0x4] %vm2327, %v2326
    %s2334 = scalar_lea.vmem [#allocation2], 118
    %2335 = vst.msk [vmem:[%s2334] sm:$0x8] %vm2327, %v2326
    %s2336 = scalar_lea.vmem [#allocation2], 149
    %2337 = vst.msk [vmem:[%s2336] sm:$0x10] %vm2327, %v2326
    %s2338 = scalar_lea.vmem [#allocation2], 180
    %2339 = vst.msk [vmem:[%s2338] sm:$0x20] %vm2327, %v2326
    %s2340 = scalar_lea.vmem [#allocation2], 211
    %2341 = vst.msk [vmem:[%s2340] sm:$0x40] %vm2327, %v2326
    %s2342 = scalar_lea.vmem [#allocation2], 242
    %2343 = vst.msk [vmem:[%s2342] sm:$0x80] %vm2327, %v2326
    %s2344 = scalar_lea.vmem [#allocation0], 8
    %v2345 = vld [vmem:[%s2344] sm:$0xff]
    %2346 = vrot.lane.b32.xlu0 %v2345, 114
    %v2347 = vpop.permute.xlu0 %2346
    %vm2348 = vcmask 15360
    %s2349 = scalar_lea.vmem [#allocation2], 281
    %2350 = vst.msk [vmem:[%s2349] sm:$0x1] %vm2348, %v2347
    %s2351 = scalar_lea.vmem [#allocation2], 312
    %2352 = vst.msk [vmem:[%s2351] sm:$0x2] %vm2348, %v2347
    %s2353 = scalar_lea.vmem [#allocation2], 343
    %2354 = vst.msk [vmem:[%s2353] sm:$0x4] %vm2348, %v2347
    %s2355 = scalar_lea.vmem [#allocation2], 374
    %2356 = vst.msk [vmem:[%s2355] sm:$0x8] %vm2348, %v2347
    %s2357 = scalar_lea.vmem [#allocation2], 405
    %2358 = vst.msk [vmem:[%s2357] sm:$0x10] %vm2348, %v2347
    %s2359 = scalar_lea.vmem [#allocation2], 436
    %2360 = vst.msk [vmem:[%s2359] sm:$0x20] %vm2348, %v2347
    %s2361 = scalar_lea.vmem [#allocation2], 467
    %2362 = vst.msk [vmem:[%s2361] sm:$0x40] %vm2348, %v2347
    %s2363 = scalar_lea.vmem [#allocation2], 498
    %2364 = vst.msk [vmem:[%s2363] sm:$0x80] %vm2348, %v2347
    %s2365 = scalar_lea.vmem [#allocation0], 16
    %v2366 = vld [vmem:[%s2365] sm:$0xff]
    %2367 = vrot.lane.b32.xlu0 %v2366, 114
    %v2368 = vpop.permute.xlu0 %2367
    %vm2369 = vcmask 15360
    %s2370 = scalar_lea.vmem [#allocation2], 537
    %2371 = vst.msk [vmem:[%s2370] sm:$0x1] %vm2369, %v2368
    %s2372 = scalar_lea.vmem [#allocation2], 568
    %2373 = vst.msk [vmem:[%s2372] sm:$0x2] %vm2369, %v2368
    %s2374 = scalar_lea.vmem [#allocation2], 599
    %2375 = vst.msk [vmem:[%s2374] sm:$0x4] %vm2369, %v2368
    %s2376 = scalar_lea.vmem [#allocation2], 630
    %2377 = vst.msk [vmem:[%s2376] sm:$0x8] %vm2369, %v2368
    %s2378 = scalar_lea.vmem [#allocation2], 661
    %2379 = vst.msk [vmem:[%s2378] sm:$0x10] %vm2369, %v2368
    %s2380 = scalar_lea.vmem [#allocation2], 692
    %2381 = vst.msk [vmem:[%s2380] sm:$0x20] %vm2369, %v2368
    %s2382 = scalar_lea.vmem [#allocation2], 723
    %2383 = vst.msk [vmem:[%s2382] sm:$0x40] %vm2369, %v2368
    %s2384 = scalar_lea.vmem [#allocation2], 754
    %2385 = vst.msk [vmem:[%s2384] sm:$0x80] %vm2369, %v2368
    %s2386 = scalar_lea.vmem [#allocation0], 24
    %v2387 = vld [vmem:[%s2386] sm:$0xff]
    %2388 = vrot.lane.b32.xlu0 %v2387, 114
    %v2389 = vpop.permute.xlu0 %2388
    %vm2390 = vcmask 15360
    %s2391 = scalar_lea.vmem [#allocation2], 793
    %2392 = vst.msk [vmem:[%s2391] sm:$0x1] %vm2390, %v2389
    %s2393 = scalar_lea.vmem [#allocation2], 824
    %2394 = vst.msk [vmem:[%s2393] sm:$0x2] %vm2390, %v2389
    %s2395 = scalar_lea.vmem [#allocation2], 855
    %2396 = vst.msk [vmem:[%s2395] sm:$0x4] %vm2390, %v2389
    %s2397 = scalar_lea.vmem [#allocation2], 886
    %2398 = vst.msk [vmem:[%s2397] sm:$0x8] %vm2390, %v2389
    %s2399 = scalar_lea.vmem [#allocation2], 917
    %2400 = vst.msk [vmem:[%s2399] sm:$0x10] %vm2390, %v2389
    %s2401 = scalar_lea.vmem [#allocation2], 948
    %2402 = vst.msk [vmem:[%s2401] sm:$0x20] %vm2390, %v2389
    %s2403 = scalar_lea.vmem [#allocation2], 979
    %2404 = vst.msk [vmem:[%s2403] sm:$0x40] %vm2390, %v2389
    %s2405 = scalar_lea.vmem [#allocation2], 1010
    %2406 = vst.msk [vmem:[%s2405] sm:$0x80] %vm2390, %v2389
    %s2407 = scalar_lea.vmem [#allocation0], 32
    %v2408 = vld [vmem:[%s2407] sm:$0xff]
    %2409 = vrot.lane.b32.xlu0 %v2408, 114
    %v2410 = vpop.permute.xlu0 %2409
    %vm2411 = vcmask 15360
    %s2412 = scalar_lea.vmem [#allocation2], 1049
    %2413 = vst.msk [vmem:[%s2412] sm:$0x1] %vm2411, %v2410
    %s2414 = scalar_lea.vmem [#allocation2], 1080
    %2415 = vst.msk [vmem:[%s2414] sm:$0x2] %vm2411, %v2410
    %s2416 = scalar_lea.vmem [#allocation2], 1111
    %2417 = vst.msk [vmem:[%s2416] sm:$0x4] %vm2411, %v2410
    %s2418 = scalar_lea.vmem [#allocation2], 1142
    %2419 = vst.msk [vmem:[%s2418] sm:$0x8] %vm2411, %v2410
    %s2420 = scalar_lea.vmem [#allocation2], 1173
    %2421 = vst.msk [vmem:[%s2420] sm:$0x10] %vm2411, %v2410
    %s2422 = scalar_lea.vmem [#allocation2], 1204
    %2423 = vst.msk [vmem:[%s2422] sm:$0x20] %vm2411, %v2410
    %s2424 = scalar_lea.vmem [#allocation2], 1235
    %2425 = vst.msk [vmem:[%s2424] sm:$0x40] %vm2411, %v2410
    %s2426 = scalar_lea.vmem [#allocation2], 1266
    %2427 = vst.msk [vmem:[%s2426] sm:$0x80] %vm2411, %v2410
    %s2428 = scalar_lea.vmem [#allocation0], 40
    %v2429 = vld [vmem:[%s2428] sm:$0xff]
    %2430 = vrot.lane.b32.xlu0 %v2429, 114
    %v2431 = vpop.permute.xlu0 %2430
    %vm2432 = vcmask 15360
    %s2433 = scalar_lea.vmem [#allocation2], 1305
    %2434 = vst.msk [vmem:[%s2433] sm:$0x1] %vm2432, %v2431
    %s2435 = scalar_lea.vmem [#allocation2], 1336
    %2436 = vst.msk [vmem:[%s2435] sm:$0x2] %vm2432, %v2431
    %s2437 = scalar_lea.vmem [#allocation2], 1367
    %2438 = vst.msk [vmem:[%s2437] sm:$0x4] %vm2432, %v2431
    %s2439 = scalar_lea.vmem [#allocation2], 1398
    %2440 = vst.msk [vmem:[%s2439] sm:$0x8] %vm2432, %v2431
    %s2441 = scalar_lea.vmem [#allocation2], 1429
    %2442 = vst.msk [vmem:[%s2441] sm:$0x10] %vm2432, %v2431
    %s2443 = scalar_lea.vmem [#allocation2], 1460
    %2444 = vst.msk [vmem:[%s2443] sm:$0x20] %vm2432, %v2431
    %s2445 = scalar_lea.vmem [#allocation2], 1491
    %2446 = vst.msk [vmem:[%s2445] sm:$0x40] %vm2432, %v2431
    %s2447 = scalar_lea.vmem [#allocation2], 1522
    %2448 = vst.msk [vmem:[%s2447] sm:$0x80] %vm2432, %v2431
    %s2449 = scalar_lea.vmem [#allocation0], 48
    %v2450 = vld [vmem:[%s2449] sm:$0xff]
    %2451 = vrot.lane.b32.xlu0 %v2450, 114
    %v2452 = vpop.permute.xlu0 %2451
    %vm2453 = vcmask 15360
    %s2454 = scalar_lea.vmem [#allocation2], 1561
    %2455 = vst.msk [vmem:[%s2454] sm:$0x1] %vm2453, %v2452
    %s2456 = scalar_lea.vmem [#allocation2], 1592
    %2457 = vst.msk [vmem:[%s2456] sm:$0x2] %vm2453, %v2452
    %s2458 = scalar_lea.vmem [#allocation2], 1623
    %2459 = vst.msk [vmem:[%s2458] sm:$0x4] %vm2453, %v2452
    %s2460 = scalar_lea.vmem [#allocation2], 1654
    %2461 = vst.msk [vmem:[%s2460] sm:$0x8] %vm2453, %v2452
    %s2462 = scalar_lea.vmem [#allocation2], 1685
    %2463 = vst.msk [vmem:[%s2462] sm:$0x10] %vm2453, %v2452
    %s2464 = scalar_lea.vmem [#allocation2], 1716
    %2465 = vst.msk [vmem:[%s2464] sm:$0x20] %vm2453, %v2452
    %s2466 = scalar_lea.vmem [#allocation2], 1747
    %2467 = vst.msk [vmem:[%s2466] sm:$0x40] %vm2453, %v2452
    %s2468 = scalar_lea.vmem [#allocation2], 1778
    %2469 = vst.msk [vmem:[%s2468] sm:$0x80] %vm2453, %v2452
    %s2470 = scalar_lea.vmem [#allocation0], 56
    %v2471 = vld [vmem:[%s2470] sm:$0xff]
    %2472 = vrot.lane.b32.xlu0 %v2471, 114
    %v2473 = vpop.permute.xlu0 %2472
    %vm2474 = vcmask 15360
    %s2475 = scalar_lea.vmem [#allocation2], 1817
    %2476 = vst.msk [vmem:[%s2475] sm:$0x1] %vm2474, %v2473
    %s2477 = scalar_lea.vmem [#allocation2], 1848
    %2478 = vst.msk [vmem:[%s2477] sm:$0x2] %vm2474, %v2473
    %s2479 = scalar_lea.vmem [#allocation2], 1879
    %2480 = vst.msk [vmem:[%s2479] sm:$0x4] %vm2474, %v2473
    %s2481 = scalar_lea.vmem [#allocation2], 1910
    %2482 = vst.msk [vmem:[%s2481] sm:$0x8] %vm2474, %v2473
    %s2483 = scalar_lea.vmem [#allocation2], 1941
    %2484 = vst.msk [vmem:[%s2483] sm:$0x10] %vm2474, %v2473
    %s2485 = scalar_lea.vmem [#allocation2], 1972
    %2486 = vst.msk [vmem:[%s2485] sm:$0x20] %vm2474, %v2473
    %s2487 = scalar_lea.vmem [#allocation2], 2003
    %2488 = vst.msk [vmem:[%s2487] sm:$0x40] %vm2474, %v2473
    %s2489 = scalar_lea.vmem [#allocation2], 2034
    %2490 = vst.msk [vmem:[%s2489] sm:$0x80] %vm2474, %v2473
    %s2491 = scalar_lea.vmem [#allocation0], 64
    %v2492 = vld [vmem:[%s2491] sm:$0xff]
    %2493 = vrot.lane.b32.xlu0 %v2492, 114
    %v2494 = vpop.permute.xlu0 %2493
    %vm2495 = vcmask 15360
    %s2496 = scalar_lea.vmem [#allocation2], 2073
    %2497 = vst.msk [vmem:[%s2496] sm:$0x1] %vm2495, %v2494
    %s2498 = scalar_lea.vmem [#allocation2], 2104
    %2499 = vst.msk [vmem:[%s2498] sm:$0x2] %vm2495, %v2494
    %s2500 = scalar_lea.vmem [#allocation2], 2135
    %2501 = vst.msk [vmem:[%s2500] sm:$0x4] %vm2495, %v2494
    %s2502 = scalar_lea.vmem [#allocation2], 2166
    %2503 = vst.msk [vmem:[%s2502] sm:$0x8] %vm2495, %v2494
    %s2504 = scalar_lea.vmem [#allocation2], 2197
    %2505 = vst.msk [vmem:[%s2504] sm:$0x10] %vm2495, %v2494
    %s2506 = scalar_lea.vmem [#allocation2], 2228
    %2507 = vst.msk [vmem:[%s2506] sm:$0x20] %vm2495, %v2494
    %s2508 = scalar_lea.vmem [#allocation2], 2259
    %2509 = vst.msk [vmem:[%s2508] sm:$0x40] %vm2495, %v2494
    %s2510 = scalar_lea.vmem [#allocation2], 2290
    %2511 = vst.msk [vmem:[%s2510] sm:$0x80] %vm2495, %v2494
    %s2512 = scalar_lea.vmem [#allocation0], 72
    %v2513 = vld [vmem:[%s2512] sm:$0xff]
    %2514 = vrot.lane.b32.xlu0 %v2513, 114
    %v2515 = vpop.permute.xlu0 %2514
    %vm2516 = vcmask 15360
    %s2517 = scalar_lea.vmem [#allocation2], 2329
    %2518 = vst.msk [vmem:[%s2517] sm:$0x1] %vm2516, %v2515
    %s2519 = scalar_lea.vmem [#allocation2], 2360
    %2520 = vst.msk [vmem:[%s2519] sm:$0x2] %vm2516, %v2515
    %s2521 = scalar_lea.vmem [#allocation2], 2391
    %2522 = vst.msk [vmem:[%s2521] sm:$0x4] %vm2516, %v2515
    %s2523 = scalar_lea.vmem [#allocation2], 2422
    %2524 = vst.msk [vmem:[%s2523] sm:$0x8] %vm2516, %v2515
    %s2525 = scalar_lea.vmem [#allocation2], 2453
    %2526 = vst.msk [vmem:[%s2525] sm:$0x10] %vm2516, %v2515
    %s2527 = scalar_lea.vmem [#allocation2], 2484
    %2528 = vst.msk [vmem:[%s2527] sm:$0x20] %vm2516, %v2515
    %s2529 = scalar_lea.vmem [#allocation2], 2515
    %2530 = vst.msk [vmem:[%s2529] sm:$0x40] %vm2516, %v2515
    %s2531 = scalar_lea.vmem [#allocation2], 2546
    %2532 = vst.msk [vmem:[%s2531] sm:$0x80] %vm2516, %v2515
    %s2533 = scalar_lea.vmem [#allocation0], 80
    %v2534 = vld [vmem:[%s2533] sm:$0xff]
    %2535 = vrot.lane.b32.xlu0 %v2534, 114
    %v2536 = vpop.permute.xlu0 %2535
    %vm2537 = vcmask 15360
    %s2538 = scalar_lea.vmem [#allocation2], 2585
    %2539 = vst.msk [vmem:[%s2538] sm:$0x1] %vm2537, %v2536
    %s2540 = scalar_lea.vmem [#allocation2], 2616
    %2541 = vst.msk [vmem:[%s2540] sm:$0x2] %vm2537, %v2536
    %s2542 = scalar_lea.vmem [#allocation2], 2647
    %2543 = vst.msk [vmem:[%s2542] sm:$0x4] %vm2537, %v2536
    %s2544 = scalar_lea.vmem [#allocation2], 2678
    %2545 = vst.msk [vmem:[%s2544] sm:$0x8] %vm2537, %v2536
    %s2546 = scalar_lea.vmem [#allocation2], 2709
    %2547 = vst.msk [vmem:[%s2546] sm:$0x10] %vm2537, %v2536
    %s2548 = scalar_lea.vmem [#allocation2], 2740
    %2549 = vst.msk [vmem:[%s2548] sm:$0x20] %vm2537, %v2536
    %s2550 = scalar_lea.vmem [#allocation2], 2771
    %2551 = vst.msk [vmem:[%s2550] sm:$0x40] %vm2537, %v2536
    %s2552 = scalar_lea.vmem [#allocation2], 2802
    %2553 = vst.msk [vmem:[%s2552] sm:$0x80] %vm2537, %v2536
    %s2554 = scalar_lea.vmem [#allocation0], 88
    %v2555 = vld [vmem:[%s2554] sm:$0xff]
    %2556 = vrot.lane.b32.xlu0 %v2555, 114
    %v2557 = vpop.permute.xlu0 %2556
    %vm2558 = vcmask 15360
    %s2559 = scalar_lea.vmem [#allocation2], 2841
    %2560 = vst.msk [vmem:[%s2559] sm:$0x1] %vm2558, %v2557
    %s2561 = scalar_lea.vmem [#allocation2], 2872
    %2562 = vst.msk [vmem:[%s2561] sm:$0x2] %vm2558, %v2557
    %s2563 = scalar_lea.vmem [#allocation2], 2903
    %2564 = vst.msk [vmem:[%s2563] sm:$0x4] %vm2558, %v2557
    %s2565 = scalar_lea.vmem [#allocation2], 2934
    %2566 = vst.msk [vmem:[%s2565] sm:$0x8] %vm2558, %v2557
    %s2567 = scalar_lea.vmem [#allocation2], 2965
    %2568 = vst.msk [vmem:[%s2567] sm:$0x10] %vm2558, %v2557
    %s2569 = scalar_lea.vmem [#allocation2], 2996
    %2570 = vst.msk [vmem:[%s2569] sm:$0x20] %vm2558, %v2557
    %s2571 = scalar_lea.vmem [#allocation2], 3027
    %2572 = vst.msk [vmem:[%s2571] sm:$0x40] %vm2558, %v2557
    %s2573 = scalar_lea.vmem [#allocation2], 3058
    %2574 = vst.msk [vmem:[%s2573] sm:$0x80] %vm2558, %v2557
    %s2575 = scalar_lea.vmem [#allocation0], 96
    %v2576 = vld [vmem:[%s2575] sm:$0xff]
    %2577 = vrot.lane.b32.xlu0 %v2576, 114
    %v2578 = vpop.permute.xlu0 %2577
    %vm2579 = vcmask 15360
    %s2580 = scalar_lea.vmem [#allocation2], 3097
    %2581 = vst.msk [vmem:[%s2580] sm:$0x1] %vm2579, %v2578
    %s2582 = scalar_lea.vmem [#allocation2], 3128
    %2583 = vst.msk [vmem:[%s2582] sm:$0x2] %vm2579, %v2578
    %s2584 = scalar_lea.vmem [#allocation2], 3159
    %2585 = vst.msk [vmem:[%s2584] sm:$0x4] %vm2579, %v2578
    %s2586 = scalar_lea.vmem [#allocation2], 3190
    %2587 = vst.msk [vmem:[%s2586] sm:$0x8] %vm2579, %v2578
    %s2588 = scalar_lea.vmem [#allocation2], 3221
    %2589 = vst.msk [vmem:[%s2588] sm:$0x10] %vm2579, %v2578
    %s2590 = scalar_lea.vmem [#allocation2], 3252
    %2591 = vst.msk [vmem:[%s2590] sm:$0x20] %vm2579, %v2578
    %s2592 = scalar_lea.vmem [#allocation2], 3283
    %2593 = vst.msk [vmem:[%s2592] sm:$0x40] %vm2579, %v2578
    %s2594 = scalar_lea.vmem [#allocation2], 3314
    %2595 = vst.msk [vmem:[%s2594] sm:$0x80] %vm2579, %v2578
    %s2596 = scalar_lea.vmem [#allocation0], 104
    %v2597 = vld [vmem:[%s2596] sm:$0xff]
    %2598 = vrot.lane.b32.xlu0 %v2597, 114
    %v2599 = vpop.permute.xlu0 %2598
    %vm2600 = vcmask 15360
    %s2601 = scalar_lea.vmem [#allocation2], 3353
    %2602 = vst.msk [vmem:[%s2601] sm:$0x1] %vm2600, %v2599
    %s2603 = scalar_lea.vmem [#allocation2], 3384
    %2604 = vst.msk [vmem:[%s2603] sm:$0x2] %vm2600, %v2599
    %s2605 = scalar_lea.vmem [#allocation2], 3415
    %2606 = vst.msk [vmem:[%s2605] sm:$0x4] %vm2600, %v2599
    %s2607 = scalar_lea.vmem [#allocation2], 3446
    %2608 = vst.msk [vmem:[%s2607] sm:$0x8] %vm2600, %v2599
    %s2609 = scalar_lea.vmem [#allocation2], 3477
    %2610 = vst.msk [vmem:[%s2609] sm:$0x10] %vm2600, %v2599
    %s2611 = scalar_lea.vmem [#allocation2], 3508
    %2612 = vst.msk [vmem:[%s2611] sm:$0x20] %vm2600, %v2599
    %s2613 = scalar_lea.vmem [#allocation2], 3539
    %2614 = vst.msk [vmem:[%s2613] sm:$0x40] %vm2600, %v2599
    %s2615 = scalar_lea.vmem [#allocation2], 3570
    %2616 = vst.msk [vmem:[%s2615] sm:$0x80] %vm2600, %v2599
    %s2617 = scalar_lea.vmem [#allocation0], 112
    %v2618 = vld [vmem:[%s2617] sm:$0xff]
    %2619 = vrot.lane.b32.xlu0 %v2618, 114
    %v2620 = vpop.permute.xlu0 %2619
    %vm2621 = vcmask 15360
    %s2622 = scalar_lea.vmem [#allocation2], 3609
    %2623 = vst.msk [vmem:[%s2622] sm:$0x1] %vm2621, %v2620
    %s2624 = scalar_lea.vmem [#allocation2], 3640
    %2625 = vst.msk [vmem:[%s2624] sm:$0x2] %vm2621, %v2620
    %s2626 = scalar_lea.vmem [#allocation2], 3671
    %2627 = vst.msk [vmem:[%s2626] sm:$0x4] %vm2621, %v2620
    %s2628 = scalar_lea.vmem [#allocation2], 3702
    %2629 = vst.msk [vmem:[%s2628] sm:$0x8] %vm2621, %v2620
    %s2630 = scalar_lea.vmem [#allocation2], 3733
    %2631 = vst.msk [vmem:[%s2630] sm:$0x10] %vm2621, %v2620
    %s2632 = scalar_lea.vmem [#allocation2], 3764
    %2633 = vst.msk [vmem:[%s2632] sm:$0x20] %vm2621, %v2620
    %s2634 = scalar_lea.vmem [#allocation2], 3795
    %2635 = vst.msk [vmem:[%s2634] sm:$0x40] %vm2621, %v2620
    %s2636 = scalar_lea.vmem [#allocation2], 3826
    %2637 = vst.msk [vmem:[%s2636] sm:$0x80] %vm2621, %v2620
    %s2638 = scalar_lea.vmem [#allocation0], 120
    %v2639 = vld [vmem:[%s2638] sm:$0xff]
    %2640 = vrot.lane.b32.xlu0 %v2639, 114
    %v2641 = vpop.permute.xlu0 %2640
    %vm2642 = vcmask 15360
    %s2643 = scalar_lea.vmem [#allocation2], 3865
    %2644 = vst.msk [vmem:[%s2643] sm:$0x1] %vm2642, %v2641
    %s2645 = scalar_lea.vmem [#allocation2], 3896
    %2646 = vst.msk [vmem:[%s2645] sm:$0x2] %vm2642, %v2641
    %s2647 = scalar_lea.vmem [#allocation2], 3927
    %2648 = vst.msk [vmem:[%s2647] sm:$0x4] %vm2642, %v2641
    %s2649 = scalar_lea.vmem [#allocation2], 3958
    %2650 = vst.msk [vmem:[%s2649] sm:$0x8] %vm2642, %v2641
    %s2651 = scalar_lea.vmem [#allocation2], 3989
    %2652 = vst.msk [vmem:[%s2651] sm:$0x10] %vm2642, %v2641
    %s2653 = scalar_lea.vmem [#allocation2], 4020
    %2654 = vst.msk [vmem:[%s2653] sm:$0x20] %vm2642, %v2641
    %s2655 = scalar_lea.vmem [#allocation2], 4051
    %2656 = vst.msk [vmem:[%s2655] sm:$0x40] %vm2642, %v2641
    %s2657 = scalar_lea.vmem [#allocation2], 4082
    %2658 = vst.msk [vmem:[%s2657] sm:$0x80] %vm2642, %v2641
    %s2660 = sshllo.u32 0, 2
    %v2662 = vld [vmem:[#allocation2] sm:%s2660]
    %s2663 = sshllo.u32 0, 2
    %2664 = vst [vmem:[%s1] sm:%s2663] %v2662
    %s2665 = scalar_lea.vmem [#allocation2], 8
    %v2666 = vld [vmem:[%s2665] sm:%s2660]
    %s2667 = sshllo.u32 0, 2
    %s2668 = scalar_lea.vmem %s1, 2
    %2669 = vst [vmem:[%s2668] sm:%s2667] %v2666
    %s2670 = scalar_lea.vmem [#allocation2], 16
    %v2671 = vld [vmem:[%s2670] sm:%s2660]
    %s2672 = sshllo.u32 0, 2
    %s2673 = smul.addr 2, 2
    %s2674 = scalar_lea.vmem %s1, %s2673
    %2675 = vst [vmem:[%s2674] sm:%s2672] %v2671
    %s2676 = scalar_lea.vmem [#allocation2], 24
    %v2677 = vld [vmem:[%s2676] sm:%s2660]
    %s2678 = sshllo.u32 0, 2
    %s2679 = smul.addr 2, 3
    %s2680 = scalar_lea.vmem %s1, %s2679
    %2681 = vst [vmem:[%s2680] sm:%s2678] %v2677
    %s2682 = scalar_lea.vmem [#allocation2], 32
    %v2683 = vld [vmem:[%s2682] sm:%s2660]
    %s2684 = sshllo.u32 0, 2
    %s2685 = smul.addr 2, 4
    %s2686 = scalar_lea.vmem %s1, %s2685
    %2687 = vst [vmem:[%s2686] sm:%s2684] %v2683
    %s2688 = scalar_lea.vmem [#allocation2], 40
    %v2689 = vld [vmem:[%s2688] sm:%s2660]
    %s2690 = sshllo.u32 0, 2
    %s2691 = smul.addr 2, 5
    %s2692 = scalar_lea.vmem %s1, %s2691
    %2693 = vst [vmem:[%s2692] sm:%s2690] %v2689
    %s2694 = scalar_lea.vmem [#allocation2], 48
    %v2695 = vld [vmem:[%s2694] sm:%s2660]
    %s2696 = sshllo.u32 0, 2
    %s2697 = smul.addr 2, 6
    %s2698 = scalar_lea.vmem %s1, %s2697
    %2699 = vst [vmem:[%s2698] sm:%s2696] %v2695
    %s2700 = scalar_lea.vmem [#allocation2], 56
    %v2701 = vld [vmem:[%s2700] sm:%s2660]
    %s2702 = sshllo.u32 0, 2
    %s2703 = smul.addr 2, 7
    %s2704 = scalar_lea.vmem %s1, %s2703
    %2705 = vst [vmem:[%s2704] sm:%s2702] %v2701
    %s2706 = scalar_lea.vmem [#allocation2], 64
    %v2707 = vld [vmem:[%s2706] sm:%s2660]
    %s2708 = sshllo.u32 0, 2
    %s2709 = smul.addr 2, 8
    %s2710 = scalar_lea.vmem %s1, %s2709
    %2711 = vst [vmem:[%s2710] sm:%s2708] %v2707
    %s2712 = scalar_lea.vmem [#allocation2], 72
    %v2713 = vld [vmem:[%s2712] sm:%s2660]
    %s2714 = sshllo.u32 0, 2
    %s2715 = smul.addr 2, 9
    %s2716 = scalar_lea.vmem %s1, %s2715
    %2717 = vst [vmem:[%s2716] sm:%s2714] %v2713
    %s2718 = scalar_lea.vmem [#allocation2], 80
    %v2719 = vld [vmem:[%s2718] sm:%s2660]
    %s2720 = sshllo.u32 0, 2
    %s2721 = smul.addr 2, 10
    %s2722 = scalar_lea.vmem %s1, %s2721
    %2723 = vst [vmem:[%s2722] sm:%s2720] %v2719
    %s2724 = scalar_lea.vmem [#allocation2], 88
    %v2725 = vld [vmem:[%s2724] sm:%s2660]
    %s2726 = sshllo.u32 0, 2
    %s2727 = smul.addr 2, 11
    %s2728 = scalar_lea.vmem %s1, %s2727
    %2729 = vst [vmem:[%s2728] sm:%s2726] %v2725
    %s2730 = scalar_lea.vmem [#allocation2], 96
    %v2731 = vld [vmem:[%s2730] sm:%s2660]
    %s2732 = sshllo.u32 0, 2
    %s2733 = smul.addr 2, 12
    %s2734 = scalar_lea.vmem %s1, %s2733
    %2735 = vst [vmem:[%s2734] sm:%s2732] %v2731
    %s2736 = scalar_lea.vmem [#allocation2], 104
    %v2737 = vld [vmem:[%s2736] sm:%s2660]
    %s2738 = sshllo.u32 0, 2
    %s2739 = smul.addr 2, 13
    %s2740 = scalar_lea.vmem %s1, %s2739
    %2741 = vst [vmem:[%s2740] sm:%s2738] %v2737
    %s2742 = scalar_lea.vmem [#allocation2], 112
    %v2743 = vld [vmem:[%s2742] sm:%s2660]
    %s2744 = sshllo.u32 0, 2
    %s2745 = smul.addr 2, 14
    %s2746 = scalar_lea.vmem %s1, %s2745
    %2747 = vst [vmem:[%s2746] sm:%s2744] %v2743
    %s2748 = scalar_lea.vmem [#allocation2], 120
    %v2749 = vld [vmem:[%s2748] sm:%s2660]
    %s2750 = sshllo.u32 0, 2
    %s2751 = smul.addr 2, 15
    %s2752 = scalar_lea.vmem %s1, %s2751
    %2753 = vst [vmem:[%s2752] sm:%s2750] %v2749
    %s2754 = scalar_lea.vmem [#allocation2], 128
    %v2755 = vld [vmem:[%s2754] sm:%s2660]
    %s2756 = sshllo.u32 0, 2
    %s2757 = smul.addr 2, 16
    %s2758 = scalar_lea.vmem %s1, %s2757
    %2759 = vst [vmem:[%s2758] sm:%s2756] %v2755
    %s2760 = scalar_lea.vmem [#allocation2], 136
    %v2761 = vld [vmem:[%s2760] sm:%s2660]
    %s2762 = sshllo.u32 0, 2
    %s2763 = smul.addr 2, 17
    %s2764 = scalar_lea.vmem %s1, %s2763
    %2765 = vst [vmem:[%s2764] sm:%s2762] %v2761
    %s2766 = scalar_lea.vmem [#allocation2], 144
    %v2767 = vld [vmem:[%s2766] sm:%s2660]
    %s2768 = sshllo.u32 0, 2
    %s2769 = smul.addr 2, 18
    %s2770 = scalar_lea.vmem %s1, %s2769
    %2771 = vst [vmem:[%s2770] sm:%s2768] %v2767
    %s2772 = scalar_lea.vmem [#allocation2], 152
    %v2773 = vld [vmem:[%s2772] sm:%s2660]
    %s2774 = sshllo.u32 0, 2
    %s2775 = smul.addr 2, 19
    %s2776 = scalar_lea.vmem %s1, %s2775
    %2777 = vst [vmem:[%s2776] sm:%s2774] %v2773
    %s2778 = scalar_lea.vmem [#allocation2], 160
    %v2779 = vld [vmem:[%s2778] sm:%s2660]
    %s2780 = sshllo.u32 0, 2
    %s2781 = smul.addr 2, 20
    %s2782 = scalar_lea.vmem %s1, %s2781
    %2783 = vst [vmem:[%s2782] sm:%s2780] %v2779
    %s2784 = scalar_lea.vmem [#allocation2], 168
    %v2785 = vld [vmem:[%s2784] sm:%s2660]
    %s2786 = sshllo.u32 0, 2
    %s2787 = smul.addr 2, 21
    %s2788 = scalar_lea.vmem %s1, %s2787
    %2789 = vst [vmem:[%s2788] sm:%s2786] %v2785
    %s2790 = scalar_lea.vmem [#allocation2], 176
    %v2791 = vld [vmem:[%s2790] sm:%s2660]
    %s2792 = sshllo.u32 0, 2
    %s2793 = smul.addr 2, 22
    %s2794 = scalar_lea.vmem %s1, %s2793
    %2795 = vst [vmem:[%s2794] sm:%s2792] %v2791
    %s2796 = scalar_lea.vmem [#allocation2], 184
    %v2797 = vld [vmem:[%s2796] sm:%s2660]
    %s2798 = sshllo.u32 0, 2
    %s2799 = smul.addr 2, 23
    %s2800 = scalar_lea.vmem %s1, %s2799
    %2801 = vst [vmem:[%s2800] sm:%s2798] %v2797
    %s2802 = scalar_lea.vmem [#allocation2], 192
    %v2803 = vld [vmem:[%s2802] sm:%s2660]
    %s2804 = sshllo.u32 0, 2
    %s2805 = smul.addr 2, 24
    %s2806 = scalar_lea.vmem %s1, %s2805
    %2807 = vst [vmem:[%s2806] sm:%s2804] %v2803
    %s2808 = scalar_lea.vmem [#allocation2], 200
    %v2809 = vld [vmem:[%s2808] sm:%s2660]
    %s2810 = sshllo.u32 0, 2
    %s2811 = smul.addr 2, 25
    %s2812 = scalar_lea.vmem %s1, %s2811
    %2813 = vst [vmem:[%s2812] sm:%s2810] %v2809
    %s2814 = scalar_lea.vmem [#allocation2], 208
    %v2815 = vld [vmem:[%s2814] sm:%s2660]
    %s2816 = sshllo.u32 0, 2
    %s2817 = smul.addr 2, 26
    %s2818 = scalar_lea.vmem %s1, %s2817
    %2819 = vst [vmem:[%s2818] sm:%s2816] %v2815
    %s2820 = scalar_lea.vmem [#allocation2], 216
    %v2821 = vld [vmem:[%s2820] sm:%s2660]
    %s2822 = sshllo.u32 0, 2
    %s2823 = smul.addr 2, 27
    %s2824 = scalar_lea.vmem %s1, %s2823
    %2825 = vst [vmem:[%s2824] sm:%s2822] %v2821
    %s2826 = scalar_lea.vmem [#allocation2], 224
    %v2827 = vld [vmem:[%s2826] sm:%s2660]
    %s2828 = sshllo.u32 0, 2
    %s2829 = smul.addr 2, 28
    %s2830 = scalar_lea.vmem %s1, %s2829
    %2831 = vst [vmem:[%s2830] sm:%s2828] %v2827
    %s2832 = scalar_lea.vmem [#allocation2], 232
    %v2833 = vld [vmem:[%s2832] sm:%s2660]
    %s2834 = sshllo.u32 0, 2
    %s2835 = smul.addr 2, 29
    %s2836 = scalar_lea.vmem %s1, %s2835
    %2837 = vst [vmem:[%s2836] sm:%s2834] %v2833
    %s2838 = scalar_lea.vmem [#allocation2], 240
    %v2839 = vld [vmem:[%s2838] sm:%s2660]
    %s2840 = sshllo.u32 0, 2
    %s2841 = smul.addr 2, 30
    %s2842 = scalar_lea.vmem %s1, %s2841
    %2843 = vst [vmem:[%s2842] sm:%s2840] %v2839
    %s2844 = scalar_lea.vmem [#allocation2], 248
    %v2845 = vld [vmem:[%s2844] sm:%s2660]
    %s2846 = sshllo.u32 0, 2
    %s2847 = smul.addr 2, 31
    %s2848 = scalar_lea.vmem %s1, %s2847
    %2849 = vst [vmem:[%s2848] sm:%s2846] %v2845
    %s2850 = scalar_lea.vmem [#allocation2], 256
    %v2851 = vld [vmem:[%s2850] sm:%s2660]
    %s2852 = sshllo.u32 0, 2
    %s2853 = smul.addr 2, 32
    %s2854 = scalar_lea.vmem %s1, %s2853
    %2855 = vst [vmem:[%s2854] sm:%s2852] %v2851
    %s2856 = scalar_lea.vmem [#allocation2], 264
    %v2857 = vld [vmem:[%s2856] sm:%s2660]
    %s2858 = sshllo.u32 0, 2
    %s2859 = smul.addr 2, 33
    %s2860 = scalar_lea.vmem %s1, %s2859
    %2861 = vst [vmem:[%s2860] sm:%s2858] %v2857
    %s2862 = scalar_lea.vmem [#allocation2], 272
    %v2863 = vld [vmem:[%s2862] sm:%s2660]
    %s2864 = sshllo.u32 0, 2
    %s2865 = smul.addr 2, 34
    %s2866 = scalar_lea.vmem %s1, %s2865
    %2867 = vst [vmem:[%s2866] sm:%s2864] %v2863
    %s2868 = scalar_lea.vmem [#allocation2], 280
    %v2869 = vld [vmem:[%s2868] sm:%s2660]
    %s2870 = sshllo.u32 0, 2
    %s2871 = smul.addr 2, 35
    %s2872 = scalar_lea.vmem %s1, %s2871
    %2873 = vst [vmem:[%s2872] sm:%s2870] %v2869
    %s2874 = scalar_lea.vmem [#allocation2], 288
    %v2875 = vld [vmem:[%s2874] sm:%s2660]
    %s2876 = sshllo.u32 0, 2
    %s2877 = smul.addr 2, 36
    %s2878 = scalar_lea.vmem %s1, %s2877
    %2879 = vst [vmem:[%s2878] sm:%s2876] %v2875
    %s2880 = scalar_lea.vmem [#allocation2], 296
    %v2881 = vld [vmem:[%s2880] sm:%s2660]
    %s2882 = sshllo.u32 0, 2
    %s2883 = smul.addr 2, 37
    %s2884 = scalar_lea.vmem %s1, %s2883
    %2885 = vst [vmem:[%s2884] sm:%s2882] %v2881
    %s2886 = scalar_lea.vmem [#allocation2], 304
    %v2887 = vld [vmem:[%s2886] sm:%s2660]
    %s2888 = sshllo.u32 0, 2
    %s2889 = smul.addr 2, 38
    %s2890 = scalar_lea.vmem %s1, %s2889
    %2891 = vst [vmem:[%s2890] sm:%s2888] %v2887
    %s2892 = scalar_lea.vmem [#allocation2], 312
    %v2893 = vld [vmem:[%s2892] sm:%s2660]
    %s2894 = sshllo.u32 0, 2
    %s2895 = smul.addr 2, 39
    %s2896 = scalar_lea.vmem %s1, %s2895
    %2897 = vst [vmem:[%s2896] sm:%s2894] %v2893
    %s2898 = scalar_lea.vmem [#allocation2], 320
    %v2899 = vld [vmem:[%s2898] sm:%s2660]
    %s2900 = sshllo.u32 0, 2
    %s2901 = smul.addr 2, 40
    %s2902 = scalar_lea.vmem %s1, %s2901
    %2903 = vst [vmem:[%s2902] sm:%s2900] %v2899
    %s2904 = scalar_lea.vmem [#allocation2], 328
    %v2905 = vld [vmem:[%s2904] sm:%s2660]
    %s2906 = sshllo.u32 0, 2
    %s2907 = smul.addr 2, 41
    %s2908 = scalar_lea.vmem %s1, %s2907
    %2909 = vst [vmem:[%s2908] sm:%s2906] %v2905
    %s2910 = scalar_lea.vmem [#allocation2], 336
    %v2911 = vld [vmem:[%s2910] sm:%s2660]
    %s2912 = sshllo.u32 0, 2
    %s2913 = smul.addr 2, 42
    %s2914 = scalar_lea.vmem %s1, %s2913
    %2915 = vst [vmem:[%s2914] sm:%s2912] %v2911
    %s2916 = scalar_lea.vmem [#allocation2], 344
    %v2917 = vld [vmem:[%s2916] sm:%s2660]
    %s2918 = sshllo.u32 0, 2
    %s2919 = smul.addr 2, 43
    %s2920 = scalar_lea.vmem %s1, %s2919
    %2921 = vst [vmem:[%s2920] sm:%s2918] %v2917
    %s2922 = scalar_lea.vmem [#allocation2], 352
    %v2923 = vld [vmem:[%s2922] sm:%s2660]
    %s2924 = sshllo.u32 0, 2
    %s2925 = smul.addr 2, 44
    %s2926 = scalar_lea.vmem %s1, %s2925
    %2927 = vst [vmem:[%s2926] sm:%s2924] %v2923
    %s2928 = scalar_lea.vmem [#allocation2], 360
    %v2929 = vld [vmem:[%s2928] sm:%s2660]
    %s2930 = sshllo.u32 0, 2
    %s2931 = smul.addr 2, 45
    %s2932 = scalar_lea.vmem %s1, %s2931
    %2933 = vst [vmem:[%s2932] sm:%s2930] %v2929
    %s2934 = scalar_lea.vmem [#allocation2], 368
    %v2935 = vld [vmem:[%s2934] sm:%s2660]
    %s2936 = sshllo.u32 0, 2
    %s2937 = smul.addr 2, 46
    %s2938 = scalar_lea.vmem %s1, %s2937
    %2939 = vst [vmem:[%s2938] sm:%s2936] %v2935
    %s2940 = scalar_lea.vmem [#allocation2], 376
    %v2941 = vld [vmem:[%s2940] sm:%s2660]
    %s2942 = sshllo.u32 0, 2
    %s2943 = smul.addr 2, 47
    %s2944 = scalar_lea.vmem %s1, %s2943
    %2945 = vst [vmem:[%s2944] sm:%s2942] %v2941
    %s2946 = scalar_lea.vmem [#allocation2], 384
    %v2947 = vld [vmem:[%s2946] sm:%s2660]
    %s2948 = sshllo.u32 0, 2
    %s2949 = smul.addr 2, 48
    %s2950 = scalar_lea.vmem %s1, %s2949
    %2951 = vst [vmem:[%s2950] sm:%s2948] %v2947
    %s2952 = scalar_lea.vmem [#allocation2], 392
    %v2953 = vld [vmem:[%s2952] sm:%s2660]
    %s2954 = sshllo.u32 0, 2
    %s2955 = smul.addr 2, 49
    %s2956 = scalar_lea.vmem %s1, %s2955
    %2957 = vst [vmem:[%s2956] sm:%s2954] %v2953
    %s2958 = scalar_lea.vmem [#allocation2], 400
    %v2959 = vld [vmem:[%s2958] sm:%s2660]
    %s2960 = sshllo.u32 0, 2
    %s2961 = smul.addr 2, 50
    %s2962 = scalar_lea.vmem %s1, %s2961
    %2963 = vst [vmem:[%s2962] sm:%s2960] %v2959
    %s2964 = scalar_lea.vmem [#allocation2], 408
    %v2965 = vld [vmem:[%s2964] sm:%s2660]
    %s2966 = sshllo.u32 0, 2
    %s2967 = smul.addr 2, 51
    %s2968 = scalar_lea.vmem %s1, %s2967
    %2969 = vst [vmem:[%s2968] sm:%s2966] %v2965
    %s2970 = scalar_lea.vmem [#allocation2], 416
    %v2971 = vld [vmem:[%s2970] sm:%s2660]
    %s2972 = sshllo.u32 0, 2
    %s2973 = smul.addr 2, 52
    %s2974 = scalar_lea.vmem %s1, %s2973
    %2975 = vst [vmem:[%s2974] sm:%s2972] %v2971
    %s2976 = scalar_lea.vmem [#allocation2], 424
    %v2977 = vld [vmem:[%s2976] sm:%s2660]
    %s2978 = sshllo.u32 0, 2
    %s2979 = smul.addr 2, 53
    %s2980 = scalar_lea.vmem %s1, %s2979
    %2981 = vst [vmem:[%s2980] sm:%s2978] %v2977
    %s2982 = scalar_lea.vmem [#allocation2], 432
    %v2983 = vld [vmem:[%s2982] sm:%s2660]
    %s2984 = sshllo.u32 0, 2
    %s2985 = smul.addr 2, 54
    %s2986 = scalar_lea.vmem %s1, %s2985
    %2987 = vst [vmem:[%s2986] sm:%s2984] %v2983
    %s2988 = scalar_lea.vmem [#allocation2], 440
    %v2989 = vld [vmem:[%s2988] sm:%s2660]
    %s2990 = sshllo.u32 0, 2
    %s2991 = smul.addr 2, 55
    %s2992 = scalar_lea.vmem %s1, %s2991
    %2993 = vst [vmem:[%s2992] sm:%s2990] %v2989
    %s2994 = scalar_lea.vmem [#allocation2], 448
    %v2995 = vld [vmem:[%s2994] sm:%s2660]
    %s2996 = sshllo.u32 0, 2
    %s2997 = smul.addr 2, 56
    %s2998 = scalar_lea.vmem %s1, %s2997
    %2999 = vst [vmem:[%s2998] sm:%s2996] %v2995
    %s3000 = scalar_lea.vmem [#allocation2], 456
    %v3001 = vld [vmem:[%s3000] sm:%s2660]
    %s3002 = sshllo.u32 0, 2
    %s3003 = smul.addr 2, 57
    %s3004 = scalar_lea.vmem %s1, %s3003
    %3005 = vst [vmem:[%s3004] sm:%s3002] %v3001
    %s3006 = scalar_lea.vmem [#allocation2], 464
    %v3007 = vld [vmem:[%s3006] sm:%s2660]
    %s3008 = sshllo.u32 0, 2
    %s3009 = smul.addr 2, 58
    %s3010 = scalar_lea.vmem %s1, %s3009
    %3011 = vst [vmem:[%s3010] sm:%s3008] %v3007
    %s3012 = scalar_lea.vmem [#allocation2], 472
    %v3013 = vld [vmem:[%s3012] sm:%s2660]
    %s3014 = sshllo.u32 0, 2
    %s3015 = smul.addr 2, 59
    %s3016 = scalar_lea.vmem %s1, %s3015
    %3017 = vst [vmem:[%s3016] sm:%s3014] %v3013
    %s3018 = scalar_lea.vmem [#allocation2], 480
    %v3019 = vld [vmem:[%s3018] sm:%s2660]
    %s3020 = sshllo.u32 0, 2
    %s3021 = smul.addr 2, 60
    %s3022 = scalar_lea.vmem %s1, %s3021
    %3023 = vst [vmem:[%s3022] sm:%s3020] %v3019
    %s3024 = scalar_lea.vmem [#allocation2], 488
    %v3025 = vld [vmem:[%s3024] sm:%s2660]
    %s3026 = sshllo.u32 0, 2
    %s3027 = smul.addr 2, 61
    %s3028 = scalar_lea.vmem %s1, %s3027
    %3029 = vst [vmem:[%s3028] sm:%s3026] %v3025
    %s3030 = scalar_lea.vmem [#allocation2], 496
    %v3031 = vld [vmem:[%s3030] sm:%s2660]
    %s3032 = sshllo.u32 0, 2
    %s3033 = smul.addr 2, 62
    %s3034 = scalar_lea.vmem %s1, %s3033
    %3035 = vst [vmem:[%s3034] sm:%s3032] %v3031
    %s3036 = scalar_lea.vmem [#allocation2], 504
    %v3037 = vld [vmem:[%s3036] sm:%s2660]
    %s3038 = sshllo.u32 0, 2
    %s3039 = smul.addr 2, 63
    %s3040 = scalar_lea.vmem %s1, %s3039
    %3041 = vst [vmem:[%s3040] sm:%s3038] %v3037
    %s3042 = scalar_lea.vmem [#allocation2], 512
    %v3043 = vld [vmem:[%s3042] sm:%s2660]
    %s3044 = sshllo.u32 0, 2
    %s3045 = smul.addr 2, 64
    %s3046 = scalar_lea.vmem %s1, %s3045
    %3047 = vst [vmem:[%s3046] sm:%s3044] %v3043
    %s3048 = scalar_lea.vmem [#allocation2], 520
    %v3049 = vld [vmem:[%s3048] sm:%s2660]
    %s3050 = sshllo.u32 0, 2
    %s3051 = smul.addr 2, 65
    %s3052 = scalar_lea.vmem %s1, %s3051
    %3053 = vst [vmem:[%s3052] sm:%s3050] %v3049
    %s3054 = scalar_lea.vmem [#allocation2], 528
    %v3055 = vld [vmem:[%s3054] sm:%s2660]
    %s3056 = sshllo.u32 0, 2
    %s3057 = smul.addr 2, 66
    %s3058 = scalar_lea.vmem %s1, %s3057
    %3059 = vst [vmem:[%s3058] sm:%s3056] %v3055
    %s3060 = scalar_lea.vmem [#allocation2], 536
    %v3061 = vld [vmem:[%s3060] sm:%s2660]
    %s3062 = sshllo.u32 0, 2
    %s3063 = smul.addr 2, 67
    %s3064 = scalar_lea.vmem %s1, %s3063
    %3065 = vst [vmem:[%s3064] sm:%s3062] %v3061
    %s3066 = scalar_lea.vmem [#allocation2], 544
    %v3067 = vld [vmem:[%s3066] sm:%s2660]
    %s3068 = sshllo.u32 0, 2
    %s3069 = smul.addr 2, 68
    %s3070 = scalar_lea.vmem %s1, %s3069
    %3071 = vst [vmem:[%s3070] sm:%s3068] %v3067
    %s3072 = scalar_lea.vmem [#allocation2], 552
    %v3073 = vld [vmem:[%s3072] sm:%s2660]
    %s3074 = sshllo.u32 0, 2
    %s3075 = smul.addr 2, 69
    %s3076 = scalar_lea.vmem %s1, %s3075
    %3077 = vst [vmem:[%s3076] sm:%s3074] %v3073
    %s3078 = scalar_lea.vmem [#allocation2], 560
    %v3079 = vld [vmem:[%s3078] sm:%s2660]
    %s3080 = sshllo.u32 0, 2
    %s3081 = smul.addr 2, 70
    %s3082 = scalar_lea.vmem %s1, %s3081
    %3083 = vst [vmem:[%s3082] sm:%s3080] %v3079
    %s3084 = scalar_lea.vmem [#allocation2], 568
    %v3085 = vld [vmem:[%s3084] sm:%s2660]
    %s3086 = sshllo.u32 0, 2
    %s3087 = smul.addr 2, 71
    %s3088 = scalar_lea.vmem %s1, %s3087
    %3089 = vst [vmem:[%s3088] sm:%s3086] %v3085
    %s3090 = scalar_lea.vmem [#allocation2], 576
    %v3091 = vld [vmem:[%s3090] sm:%s2660]
    %s3092 = sshllo.u32 0, 2
    %s3093 = smul.addr 2, 72
    %s3094 = scalar_lea.vmem %s1, %s3093
    %3095 = vst [vmem:[%s3094] sm:%s3092] %v3091
    %s3096 = scalar_lea.vmem [#allocation2], 584
    %v3097 = vld [vmem:[%s3096] sm:%s2660]
    %s3098 = sshllo.u32 0, 2
    %s3099 = smul.addr 2, 73
    %s3100 = scalar_lea.vmem %s1, %s3099
    %3101 = vst [vmem:[%s3100] sm:%s3098] %v3097
    %s3102 = scalar_lea.vmem [#allocation2], 592
    %v3103 = vld [vmem:[%s3102] sm:%s2660]
    %s3104 = sshllo.u32 0, 2
    %s3105 = smul.addr 2, 74
    %s3106 = scalar_lea.vmem %s1, %s3105
    %3107 = vst [vmem:[%s3106] sm:%s3104] %v3103
    %s3108 = scalar_lea.vmem [#allocation2], 600
    %v3109 = vld [vmem:[%s3108] sm:%s2660]
    %s3110 = sshllo.u32 0, 2
    %s3111 = smul.addr 2, 75
    %s3112 = scalar_lea.vmem %s1, %s3111
    %3113 = vst [vmem:[%s3112] sm:%s3110] %v3109
    %s3114 = scalar_lea.vmem [#allocation2], 608
    %v3115 = vld [vmem:[%s3114] sm:%s2660]
    %s3116 = sshllo.u32 0, 2
    %s3117 = smul.addr 2, 76
    %s3118 = scalar_lea.vmem %s1, %s3117
    %3119 = vst [vmem:[%s3118] sm:%s3116] %v3115
    %s3120 = scalar_lea.vmem [#allocation2], 616
    %v3121 = vld [vmem:[%s3120] sm:%s2660]
    %s3122 = sshllo.u32 0, 2
    %s3123 = smul.addr 2, 77
    %s3124 = scalar_lea.vmem %s1, %s3123
    %3125 = vst [vmem:[%s3124] sm:%s3122] %v3121
    %s3126 = scalar_lea.vmem [#allocation2], 624
    %v3127 = vld [vmem:[%s3126] sm:%s2660]
    %s3128 = sshllo.u32 0, 2
    %s3129 = smul.addr 2, 78
    %s3130 = scalar_lea.vmem %s1, %s3129
    %3131 = vst [vmem:[%s3130] sm:%s3128] %v3127
    %s3132 = scalar_lea.vmem [#allocation2], 632
    %v3133 = vld [vmem:[%s3132] sm:%s2660]
    %s3134 = sshllo.u32 0, 2
    %s3135 = smul.addr 2, 79
    %s3136 = scalar_lea.vmem %s1, %s3135
    %3137 = vst [vmem:[%s3136] sm:%s3134] %v3133
    %s3138 = scalar_lea.vmem [#allocation2], 640
    %v3139 = vld [vmem:[%s3138] sm:%s2660]
    %s3140 = sshllo.u32 0, 2
    %s3141 = smul.addr 2, 80
    %s3142 = scalar_lea.vmem %s1, %s3141
    %3143 = vst [vmem:[%s3142] sm:%s3140] %v3139
    %s3144 = scalar_lea.vmem [#allocation2], 648
    %v3145 = vld [vmem:[%s3144] sm:%s2660]
    %s3146 = sshllo.u32 0, 2
    %s3147 = smul.addr 2, 81
    %s3148 = scalar_lea.vmem %s1, %s3147
    %3149 = vst [vmem:[%s3148] sm:%s3146] %v3145
    %s3150 = scalar_lea.vmem [#allocation2], 656
    %v3151 = vld [vmem:[%s3150] sm:%s2660]
    %s3152 = sshllo.u32 0, 2
    %s3153 = smul.addr 2, 82
    %s3154 = scalar_lea.vmem %s1, %s3153
    %3155 = vst [vmem:[%s3154] sm:%s3152] %v3151
    %s3156 = scalar_lea.vmem [#allocation2], 664
    %v3157 = vld [vmem:[%s3156] sm:%s2660]
    %s3158 = sshllo.u32 0, 2
    %s3159 = smul.addr 2, 83
    %s3160 = scalar_lea.vmem %s1, %s3159
    %3161 = vst [vmem:[%s3160] sm:%s3158] %v3157
    %s3162 = scalar_lea.vmem [#allocation2], 672
    %v3163 = vld [vmem:[%s3162] sm:%s2660]
    %s3164 = sshllo.u32 0, 2
    %s3165 = smul.addr 2, 84
    %s3166 = scalar_lea.vmem %s1, %s3165
    %3167 = vst [vmem:[%s3166] sm:%s3164] %v3163
    %s3168 = scalar_lea.vmem [#allocation2], 680
    %v3169 = vld [vmem:[%s3168] sm:%s2660]
    %s3170 = sshllo.u32 0, 2
    %s3171 = smul.addr 2, 85
    %s3172 = scalar_lea.vmem %s1, %s3171
    %3173 = vst [vmem:[%s3172] sm:%s3170] %v3169
    %s3174 = scalar_lea.vmem [#allocation2], 688
    %v3175 = vld [vmem:[%s3174] sm:%s2660]
    %s3176 = sshllo.u32 0, 2
    %s3177 = smul.addr 2, 86
    %s3178 = scalar_lea.vmem %s1, %s3177
    %3179 = vst [vmem:[%s3178] sm:%s3176] %v3175
    %s3180 = scalar_lea.vmem [#allocation2], 696
    %v3181 = vld [vmem:[%s3180] sm:%s2660]
    %s3182 = sshllo.u32 0, 2
    %s3183 = smul.addr 2, 87
    %s3184 = scalar_lea.vmem %s1, %s3183
    %3185 = vst [vmem:[%s3184] sm:%s3182] %v3181
    %s3186 = scalar_lea.vmem [#allocation2], 704
    %v3187 = vld [vmem:[%s3186] sm:%s2660]
    %s3188 = sshllo.u32 0, 2
    %s3189 = smul.addr 2, 88
    %s3190 = scalar_lea.vmem %s1, %s3189
    %3191 = vst [vmem:[%s3190] sm:%s3188] %v3187
    %s3192 = scalar_lea.vmem [#allocation2], 712
    %v3193 = vld [vmem:[%s3192] sm:%s2660]
    %s3194 = sshllo.u32 0, 2
    %s3195 = smul.addr 2, 89
    %s3196 = scalar_lea.vmem %s1, %s3195
    %3197 = vst [vmem:[%s3196] sm:%s3194] %v3193
    %s3198 = scalar_lea.vmem [#allocation2], 720
    %v3199 = vld [vmem:[%s3198] sm:%s2660]
    %s3200 = sshllo.u32 0, 2
    %s3201 = smul.addr 2, 90
    %s3202 = scalar_lea.vmem %s1, %s3201
    %3203 = vst [vmem:[%s3202] sm:%s3200] %v3199
    %s3204 = scalar_lea.vmem [#allocation2], 728
    %v3205 = vld [vmem:[%s3204] sm:%s2660]
    %s3206 = sshllo.u32 0, 2
    %s3207 = smul.addr 2, 91
    %s3208 = scalar_lea.vmem %s1, %s3207
    %3209 = vst [vmem:[%s3208] sm:%s3206] %v3205
    %s3210 = scalar_lea.vmem [#allocation2], 736
    %v3211 = vld [vmem:[%s3210] sm:%s2660]
    %s3212 = sshllo.u32 0, 2
    %s3213 = smul.addr 2, 92
    %s3214 = scalar_lea.vmem %s1, %s3213
    %3215 = vst [vmem:[%s3214] sm:%s3212] %v3211
    %s3216 = scalar_lea.vmem [#allocation2], 744
    %v3217 = vld [vmem:[%s3216] sm:%s2660]
    %s3218 = sshllo.u32 0, 2
    %s3219 = smul.addr 2, 93
    %s3220 = scalar_lea.vmem %s1, %s3219
    %3221 = vst [vmem:[%s3220] sm:%s3218] %v3217
    %s3222 = scalar_lea.vmem [#allocation2], 752
    %v3223 = vld [vmem:[%s3222] sm:%s2660]
    %s3224 = sshllo.u32 0, 2
    %s3225 = smul.addr 2, 94
    %s3226 = scalar_lea.vmem %s1, %s3225
    %3227 = vst [vmem:[%s3226] sm:%s3224] %v3223
    %s3228 = scalar_lea.vmem [#allocation2], 760
    %v3229 = vld [vmem:[%s3228] sm:%s2660]
    %s3230 = sshllo.u32 0, 2
    %s3231 = smul.addr 2, 95
    %s3232 = scalar_lea.vmem %s1, %s3231
    %3233 = vst [vmem:[%s3232] sm:%s3230] %v3229
    %s3234 = scalar_lea.vmem [#allocation2], 768
    %v3235 = vld [vmem:[%s3234] sm:%s2660]
    %s3236 = sshllo.u32 0, 2
    %s3237 = smul.addr 2, 96
    %s3238 = scalar_lea.vmem %s1, %s3237
    %3239 = vst [vmem:[%s3238] sm:%s3236] %v3235
    %s3240 = scalar_lea.vmem [#allocation2], 776
    %v3241 = vld [vmem:[%s3240] sm:%s2660]
    %s3242 = sshllo.u32 0, 2
    %s3243 = smul.addr 2, 97
    %s3244 = scalar_lea.vmem %s1, %s3243
    %3245 = vst [vmem:[%s3244] sm:%s3242] %v3241
    %s3246 = scalar_lea.vmem [#allocation2], 784
    %v3247 = vld [vmem:[%s3246] sm:%s2660]
    %s3248 = sshllo.u32 0, 2
    %s3249 = smul.addr 2, 98
    %s3250 = scalar_lea.vmem %s1, %s3249
    %3251 = vst [vmem:[%s3250] sm:%s3248] %v3247
    %s3252 = scalar_lea.vmem [#allocation2], 792
    %v3253 = vld [vmem:[%s3252] sm:%s2660]
    %s3254 = sshllo.u32 0, 2
    %s3255 = smul.addr 2, 99
    %s3256 = scalar_lea.vmem %s1, %s3255
    %3257 = vst [vmem:[%s3256] sm:%s3254] %v3253
    %s3258 = scalar_lea.vmem [#allocation2], 800
    %v3259 = vld [vmem:[%s3258] sm:%s2660]
    %s3260 = sshllo.u32 0, 2
    %s3261 = smul.addr 2, 100
    %s3262 = scalar_lea.vmem %s1, %s3261
    %3263 = vst [vmem:[%s3262] sm:%s3260] %v3259
    %s3264 = scalar_lea.vmem [#allocation2], 808
    %v3265 = vld [vmem:[%s3264] sm:%s2660]
    %s3266 = sshllo.u32 0, 2
    %s3267 = smul.addr 2, 101
    %s3268 = scalar_lea.vmem %s1, %s3267
    %3269 = vst [vmem:[%s3268] sm:%s3266] %v3265
    %s3270 = scalar_lea.vmem [#allocation2], 816
    %v3271 = vld [vmem:[%s3270] sm:%s2660]
    %s3272 = sshllo.u32 0, 2
    %s3273 = smul.addr 2, 102
    %s3274 = scalar_lea.vmem %s1, %s3273
    %3275 = vst [vmem:[%s3274] sm:%s3272] %v3271
    %s3276 = scalar_lea.vmem [#allocation2], 824
    %v3277 = vld [vmem:[%s3276] sm:%s2660]
    %s3278 = sshllo.u32 0, 2
    %s3279 = smul.addr 2, 103
    %s3280 = scalar_lea.vmem %s1, %s3279
    %3281 = vst [vmem:[%s3280] sm:%s3278] %v3277
    %s3282 = scalar_lea.vmem [#allocation2], 832
    %v3283 = vld [vmem:[%s3282] sm:%s2660]
    %s3284 = sshllo.u32 0, 2
    %s3285 = smul.addr 2, 104
    %s3286 = scalar_lea.vmem %s1, %s3285
    %3287 = vst [vmem:[%s3286] sm:%s3284] %v3283
    %s3288 = scalar_lea.vmem [#allocation2], 840
    %v3289 = vld [vmem:[%s3288] sm:%s2660]
    %s3290 = sshllo.u32 0, 2
    %s3291 = smul.addr 2, 105
    %s3292 = scalar_lea.vmem %s1, %s3291
    %3293 = vst [vmem:[%s3292] sm:%s3290] %v3289
    %s3294 = scalar_lea.vmem [#allocation2], 848
    %v3295 = vld [vmem:[%s3294] sm:%s2660]
    %s3296 = sshllo.u32 0, 2
    %s3297 = smul.addr 2, 106
    %s3298 = scalar_lea.vmem %s1, %s3297
    %3299 = vst [vmem:[%s3298] sm:%s3296] %v3295
    %s3300 = scalar_lea.vmem [#allocation2], 856
    %v3301 = vld [vmem:[%s3300] sm:%s2660]
    %s3302 = sshllo.u32 0, 2
    %s3303 = smul.addr 2, 107
    %s3304 = scalar_lea.vmem %s1, %s3303
    %3305 = vst [vmem:[%s3304] sm:%s3302] %v3301
    %s3306 = scalar_lea.vmem [#allocation2], 864
    %v3307 = vld [vmem:[%s3306] sm:%s2660]
    %s3308 = sshllo.u32 0, 2
    %s3309 = smul.addr 2, 108
    %s3310 = scalar_lea.vmem %s1, %s3309
    %3311 = vst [vmem:[%s3310] sm:%s3308] %v3307
    %s3312 = scalar_lea.vmem [#allocation2], 872
    %v3313 = vld [vmem:[%s3312] sm:%s2660]
    %s3314 = sshllo.u32 0, 2
    %s3315 = smul.addr 2, 109
    %s3316 = scalar_lea.vmem %s1, %s3315
    %3317 = vst [vmem:[%s3316] sm:%s3314] %v3313
    %s3318 = scalar_lea.vmem [#allocation2], 880
    %v3319 = vld [vmem:[%s3318] sm:%s2660]
    %s3320 = sshllo.u32 0, 2
    %s3321 = smul.addr 2, 110
    %s3322 = scalar_lea.vmem %s1, %s3321
    %3323 = vst [vmem:[%s3322] sm:%s3320] %v3319
    %s3324 = scalar_lea.vmem [#allocation2], 888
    %v3325 = vld [vmem:[%s3324] sm:%s2660]
    %s3326 = sshllo.u32 0, 2
    %s3327 = smul.addr 2, 111
    %s3328 = scalar_lea.vmem %s1, %s3327
    %3329 = vst [vmem:[%s3328] sm:%s3326] %v3325
    %s3330 = scalar_lea.vmem [#allocation2], 896
    %v3331 = vld [vmem:[%s3330] sm:%s2660]
    %s3332 = sshllo.u32 0, 2
    %s3333 = smul.addr 2, 112
    %s3334 = scalar_lea.vmem %s1, %s3333
    %3335 = vst [vmem:[%s3334] sm:%s3332] %v3331
    %s3336 = scalar_lea.vmem [#allocation2], 904
    %v3337 = vld [vmem:[%s3336] sm:%s2660]
    %s3338 = sshllo.u32 0, 2
    %s3339 = smul.addr 2, 113
    %s3340 = scalar_lea.vmem %s1, %s3339
    %3341 = vst [vmem:[%s3340] sm:%s3338] %v3337
    %s3342 = scalar_lea.vmem [#allocation2], 912
    %v3343 = vld [vmem:[%s3342] sm:%s2660]
    %s3344 = sshllo.u32 0, 2
    %s3345 = smul.addr 2, 114
    %s3346 = scalar_lea.vmem %s1, %s3345
    %3347 = vst [vmem:[%s3346] sm:%s3344] %v3343
    %s3348 = scalar_lea.vmem [#allocation2], 920
    %v3349 = vld [vmem:[%s3348] sm:%s2660]
    %s3350 = sshllo.u32 0, 2
    %s3351 = smul.addr 2, 115
    %s3352 = scalar_lea.vmem %s1, %s3351
    %3353 = vst [vmem:[%s3352] sm:%s3350] %v3349
    %s3354 = scalar_lea.vmem [#allocation2], 928
    %v3355 = vld [vmem:[%s3354] sm:%s2660]
    %s3356 = sshllo.u32 0, 2
    %s3357 = smul.addr 2, 116
    %s3358 = scalar_lea.vmem %s1, %s3357
    %3359 = vst [vmem:[%s3358] sm:%s3356] %v3355
    %s3360 = scalar_lea.vmem [#allocation2], 936
    %v3361 = vld [vmem:[%s3360] sm:%s2660]
    %s3362 = sshllo.u32 0, 2
    %s3363 = smul.addr 2, 117
    %s3364 = scalar_lea.vmem %s1, %s3363
    %3365 = vst [vmem:[%s3364] sm:%s3362] %v3361
    %s3366 = scalar_lea.vmem [#allocation2], 944
    %v3367 = vld [vmem:[%s3366] sm:%s2660]
    %s3368 = sshllo.u32 0, 2
    %s3369 = smul.addr 2, 118
    %s3370 = scalar_lea.vmem %s1, %s3369
    %3371 = vst [vmem:[%s3370] sm:%s3368] %v3367
    %s3372 = scalar_lea.vmem [#allocation2], 952
    %v3373 = vld [vmem:[%s3372] sm:%s2660]
    %s3374 = sshllo.u32 0, 2
    %s3375 = smul.addr 2, 119
    %s3376 = scalar_lea.vmem %s1, %s3375
    %3377 = vst [vmem:[%s3376] sm:%s3374] %v3373
    %s3378 = scalar_lea.vmem [#allocation2], 960
    %v3379 = vld [vmem:[%s3378] sm:%s2660]
    %s3380 = sshllo.u32 0, 2
    %s3381 = smul.addr 2, 120
    %s3382 = scalar_lea.vmem %s1, %s3381
    %3383 = vst [vmem:[%s3382] sm:%s3380] %v3379
    %s3384 = scalar_lea.vmem [#allocation2], 968
    %v3385 = vld [vmem:[%s3384] sm:%s2660]
    %s3386 = sshllo.u32 0, 2
    %s3387 = smul.addr 2, 121
    %s3388 = scalar_lea.vmem %s1, %s3387
    %3389 = vst [vmem:[%s3388] sm:%s3386] %v3385
    %s3390 = scalar_lea.vmem [#allocation2], 976
    %v3391 = vld [vmem:[%s3390] sm:%s2660]
    %s3392 = sshllo.u32 0, 2
    %s3393 = smul.addr 2, 122
    %s3394 = scalar_lea.vmem %s1, %s3393
    %3395 = vst [vmem:[%s3394] sm:%s3392] %v3391
    %s3396 = scalar_lea.vmem [#allocation2], 984
    %v3397 = vld [vmem:[%s3396] sm:%s2660]
    %s3398 = sshllo.u32 0, 2
    %s3399 = smul.addr 2, 123
    %s3400 = scalar_lea.vmem %s1, %s3399
    %3401 = vst [vmem:[%s3400] sm:%s3398] %v3397
    %s3402 = scalar_lea.vmem [#allocation2], 992
    %v3403 = vld [vmem:[%s3402] sm:%s2660]
    %s3404 = sshllo.u32 0, 2
    %s3405 = smul.addr 2, 124
    %s3406 = scalar_lea.vmem %s1, %s3405
    %3407 = vst [vmem:[%s3406] sm:%s3404] %v3403
    %s3408 = scalar_lea.vmem [#allocation2], 1000
    %v3409 = vld [vmem:[%s3408] sm:%s2660]
    %s3410 = sshllo.u32 0, 2
    %s3411 = smul.addr 2, 125
    %s3412 = scalar_lea.vmem %s1, %s3411
    %3413 = vst [vmem:[%s3412] sm:%s3410] %v3409
    %s3414 = scalar_lea.vmem [#allocation2], 1008
    %v3415 = vld [vmem:[%s3414] sm:%s2660]
    %s3416 = sshllo.u32 0, 2
    %s3417 = smul.addr 2, 126
    %s3418 = scalar_lea.vmem %s1, %s3417
    %3419 = vst [vmem:[%s3418] sm:%s3416] %v3415
    %s3420 = scalar_lea.vmem [#allocation2], 1016
    %v3421 = vld [vmem:[%s3420] sm:%s2660]
    %s3422 = sshllo.u32 0, 2
    %s3423 = smul.addr 2, 127
    %s3424 = scalar_lea.vmem %s1, %s3423
    %3425 = vst [vmem:[%s3424] sm:%s3422] %v3421
    %s3426 = scalar_lea.vmem [#allocation2], 1024
    %v3427 = vld [vmem:[%s3426] sm:%s2660]
    %s3428 = sshllo.u32 0, 2
    %s3429 = smul.addr 2, 128
    %s3430 = scalar_lea.vmem %s1, %s3429
    %3431 = vst [vmem:[%s3430] sm:%s3428] %v3427
    %s3432 = scalar_lea.vmem [#allocation2], 1032
    %v3433 = vld [vmem:[%s3432] sm:%s2660]
    %s3434 = sshllo.u32 0, 2
    %s3435 = smul.addr 2, 129
    %s3436 = scalar_lea.vmem %s1, %s3435
    %3437 = vst [vmem:[%s3436] sm:%s3434] %v3433
    %s3438 = scalar_lea.vmem [#allocation2], 1040
    %v3439 = vld [vmem:[%s3438] sm:%s2660]
    %s3440 = sshllo.u32 0, 2
    %s3441 = smul.addr 2, 130
    %s3442 = scalar_lea.vmem %s1, %s3441
    %3443 = vst [vmem:[%s3442] sm:%s3440] %v3439
    %s3444 = scalar_lea.vmem [#allocation2], 1048
    %v3445 = vld [vmem:[%s3444] sm:%s2660]
    %s3446 = sshllo.u32 0, 2
    %s3447 = smul.addr 2, 131
    %s3448 = scalar_lea.vmem %s1, %s3447
    %3449 = vst [vmem:[%s3448] sm:%s3446] %v3445
    %s3450 = scalar_lea.vmem [#allocation2], 1056
    %v3451 = vld [vmem:[%s3450] sm:%s2660]
    %s3452 = sshllo.u32 0, 2
    %s3453 = smul.addr 2, 132
    %s3454 = scalar_lea.vmem %s1, %s3453
    %3455 = vst [vmem:[%s3454] sm:%s3452] %v3451
    %s3456 = scalar_lea.vmem [#allocation2], 1064
    %v3457 = vld [vmem:[%s3456] sm:%s2660]
    %s3458 = sshllo.u32 0, 2
    %s3459 = smul.addr 2, 133
    %s3460 = scalar_lea.vmem %s1, %s3459
    %3461 = vst [vmem:[%s3460] sm:%s3458] %v3457
    %s3462 = scalar_lea.vmem [#allocation2], 1072
    %v3463 = vld [vmem:[%s3462] sm:%s2660]
    %s3464 = sshllo.u32 0, 2
    %s3465 = smul.addr 2, 134
    %s3466 = scalar_lea.vmem %s1, %s3465
    %3467 = vst [vmem:[%s3466] sm:%s3464] %v3463
    %s3468 = scalar_lea.vmem [#allocation2], 1080
    %v3469 = vld [vmem:[%s3468] sm:%s2660]
    %s3470 = sshllo.u32 0, 2
    %s3471 = smul.addr 2, 135
    %s3472 = scalar_lea.vmem %s1, %s3471
    %3473 = vst [vmem:[%s3472] sm:%s3470] %v3469
    %s3474 = scalar_lea.vmem [#allocation2], 1088
    %v3475 = vld [vmem:[%s3474] sm:%s2660]
    %s3476 = sshllo.u32 0, 2
    %s3477 = smul.addr 2, 136
    %s3478 = scalar_lea.vmem %s1, %s3477
    %3479 = vst [vmem:[%s3478] sm:%s3476] %v3475
    %s3480 = scalar_lea.vmem [#allocation2], 1096
    %v3481 = vld [vmem:[%s3480] sm:%s2660]
    %s3482 = sshllo.u32 0, 2
    %s3483 = smul.addr 2, 137
    %s3484 = scalar_lea.vmem %s1, %s3483
    %3485 = vst [vmem:[%s3484] sm:%s3482] %v3481
    %s3486 = scalar_lea.vmem [#allocation2], 1104
    %v3487 = vld [vmem:[%s3486] sm:%s2660]
    %s3488 = sshllo.u32 0, 2
    %s3489 = smul.addr 2, 138
    %s3490 = scalar_lea.vmem %s1, %s3489
    %3491 = vst [vmem:[%s3490] sm:%s3488] %v3487
    %s3492 = scalar_lea.vmem [#allocation2], 1112
    %v3493 = vld [vmem:[%s3492] sm:%s2660]
    %s3494 = sshllo.u32 0, 2
    %s3495 = smul.addr 2, 139
    %s3496 = scalar_lea.vmem %s1, %s3495
    %3497 = vst [vmem:[%s3496] sm:%s3494] %v3493
    %s3498 = scalar_lea.vmem [#allocation2], 1120
    %v3499 = vld [vmem:[%s3498] sm:%s2660]
    %s3500 = sshllo.u32 0, 2
    %s3501 = smul.addr 2, 140
    %s3502 = scalar_lea.vmem %s1, %s3501
    %3503 = vst [vmem:[%s3502] sm:%s3500] %v3499
    %s3504 = scalar_lea.vmem [#allocation2], 1128
    %v3505 = vld [vmem:[%s3504] sm:%s2660]
    %s3506 = sshllo.u32 0, 2
    %s3507 = smul.addr 2, 141
    %s3508 = scalar_lea.vmem %s1, %s3507
    %3509 = vst [vmem:[%s3508] sm:%s3506] %v3505
    %s3510 = scalar_lea.vmem [#allocation2], 1136
    %v3511 = vld [vmem:[%s3510] sm:%s2660]
    %s3512 = sshllo.u32 0, 2
    %s3513 = smul.addr 2, 142
    %s3514 = scalar_lea.vmem %s1, %s3513
    %3515 = vst [vmem:[%s3514] sm:%s3512] %v3511
    %s3516 = scalar_lea.vmem [#allocation2], 1144
    %v3517 = vld [vmem:[%s3516] sm:%s2660]
    %s3518 = sshllo.u32 0, 2
    %s3519 = smul.addr 2, 143
    %s3520 = scalar_lea.vmem %s1, %s3519
    %3521 = vst [vmem:[%s3520] sm:%s3518] %v3517
    %s3522 = scalar_lea.vmem [#allocation2], 1152
    %v3523 = vld [vmem:[%s3522] sm:%s2660]
    %s3524 = sshllo.u32 0, 2
    %s3525 = smul.addr 2, 144
    %s3526 = scalar_lea.vmem %s1, %s3525
    %3527 = vst [vmem:[%s3526] sm:%s3524] %v3523
    %s3528 = scalar_lea.vmem [#allocation2], 1160
    %v3529 = vld [vmem:[%s3528] sm:%s2660]
    %s3530 = sshllo.u32 0, 2
    %s3531 = smul.addr 2, 145
    %s3532 = scalar_lea.vmem %s1, %s3531
    %3533 = vst [vmem:[%s3532] sm:%s3530] %v3529
    %s3534 = scalar_lea.vmem [#allocation2], 1168
    %v3535 = vld [vmem:[%s3534] sm:%s2660]
    %s3536 = sshllo.u32 0, 2
    %s3537 = smul.addr 2, 146
    %s3538 = scalar_lea.vmem %s1, %s3537
    %3539 = vst [vmem:[%s3538] sm:%s3536] %v3535
    %s3540 = scalar_lea.vmem [#allocation2], 1176
    %v3541 = vld [vmem:[%s3540] sm:%s2660]
    %s3542 = sshllo.u32 0, 2
    %s3543 = smul.addr 2, 147
    %s3544 = scalar_lea.vmem %s1, %s3543
    %3545 = vst [vmem:[%s3544] sm:%s3542] %v3541
    %s3546 = scalar_lea.vmem [#allocation2], 1184
    %v3547 = vld [vmem:[%s3546] sm:%s2660]
    %s3548 = sshllo.u32 0, 2
    %s3549 = smul.addr 2, 148
    %s3550 = scalar_lea.vmem %s1, %s3549
    %3551 = vst [vmem:[%s3550] sm:%s3548] %v3547
    %s3552 = scalar_lea.vmem [#allocation2], 1192
    %v3553 = vld [vmem:[%s3552] sm:%s2660]
    %s3554 = sshllo.u32 0, 2
    %s3555 = smul.addr 2, 149
    %s3556 = scalar_lea.vmem %s1, %s3555
    %3557 = vst [vmem:[%s3556] sm:%s3554] %v3553
    %s3558 = scalar_lea.vmem [#allocation2], 1200
    %v3559 = vld [vmem:[%s3558] sm:%s2660]
    %s3560 = sshllo.u32 0, 2
    %s3561 = smul.addr 2, 150
    %s3562 = scalar_lea.vmem %s1, %s3561
    %3563 = vst [vmem:[%s3562] sm:%s3560] %v3559
    %s3564 = scalar_lea.vmem [#allocation2], 1208
    %v3565 = vld [vmem:[%s3564] sm:%s2660]
    %s3566 = sshllo.u32 0, 2
    %s3567 = smul.addr 2, 151
    %s3568 = scalar_lea.vmem %s1, %s3567
    %3569 = vst [vmem:[%s3568] sm:%s3566] %v3565
    %s3570 = scalar_lea.vmem [#allocation2], 1216
    %v3571 = vld [vmem:[%s3570] sm:%s2660]
    %s3572 = sshllo.u32 0, 2
    %s3573 = smul.addr 2, 152
    %s3574 = scalar_lea.vmem %s1, %s3573
    %3575 = vst [vmem:[%s3574] sm:%s3572] %v3571
    %s3576 = scalar_lea.vmem [#allocation2], 1224
    %v3577 = vld [vmem:[%s3576] sm:%s2660]
    %s3578 = sshllo.u32 0, 2
    %s3579 = smul.addr 2, 153
    %s3580 = scalar_lea.vmem %s1, %s3579
    %3581 = vst [vmem:[%s3580] sm:%s3578] %v3577
    %s3582 = scalar_lea.vmem [#allocation2], 1232
    %v3583 = vld [vmem:[%s3582] sm:%s2660]
    %s3584 = sshllo.u32 0, 2
    %s3585 = smul.addr 2, 154
    %s3586 = scalar_lea.vmem %s1, %s3585
    %3587 = vst [vmem:[%s3586] sm:%s3584] %v3583
    %s3588 = scalar_lea.vmem [#allocation2], 1240
    %v3589 = vld [vmem:[%s3588] sm:%s2660]
    %s3590 = sshllo.u32 0, 2
    %s3591 = smul.addr 2, 155
    %s3592 = scalar_lea.vmem %s1, %s3591
    %3593 = vst [vmem:[%s3592] sm:%s3590] %v3589
    %s3594 = scalar_lea.vmem [#allocation2], 1248
    %v3595 = vld [vmem:[%s3594] sm:%s2660]
    %s3596 = sshllo.u32 0, 2
    %s3597 = smul.addr 2, 156
    %s3598 = scalar_lea.vmem %s1, %s3597
    %3599 = vst [vmem:[%s3598] sm:%s3596] %v3595
    %s3600 = scalar_lea.vmem [#allocation2], 1256
    %v3601 = vld [vmem:[%s3600] sm:%s2660]
    %s3602 = sshllo.u32 0, 2
    %s3603 = smul.addr 2, 157
    %s3604 = scalar_lea.vmem %s1, %s3603
    %3605 = vst [vmem:[%s3604] sm:%s3602] %v3601
    %s3606 = scalar_lea.vmem [#allocation2], 1264
    %v3607 = vld [vmem:[%s3606] sm:%s2660]
    %s3608 = sshllo.u32 0, 2
    %s3609 = smul.addr 2, 158
    %s3610 = scalar_lea.vmem %s1, %s3609
    %3611 = vst [vmem:[%s3610] sm:%s3608] %v3607
    %s3612 = scalar_lea.vmem [#allocation2], 1272
    %v3613 = vld [vmem:[%s3612] sm:%s2660]
    %s3614 = sshllo.u32 0, 2
    %s3615 = smul.addr 2, 159
    %s3616 = scalar_lea.vmem %s1, %s3615
    %3617 = vst [vmem:[%s3616] sm:%s3614] %v3613
    %s3618 = scalar_lea.vmem [#allocation2], 1280
    %v3619 = vld [vmem:[%s3618] sm:%s2660]
    %s3620 = sshllo.u32 0, 2
    %s3621 = smul.addr 2, 160
    %s3622 = scalar_lea.vmem %s1, %s3621
    %3623 = vst [vmem:[%s3622] sm:%s3620] %v3619
    %s3624 = scalar_lea.vmem [#allocation2], 1288
    %v3625 = vld [vmem:[%s3624] sm:%s2660]
    %s3626 = sshllo.u32 0, 2
    %s3627 = smul.addr 2, 161
    %s3628 = scalar_lea.vmem %s1, %s3627
    %3629 = vst [vmem:[%s3628] sm:%s3626] %v3625
    %s3630 = scalar_lea.vmem [#allocation2], 1296
    %v3631 = vld [vmem:[%s3630] sm:%s2660]
    %s3632 = sshllo.u32 0, 2
    %s3633 = smul.addr 2, 162
    %s3634 = scalar_lea.vmem %s1, %s3633
    %3635 = vst [vmem:[%s3634] sm:%s3632] %v3631
    %s3636 = scalar_lea.vmem [#allocation2], 1304
    %v3637 = vld [vmem:[%s3636] sm:%s2660]
    %s3638 = sshllo.u32 0, 2
    %s3639 = smul.addr 2, 163
    %s3640 = scalar_lea.vmem %s1, %s3639
    %3641 = vst [vmem:[%s3640] sm:%s3638] %v3637
    %s3642 = scalar_lea.vmem [#allocation2], 1312
    %v3643 = vld [vmem:[%s3642] sm:%s2660]
    %s3644 = sshllo.u32 0, 2
    %s3645 = smul.addr 2, 164
    %s3646 = scalar_lea.vmem %s1, %s3645
    %3647 = vst [vmem:[%s3646] sm:%s3644] %v3643
    %s3648 = scalar_lea.vmem [#allocation2], 1320
    %v3649 = vld [vmem:[%s3648] sm:%s2660]
    %s3650 = sshllo.u32 0, 2
    %s3651 = smul.addr 2, 165
    %s3652 = scalar_lea.vmem %s1, %s3651
    %3653 = vst [vmem:[%s3652] sm:%s3650] %v3649
    %s3654 = scalar_lea.vmem [#allocation2], 1328
    %v3655 = vld [vmem:[%s3654] sm:%s2660]
    %s3656 = sshllo.u32 0, 2
    %s3657 = smul.addr 2, 166
    %s3658 = scalar_lea.vmem %s1, %s3657
    %3659 = vst [vmem:[%s3658] sm:%s3656] %v3655
    %s3660 = scalar_lea.vmem [#allocation2], 1336
    %v3661 = vld [vmem:[%s3660] sm:%s2660]
    %s3662 = sshllo.u32 0, 2
    %s3663 = smul.addr 2, 167
    %s3664 = scalar_lea.vmem %s1, %s3663
    %3665 = vst [vmem:[%s3664] sm:%s3662] %v3661
    %s3666 = scalar_lea.vmem [#allocation2], 1344
    %v3667 = vld [vmem:[%s3666] sm:%s2660]
    %s3668 = sshllo.u32 0, 2
    %s3669 = smul.addr 2, 168
    %s3670 = scalar_lea.vmem %s1, %s3669
    %3671 = vst [vmem:[%s3670] sm:%s3668] %v3667
    %s3672 = scalar_lea.vmem [#allocation2], 1352
    %v3673 = vld [vmem:[%s3672] sm:%s2660]
    %s3674 = sshllo.u32 0, 2
    %s3675 = smul.addr 2, 169
    %s3676 = scalar_lea.vmem %s1, %s3675
    %3677 = vst [vmem:[%s3676] sm:%s3674] %v3673
    %s3678 = scalar_lea.vmem [#allocation2], 1360
    %v3679 = vld [vmem:[%s3678] sm:%s2660]
    %s3680 = sshllo.u32 0, 2
    %s3681 = smul.addr 2, 170
    %s3682 = scalar_lea.vmem %s1, %s3681
    %3683 = vst [vmem:[%s3682] sm:%s3680] %v3679
    %s3684 = scalar_lea.vmem [#allocation2], 1368
    %v3685 = vld [vmem:[%s3684] sm:%s2660]
    %s3686 = sshllo.u32 0, 2
    %s3687 = smul.addr 2, 171
    %s3688 = scalar_lea.vmem %s1, %s3687
    %3689 = vst [vmem:[%s3688] sm:%s3686] %v3685
    %s3690 = scalar_lea.vmem [#allocation2], 1376
    %v3691 = vld [vmem:[%s3690] sm:%s2660]
    %s3692 = sshllo.u32 0, 2
    %s3693 = smul.addr 2, 172
    %s3694 = scalar_lea.vmem %s1, %s3693
    %3695 = vst [vmem:[%s3694] sm:%s3692] %v3691
    %s3696 = scalar_lea.vmem [#allocation2], 1384
    %v3697 = vld [vmem:[%s3696] sm:%s2660]
    %s3698 = sshllo.u32 0, 2
    %s3699 = smul.addr 2, 173
    %s3700 = scalar_lea.vmem %s1, %s3699
    %3701 = vst [vmem:[%s3700] sm:%s3698] %v3697
    %s3702 = scalar_lea.vmem [#allocation2], 1392
    %v3703 = vld [vmem:[%s3702] sm:%s2660]
    %s3704 = sshllo.u32 0, 2
    %s3705 = smul.addr 2, 174
    %s3706 = scalar_lea.vmem %s1, %s3705
    %3707 = vst [vmem:[%s3706] sm:%s3704] %v3703
    %s3708 = scalar_lea.vmem [#allocation2], 1400
    %v3709 = vld [vmem:[%s3708] sm:%s2660]
    %s3710 = sshllo.u32 0, 2
    %s3711 = smul.addr 2, 175
    %s3712 = scalar_lea.vmem %s1, %s3711
    %3713 = vst [vmem:[%s3712] sm:%s3710] %v3709
    %s3714 = scalar_lea.vmem [#allocation2], 1408
    %v3715 = vld [vmem:[%s3714] sm:%s2660]
    %s3716 = sshllo.u32 0, 2
    %s3717 = smul.addr 2, 176
    %s3718 = scalar_lea.vmem %s1, %s3717
    %3719 = vst [vmem:[%s3718] sm:%s3716] %v3715
    %s3720 = scalar_lea.vmem [#allocation2], 1416
    %v3721 = vld [vmem:[%s3720] sm:%s2660]
    %s3722 = sshllo.u32 0, 2
    %s3723 = smul.addr 2, 177
    %s3724 = scalar_lea.vmem %s1, %s3723
    %3725 = vst [vmem:[%s3724] sm:%s3722] %v3721
    %s3726 = scalar_lea.vmem [#allocation2], 1424
    %v3727 = vld [vmem:[%s3726] sm:%s2660]
    %s3728 = sshllo.u32 0, 2
    %s3729 = smul.addr 2, 178
    %s3730 = scalar_lea.vmem %s1, %s3729
    %3731 = vst [vmem:[%s3730] sm:%s3728] %v3727
    %s3732 = scalar_lea.vmem [#allocation2], 1432
    %v3733 = vld [vmem:[%s3732] sm:%s2660]
    %s3734 = sshllo.u32 0, 2
    %s3735 = smul.addr 2, 179
    %s3736 = scalar_lea.vmem %s1, %s3735
    %3737 = vst [vmem:[%s3736] sm:%s3734] %v3733
    %s3738 = scalar_lea.vmem [#allocation2], 1440
    %v3739 = vld [vmem:[%s3738] sm:%s2660]
    %s3740 = sshllo.u32 0, 2
    %s3741 = smul.addr 2, 180
    %s3742 = scalar_lea.vmem %s1, %s3741
    %3743 = vst [vmem:[%s3742] sm:%s3740] %v3739
    %s3744 = scalar_lea.vmem [#allocation2], 1448
    %v3745 = vld [vmem:[%s3744] sm:%s2660]
    %s3746 = sshllo.u32 0, 2
    %s3747 = smul.addr 2, 181
    %s3748 = scalar_lea.vmem %s1, %s3747
    %3749 = vst [vmem:[%s3748] sm:%s3746] %v3745
    %s3750 = scalar_lea.vmem [#allocation2], 1456
    %v3751 = vld [vmem:[%s3750] sm:%s2660]
    %s3752 = sshllo.u32 0, 2
    %s3753 = smul.addr 2, 182
    %s3754 = scalar_lea.vmem %s1, %s3753
    %3755 = vst [vmem:[%s3754] sm:%s3752] %v3751
    %s3756 = scalar_lea.vmem [#allocation2], 1464
    %v3757 = vld [vmem:[%s3756] sm:%s2660]
    %s3758 = sshllo.u32 0, 2
    %s3759 = smul.addr 2, 183
    %s3760 = scalar_lea.vmem %s1, %s3759
    %3761 = vst [vmem:[%s3760] sm:%s3758] %v3757
    %s3762 = scalar_lea.vmem [#allocation2], 1472
    %v3763 = vld [vmem:[%s3762] sm:%s2660]
    %s3764 = sshllo.u32 0, 2
    %s3765 = smul.addr 2, 184
    %s3766 = scalar_lea.vmem %s1, %s3765
    %3767 = vst [vmem:[%s3766] sm:%s3764] %v3763
    %s3768 = scalar_lea.vmem [#allocation2], 1480
    %v3769 = vld [vmem:[%s3768] sm:%s2660]
    %s3770 = sshllo.u32 0, 2
    %s3771 = smul.addr 2, 185
    %s3772 = scalar_lea.vmem %s1, %s3771
    %3773 = vst [vmem:[%s3772] sm:%s3770] %v3769
    %s3774 = scalar_lea.vmem [#allocation2], 1488
    %v3775 = vld [vmem:[%s3774] sm:%s2660]
    %s3776 = sshllo.u32 0, 2
    %s3777 = smul.addr 2, 186
    %s3778 = scalar_lea.vmem %s1, %s3777
    %3779 = vst [vmem:[%s3778] sm:%s3776] %v3775
    %s3780 = scalar_lea.vmem [#allocation2], 1496
    %v3781 = vld [vmem:[%s3780] sm:%s2660]
    %s3782 = sshllo.u32 0, 2
    %s3783 = smul.addr 2, 187
    %s3784 = scalar_lea.vmem %s1, %s3783
    %3785 = vst [vmem:[%s3784] sm:%s3782] %v3781
    %s3786 = scalar_lea.vmem [#allocation2], 1504
    %v3787 = vld [vmem:[%s3786] sm:%s2660]
    %s3788 = sshllo.u32 0, 2
    %s3789 = smul.addr 2, 188
    %s3790 = scalar_lea.vmem %s1, %s3789
    %3791 = vst [vmem:[%s3790] sm:%s3788] %v3787
    %s3792 = scalar_lea.vmem [#allocation2], 1512
    %v3793 = vld [vmem:[%s3792] sm:%s2660]
    %s3794 = sshllo.u32 0, 2
    %s3795 = smul.addr 2, 189
    %s3796 = scalar_lea.vmem %s1, %s3795
    %3797 = vst [vmem:[%s3796] sm:%s3794] %v3793
    %s3798 = scalar_lea.vmem [#allocation2], 1520
    %v3799 = vld [vmem:[%s3798] sm:%s2660]
    %s3800 = sshllo.u32 0, 2
    %s3801 = smul.addr 2, 190
    %s3802 = scalar_lea.vmem %s1, %s3801
    %3803 = vst [vmem:[%s3802] sm:%s3800] %v3799
    %s3804 = scalar_lea.vmem [#allocation2], 1528
    %v3805 = vld [vmem:[%s3804] sm:%s2660]
    %s3806 = sshllo.u32 0, 2
    %s3807 = smul.addr 2, 191
    %s3808 = scalar_lea.vmem %s1, %s3807
    %3809 = vst [vmem:[%s3808] sm:%s3806] %v3805
    %s3810 = scalar_lea.vmem [#allocation2], 1536
    %v3811 = vld [vmem:[%s3810] sm:%s2660]
    %s3812 = sshllo.u32 0, 2
    %s3813 = smul.addr 2, 192
    %s3814 = scalar_lea.vmem %s1, %s3813
    %3815 = vst [vmem:[%s3814] sm:%s3812] %v3811
    %s3816 = scalar_lea.vmem [#allocation2], 1544
    %v3817 = vld [vmem:[%s3816] sm:%s2660]
    %s3818 = sshllo.u32 0, 2
    %s3819 = smul.addr 2, 193
    %s3820 = scalar_lea.vmem %s1, %s3819
    %3821 = vst [vmem:[%s3820] sm:%s3818] %v3817
    %s3822 = scalar_lea.vmem [#allocation2], 1552
    %v3823 = vld [vmem:[%s3822] sm:%s2660]
    %s3824 = sshllo.u32 0, 2
    %s3825 = smul.addr 2, 194
    %s3826 = scalar_lea.vmem %s1, %s3825
    %3827 = vst [vmem:[%s3826] sm:%s3824] %v3823
    %s3828 = scalar_lea.vmem [#allocation2], 1560
    %v3829 = vld [vmem:[%s3828] sm:%s2660]
    %s3830 = sshllo.u32 0, 2
    %s3831 = smul.addr 2, 195
    %s3832 = scalar_lea.vmem %s1, %s3831
    %3833 = vst [vmem:[%s3832] sm:%s3830] %v3829
    %s3834 = scalar_lea.vmem [#allocation2], 1568
    %v3835 = vld [vmem:[%s3834] sm:%s2660]
    %s3836 = sshllo.u32 0, 2
    %s3837 = smul.addr 2, 196
    %s3838 = scalar_lea.vmem %s1, %s3837
    %3839 = vst [vmem:[%s3838] sm:%s3836] %v3835
    %s3840 = scalar_lea.vmem [#allocation2], 1576
    %v3841 = vld [vmem:[%s3840] sm:%s2660]
    %s3842 = sshllo.u32 0, 2
    %s3843 = smul.addr 2, 197
    %s3844 = scalar_lea.vmem %s1, %s3843
    %3845 = vst [vmem:[%s3844] sm:%s3842] %v3841
    %s3846 = scalar_lea.vmem [#allocation2], 1584
    %v3847 = vld [vmem:[%s3846] sm:%s2660]
    %s3848 = sshllo.u32 0, 2
    %s3849 = smul.addr 2, 198
    %s3850 = scalar_lea.vmem %s1, %s3849
    %3851 = vst [vmem:[%s3850] sm:%s3848] %v3847
    %s3852 = scalar_lea.vmem [#allocation2], 1592
    %v3853 = vld [vmem:[%s3852] sm:%s2660]
    %s3854 = sshllo.u32 0, 2
    %s3855 = smul.addr 2, 199
    %s3856 = scalar_lea.vmem %s1, %s3855
    %3857 = vst [vmem:[%s3856] sm:%s3854] %v3853
    %s3858 = scalar_lea.vmem [#allocation2], 1600
    %v3859 = vld [vmem:[%s3858] sm:%s2660]
    %s3860 = sshllo.u32 0, 2
    %s3861 = smul.addr 2, 200
    %s3862 = scalar_lea.vmem %s1, %s3861
    %3863 = vst [vmem:[%s3862] sm:%s3860] %v3859
    %s3864 = scalar_lea.vmem [#allocation2], 1608
    %v3865 = vld [vmem:[%s3864] sm:%s2660]
    %s3866 = sshllo.u32 0, 2
    %s3867 = smul.addr 2, 201
    %s3868 = scalar_lea.vmem %s1, %s3867
    %3869 = vst [vmem:[%s3868] sm:%s3866] %v3865
    %s3870 = scalar_lea.vmem [#allocation2], 1616
    %v3871 = vld [vmem:[%s3870] sm:%s2660]
    %s3872 = sshllo.u32 0, 2
    %s3873 = smul.addr 2, 202
    %s3874 = scalar_lea.vmem %s1, %s3873
    %3875 = vst [vmem:[%s3874] sm:%s3872] %v3871
    %s3876 = scalar_lea.vmem [#allocation2], 1624
    %v3877 = vld [vmem:[%s3876] sm:%s2660]
    %s3878 = sshllo.u32 0, 2
    %s3879 = smul.addr 2, 203
    %s3880 = scalar_lea.vmem %s1, %s3879
    %3881 = vst [vmem:[%s3880] sm:%s3878] %v3877
    %s3882 = scalar_lea.vmem [#allocation2], 1632
    %v3883 = vld [vmem:[%s3882] sm:%s2660]
    %s3884 = sshllo.u32 0, 2
    %s3885 = smul.addr 2, 204
    %s3886 = scalar_lea.vmem %s1, %s3885
    %3887 = vst [vmem:[%s3886] sm:%s3884] %v3883
    %s3888 = scalar_lea.vmem [#allocation2], 1640
    %v3889 = vld [vmem:[%s3888] sm:%s2660]
    %s3890 = sshllo.u32 0, 2
    %s3891 = smul.addr 2, 205
    %s3892 = scalar_lea.vmem %s1, %s3891
    %3893 = vst [vmem:[%s3892] sm:%s3890] %v3889
    %s3894 = scalar_lea.vmem [#allocation2], 1648
    %v3895 = vld [vmem:[%s3894] sm:%s2660]
    %s3896 = sshllo.u32 0, 2
    %s3897 = smul.addr 2, 206
    %s3898 = scalar_lea.vmem %s1, %s3897
    %3899 = vst [vmem:[%s3898] sm:%s3896] %v3895
    %s3900 = scalar_lea.vmem [#allocation2], 1656
    %v3901 = vld [vmem:[%s3900] sm:%s2660]
    %s3902 = sshllo.u32 0, 2
    %s3903 = smul.addr 2, 207
    %s3904 = scalar_lea.vmem %s1, %s3903
    %3905 = vst [vmem:[%s3904] sm:%s3902] %v3901
    %s3906 = scalar_lea.vmem [#allocation2], 1664
    %v3907 = vld [vmem:[%s3906] sm:%s2660]
    %s3908 = sshllo.u32 0, 2
    %s3909 = smul.addr 2, 208
    %s3910 = scalar_lea.vmem %s1, %s3909
    %3911 = vst [vmem:[%s3910] sm:%s3908] %v3907
    %s3912 = scalar_lea.vmem [#allocation2], 1672
    %v3913 = vld [vmem:[%s3912] sm:%s2660]
    %s3914 = sshllo.u32 0, 2
    %s3915 = smul.addr 2, 209
    %s3916 = scalar_lea.vmem %s1, %s3915
    %3917 = vst [vmem:[%s3916] sm:%s3914] %v3913
    %s3918 = scalar_lea.vmem [#allocation2], 1680
    %v3919 = vld [vmem:[%s3918] sm:%s2660]
    %s3920 = sshllo.u32 0, 2
    %s3921 = smul.addr 2, 210
    %s3922 = scalar_lea.vmem %s1, %s3921
    %3923 = vst [vmem:[%s3922] sm:%s3920] %v3919
    %s3924 = scalar_lea.vmem [#allocation2], 1688
    %v3925 = vld [vmem:[%s3924] sm:%s2660]
    %s3926 = sshllo.u32 0, 2
    %s3927 = smul.addr 2, 211
    %s3928 = scalar_lea.vmem %s1, %s3927
    %3929 = vst [vmem:[%s3928] sm:%s3926] %v3925
    %s3930 = scalar_lea.vmem [#allocation2], 1696
    %v3931 = vld [vmem:[%s3930] sm:%s2660]
    %s3932 = sshllo.u32 0, 2
    %s3933 = smul.addr 2, 212
    %s3934 = scalar_lea.vmem %s1, %s3933
    %3935 = vst [vmem:[%s3934] sm:%s3932] %v3931
    %s3936 = scalar_lea.vmem [#allocation2], 1704
    %v3937 = vld [vmem:[%s3936] sm:%s2660]
    %s3938 = sshllo.u32 0, 2
    %s3939 = smul.addr 2, 213
    %s3940 = scalar_lea.vmem %s1, %s3939
    %3941 = vst [vmem:[%s3940] sm:%s3938] %v3937
    %s3942 = scalar_lea.vmem [#allocation2], 1712
    %v3943 = vld [vmem:[%s3942] sm:%s2660]
    %s3944 = sshllo.u32 0, 2
    %s3945 = smul.addr 2, 214
    %s3946 = scalar_lea.vmem %s1, %s3945
    %3947 = vst [vmem:[%s3946] sm:%s3944] %v3943
    %s3948 = scalar_lea.vmem [#allocation2], 1720
    %v3949 = vld [vmem:[%s3948] sm:%s2660]
    %s3950 = sshllo.u32 0, 2
    %s3951 = smul.addr 2, 215
    %s3952 = scalar_lea.vmem %s1, %s3951
    %3953 = vst [vmem:[%s3952] sm:%s3950] %v3949
    %s3954 = scalar_lea.vmem [#allocation2], 1728
    %v3955 = vld [vmem:[%s3954] sm:%s2660]
    %s3956 = sshllo.u32 0, 2
    %s3957 = smul.addr 2, 216
    %s3958 = scalar_lea.vmem %s1, %s3957
    %3959 = vst [vmem:[%s3958] sm:%s3956] %v3955
    %s3960 = scalar_lea.vmem [#allocation2], 1736
    %v3961 = vld [vmem:[%s3960] sm:%s2660]
    %s3962 = sshllo.u32 0, 2
    %s3963 = smul.addr 2, 217
    %s3964 = scalar_lea.vmem %s1, %s3963
    %3965 = vst [vmem:[%s3964] sm:%s3962] %v3961
    %s3966 = scalar_lea.vmem [#allocation2], 1744
    %v3967 = vld [vmem:[%s3966] sm:%s2660]
    %s3968 = sshllo.u32 0, 2
    %s3969 = smul.addr 2, 218
    %s3970 = scalar_lea.vmem %s1, %s3969
    %3971 = vst [vmem:[%s3970] sm:%s3968] %v3967
    %s3972 = scalar_lea.vmem [#allocation2], 1752
    %v3973 = vld [vmem:[%s3972] sm:%s2660]
    %s3974 = sshllo.u32 0, 2
    %s3975 = smul.addr 2, 219
    %s3976 = scalar_lea.vmem %s1, %s3975
    %3977 = vst [vmem:[%s3976] sm:%s3974] %v3973
    %s3978 = scalar_lea.vmem [#allocation2], 1760
    %v3979 = vld [vmem:[%s3978] sm:%s2660]
    %s3980 = sshllo.u32 0, 2
    %s3981 = smul.addr 2, 220
    %s3982 = scalar_lea.vmem %s1, %s3981
    %3983 = vst [vmem:[%s3982] sm:%s3980] %v3979
    %s3984 = scalar_lea.vmem [#allocation2], 1768
    %v3985 = vld [vmem:[%s3984] sm:%s2660]
    %s3986 = sshllo.u32 0, 2
    %s3987 = smul.addr 2, 221
    %s3988 = scalar_lea.vmem %s1, %s3987
    %3989 = vst [vmem:[%s3988] sm:%s3986] %v3985
    %s3990 = scalar_lea.vmem [#allocation2], 1776
    %v3991 = vld [vmem:[%s3990] sm:%s2660]
    %s3992 = sshllo.u32 0, 2
    %s3993 = smul.addr 2, 222
    %s3994 = scalar_lea.vmem %s1, %s3993
    %3995 = vst [vmem:[%s3994] sm:%s3992] %v3991
    %s3996 = scalar_lea.vmem [#allocation2], 1784
    %v3997 = vld [vmem:[%s3996] sm:%s2660]
    %s3998 = sshllo.u32 0, 2
    %s3999 = smul.addr 2, 223
    %s4000 = scalar_lea.vmem %s1, %s3999
    %4001 = vst [vmem:[%s4000] sm:%s3998] %v3997
    %s4002 = scalar_lea.vmem [#allocation2], 1792
    %v4003 = vld [vmem:[%s4002] sm:%s2660]
    %s4004 = sshllo.u32 0, 2
    %s4005 = smul.addr 2, 224
    %s4006 = scalar_lea.vmem %s1, %s4005
    %4007 = vst [vmem:[%s4006] sm:%s4004] %v4003
    %s4008 = scalar_lea.vmem [#allocation2], 1800
    %v4009 = vld [vmem:[%s4008] sm:%s2660]
    %s4010 = sshllo.u32 0, 2
    %s4011 = smul.addr 2, 225
    %s4012 = scalar_lea.vmem %s1, %s4011
    %4013 = vst [vmem:[%s4012] sm:%s4010] %v4009
    %s4014 = scalar_lea.vmem [#allocation2], 1808
    %v4015 = vld [vmem:[%s4014] sm:%s2660]
    %s4016 = sshllo.u32 0, 2
    %s4017 = smul.addr 2, 226
    %s4018 = scalar_lea.vmem %s1, %s4017
    %4019 = vst [vmem:[%s4018] sm:%s4016] %v4015
    %s4020 = scalar_lea.vmem [#allocation2], 1816
    %v4021 = vld [vmem:[%s4020] sm:%s2660]
    %s4022 = sshllo.u32 0, 2
    %s4023 = smul.addr 2, 227
    %s4024 = scalar_lea.vmem %s1, %s4023
    %4025 = vst [vmem:[%s4024] sm:%s4022] %v4021
    %s4026 = scalar_lea.vmem [#allocation2], 1824
    %v4027 = vld [vmem:[%s4026] sm:%s2660]
    %s4028 = sshllo.u32 0, 2
    %s4029 = smul.addr 2, 228
    %s4030 = scalar_lea.vmem %s1, %s4029
    %4031 = vst [vmem:[%s4030] sm:%s4028] %v4027
    %s4032 = scalar_lea.vmem [#allocation2], 1832
    %v4033 = vld [vmem:[%s4032] sm:%s2660]
    %s4034 = sshllo.u32 0, 2
    %s4035 = smul.addr 2, 229
    %s4036 = scalar_lea.vmem %s1, %s4035
    %4037 = vst [vmem:[%s4036] sm:%s4034] %v4033
    %s4038 = scalar_lea.vmem [#allocation2], 1840
    %v4039 = vld [vmem:[%s4038] sm:%s2660]
    %s4040 = sshllo.u32 0, 2
    %s4041 = smul.addr 2, 230
    %s4042 = scalar_lea.vmem %s1, %s4041
    %4043 = vst [vmem:[%s4042] sm:%s4040] %v4039
    %s4044 = scalar_lea.vmem [#allocation2], 1848
    %v4045 = vld [vmem:[%s4044] sm:%s2660]
    %s4046 = sshllo.u32 0, 2
    %s4047 = smul.addr 2, 231
    %s4048 = scalar_lea.vmem %s1, %s4047
    %4049 = vst [vmem:[%s4048] sm:%s4046] %v4045
    %s4050 = scalar_lea.vmem [#allocation2], 1856
    %v4051 = vld [vmem:[%s4050] sm:%s2660]
    %s4052 = sshllo.u32 0, 2
    %s4053 = smul.addr 2, 232
    %s4054 = scalar_lea.vmem %s1, %s4053
    %4055 = vst [vmem:[%s4054] sm:%s4052] %v4051
    %s4056 = scalar_lea.vmem [#allocation2], 1864
    %v4057 = vld [vmem:[%s4056] sm:%s2660]
    %s4058 = sshllo.u32 0, 2
    %s4059 = smul.addr 2, 233
    %s4060 = scalar_lea.vmem %s1, %s4059
    %4061 = vst [vmem:[%s4060] sm:%s4058] %v4057
    %s4062 = scalar_lea.vmem [#allocation2], 1872
    %v4063 = vld [vmem:[%s4062] sm:%s2660]
    %s4064 = sshllo.u32 0, 2
    %s4065 = smul.addr 2, 234
    %s4066 = scalar_lea.vmem %s1, %s4065
    %4067 = vst [vmem:[%s4066] sm:%s4064] %v4063
    %s4068 = scalar_lea.vmem [#allocation2], 1880
    %v4069 = vld [vmem:[%s4068] sm:%s2660]
    %s4070 = sshllo.u32 0, 2
    %s4071 = smul.addr 2, 235
    %s4072 = scalar_lea.vmem %s1, %s4071
    %4073 = vst [vmem:[%s4072] sm:%s4070] %v4069
    %s4074 = scalar_lea.vmem [#allocation2], 1888
    %v4075 = vld [vmem:[%s4074] sm:%s2660]
    %s4076 = sshllo.u32 0, 2
    %s4077 = smul.addr 2, 236
    %s4078 = scalar_lea.vmem %s1, %s4077
    %4079 = vst [vmem:[%s4078] sm:%s4076] %v4075
    %s4080 = scalar_lea.vmem [#allocation2], 1896
    %v4081 = vld [vmem:[%s4080] sm:%s2660]
    %s4082 = sshllo.u32 0, 2
    %s4083 = smul.addr 2, 237
    %s4084 = scalar_lea.vmem %s1, %s4083
    %4085 = vst [vmem:[%s4084] sm:%s4082] %v4081
    %s4086 = scalar_lea.vmem [#allocation2], 1904
    %v4087 = vld [vmem:[%s4086] sm:%s2660]
    %s4088 = sshllo.u32 0, 2
    %s4089 = smul.addr 2, 238
    %s4090 = scalar_lea.vmem %s1, %s4089
    %4091 = vst [vmem:[%s4090] sm:%s4088] %v4087
    %s4092 = scalar_lea.vmem [#allocation2], 1912
    %v4093 = vld [vmem:[%s4092] sm:%s2660]
    %s4094 = sshllo.u32 0, 2
    %s4095 = smul.addr 2, 239
    %s4096 = scalar_lea.vmem %s1, %s4095
    %4097 = vst [vmem:[%s4096] sm:%s4094] %v4093
    %s4098 = scalar_lea.vmem [#allocation2], 1920
    %v4099 = vld [vmem:[%s4098] sm:%s2660]
    %s4100 = sshllo.u32 0, 2
    %s4101 = smul.addr 2, 240
    %s4102 = scalar_lea.vmem %s1, %s4101
    %4103 = vst [vmem:[%s4102] sm:%s4100] %v4099
    %s4104 = scalar_lea.vmem [#allocation2], 1928
    %v4105 = vld [vmem:[%s4104] sm:%s2660]
    %s4106 = sshllo.u32 0, 2
    %s4107 = smul.addr 2, 241
    %s4108 = scalar_lea.vmem %s1, %s4107
    %4109 = vst [vmem:[%s4108] sm:%s4106] %v4105
    %s4110 = scalar_lea.vmem [#allocation2], 1936
    %v4111 = vld [vmem:[%s4110] sm:%s2660]
    %s4112 = sshllo.u32 0, 2
    %s4113 = smul.addr 2, 242
    %s4114 = scalar_lea.vmem %s1, %s4113
    %4115 = vst [vmem:[%s4114] sm:%s4112] %v4111
    %s4116 = scalar_lea.vmem [#allocation2], 1944
    %v4117 = vld [vmem:[%s4116] sm:%s2660]
    %s4118 = sshllo.u32 0, 2
    %s4119 = smul.addr 2, 243
    %s4120 = scalar_lea.vmem %s1, %s4119
    %4121 = vst [vmem:[%s4120] sm:%s4118] %v4117
    %s4122 = scalar_lea.vmem [#allocation2], 1952
    %v4123 = vld [vmem:[%s4122] sm:%s2660]
    %s4124 = sshllo.u32 0, 2
    %s4125 = smul.addr 2, 244
    %s4126 = scalar_lea.vmem %s1, %s4125
    %4127 = vst [vmem:[%s4126] sm:%s4124] %v4123
    %s4128 = scalar_lea.vmem [#allocation2], 1960
    %v4129 = vld [vmem:[%s4128] sm:%s2660]
    %s4130 = sshllo.u32 0, 2
    %s4131 = smul.addr 2, 245
    %s4132 = scalar_lea.vmem %s1, %s4131
    %4133 = vst [vmem:[%s4132] sm:%s4130] %v4129
    %s4134 = scalar_lea.vmem [#allocation2], 1968
    %v4135 = vld [vmem:[%s4134] sm:%s2660]
    %s4136 = sshllo.u32 0, 2
    %s4137 = smul.addr 2, 246
    %s4138 = scalar_lea.vmem %s1, %s4137
    %4139 = vst [vmem:[%s4138] sm:%s4136] %v4135
    %s4140 = scalar_lea.vmem [#allocation2], 1976
    %v4141 = vld [vmem:[%s4140] sm:%s2660]
    %s4142 = sshllo.u32 0, 2
    %s4143 = smul.addr 2, 247
    %s4144 = scalar_lea.vmem %s1, %s4143
    %4145 = vst [vmem:[%s4144] sm:%s4142] %v4141
    %s4146 = scalar_lea.vmem [#allocation2], 1984
    %v4147 = vld [vmem:[%s4146] sm:%s2660]
    %s4148 = sshllo.u32 0, 2
    %s4149 = smul.addr 2, 248
    %s4150 = scalar_lea.vmem %s1, %s4149
    %4151 = vst [vmem:[%s4150] sm:%s4148] %v4147
    %s4152 = scalar_lea.vmem [#allocation2], 1992
    %v4153 = vld [vmem:[%s4152] sm:%s2660]
    %s4154 = sshllo.u32 0, 2
    %s4155 = smul.addr 2, 249
    %s4156 = scalar_lea.vmem %s1, %s4155
    %4157 = vst [vmem:[%s4156] sm:%s4154] %v4153
    %s4158 = scalar_lea.vmem [#allocation2], 2000
    %v4159 = vld [vmem:[%s4158] sm:%s2660]
    %s4160 = sshllo.u32 0, 2
    %s4161 = smul.addr 2, 250
    %s4162 = scalar_lea.vmem %s1, %s4161
    %4163 = vst [vmem:[%s4162] sm:%s4160] %v4159
    %s4164 = scalar_lea.vmem [#allocation2], 2008
    %v4165 = vld [vmem:[%s4164] sm:%s2660]
    %s4166 = sshllo.u32 0, 2
    %s4167 = smul.addr 2, 251
    %s4168 = scalar_lea.vmem %s1, %s4167
    %4169 = vst [vmem:[%s4168] sm:%s4166] %v4165
    %s4170 = scalar_lea.vmem [#allocation2], 2016
    %v4171 = vld [vmem:[%s4170] sm:%s2660]
    %s4172 = sshllo.u32 0, 2
    %s4173 = smul.addr 2, 252
    %s4174 = scalar_lea.vmem %s1, %s4173
    %4175 = vst [vmem:[%s4174] sm:%s4172] %v4171
    %s4176 = scalar_lea.vmem [#allocation2], 2024
    %v4177 = vld [vmem:[%s4176] sm:%s2660]
    %s4178 = sshllo.u32 0, 2
    %s4179 = smul.addr 2, 253
    %s4180 = scalar_lea.vmem %s1, %s4179
    %4181 = vst [vmem:[%s4180] sm:%s4178] %v4177
    %s4182 = scalar_lea.vmem [#allocation2], 2032
    %v4183 = vld [vmem:[%s4182] sm:%s2660]
    %s4184 = sshllo.u32 0, 2
    %s4185 = smul.addr 2, 254
    %s4186 = scalar_lea.vmem %s1, %s4185
    %4187 = vst [vmem:[%s4186] sm:%s4184] %v4183
    %s4188 = scalar_lea.vmem [#allocation2], 2040
    %v4189 = vld [vmem:[%s4188] sm:%s2660]
    %s4190 = sshllo.u32 0, 2
    %s4191 = smul.addr 2, 255
    %s4192 = scalar_lea.vmem %s1, %s4191
    %4193 = vst [vmem:[%s4192] sm:%s4190] %v4189
    %s4194 = scalar_lea.vmem [#allocation2], 2048
    %v4195 = vld [vmem:[%s4194] sm:%s2660]
    %s4196 = sshllo.u32 0, 2
    %s4197 = smul.addr 2, 256
    %s4198 = scalar_lea.vmem %s1, %s4197
    %4199 = vst [vmem:[%s4198] sm:%s4196] %v4195
    %s4200 = scalar_lea.vmem [#allocation2], 2056
    %v4201 = vld [vmem:[%s4200] sm:%s2660]
    %s4202 = sshllo.u32 0, 2
    %s4203 = smul.addr 2, 257
    %s4204 = scalar_lea.vmem %s1, %s4203
    %4205 = vst [vmem:[%s4204] sm:%s4202] %v4201
    %s4206 = scalar_lea.vmem [#allocation2], 2064
    %v4207 = vld [vmem:[%s4206] sm:%s2660]
    %s4208 = sshllo.u32 0, 2
    %s4209 = smul.addr 2, 258
    %s4210 = scalar_lea.vmem %s1, %s4209
    %4211 = vst [vmem:[%s4210] sm:%s4208] %v4207
    %s4212 = scalar_lea.vmem [#allocation2], 2072
    %v4213 = vld [vmem:[%s4212] sm:%s2660]
    %s4214 = sshllo.u32 0, 2
    %s4215 = smul.addr 2, 259
    %s4216 = scalar_lea.vmem %s1, %s4215
    %4217 = vst [vmem:[%s4216] sm:%s4214] %v4213
    %s4218 = scalar_lea.vmem [#allocation2], 2080
    %v4219 = vld [vmem:[%s4218] sm:%s2660]
    %s4220 = sshllo.u32 0, 2
    %s4221 = smul.addr 2, 260
    %s4222 = scalar_lea.vmem %s1, %s4221
    %4223 = vst [vmem:[%s4222] sm:%s4220] %v4219
    %s4224 = scalar_lea.vmem [#allocation2], 2088
    %v4225 = vld [vmem:[%s4224] sm:%s2660]
    %s4226 = sshllo.u32 0, 2
    %s4227 = smul.addr 2, 261
    %s4228 = scalar_lea.vmem %s1, %s4227
    %4229 = vst [vmem:[%s4228] sm:%s4226] %v4225
    %s4230 = scalar_lea.vmem [#allocation2], 2096
    %v4231 = vld [vmem:[%s4230] sm:%s2660]
    %s4232 = sshllo.u32 0, 2
    %s4233 = smul.addr 2, 262
    %s4234 = scalar_lea.vmem %s1, %s4233
    %4235 = vst [vmem:[%s4234] sm:%s4232] %v4231
    %s4236 = scalar_lea.vmem [#allocation2], 2104
    %v4237 = vld [vmem:[%s4236] sm:%s2660]
    %s4238 = sshllo.u32 0, 2
    %s4239 = smul.addr 2, 263
    %s4240 = scalar_lea.vmem %s1, %s4239
    %4241 = vst [vmem:[%s4240] sm:%s4238] %v4237
    %s4242 = scalar_lea.vmem [#allocation2], 2112
    %v4243 = vld [vmem:[%s4242] sm:%s2660]
    %s4244 = sshllo.u32 0, 2
    %s4245 = smul.addr 2, 264
    %s4246 = scalar_lea.vmem %s1, %s4245
    %4247 = vst [vmem:[%s4246] sm:%s4244] %v4243
    %s4248 = scalar_lea.vmem [#allocation2], 2120
    %v4249 = vld [vmem:[%s4248] sm:%s2660]
    %s4250 = sshllo.u32 0, 2
    %s4251 = smul.addr 2, 265
    %s4252 = scalar_lea.vmem %s1, %s4251
    %4253 = vst [vmem:[%s4252] sm:%s4250] %v4249
    %s4254 = scalar_lea.vmem [#allocation2], 2128
    %v4255 = vld [vmem:[%s4254] sm:%s2660]
    %s4256 = sshllo.u32 0, 2
    %s4257 = smul.addr 2, 266
    %s4258 = scalar_lea.vmem %s1, %s4257
    %4259 = vst [vmem:[%s4258] sm:%s4256] %v4255
    %s4260 = scalar_lea.vmem [#allocation2], 2136
    %v4261 = vld [vmem:[%s4260] sm:%s2660]
    %s4262 = sshllo.u32 0, 2
    %s4263 = smul.addr 2, 267
    %s4264 = scalar_lea.vmem %s1, %s4263
    %4265 = vst [vmem:[%s4264] sm:%s4262] %v4261
    %s4266 = scalar_lea.vmem [#allocation2], 2144
    %v4267 = vld [vmem:[%s4266] sm:%s2660]
    %s4268 = sshllo.u32 0, 2
    %s4269 = smul.addr 2, 268
    %s4270 = scalar_lea.vmem %s1, %s4269
    %4271 = vst [vmem:[%s4270] sm:%s4268] %v4267
    %s4272 = scalar_lea.vmem [#allocation2], 2152
    %v4273 = vld [vmem:[%s4272] sm:%s2660]
    %s4274 = sshllo.u32 0, 2
    %s4275 = smul.addr 2, 269
    %s4276 = scalar_lea.vmem %s1, %s4275
    %4277 = vst [vmem:[%s4276] sm:%s4274] %v4273
    %s4278 = scalar_lea.vmem [#allocation2], 2160
    %v4279 = vld [vmem:[%s4278] sm:%s2660]
    %s4280 = sshllo.u32 0, 2
    %s4281 = smul.addr 2, 270
    %s4282 = scalar_lea.vmem %s1, %s4281
    %4283 = vst [vmem:[%s4282] sm:%s4280] %v4279
    %s4284 = scalar_lea.vmem [#allocation2], 2168
    %v4285 = vld [vmem:[%s4284] sm:%s2660]
    %s4286 = sshllo.u32 0, 2
    %s4287 = smul.addr 2, 271
    %s4288 = scalar_lea.vmem %s1, %s4287
    %4289 = vst [vmem:[%s4288] sm:%s4286] %v4285
    %s4290 = scalar_lea.vmem [#allocation2], 2176
    %v4291 = vld [vmem:[%s4290] sm:%s2660]
    %s4292 = sshllo.u32 0, 2
    %s4293 = smul.addr 2, 272
    %s4294 = scalar_lea.vmem %s1, %s4293
    %4295 = vst [vmem:[%s4294] sm:%s4292] %v4291
    %s4296 = scalar_lea.vmem [#allocation2], 2184
    %v4297 = vld [vmem:[%s4296] sm:%s2660]
    %s4298 = sshllo.u32 0, 2
    %s4299 = smul.addr 2, 273
    %s4300 = scalar_lea.vmem %s1, %s4299
    %4301 = vst [vmem:[%s4300] sm:%s4298] %v4297
    %s4302 = scalar_lea.vmem [#allocation2], 2192
    %v4303 = vld [vmem:[%s4302] sm:%s2660]
    %s4304 = sshllo.u32 0, 2
    %s4305 = smul.addr 2, 274
    %s4306 = scalar_lea.vmem %s1, %s4305
    %4307 = vst [vmem:[%s4306] sm:%s4304] %v4303
    %s4308 = scalar_lea.vmem [#allocation2], 2200
    %v4309 = vld [vmem:[%s4308] sm:%s2660]
    %s4310 = sshllo.u32 0, 2
    %s4311 = smul.addr 2, 275
    %s4312 = scalar_lea.vmem %s1, %s4311
    %4313 = vst [vmem:[%s4312] sm:%s4310] %v4309
    %s4314 = scalar_lea.vmem [#allocation2], 2208
    %v4315 = vld [vmem:[%s4314] sm:%s2660]
    %s4316 = sshllo.u32 0, 2
    %s4317 = smul.addr 2, 276
    %s4318 = scalar_lea.vmem %s1, %s4317
    %4319 = vst [vmem:[%s4318] sm:%s4316] %v4315
    %s4320 = scalar_lea.vmem [#allocation2], 2216
    %v4321 = vld [vmem:[%s4320] sm:%s2660]
    %s4322 = sshllo.u32 0, 2
    %s4323 = smul.addr 2, 277
    %s4324 = scalar_lea.vmem %s1, %s4323
    %4325 = vst [vmem:[%s4324] sm:%s4322] %v4321
    %s4326 = scalar_lea.vmem [#allocation2], 2224
    %v4327 = vld [vmem:[%s4326] sm:%s2660]
    %s4328 = sshllo.u32 0, 2
    %s4329 = smul.addr 2, 278
    %s4330 = scalar_lea.vmem %s1, %s4329
    %4331 = vst [vmem:[%s4330] sm:%s4328] %v4327
    %s4332 = scalar_lea.vmem [#allocation2], 2232
    %v4333 = vld [vmem:[%s4332] sm:%s2660]
    %s4334 = sshllo.u32 0, 2
    %s4335 = smul.addr 2, 279
    %s4336 = scalar_lea.vmem %s1, %s4335
    %4337 = vst [vmem:[%s4336] sm:%s4334] %v4333
    %s4338 = scalar_lea.vmem [#allocation2], 2240
    %v4339 = vld [vmem:[%s4338] sm:%s2660]
    %s4340 = sshllo.u32 0, 2
    %s4341 = smul.addr 2, 280
    %s4342 = scalar_lea.vmem %s1, %s4341
    %4343 = vst [vmem:[%s4342] sm:%s4340] %v4339
    %s4344 = scalar_lea.vmem [#allocation2], 2248
    %v4345 = vld [vmem:[%s4344] sm:%s2660]
    %s4346 = sshllo.u32 0, 2
    %s4347 = smul.addr 2, 281
    %s4348 = scalar_lea.vmem %s1, %s4347
    %4349 = vst [vmem:[%s4348] sm:%s4346] %v4345
    %s4350 = scalar_lea.vmem [#allocation2], 2256
    %v4351 = vld [vmem:[%s4350] sm:%s2660]
    %s4352 = sshllo.u32 0, 2
    %s4353 = smul.addr 2, 282
    %s4354 = scalar_lea.vmem %s1, %s4353
    %4355 = vst [vmem:[%s4354] sm:%s4352] %v4351
    %s4356 = scalar_lea.vmem [#allocation2], 2264
    %v4357 = vld [vmem:[%s4356] sm:%s2660]
    %s4358 = sshllo.u32 0, 2
    %s4359 = smul.addr 2, 283
    %s4360 = scalar_lea.vmem %s1, %s4359
    %4361 = vst [vmem:[%s4360] sm:%s4358] %v4357
    %s4362 = scalar_lea.vmem [#allocation2], 2272
    %v4363 = vld [vmem:[%s4362] sm:%s2660]
    %s4364 = sshllo.u32 0, 2
    %s4365 = smul.addr 2, 284
    %s4366 = scalar_lea.vmem %s1, %s4365
    %4367 = vst [vmem:[%s4366] sm:%s4364] %v4363
    %s4368 = scalar_lea.vmem [#allocation2], 2280
    %v4369 = vld [vmem:[%s4368] sm:%s2660]
    %s4370 = sshllo.u32 0, 2
    %s4371 = smul.addr 2, 285
    %s4372 = scalar_lea.vmem %s1, %s4371
    %4373 = vst [vmem:[%s4372] sm:%s4370] %v4369
    %s4374 = scalar_lea.vmem [#allocation2], 2288
    %v4375 = vld [vmem:[%s4374] sm:%s2660]
    %s4376 = sshllo.u32 0, 2
    %s4377 = smul.addr 2, 286
    %s4378 = scalar_lea.vmem %s1, %s4377
    %4379 = vst [vmem:[%s4378] sm:%s4376] %v4375
    %s4380 = scalar_lea.vmem [#allocation2], 2296
    %v4381 = vld [vmem:[%s4380] sm:%s2660]
    %s4382 = sshllo.u32 0, 2
    %s4383 = smul.addr 2, 287
    %s4384 = scalar_lea.vmem %s1, %s4383
    %4385 = vst [vmem:[%s4384] sm:%s4382] %v4381
    %s4386 = scalar_lea.vmem [#allocation2], 2304
    %v4387 = vld [vmem:[%s4386] sm:%s2660]
    %s4388 = sshllo.u32 0, 2
    %s4389 = smul.addr 2, 288
    %s4390 = scalar_lea.vmem %s1, %s4389
    %4391 = vst [vmem:[%s4390] sm:%s4388] %v4387
    %s4392 = scalar_lea.vmem [#allocation2], 2312
    %v4393 = vld [vmem:[%s4392] sm:%s2660]
    %s4394 = sshllo.u32 0, 2
    %s4395 = smul.addr 2, 289
    %s4396 = scalar_lea.vmem %s1, %s4395
    %4397 = vst [vmem:[%s4396] sm:%s4394] %v4393
    %s4398 = scalar_lea.vmem [#allocation2], 2320
    %v4399 = vld [vmem:[%s4398] sm:%s2660]
    %s4400 = sshllo.u32 0, 2
    %s4401 = smul.addr 2, 290
    %s4402 = scalar_lea.vmem %s1, %s4401
    %4403 = vst [vmem:[%s4402] sm:%s4400] %v4399
    %s4404 = scalar_lea.vmem [#allocation2], 2328
    %v4405 = vld [vmem:[%s4404] sm:%s2660]
    %s4406 = sshllo.u32 0, 2
    %s4407 = smul.addr 2, 291
    %s4408 = scalar_lea.vmem %s1, %s4407
    %4409 = vst [vmem:[%s4408] sm:%s4406] %v4405
    %s4410 = scalar_lea.vmem [#allocation2], 2336
    %v4411 = vld [vmem:[%s4410] sm:%s2660]
    %s4412 = sshllo.u32 0, 2
    %s4413 = smul.addr 2, 292
    %s4414 = scalar_lea.vmem %s1, %s4413
    %4415 = vst [vmem:[%s4414] sm:%s4412] %v4411
    %s4416 = scalar_lea.vmem [#allocation2], 2344
    %v4417 = vld [vmem:[%s4416] sm:%s2660]
    %s4418 = sshllo.u32 0, 2
    %s4419 = smul.addr 2, 293
    %s4420 = scalar_lea.vmem %s1, %s4419
    %4421 = vst [vmem:[%s4420] sm:%s4418] %v4417
    %s4422 = scalar_lea.vmem [#allocation2], 2352
    %v4423 = vld [vmem:[%s4422] sm:%s2660]
    %s4424 = sshllo.u32 0, 2
    %s4425 = smul.addr 2, 294
    %s4426 = scalar_lea.vmem %s1, %s4425
    %4427 = vst [vmem:[%s4426] sm:%s4424] %v4423
    %s4428 = scalar_lea.vmem [#allocation2], 2360
    %v4429 = vld [vmem:[%s4428] sm:%s2660]
    %s4430 = sshllo.u32 0, 2
    %s4431 = smul.addr 2, 295
    %s4432 = scalar_lea.vmem %s1, %s4431
    %4433 = vst [vmem:[%s4432] sm:%s4430] %v4429
    %s4434 = scalar_lea.vmem [#allocation2], 2368
    %v4435 = vld [vmem:[%s4434] sm:%s2660]
    %s4436 = sshllo.u32 0, 2
    %s4437 = smul.addr 2, 296
    %s4438 = scalar_lea.vmem %s1, %s4437
    %4439 = vst [vmem:[%s4438] sm:%s4436] %v4435
    %s4440 = scalar_lea.vmem [#allocation2], 2376
    %v4441 = vld [vmem:[%s4440] sm:%s2660]
    %s4442 = sshllo.u32 0, 2
    %s4443 = smul.addr 2, 297
    %s4444 = scalar_lea.vmem %s1, %s4443
    %4445 = vst [vmem:[%s4444] sm:%s4442] %v4441
    %s4446 = scalar_lea.vmem [#allocation2], 2384
    %v4447 = vld [vmem:[%s4446] sm:%s2660]
    %s4448 = sshllo.u32 0, 2
    %s4449 = smul.addr 2, 298
    %s4450 = scalar_lea.vmem %s1, %s4449
    %4451 = vst [vmem:[%s4450] sm:%s4448] %v4447
    %s4452 = scalar_lea.vmem [#allocation2], 2392
    %v4453 = vld [vmem:[%s4452] sm:%s2660]
    %s4454 = sshllo.u32 0, 2
    %s4455 = smul.addr 2, 299
    %s4456 = scalar_lea.vmem %s1, %s4455
    %4457 = vst [vmem:[%s4456] sm:%s4454] %v4453
    %s4458 = scalar_lea.vmem [#allocation2], 2400
    %v4459 = vld [vmem:[%s4458] sm:%s2660]
    %s4460 = sshllo.u32 0, 2
    %s4461 = smul.addr 2, 300
    %s4462 = scalar_lea.vmem %s1, %s4461
    %4463 = vst [vmem:[%s4462] sm:%s4460] %v4459
    %s4464 = scalar_lea.vmem [#allocation2], 2408
    %v4465 = vld [vmem:[%s4464] sm:%s2660]
    %s4466 = sshllo.u32 0, 2
    %s4467 = smul.addr 2, 301
    %s4468 = scalar_lea.vmem %s1, %s4467
    %4469 = vst [vmem:[%s4468] sm:%s4466] %v4465
    %s4470 = scalar_lea.vmem [#allocation2], 2416
    %v4471 = vld [vmem:[%s4470] sm:%s2660]
    %s4472 = sshllo.u32 0, 2
    %s4473 = smul.addr 2, 302
    %s4474 = scalar_lea.vmem %s1, %s4473
    %4475 = vst [vmem:[%s4474] sm:%s4472] %v4471
    %s4476 = scalar_lea.vmem [#allocation2], 2424
    %v4477 = vld [vmem:[%s4476] sm:%s2660]
    %s4478 = sshllo.u32 0, 2
    %s4479 = smul.addr 2, 303
    %s4480 = scalar_lea.vmem %s1, %s4479
    %4481 = vst [vmem:[%s4480] sm:%s4478] %v4477
    %s4482 = scalar_lea.vmem [#allocation2], 2432
    %v4483 = vld [vmem:[%s4482] sm:%s2660]
    %s4484 = sshllo.u32 0, 2
    %s4485 = smul.addr 2, 304
    %s4486 = scalar_lea.vmem %s1, %s4485
    %4487 = vst [vmem:[%s4486] sm:%s4484] %v4483
    %s4488 = scalar_lea.vmem [#allocation2], 2440
    %v4489 = vld [vmem:[%s4488] sm:%s2660]
    %s4490 = sshllo.u32 0, 2
    %s4491 = smul.addr 2, 305
    %s4492 = scalar_lea.vmem %s1, %s4491
    %4493 = vst [vmem:[%s4492] sm:%s4490] %v4489
    %s4494 = scalar_lea.vmem [#allocation2], 2448
    %v4495 = vld [vmem:[%s4494] sm:%s2660]
    %s4496 = sshllo.u32 0, 2
    %s4497 = smul.addr 2, 306
    %s4498 = scalar_lea.vmem %s1, %s4497
    %4499 = vst [vmem:[%s4498] sm:%s4496] %v4495
    %s4500 = scalar_lea.vmem [#allocation2], 2456
    %v4501 = vld [vmem:[%s4500] sm:%s2660]
    %s4502 = sshllo.u32 0, 2
    %s4503 = smul.addr 2, 307
    %s4504 = scalar_lea.vmem %s1, %s4503
    %4505 = vst [vmem:[%s4504] sm:%s4502] %v4501
    %s4506 = scalar_lea.vmem [#allocation2], 2464
    %v4507 = vld [vmem:[%s4506] sm:%s2660]
    %s4508 = sshllo.u32 0, 2
    %s4509 = smul.addr 2, 308
    %s4510 = scalar_lea.vmem %s1, %s4509
    %4511 = vst [vmem:[%s4510] sm:%s4508] %v4507
    %s4512 = scalar_lea.vmem [#allocation2], 2472
    %v4513 = vld [vmem:[%s4512] sm:%s2660]
    %s4514 = sshllo.u32 0, 2
    %s4515 = smul.addr 2, 309
    %s4516 = scalar_lea.vmem %s1, %s4515
    %4517 = vst [vmem:[%s4516] sm:%s4514] %v4513
    %s4518 = scalar_lea.vmem [#allocation2], 2480
    %v4519 = vld [vmem:[%s4518] sm:%s2660]
    %s4520 = sshllo.u32 0, 2
    %s4521 = smul.addr 2, 310
    %s4522 = scalar_lea.vmem %s1, %s4521
    %4523 = vst [vmem:[%s4522] sm:%s4520] %v4519
    %s4524 = scalar_lea.vmem [#allocation2], 2488
    %v4525 = vld [vmem:[%s4524] sm:%s2660]
    %s4526 = sshllo.u32 0, 2
    %s4527 = smul.addr 2, 311
    %s4528 = scalar_lea.vmem %s1, %s4527
    %4529 = vst [vmem:[%s4528] sm:%s4526] %v4525
    %s4530 = scalar_lea.vmem [#allocation2], 2496
    %v4531 = vld [vmem:[%s4530] sm:%s2660]
    %s4532 = sshllo.u32 0, 2
    %s4533 = smul.addr 2, 312
    %s4534 = scalar_lea.vmem %s1, %s4533
    %4535 = vst [vmem:[%s4534] sm:%s4532] %v4531
    %s4536 = scalar_lea.vmem [#allocation2], 2504
    %v4537 = vld [vmem:[%s4536] sm:%s2660]
    %s4538 = sshllo.u32 0, 2
    %s4539 = smul.addr 2, 313
    %s4540 = scalar_lea.vmem %s1, %s4539
    %4541 = vst [vmem:[%s4540] sm:%s4538] %v4537
    %s4542 = scalar_lea.vmem [#allocation2], 2512
    %v4543 = vld [vmem:[%s4542] sm:%s2660]
    %s4544 = sshllo.u32 0, 2
    %s4545 = smul.addr 2, 314
    %s4546 = scalar_lea.vmem %s1, %s4545
    %4547 = vst [vmem:[%s4546] sm:%s4544] %v4543
    %s4548 = scalar_lea.vmem [#allocation2], 2520
    %v4549 = vld [vmem:[%s4548] sm:%s2660]
    %s4550 = sshllo.u32 0, 2
    %s4551 = smul.addr 2, 315
    %s4552 = scalar_lea.vmem %s1, %s4551
    %4553 = vst [vmem:[%s4552] sm:%s4550] %v4549
    %s4554 = scalar_lea.vmem [#allocation2], 2528
    %v4555 = vld [vmem:[%s4554] sm:%s2660]
    %s4556 = sshllo.u32 0, 2
    %s4557 = smul.addr 2, 316
    %s4558 = scalar_lea.vmem %s1, %s4557
    %4559 = vst [vmem:[%s4558] sm:%s4556] %v4555
    %s4560 = scalar_lea.vmem [#allocation2], 2536
    %v4561 = vld [vmem:[%s4560] sm:%s2660]
    %s4562 = sshllo.u32 0, 2
    %s4563 = smul.addr 2, 317
    %s4564 = scalar_lea.vmem %s1, %s4563
    %4565 = vst [vmem:[%s4564] sm:%s4562] %v4561
    %s4566 = scalar_lea.vmem [#allocation2], 2544
    %v4567 = vld [vmem:[%s4566] sm:%s2660]
    %s4568 = sshllo.u32 0, 2
    %s4569 = smul.addr 2, 318
    %s4570 = scalar_lea.vmem %s1, %s4569
    %4571 = vst [vmem:[%s4570] sm:%s4568] %v4567
    %s4572 = scalar_lea.vmem [#allocation2], 2552
    %v4573 = vld [vmem:[%s4572] sm:%s2660]
    %s4574 = sshllo.u32 0, 2
    %s4575 = smul.addr 2, 319
    %s4576 = scalar_lea.vmem %s1, %s4575
    %4577 = vst [vmem:[%s4576] sm:%s4574] %v4573
    %s4578 = scalar_lea.vmem [#allocation2], 2560
    %v4579 = vld [vmem:[%s4578] sm:%s2660]
    %s4580 = sshllo.u32 0, 2
    %s4581 = smul.addr 2, 320
    %s4582 = scalar_lea.vmem %s1, %s4581
    %4583 = vst [vmem:[%s4582] sm:%s4580] %v4579
    %s4584 = scalar_lea.vmem [#allocation2], 2568
    %v4585 = vld [vmem:[%s4584] sm:%s2660]
    %s4586 = sshllo.u32 0, 2
    %s4587 = smul.addr 2, 321
    %s4588 = scalar_lea.vmem %s1, %s4587
    %4589 = vst [vmem:[%s4588] sm:%s4586] %v4585
    %s4590 = scalar_lea.vmem [#allocation2], 2576
    %v4591 = vld [vmem:[%s4590] sm:%s2660]
    %s4592 = sshllo.u32 0, 2
    %s4593 = smul.addr 2, 322
    %s4594 = scalar_lea.vmem %s1, %s4593
    %4595 = vst [vmem:[%s4594] sm:%s4592] %v4591
    %s4596 = scalar_lea.vmem [#allocation2], 2584
    %v4597 = vld [vmem:[%s4596] sm:%s2660]
    %s4598 = sshllo.u32 0, 2
    %s4599 = smul.addr 2, 323
    %s4600 = scalar_lea.vmem %s1, %s4599
    %4601 = vst [vmem:[%s4600] sm:%s4598] %v4597
    %s4602 = scalar_lea.vmem [#allocation2], 2592
    %v4603 = vld [vmem:[%s4602] sm:%s2660]
    %s4604 = sshllo.u32 0, 2
    %s4605 = smul.addr 2, 324
    %s4606 = scalar_lea.vmem %s1, %s4605
    %4607 = vst [vmem:[%s4606] sm:%s4604] %v4603
    %s4608 = scalar_lea.vmem [#allocation2], 2600
    %v4609 = vld [vmem:[%s4608] sm:%s2660]
    %s4610 = sshllo.u32 0, 2
    %s4611 = smul.addr 2, 325
    %s4612 = scalar_lea.vmem %s1, %s4611
    %4613 = vst [vmem:[%s4612] sm:%s4610] %v4609
    %s4614 = scalar_lea.vmem [#allocation2], 2608
    %v4615 = vld [vmem:[%s4614] sm:%s2660]
    %s4616 = sshllo.u32 0, 2
    %s4617 = smul.addr 2, 326
    %s4618 = scalar_lea.vmem %s1, %s4617
    %4619 = vst [vmem:[%s4618] sm:%s4616] %v4615
    %s4620 = scalar_lea.vmem [#allocation2], 2616
    %v4621 = vld [vmem:[%s4620] sm:%s2660]
    %s4622 = sshllo.u32 0, 2
    %s4623 = smul.addr 2, 327
    %s4624 = scalar_lea.vmem %s1, %s4623
    %4625 = vst [vmem:[%s4624] sm:%s4622] %v4621
    %s4626 = scalar_lea.vmem [#allocation2], 2624
    %v4627 = vld [vmem:[%s4626] sm:%s2660]
    %s4628 = sshllo.u32 0, 2
    %s4629 = smul.addr 2, 328
    %s4630 = scalar_lea.vmem %s1, %s4629
    %4631 = vst [vmem:[%s4630] sm:%s4628] %v4627
    %s4632 = scalar_lea.vmem [#allocation2], 2632
    %v4633 = vld [vmem:[%s4632] sm:%s2660]
    %s4634 = sshllo.u32 0, 2
    %s4635 = smul.addr 2, 329
    %s4636 = scalar_lea.vmem %s1, %s4635
    %4637 = vst [vmem:[%s4636] sm:%s4634] %v4633
    %s4638 = scalar_lea.vmem [#allocation2], 2640
    %v4639 = vld [vmem:[%s4638] sm:%s2660]
    %s4640 = sshllo.u32 0, 2
    %s4641 = smul.addr 2, 330
    %s4642 = scalar_lea.vmem %s1, %s4641
    %4643 = vst [vmem:[%s4642] sm:%s4640] %v4639
    %s4644 = scalar_lea.vmem [#allocation2], 2648
    %v4645 = vld [vmem:[%s4644] sm:%s2660]
    %s4646 = sshllo.u32 0, 2
    %s4647 = smul.addr 2, 331
    %s4648 = scalar_lea.vmem %s1, %s4647
    %4649 = vst [vmem:[%s4648] sm:%s4646] %v4645
    %s4650 = scalar_lea.vmem [#allocation2], 2656
    %v4651 = vld [vmem:[%s4650] sm:%s2660]
    %s4652 = sshllo.u32 0, 2
    %s4653 = smul.addr 2, 332
    %s4654 = scalar_lea.vmem %s1, %s4653
    %4655 = vst [vmem:[%s4654] sm:%s4652] %v4651
    %s4656 = scalar_lea.vmem [#allocation2], 2664
    %v4657 = vld [vmem:[%s4656] sm:%s2660]
    %s4658 = sshllo.u32 0, 2
    %s4659 = smul.addr 2, 333
    %s4660 = scalar_lea.vmem %s1, %s4659
    %4661 = vst [vmem:[%s4660] sm:%s4658] %v4657
    %s4662 = scalar_lea.vmem [#allocation2], 2672
    %v4663 = vld [vmem:[%s4662] sm:%s2660]
    %s4664 = sshllo.u32 0, 2
    %s4665 = smul.addr 2, 334
    %s4666 = scalar_lea.vmem %s1, %s4665
    %4667 = vst [vmem:[%s4666] sm:%s4664] %v4663
    %s4668 = scalar_lea.vmem [#allocation2], 2680
    %v4669 = vld [vmem:[%s4668] sm:%s2660]
    %s4670 = sshllo.u32 0, 2
    %s4671 = smul.addr 2, 335
    %s4672 = scalar_lea.vmem %s1, %s4671
    %4673 = vst [vmem:[%s4672] sm:%s4670] %v4669
    %s4674 = scalar_lea.vmem [#allocation2], 2688
    %v4675 = vld [vmem:[%s4674] sm:%s2660]
    %s4676 = sshllo.u32 0, 2
    %s4677 = smul.addr 2, 336
    %s4678 = scalar_lea.vmem %s1, %s4677
    %4679 = vst [vmem:[%s4678] sm:%s4676] %v4675
    %s4680 = scalar_lea.vmem [#allocation2], 2696
    %v4681 = vld [vmem:[%s4680] sm:%s2660]
    %s4682 = sshllo.u32 0, 2
    %s4683 = smul.addr 2, 337
    %s4684 = scalar_lea.vmem %s1, %s4683
    %4685 = vst [vmem:[%s4684] sm:%s4682] %v4681
    %s4686 = scalar_lea.vmem [#allocation2], 2704
    %v4687 = vld [vmem:[%s4686] sm:%s2660]
    %s4688 = sshllo.u32 0, 2
    %s4689 = smul.addr 2, 338
    %s4690 = scalar_lea.vmem %s1, %s4689
    %4691 = vst [vmem:[%s4690] sm:%s4688] %v4687
    %s4692 = scalar_lea.vmem [#allocation2], 2712
    %v4693 = vld [vmem:[%s4692] sm:%s2660]
    %s4694 = sshllo.u32 0, 2
    %s4695 = smul.addr 2, 339
    %s4696 = scalar_lea.vmem %s1, %s4695
    %4697 = vst [vmem:[%s4696] sm:%s4694] %v4693
    %s4698 = scalar_lea.vmem [#allocation2], 2720
    %v4699 = vld [vmem:[%s4698] sm:%s2660]
    %s4700 = sshllo.u32 0, 2
    %s4701 = smul.addr 2, 340
    %s4702 = scalar_lea.vmem %s1, %s4701
    %4703 = vst [vmem:[%s4702] sm:%s4700] %v4699
    %s4704 = scalar_lea.vmem [#allocation2], 2728
    %v4705 = vld [vmem:[%s4704] sm:%s2660]
    %s4706 = sshllo.u32 0, 2
    %s4707 = smul.addr 2, 341
    %s4708 = scalar_lea.vmem %s1, %s4707
    %4709 = vst [vmem:[%s4708] sm:%s4706] %v4705
    %s4710 = scalar_lea.vmem [#allocation2], 2736
    %v4711 = vld [vmem:[%s4710] sm:%s2660]
    %s4712 = sshllo.u32 0, 2
    %s4713 = smul.addr 2, 342
    %s4714 = scalar_lea.vmem %s1, %s4713
    %4715 = vst [vmem:[%s4714] sm:%s4712] %v4711
    %s4716 = scalar_lea.vmem [#allocation2], 2744
    %v4717 = vld [vmem:[%s4716] sm:%s2660]
    %s4718 = sshllo.u32 0, 2
    %s4719 = smul.addr 2, 343
    %s4720 = scalar_lea.vmem %s1, %s4719
    %4721 = vst [vmem:[%s4720] sm:%s4718] %v4717
    %s4722 = scalar_lea.vmem [#allocation2], 2752
    %v4723 = vld [vmem:[%s4722] sm:%s2660]
    %s4724 = sshllo.u32 0, 2
    %s4725 = smul.addr 2, 344
    %s4726 = scalar_lea.vmem %s1, %s4725
    %4727 = vst [vmem:[%s4726] sm:%s4724] %v4723
    %s4728 = scalar_lea.vmem [#allocation2], 2760
    %v4729 = vld [vmem:[%s4728] sm:%s2660]
    %s4730 = sshllo.u32 0, 2
    %s4731 = smul.addr 2, 345
    %s4732 = scalar_lea.vmem %s1, %s4731
    %4733 = vst [vmem:[%s4732] sm:%s4730] %v4729
    %s4734 = scalar_lea.vmem [#allocation2], 2768
    %v4735 = vld [vmem:[%s4734] sm:%s2660]
    %s4736 = sshllo.u32 0, 2
    %s4737 = smul.addr 2, 346
    %s4738 = scalar_lea.vmem %s1, %s4737
    %4739 = vst [vmem:[%s4738] sm:%s4736] %v4735
    %s4740 = scalar_lea.vmem [#allocation2], 2776
    %v4741 = vld [vmem:[%s4740] sm:%s2660]
    %s4742 = sshllo.u32 0, 2
    %s4743 = smul.addr 2, 347
    %s4744 = scalar_lea.vmem %s1, %s4743
    %4745 = vst [vmem:[%s4744] sm:%s4742] %v4741
    %s4746 = scalar_lea.vmem [#allocation2], 2784
    %v4747 = vld [vmem:[%s4746] sm:%s2660]
    %s4748 = sshllo.u32 0, 2
    %s4749 = smul.addr 2, 348
    %s4750 = scalar_lea.vmem %s1, %s4749
    %4751 = vst [vmem:[%s4750] sm:%s4748] %v4747
    %s4752 = scalar_lea.vmem [#allocation2], 2792
    %v4753 = vld [vmem:[%s4752] sm:%s2660]
    %s4754 = sshllo.u32 0, 2
    %s4755 = smul.addr 2, 349
    %s4756 = scalar_lea.vmem %s1, %s4755
    %4757 = vst [vmem:[%s4756] sm:%s4754] %v4753
    %s4758 = scalar_lea.vmem [#allocation2], 2800
    %v4759 = vld [vmem:[%s4758] sm:%s2660]
    %s4760 = sshllo.u32 0, 2
    %s4761 = smul.addr 2, 350
    %s4762 = scalar_lea.vmem %s1, %s4761
    %4763 = vst [vmem:[%s4762] sm:%s4760] %v4759
    %s4764 = scalar_lea.vmem [#allocation2], 2808
    %v4765 = vld [vmem:[%s4764] sm:%s2660]
    %s4766 = sshllo.u32 0, 2
    %s4767 = smul.addr 2, 351
    %s4768 = scalar_lea.vmem %s1, %s4767
    %4769 = vst [vmem:[%s4768] sm:%s4766] %v4765
    %s4770 = scalar_lea.vmem [#allocation2], 2816
    %v4771 = vld [vmem:[%s4770] sm:%s2660]
    %s4772 = sshllo.u32 0, 2
    %s4773 = smul.addr 2, 352
    %s4774 = scalar_lea.vmem %s1, %s4773
    %4775 = vst [vmem:[%s4774] sm:%s4772] %v4771
    %s4776 = scalar_lea.vmem [#allocation2], 2824
    %v4777 = vld [vmem:[%s4776] sm:%s2660]
    %s4778 = sshllo.u32 0, 2
    %s4779 = smul.addr 2, 353
    %s4780 = scalar_lea.vmem %s1, %s4779
    %4781 = vst [vmem:[%s4780] sm:%s4778] %v4777
    %s4782 = scalar_lea.vmem [#allocation2], 2832
    %v4783 = vld [vmem:[%s4782] sm:%s2660]
    %s4784 = sshllo.u32 0, 2
    %s4785 = smul.addr 2, 354
    %s4786 = scalar_lea.vmem %s1, %s4785
    %4787 = vst [vmem:[%s4786] sm:%s4784] %v4783
    %s4788 = scalar_lea.vmem [#allocation2], 2840
    %v4789 = vld [vmem:[%s4788] sm:%s2660]
    %s4790 = sshllo.u32 0, 2
    %s4791 = smul.addr 2, 355
    %s4792 = scalar_lea.vmem %s1, %s4791
    %4793 = vst [vmem:[%s4792] sm:%s4790] %v4789
    %s4794 = scalar_lea.vmem [#allocation2], 2848
    %v4795 = vld [vmem:[%s4794] sm:%s2660]
    %s4796 = sshllo.u32 0, 2
    %s4797 = smul.addr 2, 356
    %s4798 = scalar_lea.vmem %s1, %s4797
    %4799 = vst [vmem:[%s4798] sm:%s4796] %v4795
    %s4800 = scalar_lea.vmem [#allocation2], 2856
    %v4801 = vld [vmem:[%s4800] sm:%s2660]
    %s4802 = sshllo.u32 0, 2
    %s4803 = smul.addr 2, 357
    %s4804 = scalar_lea.vmem %s1, %s4803
    %4805 = vst [vmem:[%s4804] sm:%s4802] %v4801
    %s4806 = scalar_lea.vmem [#allocation2], 2864
    %v4807 = vld [vmem:[%s4806] sm:%s2660]
    %s4808 = sshllo.u32 0, 2
    %s4809 = smul.addr 2, 358
    %s4810 = scalar_lea.vmem %s1, %s4809
    %4811 = vst [vmem:[%s4810] sm:%s4808] %v4807
    %s4812 = scalar_lea.vmem [#allocation2], 2872
    %v4813 = vld [vmem:[%s4812] sm:%s2660]
    %s4814 = sshllo.u32 0, 2
    %s4815 = smul.addr 2, 359
    %s4816 = scalar_lea.vmem %s1, %s4815
    %4817 = vst [vmem:[%s4816] sm:%s4814] %v4813
    %s4818 = scalar_lea.vmem [#allocation2], 2880
    %v4819 = vld [vmem:[%s4818] sm:%s2660]
    %s4820 = sshllo.u32 0, 2
    %s4821 = smul.addr 2, 360
    %s4822 = scalar_lea.vmem %s1, %s4821
    %4823 = vst [vmem:[%s4822] sm:%s4820] %v4819
    %s4824 = scalar_lea.vmem [#allocation2], 2888
    %v4825 = vld [vmem:[%s4824] sm:%s2660]
    %s4826 = sshllo.u32 0, 2
    %s4827 = smul.addr 2, 361
    %s4828 = scalar_lea.vmem %s1, %s4827
    %4829 = vst [vmem:[%s4828] sm:%s4826] %v4825
    %s4830 = scalar_lea.vmem [#allocation2], 2896
    %v4831 = vld [vmem:[%s4830] sm:%s2660]
    %s4832 = sshllo.u32 0, 2
    %s4833 = smul.addr 2, 362
    %s4834 = scalar_lea.vmem %s1, %s4833
    %4835 = vst [vmem:[%s4834] sm:%s4832] %v4831
    %s4836 = scalar_lea.vmem [#allocation2], 2904
    %v4837 = vld [vmem:[%s4836] sm:%s2660]
    %s4838 = sshllo.u32 0, 2
    %s4839 = smul.addr 2, 363
    %s4840 = scalar_lea.vmem %s1, %s4839
    %4841 = vst [vmem:[%s4840] sm:%s4838] %v4837
    %s4842 = scalar_lea.vmem [#allocation2], 2912
    %v4843 = vld [vmem:[%s4842] sm:%s2660]
    %s4844 = sshllo.u32 0, 2
    %s4845 = smul.addr 2, 364
    %s4846 = scalar_lea.vmem %s1, %s4845
    %4847 = vst [vmem:[%s4846] sm:%s4844] %v4843
    %s4848 = scalar_lea.vmem [#allocation2], 2920
    %v4849 = vld [vmem:[%s4848] sm:%s2660]
    %s4850 = sshllo.u32 0, 2
    %s4851 = smul.addr 2, 365
    %s4852 = scalar_lea.vmem %s1, %s4851
    %4853 = vst [vmem:[%s4852] sm:%s4850] %v4849
    %s4854 = scalar_lea.vmem [#allocation2], 2928
    %v4855 = vld [vmem:[%s4854] sm:%s2660]
    %s4856 = sshllo.u32 0, 2
    %s4857 = smul.addr 2, 366
    %s4858 = scalar_lea.vmem %s1, %s4857
    %4859 = vst [vmem:[%s4858] sm:%s4856] %v4855
    %s4860 = scalar_lea.vmem [#allocation2], 2936
    %v4861 = vld [vmem:[%s4860] sm:%s2660]
    %s4862 = sshllo.u32 0, 2
    %s4863 = smul.addr 2, 367
    %s4864 = scalar_lea.vmem %s1, %s4863
    %4865 = vst [vmem:[%s4864] sm:%s4862] %v4861
    %s4866 = scalar_lea.vmem [#allocation2], 2944
    %v4867 = vld [vmem:[%s4866] sm:%s2660]
    %s4868 = sshllo.u32 0, 2
    %s4869 = smul.addr 2, 368
    %s4870 = scalar_lea.vmem %s1, %s4869
    %4871 = vst [vmem:[%s4870] sm:%s4868] %v4867
    %s4872 = scalar_lea.vmem [#allocation2], 2952
    %v4873 = vld [vmem:[%s4872] sm:%s2660]
    %s4874 = sshllo.u32 0, 2
    %s4875 = smul.addr 2, 369
    %s4876 = scalar_lea.vmem %s1, %s4875
    %4877 = vst [vmem:[%s4876] sm:%s4874] %v4873
    %s4878 = scalar_lea.vmem [#allocation2], 2960
    %v4879 = vld [vmem:[%s4878] sm:%s2660]
    %s4880 = sshllo.u32 0, 2
    %s4881 = smul.addr 2, 370
    %s4882 = scalar_lea.vmem %s1, %s4881
    %4883 = vst [vmem:[%s4882] sm:%s4880] %v4879
    %s4884 = scalar_lea.vmem [#allocation2], 2968
    %v4885 = vld [vmem:[%s4884] sm:%s2660]
    %s4886 = sshllo.u32 0, 2
    %s4887 = smul.addr 2, 371
    %s4888 = scalar_lea.vmem %s1, %s4887
    %4889 = vst [vmem:[%s4888] sm:%s4886] %v4885
    %s4890 = scalar_lea.vmem [#allocation2], 2976
    %v4891 = vld [vmem:[%s4890] sm:%s2660]
    %s4892 = sshllo.u32 0, 2
    %s4893 = smul.addr 2, 372
    %s4894 = scalar_lea.vmem %s1, %s4893
    %4895 = vst [vmem:[%s4894] sm:%s4892] %v4891
    %s4896 = scalar_lea.vmem [#allocation2], 2984
    %v4897 = vld [vmem:[%s4896] sm:%s2660]
    %s4898 = sshllo.u32 0, 2
    %s4899 = smul.addr 2, 373
    %s4900 = scalar_lea.vmem %s1, %s4899
    %4901 = vst [vmem:[%s4900] sm:%s4898] %v4897
    %s4902 = scalar_lea.vmem [#allocation2], 2992
    %v4903 = vld [vmem:[%s4902] sm:%s2660]
    %s4904 = sshllo.u32 0, 2
    %s4905 = smul.addr 2, 374
    %s4906 = scalar_lea.vmem %s1, %s4905
    %4907 = vst [vmem:[%s4906] sm:%s4904] %v4903
    %s4908 = scalar_lea.vmem [#allocation2], 3000
    %v4909 = vld [vmem:[%s4908] sm:%s2660]
    %s4910 = sshllo.u32 0, 2
    %s4911 = smul.addr 2, 375
    %s4912 = scalar_lea.vmem %s1, %s4911
    %4913 = vst [vmem:[%s4912] sm:%s4910] %v4909
    %s4914 = scalar_lea.vmem [#allocation2], 3008
    %v4915 = vld [vmem:[%s4914] sm:%s2660]
    %s4916 = sshllo.u32 0, 2
    %s4917 = smul.addr 2, 376
    %s4918 = scalar_lea.vmem %s1, %s4917
    %4919 = vst [vmem:[%s4918] sm:%s4916] %v4915
    %s4920 = scalar_lea.vmem [#allocation2], 3016
    %v4921 = vld [vmem:[%s4920] sm:%s2660]
    %s4922 = sshllo.u32 0, 2
    %s4923 = smul.addr 2, 377
    %s4924 = scalar_lea.vmem %s1, %s4923
    %4925 = vst [vmem:[%s4924] sm:%s4922] %v4921
    %s4926 = scalar_lea.vmem [#allocation2], 3024
    %v4927 = vld [vmem:[%s4926] sm:%s2660]
    %s4928 = sshllo.u32 0, 2
    %s4929 = smul.addr 2, 378
    %s4930 = scalar_lea.vmem %s1, %s4929
    %4931 = vst [vmem:[%s4930] sm:%s4928] %v4927
    %s4932 = scalar_lea.vmem [#allocation2], 3032
    %v4933 = vld [vmem:[%s4932] sm:%s2660]
    %s4934 = sshllo.u32 0, 2
    %s4935 = smul.addr 2, 379
    %s4936 = scalar_lea.vmem %s1, %s4935
    %4937 = vst [vmem:[%s4936] sm:%s4934] %v4933
    %s4938 = scalar_lea.vmem [#allocation2], 3040
    %v4939 = vld [vmem:[%s4938] sm:%s2660]
    %s4940 = sshllo.u32 0, 2
    %s4941 = smul.addr 2, 380
    %s4942 = scalar_lea.vmem %s1, %s4941
    %4943 = vst [vmem:[%s4942] sm:%s4940] %v4939
    %s4944 = scalar_lea.vmem [#allocation2], 3048
    %v4945 = vld [vmem:[%s4944] sm:%s2660]
    %s4946 = sshllo.u32 0, 2
    %s4947 = smul.addr 2, 381
    %s4948 = scalar_lea.vmem %s1, %s4947
    %4949 = vst [vmem:[%s4948] sm:%s4946] %v4945
    %s4950 = scalar_lea.vmem [#allocation2], 3056
    %v4951 = vld [vmem:[%s4950] sm:%s2660]
    %s4952 = sshllo.u32 0, 2
    %s4953 = smul.addr 2, 382
    %s4954 = scalar_lea.vmem %s1, %s4953
    %4955 = vst [vmem:[%s4954] sm:%s4952] %v4951
    %s4956 = scalar_lea.vmem [#allocation2], 3064
    %v4957 = vld [vmem:[%s4956] sm:%s2660]
    %s4958 = sshllo.u32 0, 2
    %s4959 = smul.addr 2, 383
    %s4960 = scalar_lea.vmem %s1, %s4959
    %4961 = vst [vmem:[%s4960] sm:%s4958] %v4957
    %s4962 = scalar_lea.vmem [#allocation2], 3072
    %v4963 = vld [vmem:[%s4962] sm:%s2660]
    %s4964 = sshllo.u32 0, 2
    %s4965 = smul.addr 2, 384
    %s4966 = scalar_lea.vmem %s1, %s4965
    %4967 = vst [vmem:[%s4966] sm:%s4964] %v4963
    %s4968 = scalar_lea.vmem [#allocation2], 3080
    %v4969 = vld [vmem:[%s4968] sm:%s2660]
    %s4970 = sshllo.u32 0, 2
    %s4971 = smul.addr 2, 385
    %s4972 = scalar_lea.vmem %s1, %s4971
    %4973 = vst [vmem:[%s4972] sm:%s4970] %v4969
    %s4974 = scalar_lea.vmem [#allocation2], 3088
    %v4975 = vld [vmem:[%s4974] sm:%s2660]
    %s4976 = sshllo.u32 0, 2
    %s4977 = smul.addr 2, 386
    %s4978 = scalar_lea.vmem %s1, %s4977
    %4979 = vst [vmem:[%s4978] sm:%s4976] %v4975
    %s4980 = scalar_lea.vmem [#allocation2], 3096
    %v4981 = vld [vmem:[%s4980] sm:%s2660]
    %s4982 = sshllo.u32 0, 2
    %s4983 = smul.addr 2, 387
    %s4984 = scalar_lea.vmem %s1, %s4983
    %4985 = vst [vmem:[%s4984] sm:%s4982] %v4981
    %s4986 = scalar_lea.vmem [#allocation2], 3104
    %v4987 = vld [vmem:[%s4986] sm:%s2660]
    %s4988 = sshllo.u32 0, 2
    %s4989 = smul.addr 2, 388
    %s4990 = scalar_lea.vmem %s1, %s4989
    %4991 = vst [vmem:[%s4990] sm:%s4988] %v4987
    %s4992 = scalar_lea.vmem [#allocation2], 3112
    %v4993 = vld [vmem:[%s4992] sm:%s2660]
    %s4994 = sshllo.u32 0, 2
    %s4995 = smul.addr 2, 389
    %s4996 = scalar_lea.vmem %s1, %s4995
    %4997 = vst [vmem:[%s4996] sm:%s4994] %v4993
    %s4998 = scalar_lea.vmem [#allocation2], 3120
    %v4999 = vld [vmem:[%s4998] sm:%s2660]
    %s5000 = sshllo.u32 0, 2
    %s5001 = smul.addr 2, 390
    %s5002 = scalar_lea.vmem %s1, %s5001
    %5003 = vst [vmem:[%s5002] sm:%s5000] %v4999
    %s5004 = scalar_lea.vmem [#allocation2], 3128
    %v5005 = vld [vmem:[%s5004] sm:%s2660]
    %s5006 = sshllo.u32 0, 2
    %s5007 = smul.addr 2, 391
    %s5008 = scalar_lea.vmem %s1, %s5007
    %5009 = vst [vmem:[%s5008] sm:%s5006] %v5005
    %s5010 = scalar_lea.vmem [#allocation2], 3136
    %v5011 = vld [vmem:[%s5010] sm:%s2660]
    %s5012 = sshllo.u32 0, 2
    %s5013 = smul.addr 2, 392
    %s5014 = scalar_lea.vmem %s1, %s5013
    %5015 = vst [vmem:[%s5014] sm:%s5012] %v5011
    %s5016 = scalar_lea.vmem [#allocation2], 3144
    %v5017 = vld [vmem:[%s5016] sm:%s2660]
    %s5018 = sshllo.u32 0, 2
    %s5019 = smul.addr 2, 393
    %s5020 = scalar_lea.vmem %s1, %s5019
    %5021 = vst [vmem:[%s5020] sm:%s5018] %v5017
    %s5022 = scalar_lea.vmem [#allocation2], 3152
    %v5023 = vld [vmem:[%s5022] sm:%s2660]
    %s5024 = sshllo.u32 0, 2
    %s5025 = smul.addr 2, 394
    %s5026 = scalar_lea.vmem %s1, %s5025
    %5027 = vst [vmem:[%s5026] sm:%s5024] %v5023
    %s5028 = scalar_lea.vmem [#allocation2], 3160
    %v5029 = vld [vmem:[%s5028] sm:%s2660]
    %s5030 = sshllo.u32 0, 2
    %s5031 = smul.addr 2, 395
    %s5032 = scalar_lea.vmem %s1, %s5031
    %5033 = vst [vmem:[%s5032] sm:%s5030] %v5029
    %s5034 = scalar_lea.vmem [#allocation2], 3168
    %v5035 = vld [vmem:[%s5034] sm:%s2660]
    %s5036 = sshllo.u32 0, 2
    %s5037 = smul.addr 2, 396
    %s5038 = scalar_lea.vmem %s1, %s5037
    %5039 = vst [vmem:[%s5038] sm:%s5036] %v5035
    %s5040 = scalar_lea.vmem [#allocation2], 3176
    %v5041 = vld [vmem:[%s5040] sm:%s2660]
    %s5042 = sshllo.u32 0, 2
    %s5043 = smul.addr 2, 397
    %s5044 = scalar_lea.vmem %s1, %s5043
    %5045 = vst [vmem:[%s5044] sm:%s5042] %v5041
    %s5046 = scalar_lea.vmem [#allocation2], 3184
    %v5047 = vld [vmem:[%s5046] sm:%s2660]
    %s5048 = sshllo.u32 0, 2
    %s5049 = smul.addr 2, 398
    %s5050 = scalar_lea.vmem %s1, %s5049
    %5051 = vst [vmem:[%s5050] sm:%s5048] %v5047
    %s5052 = scalar_lea.vmem [#allocation2], 3192
    %v5053 = vld [vmem:[%s5052] sm:%s2660]
    %s5054 = sshllo.u32 0, 2
    %s5055 = smul.addr 2, 399
    %s5056 = scalar_lea.vmem %s1, %s5055
    %5057 = vst [vmem:[%s5056] sm:%s5054] %v5053
    %s5058 = scalar_lea.vmem [#allocation2], 3200
    %v5059 = vld [vmem:[%s5058] sm:%s2660]
    %s5060 = sshllo.u32 0, 2
    %s5061 = smul.addr 2, 400
    %s5062 = scalar_lea.vmem %s1, %s5061
    %5063 = vst [vmem:[%s5062] sm:%s5060] %v5059
    %s5064 = scalar_lea.vmem [#allocation2], 3208
    %v5065 = vld [vmem:[%s5064] sm:%s2660]
    %s5066 = sshllo.u32 0, 2
    %s5067 = smul.addr 2, 401
    %s5068 = scalar_lea.vmem %s1, %s5067
    %5069 = vst [vmem:[%s5068] sm:%s5066] %v5065
    %s5070 = scalar_lea.vmem [#allocation2], 3216
    %v5071 = vld [vmem:[%s5070] sm:%s2660]
    %s5072 = sshllo.u32 0, 2
    %s5073 = smul.addr 2, 402
    %s5074 = scalar_lea.vmem %s1, %s5073
    %5075 = vst [vmem:[%s5074] sm:%s5072] %v5071
    %s5076 = scalar_lea.vmem [#allocation2], 3224
    %v5077 = vld [vmem:[%s5076] sm:%s2660]
    %s5078 = sshllo.u32 0, 2
    %s5079 = smul.addr 2, 403
    %s5080 = scalar_lea.vmem %s1, %s5079
    %5081 = vst [vmem:[%s5080] sm:%s5078] %v5077
    %s5082 = scalar_lea.vmem [#allocation2], 3232
    %v5083 = vld [vmem:[%s5082] sm:%s2660]
    %s5084 = sshllo.u32 0, 2
    %s5085 = smul.addr 2, 404
    %s5086 = scalar_lea.vmem %s1, %s5085
    %5087 = vst [vmem:[%s5086] sm:%s5084] %v5083
    %s5088 = scalar_lea.vmem [#allocation2], 3240
    %v5089 = vld [vmem:[%s5088] sm:%s2660]
    %s5090 = sshllo.u32 0, 2
    %s5091 = smul.addr 2, 405
    %s5092 = scalar_lea.vmem %s1, %s5091
    %5093 = vst [vmem:[%s5092] sm:%s5090] %v5089
    %s5094 = scalar_lea.vmem [#allocation2], 3248
    %v5095 = vld [vmem:[%s5094] sm:%s2660]
    %s5096 = sshllo.u32 0, 2
    %s5097 = smul.addr 2, 406
    %s5098 = scalar_lea.vmem %s1, %s5097
    %5099 = vst [vmem:[%s5098] sm:%s5096] %v5095
    %s5100 = scalar_lea.vmem [#allocation2], 3256
    %v5101 = vld [vmem:[%s5100] sm:%s2660]
    %s5102 = sshllo.u32 0, 2
    %s5103 = smul.addr 2, 407
    %s5104 = scalar_lea.vmem %s1, %s5103
    %5105 = vst [vmem:[%s5104] sm:%s5102] %v5101
    %s5106 = scalar_lea.vmem [#allocation2], 3264
    %v5107 = vld [vmem:[%s5106] sm:%s2660]
    %s5108 = sshllo.u32 0, 2
    %s5109 = smul.addr 2, 408
    %s5110 = scalar_lea.vmem %s1, %s5109
    %5111 = vst [vmem:[%s5110] sm:%s5108] %v5107
    %s5112 = scalar_lea.vmem [#allocation2], 3272
    %v5113 = vld [vmem:[%s5112] sm:%s2660]
    %s5114 = sshllo.u32 0, 2
    %s5115 = smul.addr 2, 409
    %s5116 = scalar_lea.vmem %s1, %s5115
    %5117 = vst [vmem:[%s5116] sm:%s5114] %v5113
    %s5118 = scalar_lea.vmem [#allocation2], 3280
    %v5119 = vld [vmem:[%s5118] sm:%s2660]
    %s5120 = sshllo.u32 0, 2
    %s5121 = smul.addr 2, 410
    %s5122 = scalar_lea.vmem %s1, %s5121
    %5123 = vst [vmem:[%s5122] sm:%s5120] %v5119
    %s5124 = scalar_lea.vmem [#allocation2], 3288
    %v5125 = vld [vmem:[%s5124] sm:%s2660]
    %s5126 = sshllo.u32 0, 2
    %s5127 = smul.addr 2, 411
    %s5128 = scalar_lea.vmem %s1, %s5127
    %5129 = vst [vmem:[%s5128] sm:%s5126] %v5125
    %s5130 = scalar_lea.vmem [#allocation2], 3296
    %v5131 = vld [vmem:[%s5130] sm:%s2660]
    %s5132 = sshllo.u32 0, 2
    %s5133 = smul.addr 2, 412
    %s5134 = scalar_lea.vmem %s1, %s5133
    %5135 = vst [vmem:[%s5134] sm:%s5132] %v5131
    %s5136 = scalar_lea.vmem [#allocation2], 3304
    %v5137 = vld [vmem:[%s5136] sm:%s2660]
    %s5138 = sshllo.u32 0, 2
    %s5139 = smul.addr 2, 413
    %s5140 = scalar_lea.vmem %s1, %s5139
    %5141 = vst [vmem:[%s5140] sm:%s5138] %v5137
    %s5142 = scalar_lea.vmem [#allocation2], 3312
    %v5143 = vld [vmem:[%s5142] sm:%s2660]
    %s5144 = sshllo.u32 0, 2
    %s5145 = smul.addr 2, 414
    %s5146 = scalar_lea.vmem %s1, %s5145
    %5147 = vst [vmem:[%s5146] sm:%s5144] %v5143
    %s5148 = scalar_lea.vmem [#allocation2], 3320
    %v5149 = vld [vmem:[%s5148] sm:%s2660]
    %s5150 = sshllo.u32 0, 2
    %s5151 = smul.addr 2, 415
    %s5152 = scalar_lea.vmem %s1, %s5151
    %5153 = vst [vmem:[%s5152] sm:%s5150] %v5149
    %s5154 = scalar_lea.vmem [#allocation2], 3328
    %v5155 = vld [vmem:[%s5154] sm:%s2660]
    %s5156 = sshllo.u32 0, 2
    %s5157 = smul.addr 2, 416
    %s5158 = scalar_lea.vmem %s1, %s5157
    %5159 = vst [vmem:[%s5158] sm:%s5156] %v5155
    %s5160 = scalar_lea.vmem [#allocation2], 3336
    %v5161 = vld [vmem:[%s5160] sm:%s2660]
    %s5162 = sshllo.u32 0, 2
    %s5163 = smul.addr 2, 417
    %s5164 = scalar_lea.vmem %s1, %s5163
    %5165 = vst [vmem:[%s5164] sm:%s5162] %v5161
    %s5166 = scalar_lea.vmem [#allocation2], 3344
    %v5167 = vld [vmem:[%s5166] sm:%s2660]
    %s5168 = sshllo.u32 0, 2
    %s5169 = smul.addr 2, 418
    %s5170 = scalar_lea.vmem %s1, %s5169
    %5171 = vst [vmem:[%s5170] sm:%s5168] %v5167
    %s5172 = scalar_lea.vmem [#allocation2], 3352
    %v5173 = vld [vmem:[%s5172] sm:%s2660]
    %s5174 = sshllo.u32 0, 2
    %s5175 = smul.addr 2, 419
    %s5176 = scalar_lea.vmem %s1, %s5175
    %5177 = vst [vmem:[%s5176] sm:%s5174] %v5173
    %s5178 = scalar_lea.vmem [#allocation2], 3360
    %v5179 = vld [vmem:[%s5178] sm:%s2660]
    %s5180 = sshllo.u32 0, 2
    %s5181 = smul.addr 2, 420
    %s5182 = scalar_lea.vmem %s1, %s5181
    %5183 = vst [vmem:[%s5182] sm:%s5180] %v5179
    %s5184 = scalar_lea.vmem [#allocation2], 3368
    %v5185 = vld [vmem:[%s5184] sm:%s2660]
    %s5186 = sshllo.u32 0, 2
    %s5187 = smul.addr 2, 421
    %s5188 = scalar_lea.vmem %s1, %s5187
    %5189 = vst [vmem:[%s5188] sm:%s5186] %v5185
    %s5190 = scalar_lea.vmem [#allocation2], 3376
    %v5191 = vld [vmem:[%s5190] sm:%s2660]
    %s5192 = sshllo.u32 0, 2
    %s5193 = smul.addr 2, 422
    %s5194 = scalar_lea.vmem %s1, %s5193
    %5195 = vst [vmem:[%s5194] sm:%s5192] %v5191
    %s5196 = scalar_lea.vmem [#allocation2], 3384
    %v5197 = vld [vmem:[%s5196] sm:%s2660]
    %s5198 = sshllo.u32 0, 2
    %s5199 = smul.addr 2, 423
    %s5200 = scalar_lea.vmem %s1, %s5199
    %5201 = vst [vmem:[%s5200] sm:%s5198] %v5197
    %s5202 = scalar_lea.vmem [#allocation2], 3392
    %v5203 = vld [vmem:[%s5202] sm:%s2660]
    %s5204 = sshllo.u32 0, 2
    %s5205 = smul.addr 2, 424
    %s5206 = scalar_lea.vmem %s1, %s5205
    %5207 = vst [vmem:[%s5206] sm:%s5204] %v5203
    %s5208 = scalar_lea.vmem [#allocation2], 3400
    %v5209 = vld [vmem:[%s5208] sm:%s2660]
    %s5210 = sshllo.u32 0, 2
    %s5211 = smul.addr 2, 425
    %s5212 = scalar_lea.vmem %s1, %s5211
    %5213 = vst [vmem:[%s5212] sm:%s5210] %v5209
    %s5214 = scalar_lea.vmem [#allocation2], 3408
    %v5215 = vld [vmem:[%s5214] sm:%s2660]
    %s5216 = sshllo.u32 0, 2
    %s5217 = smul.addr 2, 426
    %s5218 = scalar_lea.vmem %s1, %s5217
    %5219 = vst [vmem:[%s5218] sm:%s5216] %v5215
    %s5220 = scalar_lea.vmem [#allocation2], 3416
    %v5221 = vld [vmem:[%s5220] sm:%s2660]
    %s5222 = sshllo.u32 0, 2
    %s5223 = smul.addr 2, 427
    %s5224 = scalar_lea.vmem %s1, %s5223
    %5225 = vst [vmem:[%s5224] sm:%s5222] %v5221
    %s5226 = scalar_lea.vmem [#allocation2], 3424
    %v5227 = vld [vmem:[%s5226] sm:%s2660]
    %s5228 = sshllo.u32 0, 2
    %s5229 = smul.addr 2, 428
    %s5230 = scalar_lea.vmem %s1, %s5229
    %5231 = vst [vmem:[%s5230] sm:%s5228] %v5227
    %s5232 = scalar_lea.vmem [#allocation2], 3432
    %v5233 = vld [vmem:[%s5232] sm:%s2660]
    %s5234 = sshllo.u32 0, 2
    %s5235 = smul.addr 2, 429
    %s5236 = scalar_lea.vmem %s1, %s5235
    %5237 = vst [vmem:[%s5236] sm:%s5234] %v5233
    %s5238 = scalar_lea.vmem [#allocation2], 3440
    %v5239 = vld [vmem:[%s5238] sm:%s2660]
    %s5240 = sshllo.u32 0, 2
    %s5241 = smul.addr 2, 430
    %s5242 = scalar_lea.vmem %s1, %s5241
    %5243 = vst [vmem:[%s5242] sm:%s5240] %v5239
    %s5244 = scalar_lea.vmem [#allocation2], 3448
    %v5245 = vld [vmem:[%s5244] sm:%s2660]
    %s5246 = sshllo.u32 0, 2
    %s5247 = smul.addr 2, 431
    %s5248 = scalar_lea.vmem %s1, %s5247
    %5249 = vst [vmem:[%s5248] sm:%s5246] %v5245
    %s5250 = scalar_lea.vmem [#allocation2], 3456
    %v5251 = vld [vmem:[%s5250] sm:%s2660]
    %s5252 = sshllo.u32 0, 2
    %s5253 = smul.addr 2, 432
    %s5254 = scalar_lea.vmem %s1, %s5253
    %5255 = vst [vmem:[%s5254] sm:%s5252] %v5251
    %s5256 = scalar_lea.vmem [#allocation2], 3464
    %v5257 = vld [vmem:[%s5256] sm:%s2660]
    %s5258 = sshllo.u32 0, 2
    %s5259 = smul.addr 2, 433
    %s5260 = scalar_lea.vmem %s1, %s5259
    %5261 = vst [vmem:[%s5260] sm:%s5258] %v5257
    %s5262 = scalar_lea.vmem [#allocation2], 3472
    %v5263 = vld [vmem:[%s5262] sm:%s2660]
    %s5264 = sshllo.u32 0, 2
    %s5265 = smul.addr 2, 434
    %s5266 = scalar_lea.vmem %s1, %s5265
    %5267 = vst [vmem:[%s5266] sm:%s5264] %v5263
    %s5268 = scalar_lea.vmem [#allocation2], 3480
    %v5269 = vld [vmem:[%s5268] sm:%s2660]
    %s5270 = sshllo.u32 0, 2
    %s5271 = smul.addr 2, 435
    %s5272 = scalar_lea.vmem %s1, %s5271
    %5273 = vst [vmem:[%s5272] sm:%s5270] %v5269
    %s5274 = scalar_lea.vmem [#allocation2], 3488
    %v5275 = vld [vmem:[%s5274] sm:%s2660]
    %s5276 = sshllo.u32 0, 2
    %s5277 = smul.addr 2, 436
    %s5278 = scalar_lea.vmem %s1, %s5277
    %5279 = vst [vmem:[%s5278] sm:%s5276] %v5275
    %s5280 = scalar_lea.vmem [#allocation2], 3496
    %v5281 = vld [vmem:[%s5280] sm:%s2660]
    %s5282 = sshllo.u32 0, 2
    %s5283 = smul.addr 2, 437
    %s5284 = scalar_lea.vmem %s1, %s5283
    %5285 = vst [vmem:[%s5284] sm:%s5282] %v5281
    %s5286 = scalar_lea.vmem [#allocation2], 3504
    %v5287 = vld [vmem:[%s5286] sm:%s2660]
    %s5288 = sshllo.u32 0, 2
    %s5289 = smul.addr 2, 438
    %s5290 = scalar_lea.vmem %s1, %s5289
    %5291 = vst [vmem:[%s5290] sm:%s5288] %v5287
    %s5292 = scalar_lea.vmem [#allocation2], 3512
    %v5293 = vld [vmem:[%s5292] sm:%s2660]
    %s5294 = sshllo.u32 0, 2
    %s5295 = smul.addr 2, 439
    %s5296 = scalar_lea.vmem %s1, %s5295
    %5297 = vst [vmem:[%s5296] sm:%s5294] %v5293
    %s5298 = scalar_lea.vmem [#allocation2], 3520
    %v5299 = vld [vmem:[%s5298] sm:%s2660]
    %s5300 = sshllo.u32 0, 2
    %s5301 = smul.addr 2, 440
    %s5302 = scalar_lea.vmem %s1, %s5301
    %5303 = vst [vmem:[%s5302] sm:%s5300] %v5299
    %s5304 = scalar_lea.vmem [#allocation2], 3528
    %v5305 = vld [vmem:[%s5304] sm:%s2660]
    %s5306 = sshllo.u32 0, 2
    %s5307 = smul.addr 2, 441
    %s5308 = scalar_lea.vmem %s1, %s5307
    %5309 = vst [vmem:[%s5308] sm:%s5306] %v5305
    %s5310 = scalar_lea.vmem [#allocation2], 3536
    %v5311 = vld [vmem:[%s5310] sm:%s2660]
    %s5312 = sshllo.u32 0, 2
    %s5313 = smul.addr 2, 442
    %s5314 = scalar_lea.vmem %s1, %s5313
    %5315 = vst [vmem:[%s5314] sm:%s5312] %v5311
    %s5316 = scalar_lea.vmem [#allocation2], 3544
    %v5317 = vld [vmem:[%s5316] sm:%s2660]
    %s5318 = sshllo.u32 0, 2
    %s5319 = smul.addr 2, 443
    %s5320 = scalar_lea.vmem %s1, %s5319
    %5321 = vst [vmem:[%s5320] sm:%s5318] %v5317
    %s5322 = scalar_lea.vmem [#allocation2], 3552
    %v5323 = vld [vmem:[%s5322] sm:%s2660]
    %s5324 = sshllo.u32 0, 2
    %s5325 = smul.addr 2, 444
    %s5326 = scalar_lea.vmem %s1, %s5325
    %5327 = vst [vmem:[%s5326] sm:%s5324] %v5323
    %s5328 = scalar_lea.vmem [#allocation2], 3560
    %v5329 = vld [vmem:[%s5328] sm:%s2660]
    %s5330 = sshllo.u32 0, 2
    %s5331 = smul.addr 2, 445
    %s5332 = scalar_lea.vmem %s1, %s5331
    %5333 = vst [vmem:[%s5332] sm:%s5330] %v5329
    %s5334 = scalar_lea.vmem [#allocation2], 3568
    %v5335 = vld [vmem:[%s5334] sm:%s2660]
    %s5336 = sshllo.u32 0, 2
    %s5337 = smul.addr 2, 446
    %s5338 = scalar_lea.vmem %s1, %s5337
    %5339 = vst [vmem:[%s5338] sm:%s5336] %v5335
    %s5340 = scalar_lea.vmem [#allocation2], 3576
    %v5341 = vld [vmem:[%s5340] sm:%s2660]
    %s5342 = sshllo.u32 0, 2
    %s5343 = smul.addr 2, 447
    %s5344 = scalar_lea.vmem %s1, %s5343
    %5345 = vst [vmem:[%s5344] sm:%s5342] %v5341
    %s5346 = scalar_lea.vmem [#allocation2], 3584
    %v5347 = vld [vmem:[%s5346] sm:%s2660]
    %s5348 = sshllo.u32 0, 2
    %s5349 = smul.addr 2, 448
    %s5350 = scalar_lea.vmem %s1, %s5349
    %5351 = vst [vmem:[%s5350] sm:%s5348] %v5347
    %s5352 = scalar_lea.vmem [#allocation2], 3592
    %v5353 = vld [vmem:[%s5352] sm:%s2660]
    %s5354 = sshllo.u32 0, 2
    %s5355 = smul.addr 2, 449
    %s5356 = scalar_lea.vmem %s1, %s5355
    %5357 = vst [vmem:[%s5356] sm:%s5354] %v5353
    %s5358 = scalar_lea.vmem [#allocation2], 3600
    %v5359 = vld [vmem:[%s5358] sm:%s2660]
    %s5360 = sshllo.u32 0, 2
    %s5361 = smul.addr 2, 450
    %s5362 = scalar_lea.vmem %s1, %s5361
    %5363 = vst [vmem:[%s5362] sm:%s5360] %v5359
    %s5364 = scalar_lea.vmem [#allocation2], 3608
    %v5365 = vld [vmem:[%s5364] sm:%s2660]
    %s5366 = sshllo.u32 0, 2
    %s5367 = smul.addr 2, 451
    %s5368 = scalar_lea.vmem %s1, %s5367
    %5369 = vst [vmem:[%s5368] sm:%s5366] %v5365
    %s5370 = scalar_lea.vmem [#allocation2], 3616
    %v5371 = vld [vmem:[%s5370] sm:%s2660]
    %s5372 = sshllo.u32 0, 2
    %s5373 = smul.addr 2, 452
    %s5374 = scalar_lea.vmem %s1, %s5373
    %5375 = vst [vmem:[%s5374] sm:%s5372] %v5371
    %s5376 = scalar_lea.vmem [#allocation2], 3624
    %v5377 = vld [vmem:[%s5376] sm:%s2660]
    %s5378 = sshllo.u32 0, 2
    %s5379 = smul.addr 2, 453
    %s5380 = scalar_lea.vmem %s1, %s5379
    %5381 = vst [vmem:[%s5380] sm:%s5378] %v5377
    %s5382 = scalar_lea.vmem [#allocation2], 3632
    %v5383 = vld [vmem:[%s5382] sm:%s2660]
    %s5384 = sshllo.u32 0, 2
    %s5385 = smul.addr 2, 454
    %s5386 = scalar_lea.vmem %s1, %s5385
    %5387 = vst [vmem:[%s5386] sm:%s5384] %v5383
    %s5388 = scalar_lea.vmem [#allocation2], 3640
    %v5389 = vld [vmem:[%s5388] sm:%s2660]
    %s5390 = sshllo.u32 0, 2
    %s5391 = smul.addr 2, 455
    %s5392 = scalar_lea.vmem %s1, %s5391
    %5393 = vst [vmem:[%s5392] sm:%s5390] %v5389
    %s5394 = scalar_lea.vmem [#allocation2], 3648
    %v5395 = vld [vmem:[%s5394] sm:%s2660]
    %s5396 = sshllo.u32 0, 2
    %s5397 = smul.addr 2, 456
    %s5398 = scalar_lea.vmem %s1, %s5397
    %5399 = vst [vmem:[%s5398] sm:%s5396] %v5395
    %s5400 = scalar_lea.vmem [#allocation2], 3656
    %v5401 = vld [vmem:[%s5400] sm:%s2660]
    %s5402 = sshllo.u32 0, 2
    %s5403 = smul.addr 2, 457
    %s5404 = scalar_lea.vmem %s1, %s5403
    %5405 = vst [vmem:[%s5404] sm:%s5402] %v5401
    %s5406 = scalar_lea.vmem [#allocation2], 3664
    %v5407 = vld [vmem:[%s5406] sm:%s2660]
    %s5408 = sshllo.u32 0, 2
    %s5409 = smul.addr 2, 458
    %s5410 = scalar_lea.vmem %s1, %s5409
    %5411 = vst [vmem:[%s5410] sm:%s5408] %v5407
    %s5412 = scalar_lea.vmem [#allocation2], 3672
    %v5413 = vld [vmem:[%s5412] sm:%s2660]
    %s5414 = sshllo.u32 0, 2
    %s5415 = smul.addr 2, 459
    %s5416 = scalar_lea.vmem %s1, %s5415
    %5417 = vst [vmem:[%s5416] sm:%s5414] %v5413
    %s5418 = scalar_lea.vmem [#allocation2], 3680
    %v5419 = vld [vmem:[%s5418] sm:%s2660]
    %s5420 = sshllo.u32 0, 2
    %s5421 = smul.addr 2, 460
    %s5422 = scalar_lea.vmem %s1, %s5421
    %5423 = vst [vmem:[%s5422] sm:%s5420] %v5419
    %s5424 = scalar_lea.vmem [#allocation2], 3688
    %v5425 = vld [vmem:[%s5424] sm:%s2660]
    %s5426 = sshllo.u32 0, 2
    %s5427 = smul.addr 2, 461
    %s5428 = scalar_lea.vmem %s1, %s5427
    %5429 = vst [vmem:[%s5428] sm:%s5426] %v5425
    %s5430 = scalar_lea.vmem [#allocation2], 3696
    %v5431 = vld [vmem:[%s5430] sm:%s2660]
    %s5432 = sshllo.u32 0, 2
    %s5433 = smul.addr 2, 462
    %s5434 = scalar_lea.vmem %s1, %s5433
    %5435 = vst [vmem:[%s5434] sm:%s5432] %v5431
    %s5436 = scalar_lea.vmem [#allocation2], 3704
    %v5437 = vld [vmem:[%s5436] sm:%s2660]
    %s5438 = sshllo.u32 0, 2
    %s5439 = smul.addr 2, 463
    %s5440 = scalar_lea.vmem %s1, %s5439
    %5441 = vst [vmem:[%s5440] sm:%s5438] %v5437
    %s5442 = scalar_lea.vmem [#allocation2], 3712
    %v5443 = vld [vmem:[%s5442] sm:%s2660]
    %s5444 = sshllo.u32 0, 2
    %s5445 = smul.addr 2, 464
    %s5446 = scalar_lea.vmem %s1, %s5445
    %5447 = vst [vmem:[%s5446] sm:%s5444] %v5443
    %s5448 = scalar_lea.vmem [#allocation2], 3720
    %v5449 = vld [vmem:[%s5448] sm:%s2660]
    %s5450 = sshllo.u32 0, 2
    %s5451 = smul.addr 2, 465
    %s5452 = scalar_lea.vmem %s1, %s5451
    %5453 = vst [vmem:[%s5452] sm:%s5450] %v5449
    %s5454 = scalar_lea.vmem [#allocation2], 3728
    %v5455 = vld [vmem:[%s5454] sm:%s2660]
    %s5456 = sshllo.u32 0, 2
    %s5457 = smul.addr 2, 466
    %s5458 = scalar_lea.vmem %s1, %s5457
    %5459 = vst [vmem:[%s5458] sm:%s5456] %v5455
    %s5460 = scalar_lea.vmem [#allocation2], 3736
    %v5461 = vld [vmem:[%s5460] sm:%s2660]
    %s5462 = sshllo.u32 0, 2
    %s5463 = smul.addr 2, 467
    %s5464 = scalar_lea.vmem %s1, %s5463
    %5465 = vst [vmem:[%s5464] sm:%s5462] %v5461
    %s5466 = scalar_lea.vmem [#allocation2], 3744
    %v5467 = vld [vmem:[%s5466] sm:%s2660]
    %s5468 = sshllo.u32 0, 2
    %s5469 = smul.addr 2, 468
    %s5470 = scalar_lea.vmem %s1, %s5469
    %5471 = vst [vmem:[%s5470] sm:%s5468] %v5467
    %s5472 = scalar_lea.vmem [#allocation2], 3752
    %v5473 = vld [vmem:[%s5472] sm:%s2660]
    %s5474 = sshllo.u32 0, 2
    %s5475 = smul.addr 2, 469
    %s5476 = scalar_lea.vmem %s1, %s5475
    %5477 = vst [vmem:[%s5476] sm:%s5474] %v5473
    %s5478 = scalar_lea.vmem [#allocation2], 3760
    %v5479 = vld [vmem:[%s5478] sm:%s2660]
    %s5480 = sshllo.u32 0, 2
    %s5481 = smul.addr 2, 470
    %s5482 = scalar_lea.vmem %s1, %s5481
    %5483 = vst [vmem:[%s5482] sm:%s5480] %v5479
    %s5484 = scalar_lea.vmem [#allocation2], 3768
    %v5485 = vld [vmem:[%s5484] sm:%s2660]
    %s5486 = sshllo.u32 0, 2
    %s5487 = smul.addr 2, 471
    %s5488 = scalar_lea.vmem %s1, %s5487
    %5489 = vst [vmem:[%s5488] sm:%s5486] %v5485
    %s5490 = scalar_lea.vmem [#allocation2], 3776
    %v5491 = vld [vmem:[%s5490] sm:%s2660]
    %s5492 = sshllo.u32 0, 2
    %s5493 = smul.addr 2, 472
    %s5494 = scalar_lea.vmem %s1, %s5493
    %5495 = vst [vmem:[%s5494] sm:%s5492] %v5491
    %s5496 = scalar_lea.vmem [#allocation2], 3784
    %v5497 = vld [vmem:[%s5496] sm:%s2660]
    %s5498 = sshllo.u32 0, 2
    %s5499 = smul.addr 2, 473
    %s5500 = scalar_lea.vmem %s1, %s5499
    %5501 = vst [vmem:[%s5500] sm:%s5498] %v5497
    %s5502 = scalar_lea.vmem [#allocation2], 3792
    %v5503 = vld [vmem:[%s5502] sm:%s2660]
    %s5504 = sshllo.u32 0, 2
    %s5505 = smul.addr 2, 474
    %s5506 = scalar_lea.vmem %s1, %s5505
    %5507 = vst [vmem:[%s5506] sm:%s5504] %v5503
    %s5508 = scalar_lea.vmem [#allocation2], 3800
    %v5509 = vld [vmem:[%s5508] sm:%s2660]
    %s5510 = sshllo.u32 0, 2
    %s5511 = smul.addr 2, 475
    %s5512 = scalar_lea.vmem %s1, %s5511
    %5513 = vst [vmem:[%s5512] sm:%s5510] %v5509
    %s5514 = scalar_lea.vmem [#allocation2], 3808
    %v5515 = vld [vmem:[%s5514] sm:%s2660]
    %s5516 = sshllo.u32 0, 2
    %s5517 = smul.addr 2, 476
    %s5518 = scalar_lea.vmem %s1, %s5517
    %5519 = vst [vmem:[%s5518] sm:%s5516] %v5515
    %s5520 = scalar_lea.vmem [#allocation2], 3816
    %v5521 = vld [vmem:[%s5520] sm:%s2660]
    %s5522 = sshllo.u32 0, 2
    %s5523 = smul.addr 2, 477
    %s5524 = scalar_lea.vmem %s1, %s5523
    %5525 = vst [vmem:[%s5524] sm:%s5522] %v5521
    %s5526 = scalar_lea.vmem [#allocation2], 3824
    %v5527 = vld [vmem:[%s5526] sm:%s2660]
    %s5528 = sshllo.u32 0, 2
    %s5529 = smul.addr 2, 478
    %s5530 = scalar_lea.vmem %s1, %s5529
    %5531 = vst [vmem:[%s5530] sm:%s5528] %v5527
    %s5532 = scalar_lea.vmem [#allocation2], 3832
    %v5533 = vld [vmem:[%s5532] sm:%s2660]
    %s5534 = sshllo.u32 0, 2
    %s5535 = smul.addr 2, 479
    %s5536 = scalar_lea.vmem %s1, %s5535
    %5537 = vst [vmem:[%s5536] sm:%s5534] %v5533
    %s5538 = scalar_lea.vmem [#allocation2], 3840
    %v5539 = vld [vmem:[%s5538] sm:%s2660]
    %s5540 = sshllo.u32 0, 2
    %s5541 = smul.addr 2, 480
    %s5542 = scalar_lea.vmem %s1, %s5541
    %5543 = vst [vmem:[%s5542] sm:%s5540] %v5539
    %s5544 = scalar_lea.vmem [#allocation2], 3848
    %v5545 = vld [vmem:[%s5544] sm:%s2660]
    %s5546 = sshllo.u32 0, 2
    %s5547 = smul.addr 2, 481
    %s5548 = scalar_lea.vmem %s1, %s5547
    %5549 = vst [vmem:[%s5548] sm:%s5546] %v5545
    %s5550 = scalar_lea.vmem [#allocation2], 3856
    %v5551 = vld [vmem:[%s5550] sm:%s2660]
    %s5552 = sshllo.u32 0, 2
    %s5553 = smul.addr 2, 482
    %s5554 = scalar_lea.vmem %s1, %s5553
    %5555 = vst [vmem:[%s5554] sm:%s5552] %v5551
    %s5556 = scalar_lea.vmem [#allocation2], 3864
    %v5557 = vld [vmem:[%s5556] sm:%s2660]
    %s5558 = sshllo.u32 0, 2
    %s5559 = smul.addr 2, 483
    %s5560 = scalar_lea.vmem %s1, %s5559
    %5561 = vst [vmem:[%s5560] sm:%s5558] %v5557
    %s5562 = scalar_lea.vmem [#allocation2], 3872
    %v5563 = vld [vmem:[%s5562] sm:%s2660]
    %s5564 = sshllo.u32 0, 2
    %s5565 = smul.addr 2, 484
    %s5566 = scalar_lea.vmem %s1, %s5565
    %5567 = vst [vmem:[%s5566] sm:%s5564] %v5563
    %s5568 = scalar_lea.vmem [#allocation2], 3880
    %v5569 = vld [vmem:[%s5568] sm:%s2660]
    %s5570 = sshllo.u32 0, 2
    %s5571 = smul.addr 2, 485
    %s5572 = scalar_lea.vmem %s1, %s5571
    %5573 = vst [vmem:[%s5572] sm:%s5570] %v5569
    %s5574 = scalar_lea.vmem [#allocation2], 3888
    %v5575 = vld [vmem:[%s5574] sm:%s2660]
    %s5576 = sshllo.u32 0, 2
    %s5577 = smul.addr 2, 486
    %s5578 = scalar_lea.vmem %s1, %s5577
    %5579 = vst [vmem:[%s5578] sm:%s5576] %v5575
    %s5580 = scalar_lea.vmem [#allocation2], 3896
    %v5581 = vld [vmem:[%s5580] sm:%s2660]
    %s5582 = sshllo.u32 0, 2
    %s5583 = smul.addr 2, 487
    %s5584 = scalar_lea.vmem %s1, %s5583
    %5585 = vst [vmem:[%s5584] sm:%s5582] %v5581
    %s5586 = scalar_lea.vmem [#allocation2], 3904
    %v5587 = vld [vmem:[%s5586] sm:%s2660]
    %s5588 = sshllo.u32 0, 2
    %s5589 = smul.addr 2, 488
    %s5590 = scalar_lea.vmem %s1, %s5589
    %5591 = vst [vmem:[%s5590] sm:%s5588] %v5587
    %s5592 = scalar_lea.vmem [#allocation2], 3912
    %v5593 = vld [vmem:[%s5592] sm:%s2660]
    %s5594 = sshllo.u32 0, 2
    %s5595 = smul.addr 2, 489
    %s5596 = scalar_lea.vmem %s1, %s5595
    %5597 = vst [vmem:[%s5596] sm:%s5594] %v5593
    %s5598 = scalar_lea.vmem [#allocation2], 3920
    %v5599 = vld [vmem:[%s5598] sm:%s2660]
    %s5600 = sshllo.u32 0, 2
    %s5601 = smul.addr 2, 490
    %s5602 = scalar_lea.vmem %s1, %s5601
    %5603 = vst [vmem:[%s5602] sm:%s5600] %v5599
    %s5604 = scalar_lea.vmem [#allocation2], 3928
    %v5605 = vld [vmem:[%s5604] sm:%s2660]
    %s5606 = sshllo.u32 0, 2
    %s5607 = smul.addr 2, 491
    %s5608 = scalar_lea.vmem %s1, %s5607
    %5609 = vst [vmem:[%s5608] sm:%s5606] %v5605
    %s5610 = scalar_lea.vmem [#allocation2], 3936
    %v5611 = vld [vmem:[%s5610] sm:%s2660]
    %s5612 = sshllo.u32 0, 2
    %s5613 = smul.addr 2, 492
    %s5614 = scalar_lea.vmem %s1, %s5613
    %5615 = vst [vmem:[%s5614] sm:%s5612] %v5611
    %s5616 = scalar_lea.vmem [#allocation2], 3944
    %v5617 = vld [vmem:[%s5616] sm:%s2660]
    %s5618 = sshllo.u32 0, 2
    %s5619 = smul.addr 2, 493
    %s5620 = scalar_lea.vmem %s1, %s5619
    %5621 = vst [vmem:[%s5620] sm:%s5618] %v5617
    %s5622 = scalar_lea.vmem [#allocation2], 3952
    %v5623 = vld [vmem:[%s5622] sm:%s2660]
    %s5624 = sshllo.u32 0, 2
    %s5625 = smul.addr 2, 494
    %s5626 = scalar_lea.vmem %s1, %s5625
    %5627 = vst [vmem:[%s5626] sm:%s5624] %v5623
    %s5628 = scalar_lea.vmem [#allocation2], 3960
    %v5629 = vld [vmem:[%s5628] sm:%s2660]
    %s5630 = sshllo.u32 0, 2
    %s5631 = smul.addr 2, 495
    %s5632 = scalar_lea.vmem %s1, %s5631
    %5633 = vst [vmem:[%s5632] sm:%s5630] %v5629
    %s5634 = scalar_lea.vmem [#allocation2], 3968
    %v5635 = vld [vmem:[%s5634] sm:%s2660]
    %s5636 = sshllo.u32 0, 2
    %s5637 = smul.addr 2, 496
    %s5638 = scalar_lea.vmem %s1, %s5637
    %5639 = vst [vmem:[%s5638] sm:%s5636] %v5635
    %s5640 = scalar_lea.vmem [#allocation2], 3976
    %v5641 = vld [vmem:[%s5640] sm:%s2660]
    %s5642 = sshllo.u32 0, 2
    %s5643 = smul.addr 2, 497
    %s5644 = scalar_lea.vmem %s1, %s5643
    %5645 = vst [vmem:[%s5644] sm:%s5642] %v5641
    %s5646 = scalar_lea.vmem [#allocation2], 3984
    %v5647 = vld [vmem:[%s5646] sm:%s2660]
    %s5648 = sshllo.u32 0, 2
    %s5649 = smul.addr 2, 498
    %s5650 = scalar_lea.vmem %s1, %s5649
    %5651 = vst [vmem:[%s5650] sm:%s5648] %v5647
    %s5652 = scalar_lea.vmem [#allocation2], 3992
    %v5653 = vld [vmem:[%s5652] sm:%s2660]
    %s5654 = sshllo.u32 0, 2
    %s5655 = smul.addr 2, 499
    %s5656 = scalar_lea.vmem %s1, %s5655
    %5657 = vst [vmem:[%s5656] sm:%s5654] %v5653
    %s5658 = scalar_lea.vmem [#allocation2], 4000
    %v5659 = vld [vmem:[%s5658] sm:%s2660]
    %s5660 = sshllo.u32 0, 2
    %s5661 = smul.addr 2, 500
    %s5662 = scalar_lea.vmem %s1, %s5661
    %5663 = vst [vmem:[%s5662] sm:%s5660] %v5659
    %s5664 = scalar_lea.vmem [#allocation2], 4008
    %v5665 = vld [vmem:[%s5664] sm:%s2660]
    %s5666 = sshllo.u32 0, 2
    %s5667 = smul.addr 2, 501
    %s5668 = scalar_lea.vmem %s1, %s5667
    %5669 = vst [vmem:[%s5668] sm:%s5666] %v5665
    %s5670 = scalar_lea.vmem [#allocation2], 4016
    %v5671 = vld [vmem:[%s5670] sm:%s2660]
    %s5672 = sshllo.u32 0, 2
    %s5673 = smul.addr 2, 502
    %s5674 = scalar_lea.vmem %s1, %s5673
    %5675 = vst [vmem:[%s5674] sm:%s5672] %v5671
    %s5676 = scalar_lea.vmem [#allocation2], 4024
    %v5677 = vld [vmem:[%s5676] sm:%s2660]
    %s5678 = sshllo.u32 0, 2
    %s5679 = smul.addr 2, 503
    %s5680 = scalar_lea.vmem %s1, %s5679
    %5681 = vst [vmem:[%s5680] sm:%s5678] %v5677
    %s5682 = scalar_lea.vmem [#allocation2], 4032
    %v5683 = vld [vmem:[%s5682] sm:%s2660]
    %s5684 = sshllo.u32 0, 2
    %s5685 = smul.addr 2, 504
    %s5686 = scalar_lea.vmem %s1, %s5685
    %5687 = vst [vmem:[%s5686] sm:%s5684] %v5683
    %s5688 = scalar_lea.vmem [#allocation2], 4040
    %v5689 = vld [vmem:[%s5688] sm:%s2660]
    %s5690 = sshllo.u32 0, 2
    %s5691 = smul.addr 2, 505
    %s5692 = scalar_lea.vmem %s1, %s5691
    %5693 = vst [vmem:[%s5692] sm:%s5690] %v5689
    %s5694 = scalar_lea.vmem [#allocation2], 4048
    %v5695 = vld [vmem:[%s5694] sm:%s2660]
    %s5696 = sshllo.u32 0, 2
    %s5697 = smul.addr 2, 506
    %s5698 = scalar_lea.vmem %s1, %s5697
    %5699 = vst [vmem:[%s5698] sm:%s5696] %v5695
    %s5700 = scalar_lea.vmem [#allocation2], 4056
    %v5701 = vld [vmem:[%s5700] sm:%s2660]
    %s5702 = sshllo.u32 0, 2
    %s5703 = smul.addr 2, 507
    %s5704 = scalar_lea.vmem %s1, %s5703
    %5705 = vst [vmem:[%s5704] sm:%s5702] %v5701
    %s5706 = scalar_lea.vmem [#allocation2], 4064
    %v5707 = vld [vmem:[%s5706] sm:%s2660]
    %s5708 = sshllo.u32 0, 2
    %s5709 = smul.addr 2, 508
    %s5710 = scalar_lea.vmem %s1, %s5709
    %5711 = vst [vmem:[%s5710] sm:%s5708] %v5707
    %s5712 = scalar_lea.vmem [#allocation2], 4072
    %v5713 = vld [vmem:[%s5712] sm:%s2660]
    %s5714 = sshllo.u32 0, 2
    %s5715 = smul.addr 2, 509
    %s5716 = scalar_lea.vmem %s1, %s5715
    %5717 = vst [vmem:[%s5716] sm:%s5714] %v5713
    %s5718 = scalar_lea.vmem [#allocation2], 4080
    %v5719 = vld [vmem:[%s5718] sm:%s2660]
    %s5720 = sshllo.u32 0, 2
    %s5721 = smul.addr 2, 510
    %s5722 = scalar_lea.vmem %s1, %s5721
    %5723 = vst [vmem:[%s5722] sm:%s5720] %v5719
    %s5724 = scalar_lea.vmem [#allocation2], 4088
    %v5725 = vld [vmem:[%s5724] sm:%s2660]
    %s5726 = sshllo.u32 0, 2
    %s5727 = smul.addr 2, 511
    %s5728 = scalar_lea.vmem %s1, %s5727
    %5729 = vst [vmem:[%s5728] sm:%s5726] %v5725
    %5730 = vsyncpa [#allocation1], 1

// kernel: i3d_forward.1
$region0: #{i3d_forward.1}
  #allocation0 [shape = 'u32[]', space=smem, size = 0x4, offset = 0x4, fixed_abs, tag = 'smem constant byte address 0x4 - core index']
  #allocation1 [shape = 'u32[144,128]{1,0:T(1,128)}', space=vmem, size = 0x12000, scoped, tag = 'internal scratch']
  %s0 = inlined_call_operand.vmem [shape: f32[8,256], index: 0, kind: input, shape index: {}]
  %s1 = inlined_call_operand.vmem [shape: f32[32,128], index: 1, kind: input, shape index: {}]
  %s2 = inlined_call_operand.vmem [shape: f32[16,10,16], index: 2, kind: input, shape index: {}]
  %s3 = inlined_call_operand.vmem [shape: bf16[32,864], index: 3, kind: input, shape index: {}]
  %s4 = inlined_call_operand.vmem [shape: f32[10,2], index: 4, kind: output, shape index: {}]
  %s5 = sld [smem:[#allocation0]]
  $region26: #{i3d_forward.1} parent=0
    _
  %s7 = ssub.s32 1, %s5
  %s8 = scalar_select 0, %s7, %s5
  // Predicated region
  $region2: #{i3d_forward.1} parent=0 // pred_check
    _
  $region3: #{i3d_forward.1} parent=0 // pred_check_branch
    %10 = sbr.rel (0) target = $region5
  $region4: #{i3d_forward.1} parent=0 // pred_region
    _
  $region5: #{i3d_forward.1} parent=0 // pred_fallthru
    _
  // Predicated region
  $region6: #{i3d_forward.1} parent=0 // pred_check
    _
  $region7: #{i3d_forward.1} parent=0 // pred_check_branch
    %12 = sbr.rel (0) target = $region9
  $region8: #{i3d_forward.1} parent=0 // pred_region
    _
  $region9: #{i3d_forward.1} parent=0 // pred_fallthru
    _
  // Predicated region
  $region10: #{i3d_forward.1} parent=0 // pred_check
    _
  $region11: #{i3d_forward.1} parent=0 // pred_check_branch
    %14 = sbr.rel (0) target = $region13
  $region12: #{i3d_forward.1} parent=0 // pred_region
    _
  $region13: #{i3d_forward.1} parent=0 // pred_fallthru
    _
  // Predicated region
  $region14: #{i3d_forward.1} parent=0 // pred_check
    _
  $region15: #{i3d_forward.1} parent=0 // pred_check_branch
    %16 = sbr.rel (0) target = $region17
  $region16: #{i3d_forward.1} parent=0 // pred_region
    _
  $region17: #{i3d_forward.1} parent=0 // pred_fallthru
    _
  %v18 = vld [vmem:[%s1] sm:$0xff]
  %v19 = vld [vmem:[%s1 + $0x8] sm:$0xff]
  %v20 = vld [vmem:[%s1 + $0x10] sm:$0xff]
  %v21 = vld [vmem:[%s1 + $0x18] sm:$0xff]
  %v22 = vld [vmem:[%s0] sm:$0xff]
  %v23 = vld [vmem:[%s0 + $0x8] sm:$0xff]
  %v24 = vrot.slane %v22, 4
  %v25 = vadd.f32 %v22, %v24
  %v26 = vrot.slane %v25, 2
  %v27 = vadd.f32 %v25, %v26
  %v28 = vrot.slane %v27, 1
  %v29 = vadd.f32 %v27, %v28
  %v30 = vrot.slane %v23, 4
  %v31 = vadd.f32 %v23, %v30
  %v32 = vrot.slane %v31, 2
  %v33 = vadd.f32 %v31, %v32
  %v34 = vrot.slane %v33, 1
  %v35 = vadd.f32 %v33, %v34
  %v36 = vrcp.pop 8.0
  %v37 = vmul.f32 %v29, %v36
  %v38 = vmul.f32 %v35, %v36
  %40 = vset.pattern.permute.xlu0 5
  %41 = vperm.xlu0 %40, %v18
  %v42 = vpop.permute.xlu0 %41
  %v44 = vmul.f32 %v42, %v37
  %v45 = vmul.f32 %v42, %v38
  %v46 = vmax.f32 %v44, 0.0
  %v47 = vmax.f32 %v45, 0.0
  %vm48 = vcmask 31744
  %v49 = vsel %vm48, %v18, 0
  %vm51 = vcmask 1043456
  %v53 = vsel %vm51, %v46, 0
  %v56 = vsel %vm51, %v47, 0
  %58 = vmatprep.subr.mxu0 %v56
  %59 = vmatpush1.msra.mxu0 %v53
  %60 = vmatprep.subr.mxu0 0.0
  %61 = vmatpush1.msra.mxu0 0.0
  %62 = vmatprep.subr.mxu0 0.0
  %63 = vmatpush1.msra.mxu0 0.0
  %64 = vmatprep.subr.mxu0 0.0
  %65 = vmatpush1.msra.mxu0 0.0
  %66 = vmatprep.subr.mxu0 0.0
  %67 = vmatpush1.msra.mxu0 0.0
  %68 = vmatprep.subr.mxu0 0.0
  %69 = vmatpush1.msra.mxu0 0.0
  %70 = vmatprep.subr.mxu0 0.0
  %71 = vmatpush1.msra.mxu0 0.0
  %72 = vmatprep.subr.mxu0 0.0
  %73 = vmatpush1.msra.mxu0 0.0
  %74 = vmatprep.subr.mxu0 0.0
  %75 = vmatpush1.msra.mxu0 0.0
  %76 = vmatprep.subr.mxu0 0.0
  %77 = vmatpush1.msra.mxu0 0.0
  %78 = vmatprep.subr.mxu0 0.0
  %79 = vmatpush1.msra.mxu0 0.0
  %80 = vmatprep.subr.mxu0 0.0
  %81 = vmatpush1.msra.mxu0 0.0
  %82 = vmatprep.subr.mxu0 0.0
  %83 = vmatpush1.msra.mxu0 0.0
  %84 = vmatprep.subr.mxu0 0.0
  %85 = vmatpush1.msra.mxu0 0.0
  %86 = vmatprep.subr.mxu0 0.0
  %87 = vmatpush1.msra.mxu0 0.0
  %88 = vmatprep.subr.mxu0 0.0
  %89 = vmatpush1.msra.mxu0 0.0
  %90 = vmatprep.subr.mxu0 0.0
  %91 = vmatpush1.msra.mxu0 0.0
  %92 = vmatprep.subr.mxu0 0.0
  %93 = vmatpush1.msra.mxu0 0.0
  %94 = vmatprep.subr.mxu0 0.0
  %95 = vmatpush1.msra.mxu0 0.0
  %96 = vmatprep.subr.mxu0 0.0
  %97 = vmatpush1.msra.mxu0 0.0
  %98 = vmatprep.subr.mxu0 0.0
  %99 = vmatpush1.msra.mxu0 0.0
  %100 = vmatprep.subr.mxu0 0.0
  %101 = vmatpush1.msra.mxu0 0.0
  %102 = vmatprep.subr.mxu0 0.0
  %103 = vmatpush1.msra.mxu0 0.0
  %104 = vmatprep.subr.mxu0 0.0
  %105 = vmatpush1.msra.mxu0 0.0
  %106 = vmatprep.subr.mxu0 0.0
  %107 = vmatpush1.msra.mxu0 0.0
  %108 = vmatprep.subr.mxu0 0.0
  %109 = vmatpush1.msra.mxu0 0.0
  %110 = vmatprep.subr.mxu0 0.0
  %111 = vmatpush1.msra.mxu0 0.0
  %112 = vmatprep.subr.mxu0 0.0
  %113 = vmatpush1.msra.mxu0 0.0
  %114 = vmatprep.subr.mxu0 0.0
  %115 = vmatpush1.msra.mxu0 0.0
  %116 = vmatprep.subr.mxu0 0.0
  %117 = vmatpush1.msra.mxu0 0.0
  %118 = vmatprep.subr.mxu0 0.0
  %119 = vmatpush1.msra.mxu0 0.0
  %120 = vmatprep.subr.mxu0 0.0
  %121 = vmatpush1.msra.mxu0 0.0
  %122 = vmatprep.mubr.f32.mxu0 0.0
  %123 = vmatmul.mubr.f32.gmra.mrb[0].mxu0 %v49
  %v124 = vpop.f32.mrb[0].mxu0
  %v125 = vadd.f32 0.0, %v124
  %v126 = vpop.f32.mrb[0].mxu0
  %v127 = vadd.f32 0.0, %v126
  %128 = vdwg.mxu0
  %v129 = vmul.f32 %v125, %v22
  %v130 = vmul.f32 %v127, %v23
  %v131 = vrot.slane %v129, 4
  %v132 = vadd.f32 %v129, %v131
  %v133 = vrot.slane %v132, 2
  %v134 = vadd.f32 %v132, %v133
  %v135 = vrot.slane %v134, 1
  %v136 = vadd.f32 %v134, %v135
  %v137 = vrot.slane %v130, 4
  %v138 = vadd.f32 %v130, %v137
  %v139 = vrot.slane %v138, 2
  %v140 = vadd.f32 %v138, %v139
  %v141 = vrot.slane %v140, 1
  %v142 = vadd.f32 %v140, %v141
  %143 = vset.pattern.permute.xlu0 4
  %144 = vperm.xlu0 %143, %v18
  %v145 = vpop.permute.xlu0 %144
  %v147 = vmul.f32 %v145, %v136
  %v148 = vmul.f32 %v145, %v142
  %150 = vrot.lane.b32.xlu0 %v147, 96
  %v151 = vpop.permute.xlu0 %150
  %v153 = vadd.f32 %v147, %v151
  %155 = vrot.lane.b32.xlu0 %v148, 96
  %v156 = vpop.permute.xlu0 %155
  %v158 = vadd.f32 %v148, %v156
  %160 = vrot.lane.b32.xlu0 %v153, 64
  %v161 = vpop.permute.xlu0 %160
  %v163 = vadd.f32 %v153, %v161
  %165 = vrot.lane.b32.xlu0 %v158, 64
  %v166 = vpop.permute.xlu0 %165
  %v168 = vadd.f32 %v158, %v166
  %v169 = vadd.f32 %v163, %v168
  %v170 = vmul.f32 %v169, 0.125
  %171 = vrot.lane.b32.xlu0 %v18, 110
  %v172 = vpop.permute.xlu0 %171
  %v173 = vsel %vm48, %v172, 0
  %v176 = vsel %vm51, %v170, 0
  %178 = vmatprep.subr.mxu0 0.0
  %179 = vmatpush1.msra.mxu0 %v176
  %180 = vmatprep.subr.mxu0 0.0
  %181 = vmatpush1.msra.mxu0 0.0
  %182 = vmatprep.subr.mxu0 0.0
  %183 = vmatpush1.msra.mxu0 0.0
  %184 = vmatprep.subr.mxu0 0.0
  %185 = vmatpush1.msra.mxu0 0.0
  %186 = vmatprep.subr.mxu0 0.0
  %187 = vmatpush1.msra.mxu0 0.0
  %188 = vmatprep.subr.mxu0 0.0
  %189 = vmatpush1.msra.mxu0 0.0
  %190 = vmatprep.subr.mxu0 0.0
  %191 = vmatpush1.msra.mxu0 0.0
  %192 = vmatprep.subr.mxu0 0.0
  %193 = vmatpush1.msra.mxu0 0.0
  %194 = vmatprep.subr.mxu0 0.0
  %195 = vmatpush1.msra.mxu0 0.0
  %196 = vmatprep.subr.mxu0 0.0
  %197 = vmatpush1.msra.mxu0 0.0
  %198 = vmatprep.subr.mxu0 0.0
  %199 = vmatpush1.msra.mxu0 0.0
  %200 = vmatprep.subr.mxu0 0.0
  %201 = vmatpush1.msra.mxu0 0.0
  %202 = vmatprep.subr.mxu0 0.0
  %203 = vmatpush1.msra.mxu0 0.0
  %204 = vmatprep.subr.mxu0 0.0
  %205 = vmatpush1.msra.mxu0 0.0
  %206 = vmatprep.subr.mxu0 0.0
  %207 = vmatpush1.msra.mxu0 0.0
  %208 = vmatprep.subr.mxu0 0.0
  %209 = vmatpush1.msra.mxu0 0.0
  %210 = vmatprep.subr.mxu0 0.0
  %211 = vmatpush1.msra.mxu0 0.0
  %212 = vmatprep.subr.mxu0 0.0
  %213 = vmatpush1.msra.mxu0 0.0
  %214 = vmatprep.subr.mxu0 0.0
  %215 = vmatpush1.msra.mxu0 0.0
  %216 = vmatprep.subr.mxu0 0.0
  %217 = vmatpush1.msra.mxu0 0.0
  %218 = vmatprep.subr.mxu0 0.0
  %219 = vmatpush1.msra.mxu0 0.0
  %220 = vmatprep.subr.mxu0 0.0
  %221 = vmatpush1.msra.mxu0 0.0
  %222 = vmatprep.subr.mxu0 0.0
  %223 = vmatpush1.msra.mxu0 0.0
  %224 = vmatprep.subr.mxu0 0.0
  %225 = vmatpush1.msra.mxu0 0.0
  %226 = vmatprep.subr.mxu0 0.0
  %227 = vmatpush1.msra.mxu0 0.0
  %228 = vmatprep.subr.mxu0 0.0
  %229 = vmatpush1.msra.mxu0 0.0
  %230 = vmatprep.subr.mxu0 0.0
  %231 = vmatpush1.msra.mxu0 0.0
  %232 = vmatprep.subr.mxu0 0.0
  %233 = vmatpush1.msra.mxu0 0.0
  %234 = vmatprep.subr.mxu0 0.0
  %235 = vmatpush1.msra.mxu0 0.0
  %236 = vmatprep.subr.mxu0 0.0
  %237 = vmatpush1.msra.mxu0 0.0
  %238 = vmatprep.subr.mxu0 0.0
  %239 = vmatpush1.msra.mxu0 0.0
  %240 = vmatprep.subr.mxu0 0.0
  %241 = vmatpush1.msra.mxu0 0.0
  %242 = vmatprep.mubr.f32.mxu0 0.0
  %243 = vmatmul.mubr.f32.gmra.mrb[0].mxu0 %v173
  %v244 = vpop.f32.mrb[0].mxu0
  %v245 = vadd.f32 0.0, %v244
  %v246 = vpop.f32.mrb[0].mxu0
  %247 = vdwg.mxu0
  %v248 = vmax.f32 %v245, 0.0
  %249 = vrot.lane.b32.xlu0 %v18, 122
  %v250 = vpop.permute.xlu0 %249
  %vm251 = vcmask 64512
  %v252 = vsel %vm251, %v250, 0
  %254 = vmatprep.subr.mxu0 0.0
  %255 = vmatpush1.msra.mxu0 %v248
  %256 = vmatprep.subr.mxu0 0.0
  %257 = vmatpush1.msra.mxu0 0.0
  %258 = vmatprep.subr.mxu0 0.0
  %259 = vmatpush1.msra.mxu0 0.0
  %260 = vmatprep.subr.mxu0 0.0
  %261 = vmatpush1.msra.mxu0 0.0
  %262 = vmatprep.subr.mxu0 0.0
  %263 = vmatpush1.msra.mxu0 0.0
  %264 = vmatprep.subr.mxu0 0.0
  %265 = vmatpush1.msra.mxu0 0.0
  %266 = vmatprep.subr.mxu0 0.0
  %267 = vmatpush1.msra.mxu0 0.0
  %268 = vmatprep.subr.mxu0 0.0
  %269 = vmatpush1.msra.mxu0 0.0
  %270 = vmatprep.subr.mxu0 0.0
  %271 = vmatpush1.msra.mxu0 0.0
  %272 = vmatprep.subr.mxu0 0.0
  %273 = vmatpush1.msra.mxu0 0.0
  %274 = vmatprep.subr.mxu0 0.0
  %275 = vmatpush1.msra.mxu0 0.0
  %276 = vmatprep.subr.mxu0 0.0
  %277 = vmatpush1.msra.mxu0 0.0
  %278 = vmatprep.subr.mxu0 0.0
  %279 = vmatpush1.msra.mxu0 0.0
  %280 = vmatprep.subr.mxu0 0.0
  %281 = vmatpush1.msra.mxu0 0.0
  %282 = vmatprep.subr.mxu0 0.0
  %283 = vmatpush1.msra.mxu0 0.0
  %284 = vmatprep.subr.mxu0 0.0
  %285 = vmatpush1.msra.mxu0 0.0
  %286 = vmatprep.subr.mxu0 0.0
  %287 = vmatpush1.msra.mxu0 0.0
  %288 = vmatprep.subr.mxu0 0.0
  %289 = vmatpush1.msra.mxu0 0.0
  %290 = vmatprep.subr.mxu0 0.0
  %291 = vmatpush1.msra.mxu0 0.0
  %292 = vmatprep.subr.mxu0 0.0
  %293 = vmatpush1.msra.mxu0 0.0
  %294 = vmatprep.subr.mxu0 0.0
  %295 = vmatpush1.msra.mxu0 0.0
  %296 = vmatprep.subr.mxu0 0.0
  %297 = vmatpush1.msra.mxu0 0.0
  %298 = vmatprep.subr.mxu0 0.0
  %299 = vmatpush1.msra.mxu0 0.0
  %300 = vmatprep.subr.mxu0 0.0
  %301 = vmatpush1.msra.mxu0 0.0
  %302 = vmatprep.subr.mxu0 0.0
  %303 = vmatpush1.msra.mxu0 0.0
  %304 = vmatprep.subr.mxu0 0.0
  %305 = vmatpush1.msra.mxu0 0.0
  %306 = vmatprep.subr.mxu0 0.0
  %307 = vmatpush1.msra.mxu0 0.0
  %308 = vmatprep.subr.mxu0 0.0
  %309 = vmatpush1.msra.mxu0 0.0
  %310 = vmatprep.subr.mxu0 0.0
  %311 = vmatpush1.msra.mxu0 0.0
  %312 = vmatprep.subr.mxu0 0.0
  %313 = vmatpush1.msra.mxu0 0.0
  %314 = vmatprep.subr.mxu0 0.0
  %315 = vmatpush1.msra.mxu0 0.0
  %316 = vmatprep.subr.mxu0 0.0
  %317 = vmatpush1.msra.mxu0 0.0
  %318 = vmatprep.mubr.f32.mxu0 0.0
  %319 = vmatmul.mubr.f32.gmra.mrb[0].mxu0 %v252
  %v320 = vpop.f32.mrb[0].mxu0
  %v321 = vadd.f32 0.0, %v320
  %v322 = vpop.f32.mrb[0].mxu0
  %323 = vdwg.mxu0
  %v324 = vlaneseq
  %v325 = vshrl.u32 %v324, 7
  %v326 = vsub.s32 0, %v325
  %v327 = vrot.slane %v321, %v326
  %v328 = vmul.f32 %v327, %v147
  %v329 = vlaneseq
  %v330 = vshrl.u32 %v329, 7
  %v331 = vsub.s32 1, %v330
  %v332 = vrot.slane %v321, %v331
  %v333 = vmul.f32 %v332, %v151
  %v334 = vlaneseq
  %v335 = vshrl.u32 %v334, 7
  %v336 = vsub.s32 2, %v335
  %v337 = vrot.slane %v321, %v336
  %338 = vrot.lane.b32.xlu0 %v147, 64
  %v339 = vpop.permute.xlu0 %338
  %v341 = vmul.f32 %v337, %v339
  %v342 = vlaneseq
  %v343 = vshrl.u32 %v342, 7
  %v344 = vsub.s32 3, %v343
  %v345 = vrot.slane %v321, %v344
  %346 = vrot.lane.b32.xlu0 %v147, 32
  %v347 = vpop.permute.xlu0 %346
  %v349 = vmul.f32 %v345, %v347
  %v350 = vlaneseq
  %v351 = vshrl.u32 %v350, 7
  %v352 = vsub.s32 4, %v351
  %v353 = vrot.slane %v321, %v352
  %v354 = vmul.f32 %v353, %v148
  %v355 = vlaneseq
  %v356 = vshrl.u32 %v355, 7
  %v357 = vsub.s32 5, %v356
  %v358 = vrot.slane %v321, %v357
  %v359 = vmul.f32 %v358, %v156
  %v360 = vlaneseq
  %v361 = vshrl.u32 %v360, 7
  %v362 = vsub.s32 6, %v361
  %v363 = vrot.slane %v321, %v362
  %364 = vrot.lane.b32.xlu0 %v148, 64
  %v365 = vpop.permute.xlu0 %364
  %v367 = vmul.f32 %v363, %v365
  %v368 = vlaneseq
  %v369 = vshrl.u32 %v368, 7
  %v370 = vsub.s32 7, %v369
  %v371 = vrot.slane %v321, %v370
  %372 = vrot.lane.b32.xlu0 %v148, 32
  %v373 = vpop.permute.xlu0 %372
  %v375 = vmul.f32 %v371, %v373
  %v376 = vadd.f32 %v328, %v333
  %v377 = vadd.f32 %v341, %v349
  %v378 = vadd.f32 %v354, %v359
  %v379 = vadd.f32 %v367, %v375
  %v380 = vadd.f32 %v376, %v377
  %v381 = vadd.f32 %v378, %v379
  %v382 = vadd.f32 %v380, %v381
  %383 = vrot.lane.b32.xlu0 %v18, 114
  %v384 = vpop.permute.xlu0 %383
  %v385 = vsel %vm48, %v384, 0
  %v388 = vsel %vm51, %v382, 0
  %390 = vmatprep.subr.mxu0 0.0
  %391 = vmatpush1.msra.mxu0 %v388
  %392 = vmatprep.subr.mxu0 0.0
  %393 = vmatpush1.msra.mxu0 0.0
  %394 = vmatprep.subr.mxu0 0.0
  %395 = vmatpush1.msra.mxu0 0.0
  %396 = vmatprep.subr.mxu0 0.0
  %397 = vmatpush1.msra.mxu0 0.0
  %398 = vmatprep.subr.mxu0 0.0
  %399 = vmatpush1.msra.mxu0 0.0
  %400 = vmatprep.subr.mxu0 0.0
  %401 = vmatpush1.msra.mxu0 0.0
  %402 = vmatprep.subr.mxu0 0.0
  %403 = vmatpush1.msra.mxu0 0.0
  %404 = vmatprep.subr.mxu0 0.0
  %405 = vmatpush1.msra.mxu0 0.0
  %406 = vmatprep.subr.mxu0 0.0
  %407 = vmatpush1.msra.mxu0 0.0
  %408 = vmatprep.subr.mxu0 0.0
  %409 = vmatpush1.msra.mxu0 0.0
  %410 = vmatprep.subr.mxu0 0.0
  %411 = vmatpush1.msra.mxu0 0.0
  %412 = vmatprep.subr.mxu0 0.0
  %413 = vmatpush1.msra.mxu0 0.0
  %414 = vmatprep.subr.mxu0 0.0
  %415 = vmatpush1.msra.mxu0 0.0
  %416 = vmatprep.subr.mxu0 0.0
  %417 = vmatpush1.msra.mxu0 0.0
  %418 = vmatprep.subr.mxu0 0.0
  %419 = vmatpush1.msra.mxu0 0.0
  %420 = vmatprep.subr.mxu0 0.0
  %421 = vmatpush1.msra.mxu0 0.0
  %422 = vmatprep.subr.mxu0 0.0
  %423 = vmatpush1.msra.mxu0 0.0
  %424 = vmatprep.subr.mxu0 0.0
  %425 = vmatpush1.msra.mxu0 0.0
  %426 = vmatprep.subr.mxu0 0.0
  %427 = vmatpush1.msra.mxu0 0.0
  %428 = vmatprep.subr.mxu0 0.0
  %429 = vmatpush1.msra.mxu0 0.0
  %430 = vmatprep.subr.mxu0 0.0
  %431 = vmatpush1.msra.mxu0 0.0
  %432 = vmatprep.subr.mxu0 0.0
  %433 = vmatpush1.msra.mxu0 0.0
  %434 = vmatprep.subr.mxu0 0.0
  %435 = vmatpush1.msra.mxu0 0.0
  %436 = vmatprep.subr.mxu0 0.0
  %437 = vmatpush1.msra.mxu0 0.0
  %438 = vmatprep.subr.mxu0 0.0
  %439 = vmatpush1.msra.mxu0 0.0
  %440 = vmatprep.subr.mxu0 0.0
  %441 = vmatpush1.msra.mxu0 0.0
  %442 = vmatprep.subr.mxu0 0.0
  %443 = vmatpush1.msra.mxu0 0.0
  %444 = vmatprep.subr.mxu0 0.0
  %445 = vmatpush1.msra.mxu0 0.0
  %446 = vmatprep.subr.mxu0 0.0
  %447 = vmatpush1.msra.mxu0 0.0
  %448 = vmatprep.subr.mxu0 0.0
  %449 = vmatpush1.msra.mxu0 0.0
  %450 = vmatprep.subr.mxu0 0.0
  %451 = vmatpush1.msra.mxu0 0.0
  %452 = vmatprep.subr.mxu0 0.0
  %453 = vmatpush1.msra.mxu0 0.0
  %454 = vmatprep.mubr.f32.mxu0 0.0
  %455 = vmatmul.mubr.f32.gmra.mrb[0].mxu0 %v385
  %v456 = vpop.f32.mrb[0].mxu0
  %v457 = vadd.f32 0.0, %v456
  %v458 = vpop.f32.mrb[0].mxu0
  %459 = vdwg.mxu0
  %461 = vrot.lane.b32.xlu0 %v18, 82
  %v462 = vpop.permute.xlu0 %461
  %463 = vrot.lane.b32.xlu0 %v19, 82
  %v464 = vpop.permute.xlu0 %463
  %v465 = vsel %vm251, %v462, 0
  %v467 = vsel %vm251, %v464, 0
  %469 = vmatprep.subr.mxu0 0.0
  %470 = vmatpush1.msra.mxu0 %v457
  %471 = vmatprep.subr.mxu0 0.0
  %472 = vmatpush1.msra.mxu0 0.0
  %473 = vmatprep.subr.mxu0 0.0
  %474 = vmatpush1.msra.mxu0 0.0
  %475 = vmatprep.subr.mxu0 0.0
  %476 = vmatpush1.msra.mxu0 0.0
  %477 = vmatprep.subr.mxu0 0.0
  %478 = vmatpush1.msra.mxu0 0.0
  %479 = vmatprep.subr.mxu0 0.0
  %480 = vmatpush1.msra.mxu0 0.0
  %481 = vmatprep.subr.mxu0 0.0
  %482 = vmatpush1.msra.mxu0 0.0
  %483 = vmatprep.subr.mxu0 0.0
  %484 = vmatpush1.msra.mxu0 0.0
  %485 = vmatprep.subr.mxu0 0.0
  %486 = vmatpush1.msra.mxu0 0.0
  %487 = vmatprep.subr.mxu0 0.0
  %488 = vmatpush1.msra.mxu0 0.0
  %489 = vmatprep.subr.mxu0 0.0
  %490 = vmatpush1.msra.mxu0 0.0
  %491 = vmatprep.subr.mxu0 0.0
  %492 = vmatpush1.msra.mxu0 0.0
  %493 = vmatprep.subr.mxu0 0.0
  %494 = vmatpush1.msra.mxu0 0.0
  %495 = vmatprep.subr.mxu0 0.0
  %496 = vmatpush1.msra.mxu0 0.0
  %497 = vmatprep.subr.mxu0 0.0
  %498 = vmatpush1.msra.mxu0 0.0
  %499 = vmatprep.subr.mxu0 0.0
  %500 = vmatpush1.msra.mxu0 0.0
  %501 = vmatprep.subr.mxu0 0.0
  %502 = vmatpush1.msra.mxu0 0.0
  %503 = vmatprep.subr.mxu0 0.0
  %504 = vmatpush1.msra.mxu0 0.0
  %505 = vmatprep.subr.mxu0 0.0
  %506 = vmatpush1.msra.mxu0 0.0
  %507 = vmatprep.subr.mxu0 0.0
  %508 = vmatpush1.msra.mxu0 0.0
  %509 = vmatprep.subr.mxu0 0.0
  %510 = vmatpush1.msra.mxu0 0.0
  %511 = vmatprep.subr.mxu0 0.0
  %512 = vmatpush1.msra.mxu0 0.0
  %513 = vmatprep.subr.mxu0 0.0
  %514 = vmatpush1.msra.mxu0 0.0
  %515 = vmatprep.subr.mxu0 0.0
  %516 = vmatpush1.msra.mxu0 0.0
  %517 = vmatprep.subr.mxu0 0.0
  %518 = vmatpush1.msra.mxu0 0.0
  %519 = vmatprep.subr.mxu0 0.0
  %520 = vmatpush1.msra.mxu0 0.0
  %521 = vmatprep.subr.mxu0 0.0
  %522 = vmatpush1.msra.mxu0 0.0
  %523 = vmatprep.subr.mxu0 0.0
  %524 = vmatpush1.msra.mxu0 0.0
  %525 = vmatprep.subr.mxu0 0.0
  %526 = vmatpush1.msra.mxu0 0.0
  %527 = vmatprep.subr.mxu0 0.0
  %528 = vmatpush1.msra.mxu0 0.0
  %529 = vmatprep.subr.mxu0 0.0
  %530 = vmatpush1.msra.mxu0 0.0
  %531 = vmatprep.subr.mxu0 0.0
  %532 = vmatpush1.msra.mxu0 0.0
  %533 = vmatprep.mubr.f32.mxu0 0.0
  %534 = vmatmul.mubr.f32.gmra.mrb[0].mxu0 %v465
  %v535 = vpop.f32.mrb[0].mxu0
  %v536 = vadd.f32 0.0, %v535
  %v537 = vpop.f32.mrb[0].mxu0
  %538 = vmatprep.mubr.f32.mxu0 0.0
  %539 = vmatmul.mubr.f32.gmra.mrb[0].mxu0 %v467
  %v540 = vpop.f32.mrb[0].mxu0
  %v541 = vadd.f32 0.0, %v540
  %v542 = vpop.f32.mrb[0].mxu0
  %543 = vdwg.mxu0
  %v544 = vmax.f32 %v536, 0.0
  %v545 = vmax.f32 %v541, 0.0
  %548 = vrot.lane.b32.xlu0 %v18, 106
  %v549 = vpop.permute.xlu0 %548
  %550 = vrot.lane.b32.xlu0 %v19, 106
  %v551 = vpop.permute.xlu0 %550
  %552 = vrot.lane.b32.xlu0 %v20, 106
  %v553 = vpop.permute.xlu0 %552
  %554 = vrot.lane.b32.xlu0 %v21, 106
  %v555 = vpop.permute.xlu0 %554
  %vm556 = vcmask 130048
  %v557 = vsel %vm556, %v549, 0
  %v559 = vsel %vm556, %v551, 0
  %v561 = vsel %vm556, %v553, 0
  %v563 = vsel %vm556, %v555, 0
  %565 = vmatprep.subr.mxu0 0.0
  %566 = vmatpush1.msra.mxu0 %v544
  %567 = vmatprep.subr.mxu0 0.0
  %568 = vmatpush1.msra.mxu0 %v545
  %569 = vmatprep.subr.mxu0 0.0
  %570 = vmatpush1.msra.mxu0 0.0
  %571 = vmatprep.subr.mxu0 0.0
  %572 = vmatpush1.msra.mxu0 0.0
  %573 = vmatprep.subr.mxu0 0.0
  %574 = vmatpush1.msra.mxu0 0.0
  %575 = vmatprep.subr.mxu0 0.0
  %576 = vmatpush1.msra.mxu0 0.0
  %577 = vmatprep.subr.mxu0 0.0
  %578 = vmatpush1.msra.mxu0 0.0
  %579 = vmatprep.subr.mxu0 0.0
  %580 = vmatpush1.msra.mxu0 0.0
  %581 = vmatprep.subr.mxu0 0.0
  %582 = vmatpush1.msra.mxu0 0.0
  %583 = vmatprep.subr.mxu0 0.0
  %584 = vmatpush1.msra.mxu0 0.0
  %585 = vmatprep.subr.mxu0 0.0
  %586 = vmatpush1.msra.mxu0 0.0
  %587 = vmatprep.subr.mxu0 0.0
  %588 = vmatpush1.msra.mxu0 0.0
  %589 = vmatprep.subr.mxu0 0.0
  %590 = vmatpush1.msra.mxu0 0.0
  %591 = vmatprep.subr.mxu0 0.0
  %592 = vmatpush1.msra.mxu0 0.0
  %593 = vmatprep.subr.mxu0 0.0
  %594 = vmatpush1.msra.mxu0 0.0
  %595 = vmatprep.subr.mxu0 0.0
  %596 = vmatpush1.msra.mxu0 0.0
  %597 = vmatprep.subr.mxu0 0.0
  %598 = vmatpush1.msra.mxu0 0.0
  %599 = vmatprep.subr.mxu0 0.0
  %600 = vmatpush1.msra.mxu0 0.0
  %601 = vmatprep.subr.mxu0 0.0
  %602 = vmatpush1.msra.mxu0 0.0
  %603 = vmatprep.subr.mxu0 0.0
  %604 = vmatpush1.msra.mxu0 0.0
  %605 = vmatprep.subr.mxu0 0.0
  %606 = vmatpush1.msra.mxu0 0.0
  %607 = vmatprep.subr.mxu0 0.0
  %608 = vmatpush1.msra.mxu0 0.0
  %609 = vmatprep.subr.mxu0 0.0
  %610 = vmatpush1.msra.mxu0 0.0
  %611 = vmatprep.subr.mxu0 0.0
  %612 = vmatpush1.msra.mxu0 0.0
  %613 = vmatprep.subr.mxu0 0.0
  %614 = vmatpush1.msra.mxu0 0.0
  %615 = vmatprep.subr.mxu0 0.0
  %616 = vmatpush1.msra.mxu0 0.0
  %617 = vmatprep.subr.mxu0 0.0
  %618 = vmatpush1.msra.mxu0 0.0
  %619 = vmatprep.subr.mxu0 0.0
  %620 = vmatpush1.msra.mxu0 0.0
  %621 = vmatprep.subr.mxu0 0.0
  %622 = vmatpush1.msra.mxu0 0.0
  %623 = vmatprep.subr.mxu0 0.0
  %624 = vmatpush1.msra.mxu0 0.0
  %625 = vmatprep.subr.mxu0 0.0
  %626 = vmatpush1.msra.mxu0 0.0
  %627 = vmatprep.subr.mxu0 0.0
  %628 = vmatpush1.msra.mxu0 0.0
  %629 = vmatprep.mubr.f32.mxu0 0.0
  %630 = vmatmul.mubr.f32.gmra.mrb[0].mxu0 %v557
  %v631 = vpop.f32.mrb[0].mxu0
  %v632 = vadd.f32 0.0, %v631
  %v633 = vpop.f32.mrb[0].mxu0
  %634 = vmatprep.mubr.f32.mxu0 0.0
  %635 = vmatmul.mubr.f32.gmra.mrb[0].mxu0 %v559
  %v636 = vpop.f32.mrb[0].mxu0
  %v637 = vadd.f32 0.0, %v636
  %v638 = vpop.f32.mrb[0].mxu0
  %639 = vmatprep.mubr.f32.mxu0 0.0
  %640 = vmatmul.mubr.f32.gmra.mrb[0].mxu0 %v561
  %v641 = vpop.f32.mrb[0].mxu0
  %v642 = vadd.f32 0.0, %v641
  %v643 = vpop.f32.mrb[0].mxu0
  %644 = vmatprep.mubr.f32.mxu0 0.0
  %645 = vmatmul.mubr.f32.gmra.mrb[0].mxu0 %v563
  %v646 = vpop.f32.mrb[0].mxu0
  %v647 = vadd.f32 0.0, %v646
  %v648 = vpop.f32.mrb[0].mxu0
  %649 = vdwg.mxu0
  %v650 = vpack.c.bf16 %v457, %v457
  %v651 = vld [vmem:[%s3] sm:$0xff]
  %v652 = vld [vmem:[%s3 + $0x8] sm:$0xff]
  %v653 = vld [vmem:[%s3 + $0x10] sm:$0xff]
  %v654 = vld [vmem:[%s3 + $0x18] sm:$0xf]
  %v655 = vld [vmem:[%s3 + $0x1c] sm:$0xff]
  %v656 = vld [vmem:[%s3 + $0x24] sm:$0xff]
  %v657 = vld [vmem:[%s3 + $0x2c] sm:$0xff]
  %v658 = vld [vmem:[%s3 + $0x34] sm:$0xf]
  %v659 = vld [vmem:[%s3 + $0x38] sm:$0xff]
  %v660 = vld [vmem:[%s3 + $0x40] sm:$0xff]
  %v661 = vld [vmem:[%s3 + $0x48] sm:$0xff]
  %v662 = vld [vmem:[%s3 + $0x50] sm:$0xf]
  %v663 = vld [vmem:[%s3 + $0x54] sm:$0xff]
  %v664 = vld [vmem:[%s3 + $0x5c] sm:$0xff]
  %v665 = vld [vmem:[%s3 + $0x64] sm:$0xff]
  %v666 = vld [vmem:[%s3 + $0x6c] sm:$0xf]
  %v683 = vunpack.c.l.b16 %v651
  %v684 = vunpack.c.h.b16 %v651
  %v685 = vunpack.c.l.b16 %v652
  %v686 = vunpack.c.h.b16 %v652
  %v687 = vunpack.c.l.b16 %v653
  %v688 = vunpack.c.h.b16 %v653
  %v689 = vunpack.c.l.b16 %v654
  %v690 = vunpack.c.l.b16 %v655
  %v691 = vunpack.c.h.b16 %v655
  %v692 = vunpack.c.l.b16 %v656
  %v693 = vunpack.c.h.b16 %v656
  %v694 = vunpack.c.l.b16 %v657
  %v695 = vunpack.c.h.b16 %v657
  %v696 = vunpack.c.l.b16 %v658
  %v697 = vunpack.c.l.b16 %v659
  %v698 = vunpack.c.h.b16 %v659
  %v699 = vunpack.c.l.b16 %v660
  %v700 = vunpack.c.h.b16 %v660
  %v701 = vunpack.c.l.b16 %v661
  %v702 = vunpack.c.h.b16 %v661
  %v703 = vunpack.c.l.b16 %v662
  %v704 = vunpack.c.l.b16 %v663
  %v705 = vunpack.c.h.b16 %v663
  %v706 = vunpack.c.l.b16 %v664
  %v707 = vunpack.c.h.b16 %v664
  %v708 = vunpack.c.l.b16 %v665
  %v709 = vunpack.c.h.b16 %v665
  %v710 = vunpack.c.l.b16 %v666
  %v711 = vpack.c.b16 %v690, %v683
  %v712 = vpack.c.b16 %v691, %v684
  %v713 = vpack.c.b16 %v692, %v685
  %v714 = vpack.c.b16 %v693, %v686
  %v715 = vpack.c.b16 %v694, %v687
  %v716 = vpack.c.b16 %v695, %v688
  %v717 = vpack.c.b16 %v696, %v689
  %v718 = vpack.c.b16 %v704, %v697
  %v719 = vpack.c.b16 %v705, %v698
  %v720 = vpack.c.b16 %v706, %v699
  %v721 = vpack.c.b16 %v707, %v700
  %v722 = vpack.c.b16 %v708, %v701
  %v723 = vpack.c.b16 %v709, %v702
  %v724 = vpack.c.b16 %v710, %v703
  %vm739 = vcmask 261120
  %v741 = vsel %vm739, %v650, 0
  %743 = vmatprep.subr.bf16.mxu0 %v712
  %744 = vmatpush1.bf16.msra.mxu0 %v711
  %745 = vmatprep.subr.bf16.mxu0 %v719
  %746 = vmatpush1.bf16.msra.mxu0 %v718
  %747 = vmatprep.subr.bf16.mxu0 0
  %748 = vmatpush1.bf16.msra.mxu0 0
  %749 = vmatprep.subr.bf16.mxu0 0
  %750 = vmatpush1.bf16.msra.mxu0 0
  %751 = vmatprep.subr.bf16.mxu0 0
  %752 = vmatpush1.bf16.msra.mxu0 0
  %753 = vmatprep.subr.bf16.mxu0 0
  %754 = vmatpush1.bf16.msra.mxu0 0
  %755 = vmatprep.subr.bf16.mxu0 0
  %756 = vmatpush1.bf16.msra.mxu0 0
  %757 = vmatprep.subr.bf16.mxu0 0
  %758 = vmatpush1.bf16.msra.mxu0 0
  %759 = vmatprep.subr.bf16.mxu0 0
  %760 = vmatpush1.bf16.msra.mxu0 0
  %761 = vmatprep.subr.bf16.mxu0 0
  %762 = vmatpush1.bf16.msra.mxu0 0
  %763 = vmatprep.subr.bf16.mxu0 0
  %764 = vmatpush1.bf16.msra.mxu0 0
  %765 = vmatprep.subr.bf16.mxu0 0
  %766 = vmatpush1.bf16.msra.mxu0 0
  %767 = vmatprep.subr.bf16.mxu0 0
  %768 = vmatpush1.bf16.msra.mxu0 0
  %769 = vmatprep.subr.bf16.mxu0 0
  %770 = vmatpush1.bf16.msra.mxu0 0
  %771 = vmatprep.subr.bf16.mxu0 0
  %772 = vmatpush1.bf16.msra.mxu0 0
  %773 = vmatprep.subr.bf16.mxu0 0
  %774 = vmatpush1.bf16.msra.mxu0 0
  %775 = vmatprep.mubr.bf16.mxu0 0
  %776 = vmatmul.mubr.bf16.gmra.mrb[0].mxu0 %v741
  %v777 = vpop.f32.mrb[0].mxu0
  %v778 = vadd.f32 0.0, %v777
  %v779 = vpop.f32.mrb[0].mxu0
  %v780 = vadd.f32 0.0, %v779
  %v781 = vpop.f32.mrb[0].mxu0
  %v782 = vpop.f32.mrb[0].mxu0
  %783 = vdwg.mxu0
  %784 = vmatprep.subr.bf16.mxu0 %v714
  %785 = vmatpush1.bf16.msra.mxu0 %v713
  %786 = vmatprep.subr.bf16.mxu0 %v721
  %787 = vmatpush1.bf16.msra.mxu0 %v720
  %788 = vmatprep.subr.bf16.mxu0 0
  %789 = vmatpush1.bf16.msra.mxu0 0
  %790 = vmatprep.subr.bf16.mxu0 0
  %791 = vmatpush1.bf16.msra.mxu0 0
  %792 = vmatprep.subr.bf16.mxu0 0
  %793 = vmatpush1.bf16.msra.mxu0 0
  %794 = vmatprep.subr.bf16.mxu0 0
  %795 = vmatpush1.bf16.msra.mxu0 0
  %796 = vmatprep.subr.bf16.mxu0 0
  %797 = vmatpush1.bf16.msra.mxu0 0
  %798 = vmatprep.subr.bf16.mxu0 0
  %799 = vmatpush1.bf16.msra.mxu0 0
  %800 = vmatprep.subr.bf16.mxu0 0
  %801 = vmatpush1.bf16.msra.mxu0 0
  %802 = vmatprep.subr.bf16.mxu0 0
  %803 = vmatpush1.bf16.msra.mxu0 0
  %804 = vmatprep.subr.bf16.mxu0 0
  %805 = vmatpush1.bf16.msra.mxu0 0
  %806 = vmatprep.subr.bf16.mxu0 0
  %807 = vmatpush1.bf16.msra.mxu0 0
  %808 = vmatprep.subr.bf16.mxu0 0
  %809 = vmatpush1.bf16.msra.mxu0 0
  %810 = vmatprep.subr.bf16.mxu0 0
  %811 = vmatpush1.bf16.msra.mxu0 0
  %812 = vmatprep.subr.bf16.mxu0 0
  %813 = vmatpush1.bf16.msra.mxu0 0
  %814 = vmatprep.subr.bf16.mxu0 0
  %815 = vmatpush1.bf16.msra.mxu0 0
  %816 = vmatprep.mubr.bf16.mxu0 0
  %817 = vmatmul.mubr.bf16.gmra.mrb[0].mxu0 %v741
  %v818 = vpop.f32.mrb[0].mxu0
  %v819 = vadd.f32 0.0, %v818
  %v820 = vpop.f32.mrb[0].mxu0
  %v821 = vadd.f32 0.0, %v820
  %v822 = vpop.f32.mrb[0].mxu0
  %v823 = vpop.f32.mrb[0].mxu0
  %824 = vdwg.mxu0
  %825 = vmatprep.subr.bf16.mxu0 %v716
  %826 = vmatpush1.bf16.msra.mxu0 %v715
  %827 = vmatprep.subr.bf16.mxu0 %v723
  %828 = vmatpush1.bf16.msra.mxu0 %v722
  %829 = vmatprep.subr.bf16.mxu0 0
  %830 = vmatpush1.bf16.msra.mxu0 0
  %831 = vmatprep.subr.bf16.mxu0 0
  %832 = vmatpush1.bf16.msra.mxu0 0
  %833 = vmatprep.subr.bf16.mxu0 0
  %834 = vmatpush1.bf16.msra.mxu0 0
  %835 = vmatprep.subr.bf16.mxu0 0
  %836 = vmatpush1.bf16.msra.mxu0 0
  %837 = vmatprep.subr.bf16.mxu0 0
  %838 = vmatpush1.bf16.msra.mxu0 0
  %839 = vmatprep.subr.bf16.mxu0 0
  %840 = vmatpush1.bf16.msra.mxu0 0
  %841 = vmatprep.subr.bf16.mxu0 0
  %842 = vmatpush1.bf16.msra.mxu0 0
  %843 = vmatprep.subr.bf16.mxu0 0
  %844 = vmatpush1.bf16.msra.mxu0 0
  %845 = vmatprep.subr.bf16.mxu0 0
  %846 = vmatpush1.bf16.msra.mxu0 0
  %847 = vmatprep.subr.bf16.mxu0 0
  %848 = vmatpush1.bf16.msra.mxu0 0
  %849 = vmatprep.subr.bf16.mxu0 0
  %850 = vmatpush1.bf16.msra.mxu0 0
  %851 = vmatprep.subr.bf16.mxu0 0
  %852 = vmatpush1.bf16.msra.mxu0 0
  %853 = vmatprep.subr.bf16.mxu0 0
  %854 = vmatpush1.bf16.msra.mxu0 0
  %855 = vmatprep.subr.bf16.mxu0 0
  %856 = vmatpush1.bf16.msra.mxu0 0
  %857 = vmatprep.mubr.bf16.mxu0 0
  %858 = vmatmul.mubr.bf16.gmra.mrb[0].mxu0 %v741
  %v859 = vpop.f32.mrb[0].mxu0
  %v860 = vadd.f32 0.0, %v859
  %v861 = vpop.f32.mrb[0].mxu0
  %v862 = vadd.f32 0.0, %v861
  %v863 = vpop.f32.mrb[0].mxu0
  %v864 = vpop.f32.mrb[0].mxu0
  %865 = vdwg.mxu0
  %866 = vmatprep.subr.bf16.mxu0 0
  %867 = vmatpush1.bf16.msra.mxu0 %v717
  %868 = vmatprep.subr.bf16.mxu0 0
  %869 = vmatpush1.bf16.msra.mxu0 %v724
  %870 = vmatprep.subr.bf16.mxu0 0
  %871 = vmatpush1.bf16.msra.mxu0 0
  %872 = vmatprep.subr.bf16.mxu0 0
  %873 = vmatpush1.bf16.msra.mxu0 0
  %874 = vmatprep.subr.bf16.mxu0 0
  %875 = vmatpush1.bf16.msra.mxu0 0
  %876 = vmatprep.subr.bf16.mxu0 0
  %877 = vmatpush1.bf16.msra.mxu0 0
  %878 = vmatprep.subr.bf16.mxu0 0
  %879 = vmatpush1.bf16.msra.mxu0 0
  %880 = vmatprep.subr.bf16.mxu0 0
  %881 = vmatpush1.bf16.msra.mxu0 0
  %882 = vmatprep.subr.bf16.mxu0 0
  %883 = vmatpush1.bf16.msra.mxu0 0
  %884 = vmatprep.subr.bf16.mxu0 0
  %885 = vmatpush1.bf16.msra.mxu0 0
  %886 = vmatprep.subr.bf16.mxu0 0
  %887 = vmatpush1.bf16.msra.mxu0 0
  %888 = vmatprep.subr.bf16.mxu0 0
  %889 = vmatpush1.bf16.msra.mxu0 0
  %890 = vmatprep.subr.bf16.mxu0 0
  %891 = vmatpush1.bf16.msra.mxu0 0
  %892 = vmatprep.subr.bf16.mxu0 0
  %893 = vmatpush1.bf16.msra.mxu0 0
  %894 = vmatprep.subr.bf16.mxu0 0
  %895 = vmatpush1.bf16.msra.mxu0 0
  %896 = vmatprep.subr.bf16.mxu0 0
  %897 = vmatpush1.bf16.msra.mxu0 0
  %898 = vmatprep.mubr.bf16.mxu0 0
  %899 = vmatmul.mubr.bf16.gmra.mrb[0].mxu0 %v741
  %v900 = vpop.f32.mrb[0].mxu0
  %v901 = vadd.f32 0.0, %v900
  %v902 = vpop.f32.mrb[0].mxu0
  %v903 = vpop.f32.mrb[0].mxu0
  %v904 = vpop.f32.mrb[0].mxu0
  %905 = vdwg.mxu0
  %v906 = vlaneseq
  %v907 = vshrl.u32 %v906, 7
  %v908 = vsub.s32 0, %v907
  %v909 = vrot.slane %v632, %v908
  %v910 = vmul.f32 %v909, %v778
  %v911 = vlaneseq
  %v912 = vshrl.u32 %v911, 7
  %v913 = vsub.s32 1, %v912
  %v914 = vrot.slane %v632, %v913
  %916 = vrot.lane.b32.xlu0 %v778, 96
  %v917 = vpop.permute.xlu0 %916
  %v919 = vmul.f32 %v914, %v917
  %v920 = vlaneseq
  %v921 = vshrl.u32 %v920, 7
  %v922 = vsub.s32 2, %v921
  %v923 = vrot.slane %v632, %v922
  %924 = vrot.lane.b32.xlu0 %v778, 64
  %v925 = vpop.permute.xlu0 %924
  %v927 = vmul.f32 %v923, %v925
  %v928 = vlaneseq
  %v929 = vshrl.u32 %v928, 7
  %v930 = vsub.s32 3, %v929
  %v931 = vrot.slane %v632, %v930
  %932 = vrot.lane.b32.xlu0 %v778, 32
  %v933 = vpop.permute.xlu0 %932
  %v935 = vmul.f32 %v931, %v933
  %v936 = vlaneseq
  %v937 = vshrl.u32 %v936, 7
  %v938 = vsub.s32 4, %v937
  %v939 = vrot.slane %v632, %v938
  %v940 = vmul.f32 %v939, %v780
  %v941 = vlaneseq
  %v942 = vshrl.u32 %v941, 7
  %v943 = vsub.s32 5, %v942
  %v944 = vrot.slane %v632, %v943
  %946 = vrot.lane.b32.xlu0 %v780, 96
  %v947 = vpop.permute.xlu0 %946
  %v949 = vmul.f32 %v944, %v947
  %v950 = vlaneseq
  %v951 = vshrl.u32 %v950, 7
  %v952 = vsub.s32 6, %v951
  %v953 = vrot.slane %v632, %v952
  %954 = vrot.lane.b32.xlu0 %v780, 64
  %v955 = vpop.permute.xlu0 %954
  %v957 = vmul.f32 %v953, %v955
  %v958 = vlaneseq
  %v959 = vshrl.u32 %v958, 7
  %v960 = vsub.s32 7, %v959
  %v961 = vrot.slane %v632, %v960
  %962 = vrot.lane.b32.xlu0 %v780, 32
  %v963 = vpop.permute.xlu0 %962
  %v965 = vmul.f32 %v961, %v963
  %v966 = vlaneseq
  %v967 = vshrl.u32 %v966, 7
  %v968 = vsub.s32 0, %v967
  %v969 = vrot.slane %v637, %v968
  %v970 = vmul.f32 %v969, %v819
  %v971 = vlaneseq
  %v972 = vshrl.u32 %v971, 7
  %v973 = vsub.s32 1, %v972
  %v974 = vrot.slane %v637, %v973
  %976 = vrot.lane.b32.xlu0 %v819, 96
  %v977 = vpop.permute.xlu0 %976
  %v979 = vmul.f32 %v974, %v977
  %v980 = vlaneseq
  %v981 = vshrl.u32 %v980, 7
  %v982 = vsub.s32 2, %v981
  %v983 = vrot.slane %v637, %v982
  %984 = vrot.lane.b32.xlu0 %v819, 64
  %v985 = vpop.permute.xlu0 %984
  %v987 = vmul.f32 %v983, %v985
  %v988 = vlaneseq
  %v989 = vshrl.u32 %v988, 7
  %v990 = vsub.s32 3, %v989
  %v991 = vrot.slane %v637, %v990
  %992 = vrot.lane.b32.xlu0 %v819, 32
  %v993 = vpop.permute.xlu0 %992
  %v995 = vmul.f32 %v991, %v993
  %v996 = vlaneseq
  %v997 = vshrl.u32 %v996, 7
  %v998 = vsub.s32 4, %v997
  %v999 = vrot.slane %v637, %v998
  %v1000 = vmul.f32 %v999, %v821
  %v1001 = vlaneseq
  %v1002 = vshrl.u32 %v1001, 7
  %v1003 = vsub.s32 5, %v1002
  %v1004 = vrot.slane %v637, %v1003
  %1006 = vrot.lane.b32.xlu0 %v821, 96
  %v1007 = vpop.permute.xlu0 %1006
  %v1009 = vmul.f32 %v1004, %v1007
  %v1010 = vlaneseq
  %v1011 = vshrl.u32 %v1010, 7
  %v1012 = vsub.s32 6, %v1011
  %v1013 = vrot.slane %v637, %v1012
  %1014 = vrot.lane.b32.xlu0 %v821, 64
  %v1015 = vpop.permute.xlu0 %1014
  %v1017 = vmul.f32 %v1013, %v1015
  %v1018 = vlaneseq
  %v1019 = vshrl.u32 %v1018, 7
  %v1020 = vsub.s32 7, %v1019
  %v1021 = vrot.slane %v637, %v1020
  %1022 = vrot.lane.b32.xlu0 %v821, 32
  %v1023 = vpop.permute.xlu0 %1022
  %v1025 = vmul.f32 %v1021, %v1023
  %v1026 = vlaneseq
  %v1027 = vshrl.u32 %v1026, 7
  %v1028 = vsub.s32 0, %v1027
  %v1029 = vrot.slane %v642, %v1028
  %v1030 = vmul.f32 %v1029, %v860
  %v1031 = vlaneseq
  %v1032 = vshrl.u32 %v1031, 7
  %v1033 = vsub.s32 1, %v1032
  %v1034 = vrot.slane %v642, %v1033
  %1036 = vrot.lane.b32.xlu0 %v860, 96
  %v1037 = vpop.permute.xlu0 %1036
  %v1039 = vmul.f32 %v1034, %v1037
  %v1040 = vlaneseq
  %v1041 = vshrl.u32 %v1040, 7
  %v1042 = vsub.s32 2, %v1041
  %v1043 = vrot.slane %v642, %v1042
  %1044 = vrot.lane.b32.xlu0 %v860, 64
  %v1045 = vpop.permute.xlu0 %1044
  %v1047 = vmul.f32 %v1043, %v1045
  %v1048 = vlaneseq
  %v1049 = vshrl.u32 %v1048, 7
  %v1050 = vsub.s32 3, %v1049
  %v1051 = vrot.slane %v642, %v1050
  %1052 = vrot.lane.b32.xlu0 %v860, 32
  %v1053 = vpop.permute.xlu0 %1052
  %v1055 = vmul.f32 %v1051, %v1053
  %v1056 = vlaneseq
  %v1057 = vshrl.u32 %v1056, 7
  %v1058 = vsub.s32 4, %v1057
  %v1059 = vrot.slane %v642, %v1058
  %v1060 = vmul.f32 %v1059, %v862
  %v1061 = vlaneseq
  %v1062 = vshrl.u32 %v1061, 7
  %v1063 = vsub.s32 5, %v1062
  %v1064 = vrot.slane %v642, %v1063
  %1066 = vrot.lane.b32.xlu0 %v862, 96
  %v1067 = vpop.permute.xlu0 %1066
  %v1069 = vmul.f32 %v1064, %v1067
  %v1070 = vlaneseq
  %v1071 = vshrl.u32 %v1070, 7
  %v1072 = vsub.s32 6, %v1071
  %v1073 = vrot.slane %v642, %v1072
  %1074 = vrot.lane.b32.xlu0 %v862, 64
  %v1075 = vpop.permute.xlu0 %1074
  %v1077 = vmul.f32 %v1073, %v1075
  %v1078 = vlaneseq
  %v1079 = vshrl.u32 %v1078, 7
  %v1080 = vsub.s32 7, %v1079
  %v1081 = vrot.slane %v642, %v1080
  %1082 = vrot.lane.b32.xlu0 %v862, 32
  %v1083 = vpop.permute.xlu0 %1082
  %v1085 = vmul.f32 %v1081, %v1083
  %v1086 = vlaneseq
  %v1087 = vshrl.u32 %v1086, 7
  %v1088 = vsub.s32 0, %v1087
  %v1089 = vrot.slane %v647, %v1088
  %v1090 = vmul.f32 %v1089, %v901
  %v1091 = vlaneseq
  %v1092 = vshrl.u32 %v1091, 7
  %v1093 = vsub.s32 1, %v1092
  %v1094 = vrot.slane %v647, %v1093
  %1096 = vrot.lane.b32.xlu0 %v901, 96
  %v1097 = vpop.permute.xlu0 %1096
  %v1099 = vmul.f32 %v1094, %v1097
  %v1100 = vlaneseq
  %v1101 = vshrl.u32 %v1100, 7
  %v1102 = vsub.s32 2, %v1101
  %v1103 = vrot.slane %v647, %v1102
  %1104 = vrot.lane.b32.xlu0 %v901, 64
  %v1105 = vpop.permute.xlu0 %1104
  %v1107 = vmul.f32 %v1103, %v1105
  %v1108 = vadd.f32 %v910, %v919
  %v1109 = vadd.f32 %v927, %v935
  %v1110 = vadd.f32 %v940, %v949
  %v1111 = vadd.f32 %v957, %v965
  %v1112 = vadd.f32 %v970, %v979
  %v1113 = vadd.f32 %v987, %v995
  %v1114 = vadd.f32 %v1000, %v1009
  %v1115 = vadd.f32 %v1017, %v1025
  %v1116 = vadd.f32 %v1030, %v1039
  %v1117 = vadd.f32 %v1047, %v1055
  %v1118 = vadd.f32 %v1060, %v1069
  %v1119 = vadd.f32 %v1077, %v1085
  %v1120 = vadd.f32 %v1090, %v1099
  %v1121 = vadd.f32 %v1108, %v1109
  %v1122 = vadd.f32 %v1110, %v1111
  %v1123 = vadd.f32 %v1112, %v1113
  %v1124 = vadd.f32 %v1114, %v1115
  %v1125 = vadd.f32 %v1116, %v1117
  %v1126 = vadd.f32 %v1118, %v1119
  %v1127 = vadd.f32 %v1120, %v1107
  %v1128 = vadd.f32 %v1121, %v1122
  %v1129 = vadd.f32 %v1123, %v1124
  %v1130 = vadd.f32 %v1125, %v1126
  %v1131 = vadd.f32 %v1128, %v1129
  %v1132 = vadd.f32 %v1130, %v1127
  %v1133 = vadd.f32 %v1131, %v1132
  %1134 = vrot.lane.b32.xlu0 %v18, 90
  %v1135 = vpop.permute.xlu0 %1134
  %1136 = vrot.lane.b32.xlu0 %v19, 90
  %v1137 = vpop.permute.xlu0 %1136
  %v1138 = vsel %vm251, %v1135, 0
  %v1140 = vsel %vm251, %v1137, 0
  %1142 = vmatprep.subr.mxu0 0.0
  %1143 = vmatpush1.msra.mxu0 %v1133
  %1144 = vmatprep.subr.mxu0 0.0
  %1145 = vmatpush1.msra.mxu0 0.0
  %1146 = vmatprep.subr.mxu0 0.0
  %1147 = vmatpush1.msra.mxu0 0.0
  %1148 = vmatprep.subr.mxu0 0.0
  %1149 = vmatpush1.msra.mxu0 0.0
  %1150 = vmatprep.subr.mxu0 0.0
  %1151 = vmatpush1.msra.mxu0 0.0
  %1152 = vmatprep.subr.mxu0 0.0
  %1153 = vmatpush1.msra.mxu0 0.0
  %1154 = vmatprep.subr.mxu0 0.0
  %1155 = vmatpush1.msra.mxu0 0.0
  %1156 = vmatprep.subr.mxu0 0.0
  %1157 = vmatpush1.msra.mxu0 0.0
  %1158 = vmatprep.subr.mxu0 0.0
  %1159 = vmatpush1.msra.mxu0 0.0
  %1160 = vmatprep.subr.mxu0 0.0
  %1161 = vmatpush1.msra.mxu0 0.0
  %1162 = vmatprep.subr.mxu0 0.0
  %1163 = vmatpush1.msra.mxu0 0.0
  %1164 = vmatprep.subr.mxu0 0.0
  %1165 = vmatpush1.msra.mxu0 0.0
  %1166 = vmatprep.subr.mxu0 0.0
  %1167 = vmatpush1.msra.mxu0 0.0
  %1168 = vmatprep.subr.mxu0 0.0
  %1169 = vmatpush1.msra.mxu0 0.0
  %1170 = vmatprep.subr.mxu0 0.0
  %1171 = vmatpush1.msra.mxu0 0.0
  %1172 = vmatprep.subr.mxu0 0.0
  %1173 = vmatpush1.msra.mxu0 0.0
  %1174 = vmatprep.subr.mxu0 0.0
  %1175 = vmatpush1.msra.mxu0 0.0
  %1176 = vmatprep.subr.mxu0 0.0
  %1177 = vmatpush1.msra.mxu0 0.0
  %1178 = vmatprep.subr.mxu0 0.0
  %1179 = vmatpush1.msra.mxu0 0.0
  %1180 = vmatprep.subr.mxu0 0.0
  %1181 = vmatpush1.msra.mxu0 0.0
  %1182 = vmatprep.subr.mxu0 0.0
  %1183 = vmatpush1.msra.mxu0 0.0
  %1184 = vmatprep.subr.mxu0 0.0
  %1185 = vmatpush1.msra.mxu0 0.0
  %1186 = vmatprep.subr.mxu0 0.0
  %1187 = vmatpush1.msra.mxu0 0.0
  %1188 = vmatprep.subr.mxu0 0.0
  %1189 = vmatpush1.msra.mxu0 0.0
  %1190 = vmatprep.subr.mxu0 0.0
  %1191 = vmatpush1.msra.mxu0 0.0
  %1192 = vmatprep.subr.mxu0 0.0
  %1193 = vmatpush1.msra.mxu0 0.0
  %1194 = vmatprep.subr.mxu0 0.0
  %1195 = vmatpush1.msra.mxu0 0.0
  %1196 = vmatprep.subr.mxu0 0.0
  %1197 = vmatpush1.msra.mxu0 0.0
  %1198 = vmatprep.subr.mxu0 0.0
  %1199 = vmatpush1.msra.mxu0 0.0
  %1200 = vmatprep.subr.mxu0 0.0
  %1201 = vmatpush1.msra.mxu0 0.0
  %1202 = vmatprep.subr.mxu0 0.0
  %1203 = vmatpush1.msra.mxu0 0.0
  %1204 = vmatprep.subr.mxu0 0.0
  %1205 = vmatpush1.msra.mxu0 0.0
  %1206 = vmatprep.mubr.f32.mxu0 0.0
  %1207 = vmatmul.mubr.f32.gmra.mrb[0].mxu0 %v1138
  %v1208 = vpop.f32.mrb[0].mxu0
  %v1209 = vadd.f32 0.0, %v1208
  %v1210 = vpop.f32.mrb[0].mxu0
  %1211 = vmatprep.mubr.f32.mxu0 0.0
  %1212 = vmatmul.mubr.f32.gmra.mrb[0].mxu0 %v1140
  %v1213 = vpop.f32.mrb[0].mxu0
  %v1214 = vadd.f32 0.0, %v1213
  %v1215 = vpop.f32.mrb[0].mxu0
  %1216 = vdwg.mxu0
  %v1217 = vld [vmem:[%s2] sm:$0xff]
  %v1218 = vld [vmem:[%s2 + $0x8] sm:$0x3]
  %v1219 = vld [vmem:[%s2 + $0x10] sm:$0xff]
  %v1220 = vld [vmem:[%s2 + $0x18] sm:$0x3]
  %v1221 = vld [vmem:[%s2 + $0x20] sm:$0xff]
  %v1222 = vld [vmem:[%s2 + $0x28] sm:$0x3]
  %v1223 = vld [vmem:[%s2 + $0x30] sm:$0xff]
  %v1224 = vld [vmem:[%s2 + $0x38] sm:$0x3]
  %v1225 = vld [vmem:[%s2 + $0x40] sm:$0xff]
  %v1226 = vld [vmem:[%s2 + $0x48] sm:$0x3]
  %v1227 = vld [vmem:[%s2 + $0x50] sm:$0xff]
  %v1228 = vld [vmem:[%s2 + $0x58] sm:$0x3]
  %v1229 = vld [vmem:[%s2 + $0x60] sm:$0xff]
  %v1230 = vld [vmem:[%s2 + $0x68] sm:$0x3]
  %v1231 = vld [vmem:[%s2 + $0x70] sm:$0xff]
  %v1232 = vld [vmem:[%s2 + $0x78] sm:$0x3]
  %v1233 = vld [vmem:[%s2 + $0x80] sm:$0xff]
  %v1234 = vld [vmem:[%s2 + $0x88] sm:$0x3]
  %v1235 = vld [vmem:[%s2 + $0x90] sm:$0xff]
  %v1236 = vld [vmem:[%s2 + $0x98] sm:$0x3]
  %v1237 = vld [vmem:[%s2 + $0xa0] sm:$0xff]
  %v1238 = vld [vmem:[%s2 + $0xa8] sm:$0x3]
  %v1239 = vld [vmem:[%s2 + $0xb0] sm:$0xff]
  %v1240 = vld [vmem:[%s2 + $0xb8] sm:$0x3]
  %v1241 = vld [vmem:[%s2 + $0xc0] sm:$0xff]
  %v1242 = vld [vmem:[%s2 + $0xc8] sm:$0x3]
  %v1243 = vld [vmem:[%s2 + $0xd0] sm:$0xff]
  %v1244 = vld [vmem:[%s2 + $0xd8] sm:$0x3]
  %v1245 = vld [vmem:[%s2 + $0xe0] sm:$0xff]
  %v1246 = vld [vmem:[%s2 + $0xe8] sm:$0x3]
  %v1247 = vld [vmem:[%s2 + $0xf0] sm:$0xff]
  %v1248 = vld [vmem:[%s2 + $0xf8] sm:$0x3]
  %v1251 = vcombine.high %v1209, %v1209
  %v1253 = vunpack.c.l.s4 1966171168
  %v1254 = vunpack.c.0.s8 %v1253
  %v1255 = vlaneseq
  %v1256 = vshrl.u32 %v1255, 7
  %v1257 = vsub.s32 %v1254, %v1256
  %v1258 = vrot.slane %v1209, %v1257
  %v1260 = vunpack.c.l.s4 1966171168
  %v1261 = vunpack.c.0.s8 %v1260
  %v1262 = vlaneseq
  %v1263 = vshrl.u32 %v1262, 7
  %v1264 = vsub.s32 %v1261, %v1263
  %v1265 = vrot.slane %v1251, %v1264
  %v1266 = vcombine.high %v1258, %v1258
  %v1267 = vcombine.high %v1265, %v1265
  %v1269 = vunpack.c.l.s4 1966171168
  %v1270 = vunpack.c.0.s8 %v1269
  %v1271 = vlaneseq
  %v1272 = vshrl.u32 %v1271, 7
  %v1273 = vsub.s32 %v1270, %v1272
  %v1274 = vrot.slane %v1258, %v1273
  %v1276 = vunpack.c.l.s4 1966171168
  %v1277 = vunpack.c.0.s8 %v1276
  %v1278 = vlaneseq
  %v1279 = vshrl.u32 %v1278, 7
  %v1280 = vsub.s32 %v1277, %v1279
  %v1281 = vrot.slane %v1265, %v1280
  %v1283 = vunpack.c.l.s4 1966171168
  %v1284 = vunpack.c.0.s8 %v1283
  %v1285 = vlaneseq
  %v1286 = vshrl.u32 %v1285, 7
  %v1287 = vsub.s32 %v1284, %v1286
  %v1288 = vrot.slane %v1266, %v1287
  %v1290 = vunpack.c.l.s4 1966171168
  %v1291 = vunpack.c.0.s8 %v1290
  %v1292 = vlaneseq
  %v1293 = vshrl.u32 %v1292, 7
  %v1294 = vsub.s32 %v1291, %v1293
  %v1295 = vrot.slane %v1267, %v1294
  %v1296 = vcombine.high %v1274, %v1274
  %v1297 = vcombine.high %v1281, %v1281
  %v1298 = vcombine.high %v1288, %v1288
  %v1299 = vcombine.high %v1295, %v1295
  %v1300 = vcombine.high %v1214, %v1214
  %v1302 = vunpack.c.l.s4 1966171168
  %v1303 = vunpack.c.0.s8 %v1302
  %v1304 = vlaneseq
  %v1305 = vshrl.u32 %v1304, 7
  %v1306 = vsub.s32 %v1303, %v1305
  %v1307 = vrot.slane %v1214, %v1306
  %v1309 = vunpack.c.l.s4 1966171168
  %v1310 = vunpack.c.0.s8 %v1309
  %v1311 = vlaneseq
  %v1312 = vshrl.u32 %v1311, 7
  %v1313 = vsub.s32 %v1310, %v1312
  %v1314 = vrot.slane %v1300, %v1313
  %v1315 = vcombine.high %v1307, %v1307
  %v1316 = vcombine.high %v1314, %v1314
  %v1318 = vunpack.c.l.s4 1966171168
  %v1319 = vunpack.c.0.s8 %v1318
  %v1320 = vlaneseq
  %v1321 = vshrl.u32 %v1320, 7
  %v1322 = vsub.s32 %v1319, %v1321
  %v1323 = vrot.slane %v1307, %v1322
  %v1325 = vunpack.c.l.s4 1966171168
  %v1326 = vunpack.c.0.s8 %v1325
  %v1327 = vlaneseq
  %v1328 = vshrl.u32 %v1327, 7
  %v1329 = vsub.s32 %v1326, %v1328
  %v1330 = vrot.slane %v1314, %v1329
  %v1332 = vunpack.c.l.s4 1966171168
  %v1333 = vunpack.c.0.s8 %v1332
  %v1334 = vlaneseq
  %v1335 = vshrl.u32 %v1334, 7
  %v1336 = vsub.s32 %v1333, %v1335
  %v1337 = vrot.slane %v1315, %v1336
  %v1339 = vunpack.c.l.s4 1966171168
  %v1340 = vunpack.c.0.s8 %v1339
  %v1341 = vlaneseq
  %v1342 = vshrl.u32 %v1341, 7
  %v1343 = vsub.s32 %v1340, %v1342
  %v1344 = vrot.slane %v1316, %v1343
  %v1345 = vcombine.high %v1323, %v1323
  %v1346 = vcombine.high %v1330, %v1330
  %v1347 = vcombine.high %v1337, %v1337
  %v1348 = vcombine.high %v1344, %v1344
  %v1349 = vlaneseq
  %v1350 = vshrl.u32 %v1349, 7
  %v1351 = vsub.s32 0, %v1350
  %v1352 = vrot.slane %v1274, %v1351
  %v1353 = vlaneseq
  %v1354 = vshrl.u32 %v1353, 7
  %v1355 = vsub.s32 0, %v1354
  %v1356 = vrot.slane %v1288, %v1355
  %v1357 = vlaneseq
  %v1358 = vshrl.u32 %v1357, 7
  %v1359 = vsub.s32 0, %v1358
  %v1360 = vrot.slane %v1296, %v1359
  %v1361 = vlaneseq
  %v1362 = vshrl.u32 %v1361, 7
  %v1363 = vsub.s32 0, %v1362
  %v1364 = vrot.slane %v1298, %v1363
  %v1365 = vlaneseq
  %v1366 = vshrl.u32 %v1365, 7
  %v1367 = vsub.s32 0, %v1366
  %v1368 = vrot.slane %v1281, %v1367
  %v1369 = vlaneseq
  %v1370 = vshrl.u32 %v1369, 7
  %v1371 = vsub.s32 0, %v1370
  %v1372 = vrot.slane %v1295, %v1371
  %v1373 = vlaneseq
  %v1374 = vshrl.u32 %v1373, 7
  %v1375 = vsub.s32 0, %v1374
  %v1376 = vrot.slane %v1297, %v1375
  %v1377 = vlaneseq
  %v1378 = vshrl.u32 %v1377, 7
  %v1379 = vsub.s32 0, %v1378
  %v1380 = vrot.slane %v1299, %v1379
  %v1381 = vlaneseq
  %v1382 = vshrl.u32 %v1381, 7
  %v1383 = vsub.s32 0, %v1382
  %v1384 = vrot.slane %v1323, %v1383
  %v1385 = vlaneseq
  %v1386 = vshrl.u32 %v1385, 7
  %v1387 = vsub.s32 0, %v1386
  %v1388 = vrot.slane %v1337, %v1387
  %v1389 = vlaneseq
  %v1390 = vshrl.u32 %v1389, 7
  %v1391 = vsub.s32 0, %v1390
  %v1392 = vrot.slane %v1345, %v1391
  %v1393 = vlaneseq
  %v1394 = vshrl.u32 %v1393, 7
  %v1395 = vsub.s32 0, %v1394
  %v1396 = vrot.slane %v1347, %v1395
  %v1397 = vlaneseq
  %v1398 = vshrl.u32 %v1397, 7
  %v1399 = vsub.s32 0, %v1398
  %v1400 = vrot.slane %v1330, %v1399
  %v1401 = vlaneseq
  %v1402 = vshrl.u32 %v1401, 7
  %v1403 = vsub.s32 0, %v1402
  %v1404 = vrot.slane %v1344, %v1403
  %v1405 = vlaneseq
  %v1406 = vshrl.u32 %v1405, 7
  %v1407 = vsub.s32 0, %v1406
  %v1408 = vrot.slane %v1346, %v1407
  %v1409 = vlaneseq
  %v1410 = vshrl.u32 %v1409, 7
  %v1411 = vsub.s32 0, %v1410
  %v1412 = vrot.slane %v1348, %v1411
  %v1429 = vmul.f32 %v1217, %v1352
  %v1430 = vmul.f32 %v1218, %v1352
  %v1431 = vmul.f32 %v1219, %v1356
  %v1432 = vmul.f32 %v1220, %v1356
  %v1433 = vmul.f32 %v1221, %v1360
  %v1434 = vmul.f32 %v1222, %v1360
  %v1435 = vmul.f32 %v1223, %v1364
  %v1436 = vmul.f32 %v1224, %v1364
  %v1437 = vmul.f32 %v1225, %v1368
  %v1438 = vmul.f32 %v1226, %v1368
  %v1439 = vmul.f32 %v1227, %v1372
  %v1440 = vmul.f32 %v1228, %v1372
  %v1441 = vmul.f32 %v1229, %v1376
  %v1442 = vmul.f32 %v1230, %v1376
  %v1443 = vmul.f32 %v1231, %v1380
  %v1444 = vmul.f32 %v1232, %v1380
  %v1445 = vmul.f32 %v1233, %v1384
  %v1446 = vmul.f32 %v1234, %v1384
  %v1447 = vmul.f32 %v1235, %v1388
  %v1448 = vmul.f32 %v1236, %v1388
  %v1449 = vmul.f32 %v1237, %v1392
  %v1450 = vmul.f32 %v1238, %v1392
  %v1451 = vmul.f32 %v1239, %v1396
  %v1452 = vmul.f32 %v1240, %v1396
  %v1453 = vmul.f32 %v1241, %v1400
  %v1454 = vmul.f32 %v1242, %v1400
  %v1455 = vmul.f32 %v1243, %v1404
  %v1456 = vmul.f32 %v1244, %v1404
  %v1457 = vmul.f32 %v1245, %v1408
  %v1458 = vmul.f32 %v1246, %v1408
  %v1459 = vmul.f32 %v1247, %v1412
  %v1460 = vmul.f32 %v1248, %v1412
  %v1461 = vsel %vm556, %v1429, 0.0
  %v1462 = vsel %vm556, %v1431, 0.0
  %v1463 = vadd.f32 %v1461, %v1462
  %v1464 = vsel %vm556, %v1433, 0.0
  %v1465 = vadd.f32 %v1463, %v1464
  %v1466 = vsel %vm556, %v1435, 0.0
  %v1467 = vadd.f32 %v1465, %v1466
  %v1468 = vsel %vm556, %v1437, 0.0
  %v1469 = vadd.f32 %v1467, %v1468
  %v1470 = vsel %vm556, %v1439, 0.0
  %v1471 = vadd.f32 %v1469, %v1470
  %v1472 = vsel %vm556, %v1441, 0.0
  %v1473 = vadd.f32 %v1471, %v1472
  %v1474 = vsel %vm556, %v1443, 0.0
  %v1475 = vadd.f32 %v1473, %v1474
  %v1476 = vsel %vm556, %v1445, 0.0
  %v1477 = vadd.f32 %v1475, %v1476
  %v1478 = vsel %vm556, %v1447, 0.0
  %v1479 = vadd.f32 %v1477, %v1478
  %v1480 = vsel %vm556, %v1449, 0.0
  %v1481 = vadd.f32 %v1479, %v1480
  %v1482 = vsel %vm556, %v1451, 0.0
  %v1483 = vadd.f32 %v1481, %v1482
  %v1484 = vsel %vm556, %v1453, 0.0
  %v1485 = vadd.f32 %v1483, %v1484
  %v1486 = vsel %vm556, %v1455, 0.0
  %v1487 = vadd.f32 %v1485, %v1486
  %v1488 = vsel %vm556, %v1457, 0.0
  %v1489 = vadd.f32 %v1487, %v1488
  %v1490 = vsel %vm556, %v1459, 0.0
  %v1491 = vadd.f32 %v1489, %v1490
  %vm1492 = vcmask 123904
  %v1493 = vsel %vm1492, %v1430, 0.0
  %v1494 = vsel %vm1492, %v1432, 0.0
  %v1495 = vadd.f32 %v1493, %v1494
  %v1496 = vsel %vm1492, %v1434, 0.0
  %v1497 = vadd.f32 %v1495, %v1496
  %v1498 = vsel %vm1492, %v1436, 0.0
  %v1499 = vadd.f32 %v1497, %v1498
  %v1500 = vsel %vm1492, %v1438, 0.0
  %v1501 = vadd.f32 %v1499, %v1500
  %v1502 = vsel %vm1492, %v1440, 0.0
  %v1503 = vadd.f32 %v1501, %v1502
  %v1504 = vsel %vm1492, %v1442, 0.0
  %v1505 = vadd.f32 %v1503, %v1504
  %v1506 = vsel %vm1492, %v1444, 0.0
  %v1507 = vadd.f32 %v1505, %v1506
  %v1508 = vsel %vm1492, %v1446, 0.0
  %v1509 = vadd.f32 %v1507, %v1508
  %v1510 = vsel %vm1492, %v1448, 0.0
  %v1511 = vadd.f32 %v1509, %v1510
  %v1512 = vsel %vm1492, %v1450, 0.0
  %v1513 = vadd.f32 %v1511, %v1512
  %v1514 = vsel %vm1492, %v1452, 0.0
  %v1515 = vadd.f32 %v1513, %v1514
  %v1516 = vsel %vm1492, %v1454, 0.0
  %v1517 = vadd.f32 %v1515, %v1516
  %v1518 = vsel %vm1492, %v1456, 0.0
  %v1519 = vadd.f32 %v1517, %v1518
  %v1520 = vsel %vm1492, %v1458, 0.0
  %v1521 = vadd.f32 %v1519, %v1520
  %v1522 = vsel %vm1492, %v1460, 0.0
  %v1523 = vadd.f32 %v1521, %v1522
  %v1524 = vsel %vm556, %v1491, 0.0
  %1525 = vadd.xlane.f32.xlu0 %v1524
  %v1526 = vpop.xlane.xlu0 %1525
  %v1527 = vsel %vm1492, %v1523, 0.0
  %1528 = vadd.xlane.f32.xlu0 %v1527
  %v1529 = vpop.xlane.xlu0 %1528
  %1530 = vrot.lane.b32.xlu0 %v1352, 112
  %v1531 = vpop.permute.xlu0 %1530
  %1532 = vrot.lane.b32.xlu0 %v1356, 112
  %v1533 = vpop.permute.xlu0 %1532
  %1534 = vrot.lane.b32.xlu0 %v1360, 112
  %v1535 = vpop.permute.xlu0 %1534
  %1536 = vrot.lane.b32.xlu0 %v1364, 112
  %v1537 = vpop.permute.xlu0 %1536
  %1538 = vrot.lane.b32.xlu0 %v1368, 112
  %v1539 = vpop.permute.xlu0 %1538
  %1540 = vrot.lane.b32.xlu0 %v1372, 112
  %v1541 = vpop.permute.xlu0 %1540
  %1542 = vrot.lane.b32.xlu0 %v1376, 112
  %v1543 = vpop.permute.xlu0 %1542
  %1544 = vrot.lane.b32.xlu0 %v1380, 112
  %v1545 = vpop.permute.xlu0 %1544
  %1546 = vrot.lane.b32.xlu0 %v1384, 112
  %v1547 = vpop.permute.xlu0 %1546
  %1548 = vrot.lane.b32.xlu0 %v1388, 112
  %v1549 = vpop.permute.xlu0 %1548
  %1550 = vrot.lane.b32.xlu0 %v1392, 112
  %v1551 = vpop.permute.xlu0 %1550
  %1552 = vrot.lane.b32.xlu0 %v1396, 112
  %v1553 = vpop.permute.xlu0 %1552
  %1554 = vrot.lane.b32.xlu0 %v1400, 112
  %v1555 = vpop.permute.xlu0 %1554
  %1556 = vrot.lane.b32.xlu0 %v1404, 112
  %v1557 = vpop.permute.xlu0 %1556
  %1558 = vrot.lane.b32.xlu0 %v1408, 112
  %v1559 = vpop.permute.xlu0 %1558
  %1560 = vrot.lane.b32.xlu0 %v1412, 112
  %v1561 = vpop.permute.xlu0 %1560
  %v1578 = vmul.f32 %v1217, %v1531
  %v1579 = vmul.f32 %v1218, %v1531
  %v1580 = vmul.f32 %v1219, %v1533
  %v1581 = vmul.f32 %v1220, %v1533
  %v1582 = vmul.f32 %v1221, %v1535
  %v1583 = vmul.f32 %v1222, %v1535
  %v1584 = vmul.f32 %v1223, %v1537
  %v1585 = vmul.f32 %v1224, %v1537
  %v1586 = vmul.f32 %v1225, %v1539
  %v1587 = vmul.f32 %v1226, %v1539
  %v1588 = vmul.f32 %v1227, %v1541
  %v1589 = vmul.f32 %v1228, %v1541
  %v1590 = vmul.f32 %v1229, %v1543
  %v1591 = vmul.f32 %v1230, %v1543
  %v1592 = vmul.f32 %v1231, %v1545
  %v1593 = vmul.f32 %v1232, %v1545
  %v1594 = vmul.f32 %v1233, %v1547
  %v1595 = vmul.f32 %v1234, %v1547
  %v1596 = vmul.f32 %v1235, %v1549
  %v1597 = vmul.f32 %v1236, %v1549
  %v1598 = vmul.f32 %v1237, %v1551
  %v1599 = vmul.f32 %v1238, %v1551
  %v1600 = vmul.f32 %v1239, %v1553
  %v1601 = vmul.f32 %v1240, %v1553
  %v1602 = vmul.f32 %v1241, %v1555
  %v1603 = vmul.f32 %v1242, %v1555
  %v1604 = vmul.f32 %v1243, %v1557
  %v1605 = vmul.f32 %v1244, %v1557
  %v1606 = vmul.f32 %v1245, %v1559
  %v1607 = vmul.f32 %v1246, %v1559
  %v1608 = vmul.f32 %v1247, %v1561
  %v1609 = vmul.f32 %v1248, %v1561
  %v1610 = vsel %vm556, %v1578, 0.0
  %v1611 = vsel %vm556, %v1580, 0.0
  %v1612 = vadd.f32 %v1610, %v1611
  %v1613 = vsel %vm556, %v1582, 0.0
  %v1614 = vadd.f32 %v1612, %v1613
  %v1615 = vsel %vm556, %v1584, 0.0
  %v1616 = vadd.f32 %v1614, %v1615
  %v1617 = vsel %vm556, %v1586, 0.0
  %v1618 = vadd.f32 %v1616, %v1617
  %v1619 = vsel %vm556, %v1588, 0.0
  %v1620 = vadd.f32 %v1618, %v1619
  %v1621 = vsel %vm556, %v1590, 0.0
  %v1622 = vadd.f32 %v1620, %v1621
  %v1623 = vsel %vm556, %v1592, 0.0
  %v1624 = vadd.f32 %v1622, %v1623
  %v1625 = vsel %vm556, %v1594, 0.0
  %v1626 = vadd.f32 %v1624, %v1625
  %v1627 = vsel %vm556, %v1596, 0.0
  %v1628 = vadd.f32 %v1626, %v1627
  %v1629 = vsel %vm556, %v1598, 0.0
  %v1630 = vadd.f32 %v1628, %v1629
  %v1631 = vsel %vm556, %v1600, 0.0
  %v1632 = vadd.f32 %v1630, %v1631
  %v1633 = vsel %vm556, %v1602, 0.0
  %v1634 = vadd.f32 %v1632, %v1633
  %v1635 = vsel %vm556, %v1604, 0.0
  %v1636 = vadd.f32 %v1634, %v1635
  %v1637 = vsel %vm556, %v1606, 0.0
  %v1638 = vadd.f32 %v1636, %v1637
  %v1639 = vsel %vm556, %v1608, 0.0
  %v1640 = vadd.f32 %v1638, %v1639
  %v1641 = vsel %vm1492, %v1579, 0.0
  %v1642 = vsel %vm1492, %v1581, 0.0
  %v1643 = vadd.f32 %v1641, %v1642
  %v1644 = vsel %vm1492, %v1583, 0.0
  %v1645 = vadd.f32 %v1643, %v1644
  %v1646 = vsel %vm1492, %v1585, 0.0
  %v1647 = vadd.f32 %v1645, %v1646
  %v1648 = vsel %vm1492, %v1587, 0.0
  %v1649 = vadd.f32 %v1647, %v1648
  %v1650 = vsel %vm1492, %v1589, 0.0
  %v1651 = vadd.f32 %v1649, %v1650
  %v1652 = vsel %vm1492, %v1591, 0.0
  %v1653 = vadd.f32 %v1651, %v1652
  %v1654 = vsel %vm1492, %v1593, 0.0
  %v1655 = vadd.f32 %v1653, %v1654
  %v1656 = vsel %vm1492, %v1595, 0.0
  %v1657 = vadd.f32 %v1655, %v1656
  %v1658 = vsel %vm1492, %v1597, 0.0
  %v1659 = vadd.f32 %v1657, %v1658
  %v1660 = vsel %vm1492, %v1599, 0.0
  %v1661 = vadd.f32 %v1659, %v1660
  %v1662 = vsel %vm1492, %v1601, 0.0
  %v1663 = vadd.f32 %v1661, %v1662
  %v1664 = vsel %vm1492, %v1603, 0.0
  %v1665 = vadd.f32 %v1663, %v1664
  %v1666 = vsel %vm1492, %v1605, 0.0
  %v1667 = vadd.f32 %v1665, %v1666
  %v1668 = vsel %vm1492, %v1607, 0.0
  %v1669 = vadd.f32 %v1667, %v1668
  %v1670 = vsel %vm1492, %v1609, 0.0
  %v1671 = vadd.f32 %v1669, %v1670
  %v1672 = vsel %vm556, %v1640, 0.0
  %1673 = vadd.xlane.f32.xlu0 %v1672
  %v1674 = vpop.xlane.xlu0 %1673
  %v1675 = vsel %vm1492, %v1671, 0.0
  %1676 = vadd.xlane.f32.xlu0 %v1675
  %v1677 = vpop.xlane.xlu0 %1676
  %vm1678 = vcmask 7168
  %v1679 = vsel %vm1678, %v1526, %v1674
  %v1680 = vsel %vm1678, %v1529, %v1677
  %1681 = vset.pattern.permute.xlu0 54
  %1682 = vperm.xlu0 %1681, %v18
  %v1683 = vpop.permute.xlu0 %1682
  %1685 = vset.pattern.permute.xlu0 54
  %1686 = vperm.xlu0 %1685, %v19
  %v1687 = vpop.permute.xlu0 %1686
  %v1689 = vadd.f32 %v1679, %v1683
  %v1690 = vadd.f32 %v1680, %v1687
  %vm1691 = vcmask 15360
  %1692 = vst.msk [vmem:[%s4] sm:$0xff] %vm1691, %v1689
  %vm1693 = vcmask 9216
  %1694 = vst.msk [vmem:[%s4 + $0x8] sm:$0x3] %vm1693, %v1690
  // Predicated region
  $region18: #{i3d_forward.1} parent=0 // pred_check
    _
  $region19: #{i3d_forward.1} parent=0 // pred_check_branch
    %1696 = sbr.rel (0) target = $region21
  $region20: #{i3d_forward.1} parent=0 // pred_region
    _
  $region21: #{i3d_forward.1} parent=0 // pred_fallthru
    _
  // Predicated region
  $region22: #{i3d_forward.1} parent=0 // pred_check
    _
  $region23: #{i3d_forward.1} parent=0 // pred_check_branch
    %1698 = sbr.rel (0) target = $region25
  $region24: #{i3d_forward.1} parent=0 // pred_region
    _
  $region25: #{i3d_forward.1} parent=0 // pred_fallthru
    _

</llo_original>
